<compile_context>
chip_gen: v7x
topology: tpu7x:2x2x1
jax: 0.10.0
libtpu: 0.0.40
codegen_flags: <defaults>
</compile_context>

<pallas_src>
import functools

import jax
import jax.numpy as jnp
from jax.experimental import pallas as pl
from jax.experimental.pallas import tpu as pltpu

C_FEAT = 2048
L2N_EPS = 1e-6
BN_EPS = 1e-5


def _round_up(x, m):
    return ((x + m - 1) // m) * m


def cgd_kernel(feat_ref, wavg_ref, bavg_ref, wmax_ref, bmax_ref,
               outr_ref, outc_ref, sum_acc, max_acc,
               *, hw, thw, d1, inv_hw, needs_mask):
    s = pl.program_id(1)
    last = pl.num_programs(1) - 1

    @pl.when(s == 0)
    def _():
        sum_acc[...] = jnp.zeros_like(sum_acc)
        max_acc[...] = jnp.full_like(max_acc, -jnp.inf)

    # (TB, THW, C) tile; pooling partials accumulate in f32 (v5e-safe for bf16 input).
    feat = feat_ref[...].astype(jnp.float32)

    if needs_mask:
        # Mask only the final (partial) HW tile; hot tiles stay on the HBM roofline.
        @pl.when(s < last)
        def _():
            sum_acc[...] = sum_acc[...] + jnp.sum(feat, axis=1)
            max_acc[...] = jnp.maximum(max_acc[...], jnp.max(feat, axis=1))

        @pl.when(s == last)
        def _():
            row = jax.lax.broadcasted_iota(jnp.int32, (1, thw, 1), 1)
            valid = (s * thw + row) < hw
            # Select (not multiply-by-mask) so OOB garbage / NaN cannot propagate.
            sum_acc[...] = sum_acc[...] + jnp.sum(jnp.where(valid, feat, 0.0), axis=1)
            max_acc[...] = jnp.maximum(
                max_acc[...], jnp.max(jnp.where(valid, feat, -jnp.inf), axis=1))
    else:
        sum_acc[...] = sum_acc[...] + jnp.sum(feat, axis=1)
        max_acc[...] = jnp.maximum(max_acc[...], jnp.max(feat, axis=1))

    @pl.when(s == last)
    def _():
        # TODO(synk): on v7x + bf16 inputs the per-tile channel sum could be pushed
        #             onto the idle MXU (ones-vector dot) if the VALU slot binds.
        avg = (sum_acc[...] * inv_hw).astype(jnp.bfloat16)   # global average pool
        mx = max_acc[...].astype(jnp.bfloat16)               # global max pool

        # avg path: fcr1 + BN-folded fcc fused into one bf16 MXU pass (f32 accum).
        prod_a = jnp.dot(avg, wavg_ref[...],
                         preferred_element_type=jnp.float32) + bavg_ref[...]
        # max path: fcr2.
        prod_m = jnp.dot(mx, wmax_ref[...],
                         preferred_element_type=jnp.float32) + bmax_ref[...]

        y1 = prod_a[:, :d1]                  # padded cols are exactly 0
        yc = prod_a[:, d1:]
        y2 = prod_m

        n1 = jnp.sqrt(jnp.sum(y1 * y1, axis=-1, keepdims=True)) + L2N_EPS
        y1n = y1 / n1
        n2 = jnp.sqrt(jnp.sum(y2 * y2, axis=-1, keepdims=True)) + L2N_EPS
        y2n = y2 / n2

        # L2N of concat((y1n, y2n), -1): share the joint norm instead of
        # materializing an in-kernel concatenate.
        nr = jnp.sqrt(jnp.sum(y1n * y1n, axis=-1, keepdims=True)
                      + jnp.sum(y2n * y2n, axis=-1, keepdims=True)) + L2N_EPS
        inv_nr = 1.0 / nr
        outr_ref[:, :, :d1] = (y1n * inv_nr)[:, None, :]
        outr_ref[:, :, d1:] = (y2n * inv_nr)[:, None, :]
        outc_ref[...] = yc[:, None, :]


def _vmem_capacity_bytes():
    try:
        return int(pltpu.get_tpu_info().vmem_capacity_bytes)
    except Exception:
        return 64 * 1024 * 1024   # conservative fallback (v7x per-TensorCore VMEM)


def _pick_tb(B):
    """Largest divisor of B (<= 8) that leaves >= 2 blocks on the parallel axis."""
    if B <= 1:
        return 1
    cap = min(8, B // 2)
    for tb in range(cap, 0, -1):
        if B % tb == 0:
            return tb
    return 1


def _choose_tiles(B, HW, itemsize, per_buf_budget):
    """Pick (TB, THW, align) so a double-buffered feature tile fits the budget."""
    TB = _pick_tb(B)
    align = 8 * max(1, 4 // itemsize)      # 8 (f32) / 16 (bf16) / 32 (int8, fp8)
    rows = max(align, per_buf_budget // (TB * C_FEAT * itemsize))
    if HW <= rows:
        return TB, HW, align               # single HW tile, no masking needed
    return TB, max(align, (rows // align) * align), align


def cgd_forward(x_nhwc, params, *, thw=None):
    """x_nhwc: (B, H, W, 2048) feature map (NHWC; f32 or bf16)."""
    B, H, W, C = x_nhwc.shape
    assert C == C_FEAT
    HW = H * W
    feat = x_nhwc.reshape(B, HW, C)        # free reshape, no transpose

    f32 = jnp.float32
    bf16 = jnp.bfloat16
    d = params["fcr1_w"].shape[0]
    classes = params["fcc_w"].shape[0]
    D1 = _round_up(d, 128)
    D2 = _round_up(d, 128)
    DC = _round_up(classes, 128)

    # PyTorch Linear stores W as (out, in); transpose to (in, out) for x @ W.
    w1 = params["fcr1_w"].astype(f32).T          # (2048, d)
    w2 = params["fcr2_w"].astype(f32).T          # (2048, d)
    wc = params["fcc_w"].astype(f32).T           # (2048, classes)

    # Fold eval-mode BatchNorm2d (applied to the pooled avg feature) into fcc.
    s_bn = params["bn_gamma"] / jnp.sqrt(params["bn_var"] + BN_EPS)
    off = params["bn_beta"] - params["bn_mean"] * s_bn
    wc_f = wc * s_bn[:, None]
    bc_f = params["fcc_b"] + off @ wc

    def pad_cols(m, dpad):
        return jnp.pad(m, ((0, 0), (0, dpad - m.shape[1])))

    # Lane-dense fused RHS for the avg path + max-path RHS, in bf16 (halves weight
    # HBM traffic / VMEM; dots accumulate in f32).  Biases stay f32.
    w_avg = jnp.concatenate([pad_cols(w1, D1), pad_cols(wc_f, DC)], axis=1).astype(bf16)
    w_max = pad_cols(w2, D2).astype(bf16)
    b_avg = jnp.concatenate([jnp.pad(params["fcr1_b"].astype(f32), (0, D1 - d)),
                             jnp.pad(bc_f.astype(f32), (0, DC - classes))]
                            ).reshape(1, D1 + DC)
    b_max = jnp.pad(params["fcr2_b"].astype(f32), (0, D2 - d)).reshape(1, D2)

    # Generation-aware VMEM budget: 128 MiB chips (v5e/v6e) -> 16 MiB tiles / 96 MiB
    # limit; 64 MiB chips (v7x) -> 8 MiB tiles / 48 MiB limit.
    vmem_cap = _vmem_capacity_bytes()
    if vmem_cap >= 100 * 1024 * 1024:
        per_buf_budget, vmem_limit = 16 * 1024 * 1024, 96 * 1024 * 1024
    else:
        per_buf_budget, vmem_limit = 8 * 1024 * 1024, 48 * 1024 * 1024

    itemsize = jnp.dtype(feat.dtype).itemsize
    TB, THW_auto, align = _choose_tiles(B, HW, itemsize, per_buf_budget)
    if thw is None:
        THW = THW_auto
    else:
        # Validate/round explicit tile sizes so the (8,128) BlockSpec rule holds.
        THW = HW if thw >= HW else max(align, _round_up(thw, align))
    num_hw = pl.cdiv(HW, THW)
    needs_mask = (HW % THW) != 0

    kernel = functools.partial(
        cgd_kernel, hw=HW, thw=THW, d1=D1, inv_hw=1.0 / HW,
        needs_mask=needs_mask)

    def run(single_buffer_weights):
        const_kw = ({"pipeline_mode": pl.Buffered(1)}
                    if single_buffer_weights else {})
        in_specs = [
            pl.BlockSpec((TB, THW, C_FEAT), lambda b, s: (b, s, 0)),
            pl.BlockSpec((C_FEAT, D1 + DC), lambda b, s: (0, 0), **const_kw),
            pl.BlockSpec((1, D1 + DC), lambda b, s: (0, 0), **const_kw),
            pl.BlockSpec((C_FEAT, D2), lambda b, s: (0, 0), **const_kw),
            pl.BlockSpec((1, D2), lambda b, s: (0, 0), **const_kw),
        ]
        out_specs = (
            pl.BlockSpec((TB, 1, D1 + D2), lambda b, s: (b, 0, 0)),
            pl.BlockSpec((TB, 1, DC), lambda b, s: (b, 0, 0)),
        )
        return pl.pallas_call(
            kernel,
            grid=(B // TB, num_hw),
            in_specs=in_specs,
            out_specs=out_specs,
            out_shape=(jax.ShapeDtypeStruct((B, 1, D1 + D2), f32),
                       jax.ShapeDtypeStruct((B, 1, DC), f32)),
            scratch_shapes=[pltpu.VMEM((TB, C_FEAT), f32),    # running sum
                            pltpu.VMEM((TB, C_FEAT), f32)],   # running max
            compiler_params=pltpu.CompilerParams(
                dimension_semantics=("parallel", "arbitrary"),
                vmem_limit_bytes=vmem_limit),
        )(feat, w_avg, b_avg, w_max, b_max)

    try:
        outr_pad, outc_pad = run(True)
    except Exception:
        # pl.Buffered(1) single-buffering of constants unsupported on this jax
        # version; fall back to default double-buffering (same numerics).
        outr_pad, outc_pad = run(False)

    # Strip padding and match PyTorch shapes: (B,1,1,output_dim), (B,1,1,classes).
    if D1 == d:
        outr = outr_pad[:, 0, :2 * d]
    else:
        outr = jnp.concatenate([outr_pad[:, 0, :d], outr_pad[:, 0, D1:D1 + d]], axis=-1)
    outc = outc_pad[:, 0, :classes]
    return outr.reshape(B, 1, 1, 2 * d), outc.reshape(B, 1, 1, classes)


def cgd_reference(x_nhwc, params):
    """Pure-JAX reference of the same forward pass (for validation)."""
    B = x_nhwc.shape[0]
    xf = x_nhwc.astype(jnp.float32)
    avg = xf.mean(axis=(1, 2))
    mx = xf.max(axis=(1, 2))
    y1 = avg @ params["fcr1_w"].T + params["fcr1_b"]
    y1 = y1 / (jnp.linalg.norm(y1, axis=-1, keepdims=True) + L2N_EPS)
    y2 = mx @ params["fcr2_w"].T + params["fcr2_b"]
    y2 = y2 / (jnp.linalg.norm(y2, axis=-1, keepdims=True) + L2N_EPS)
    yr = jnp.concatenate([y1, y2], axis=-1)
    yr = yr / (jnp.linalg.norm(yr, axis=-1, keepdims=True) + L2N_EPS)
    xb = (avg - params["bn_mean"]) / jnp.sqrt(params["bn_var"] + BN_EPS)
    xb = xb * params["bn_gamma"] + params["bn_beta"]
    yc = xb @ params["fcc_w"].T + params["fcc_b"]
    return yr.reshape(B, 1, 1, -1), yc.reshape(B, 1, 1, -1)


def init_params(key, output_dim=256, classes=16):
    d = output_dim // 2  # len(combination) == 2
    ks = jax.random.split(key, 10)
    return {
        "fcr1_w": 0.02 * jax.random.normal(ks[0], (d, C_FEAT), jnp.float32),
        "fcr1_b": 0.01 * jax.random.normal(ks[1], (d,), jnp.float32),
        "fcr2_w": 0.02 * jax.random.normal(ks[2], (d, C_FEAT), jnp.float32),
        "fcr2_b": 0.01 * jax.random.normal(ks[3], (d,), jnp.float32),
        "fcc_w": 0.02 * jax.random.normal(ks[4], (classes, C_FEAT), jnp.float32),
        "fcc_b": 0.01 * jax.random.normal(ks[5], (classes,), jnp.float32),
        "bn_gamma": 1.0 + 0.1 * jax.random.normal(ks[6], (C_FEAT,), jnp.float32),
        "bn_beta": 0.1 * jax.random.normal(ks[7], (C_FEAT,), jnp.float32),
        "bn_mean": 0.1 * jax.random.normal(ks[8], (C_FEAT,), jnp.float32),
        "bn_var": 0.5 + jnp.abs(jax.random.normal(ks[9], (C_FEAT,), jnp.float32)),
    }


if __name__ == "__main__":
    key = jax.random.PRNGKey(0)
    k_x1, k_x2, k_p = jax.random.split(key, 3)

    output_dim, classes = 256, 16
    params = init_params(k_p, output_dim=output_dim, classes=classes)

    # Config 1 (f32): TB=1 (2 parallel blocks), multi-tile HW reduction with a
    # masked partial last tile (explicit thw=64).
    B1, H1, W1 = 2, 14, 14
    x1 = jax.random.normal(k_x1, (B1, H1, W1, C_FEAT), jnp.float32)
    outr1, outc1 = cgd_forward(x1, params, thw=64)
    jax.block_until_ready((outr1, outc1))
    ref_r1, ref_c1 = cgd_reference(x1, params)
    assert outr1.shape == (B1, 1, 1, output_dim) and outc1.shape == (B1, 1, 1, classes)
    assert jnp.allclose(outr1, ref_r1, rtol=1e-2, atol=1e-2)
    assert jnp.allclose(outc1, ref_c1, rtol=1e-2, atol=1e-2)

    # Config 2 (bf16 feature map): TB=4 (2 parallel blocks), single HW tile,
    # f32 accumulation, bf16 weights.
    B2, H2, W2 = 8, 7, 7
    x2 = jax.random.normal(k_x2, (B2, H2, W2, C_FEAT), jnp.float32).astype(jnp.bfloat16)
    outr2, outc2 = cgd_forward(x2, params)
    jax.block_until_ready((outr2, outc2))
    ref_r2, ref_c2 = cgd_reference(x2, params)
    assert jnp.allclose(outr2, ref_r2, rtol=2e-2, atol=2e-2)
    assert jnp.allclose(outc2, ref_c2, rtol=2e-2, atol=2e-2)

    print("KERNEL_OK")
</pallas_src>

<mosaic_0001>
module attributes {stable_mosaic.version = 11 : i64} {
  func.func @cgd_kernel(%arg0: i32, %arg1: i32, %arg2: memref<1x64x2048xf32, #tpu.memory_space<vmem>>, %arg3: memref<2048x256xbf16, #tpu.memory_space<vmem>>, %arg4: memref<1x256xf32, #tpu.memory_space<vmem>>, %arg5: memref<2048x128xbf16, #tpu.memory_space<vmem>>, %arg6: memref<1x128xf32, #tpu.memory_space<vmem>>, %arg7: memref<1x1x256xf32, #tpu.memory_space<vmem>>, %arg8: memref<1x1x128xf32, #tpu.memory_space<vmem>>, %arg9: memref<1x2048xf32, #tpu.memory_space<vmem>>, %arg10: memref<1x2048xf32, #tpu.memory_space<vmem>>) attributes {dimension_semantics = [#tpu.dimension_semantics<parallel>, #tpu.dimension_semantics<arbitrary>], iteration_bounds = array<i64: 2, 4>, scalar_prefetch = 0 : i64, scratch_operands = 2 : i64, tpu.core_type = #tpu.core_type<tc>, window_params = [{transform_indices = @transform_0, window_bounds = array<i64: 1, 64, 2048>}, {pipeline_mode = #tpu.pipeline_mode<synchronous>, transform_indices = @transform_1, window_bounds = array<i64: 2048, 256>}, {pipeline_mode = #tpu.pipeline_mode<synchronous>, transform_indices = @transform_2, window_bounds = array<i64: 1, 256>}, {pipeline_mode = #tpu.pipeline_mode<synchronous>, transform_indices = @transform_3, window_bounds = array<i64: 2048, 128>}, {pipeline_mode = #tpu.pipeline_mode<synchronous>, transform_indices = @transform_4, window_bounds = array<i64: 1, 128>}, {transform_indices = @transform_5, window_bounds = array<i64: 1, 1, 256>}, {transform_indices = @transform_6, window_bounds = array<i64: 1, 1, 128>}]} {
    %c0_i32 = arith.constant 0 : i32
    %0 = arith.cmpi eq, %arg1, %c0_i32 : i32
    %1 = arith.extui %0 : i1 to i32
    %c0_i32_0 = arith.constant 0 : i32
    %2 = arith.cmpi ne, %1, %c0_i32_0 : i32
    scf.if %2 {
      %cst = arith.constant 0.000000e+00 : f32
      %13 = vector.broadcast %cst : f32 to vector<1x2048xf32>
      %c0_8 = arith.constant 0 : index
      %c0_9 = arith.constant 0 : index
      %14 = vector.load %arg9[%c0_8, %c0_9] : memref<1x2048xf32, #tpu.memory_space<vmem>>, vector<1x2048xf32>
      tpu.vector_store %arg9[%c0_8, %c0_9], %13 {strides = array<i32>} : memref<1x2048xf32, #tpu.memory_space<vmem>>, vector<1x2048xf32>,
      %cst_10 = arith.constant 0xFF800000 : f32
      %15 = vector.broadcast %cst_10 : f32 to vector<1x2048xf32>
      %c0_11 = arith.constant 0 : index
      %c0_12 = arith.constant 0 : index
      %16 = vector.load %arg10[%c0_11, %c0_12] : memref<1x2048xf32, #tpu.memory_space<vmem>>, vector<1x2048xf32>
      tpu.vector_store %arg10[%c0_11, %c0_12], %15 {strides = array<i32>} : memref<1x2048xf32, #tpu.memory_space<vmem>>, vector<1x2048xf32>,
    } else {
    }
    %c0 = arith.constant 0 : index
    %c0_1 = arith.constant 0 : index
    %c0_2 = arith.constant 0 : index
    %3 = vector.load %arg2[%c0, %c0_1, %c0_2] : memref<1x64x2048xf32, #tpu.memory_space<vmem>>, vector<1x64x2048xf32>
    %c3_i32 = arith.constant 3 : i32
    %4 = arith.cmpi slt, %arg1, %c3_i32 : i32
    %5 = arith.extui %4 : i1 to i32
    %c0_i32_3 = arith.constant 0 : i32
    %6 = arith.cmpi ne, %5, %c0_i32_3 : i32
    scf.if %6 {
      %c0_8 = arith.constant 0 : index
      %c0_9 = arith.constant 0 : index
      %13 = vector.load %arg9[%c0_8, %c0_9] : memref<1x2048xf32, #tpu.memory_space<vmem>>, vector<1x2048xf32>
      %cst = arith.constant dense<0.000000e+00> : vector<1x2048xf32>
      %14 = vector.multi_reduction <add>, %3, %cst [1] : vector<1x64x2048xf32> to vector<1x2048xf32>
      %15 = arith.addf %13, %14 : vector<1x2048xf32>
      %c0_10 = arith.constant 0 : index
      %c0_11 = arith.constant 0 : index
      %16 = vector.load %arg9[%c0_10, %c0_11] : memref<1x2048xf32, #tpu.memory_space<vmem>>, vector<1x2048xf32>
      tpu.vector_store %arg9[%c0_10, %c0_11], %15 {strides = array<i32>} : memref<1x2048xf32, #tpu.memory_space<vmem>>, vector<1x2048xf32>,
      %c0_12 = arith.constant 0 : index
      %c0_13 = arith.constant 0 : index
      %17 = vector.load %arg10[%c0_12, %c0_13] : memref<1x2048xf32, #tpu.memory_space<vmem>>, vector<1x2048xf32>
      %cst_14 = arith.constant dense<0xFF800000> : vector<1x2048xf32>
      %18 = vector.multi_reduction <maximumf>, %3, %cst_14 [1] : vector<1x64x2048xf32> to vector<1x2048xf32>
      %19 = arith.maximumf %17, %18 : vector<1x2048xf32>
      %c0_15 = arith.constant 0 : index
      %c0_16 = arith.constant 0 : index
      %20 = vector.load %arg10[%c0_15, %c0_16] : memref<1x2048xf32, #tpu.memory_space<vmem>>, vector<1x2048xf32>
      tpu.vector_store %arg10[%c0_15, %c0_16], %19 {strides = array<i32>} : memref<1x2048xf32, #tpu.memory_space<vmem>>, vector<1x2048xf32>,
    } else {
    }
    %c3_i32_4 = arith.constant 3 : i32
    %7 = arith.cmpi eq, %arg1, %c3_i32_4 : i32
    %8 = arith.extui %7 : i1 to i32
    %c0_i32_5 = arith.constant 0 : i32
    %9 = arith.cmpi ne, %8, %c0_i32_5 : i32
    scf.if %9 {
      %13 = tpu.iota {dimensions = array<i32: 1>} : vector<1x64x1xi32>
      %c64_i32 = arith.constant 64 : i32
      %14 = arith.muli %arg1, %c64_i32 : i32
      %15 = vector.broadcast %14 : i32 to vector<1x64x1xi32>
      %16 = arith.addi %15, %13 : vector<1x64x1xi32>
      %c196_i32 = arith.constant 196 : i32
      %17 = vector.broadcast %c196_i32 : i32 to vector<1x64x1xi32>
      %18 = arith.cmpi slt, %16, %17 : vector<1x64x1xi32>
      %c0_8 = arith.constant 0 : index
      %c0_9 = arith.constant 0 : index
      %19 = vector.load %arg9[%c0_8, %c0_9] : memref<1x2048xf32, #tpu.memory_space<vmem>>, vector<1x2048xf32>
      %cst = arith.constant 0.000000e+00 : f32
      %20 = vector.shape_cast %18 : vector<1x64x1xi1> to vector<1x64x1xi1>
      %21 = vector.broadcast %20 : vector<1x64x1xi1> to vector<1x64x2048xi1>
      %22 = vector.broadcast %cst : f32 to vector<1x64x2048xf32>
      %23 = arith.select %21, %3, %22 : vector<1x64x2048xi1>, vector<1x64x2048xf32>
      %cst_10 = arith.constant dense<0.000000e+00> : vector<1x2048xf32>
      %24 = vector.multi_reduction <add>, %23, %cst_10 [1] : vector<1x64x2048xf32> to vector<1x2048xf32>
      %25 = arith.addf %19, %24 : vector<1x2048xf32>
      %c0_11 = arith.constant 0 : index
      %c0_12 = arith.constant 0 : index
      %26 = vector.load %arg9[%c0_11, %c0_12] : memref<1x2048xf32, #tpu.memory_space<vmem>>, vector<1x2048xf32>
      tpu.vector_store %arg9[%c0_11, %c0_12], %25 {strides = array<i32>} : memref<1x2048xf32, #tpu.memory_space<vmem>>, vector<1x2048xf32>,
      %c0_13 = arith.constant 0 : index
      %c0_14 = arith.constant 0 : index
      %27 = vector.load %arg10[%c0_13, %c0_14] : memref<1x2048xf32, #tpu.memory_space<vmem>>, vector<1x2048xf32>
      %cst_15 = arith.constant 0xFF800000 : f32
      %28 = vector.shape_cast %18 : vector<1x64x1xi1> to vector<1x64x1xi1>
      %29 = vector.broadcast %28 : vector<1x64x1xi1> to vector<1x64x2048xi1>
      %30 = vector.broadcast %cst_15 : f32 to vector<1x64x2048xf32>
      %31 = arith.select %29, %3, %30 : vector<1x64x2048xi1>, vector<1x64x2048xf32>
      %cst_16 = arith.constant dense<0xFF800000> : vector<1x2048xf32>
      %32 = vector.multi_reduction <maximumf>, %31, %cst_16 [1] : vector<1x64x2048xf32> to vector<1x2048xf32>
      %33 = arith.maximumf %27, %32 : vector<1x2048xf32>
      %c0_17 = arith.constant 0 : index
      %c0_18 = arith.constant 0 : index
      %34 = vector.load %arg10[%c0_17, %c0_18] : memref<1x2048xf32, #tpu.memory_space<vmem>>, vector<1x2048xf32>
      tpu.vector_store %arg10[%c0_17, %c0_18], %33 {strides = array<i32>} : memref<1x2048xf32, #tpu.memory_space<vmem>>, vector<1x2048xf32>,
    } else {
    }
    %c3_i32_6 = arith.constant 3 : i32
    %10 = arith.cmpi eq, %arg1, %c3_i32_6 : i32
    %11 = arith.extui %10 : i1 to i32
    %c0_i32_7 = arith.constant 0 : i32
    %12 = arith.cmpi ne, %11, %c0_i32_7 : i32
    scf.if %12 {
      %c0_8 = arith.constant 0 : index
      %c0_9 = arith.constant 0 : index
      %13 = vector.load %arg9[%c0_8, %c0_9] : memref<1x2048xf32, #tpu.memory_space<vmem>>, vector<1x2048xf32>
      %cst = arith.constant 0.00510204071 : f32
      %14 = vector.broadcast %cst : f32 to vector<1x2048xf32>
      %15 = arith.mulf %13, %14 : vector<1x2048xf32>
      %16 = arith.truncf %15 : vector<1x2048xf32> to vector<1x2048xbf16>
      %c0_10 = arith.constant 0 : index
      %c0_11 = arith.constant 0 : index
      %17 = vector.load %arg10[%c0_10, %c0_11] : memref<1x2048xf32, #tpu.memory_space<vmem>>, vector<1x2048xf32>
      %18 = arith.truncf %17 : vector<1x2048xf32> to vector<1x2048xbf16>
      %c0_12 = arith.constant 0 : index
      %c0_13 = arith.constant 0 : index
      %19 = vector.load %arg3[%c0_12, %c0_13] : memref<2048x256xbf16, #tpu.memory_space<vmem>>, vector<2048x256xbf16>
      %cst_14 = arith.constant dense<0.000000e+00> : vector<1x256xf32>
      %20 = tpu.matmul %16, %19, %cst_14 {dimension_numbers = #tpu.dot_dimension_numbers<[1], [0], [0], [1], [0, 0, 1, 1], [], []>} : vector<1x2048xbf16>, vector<2048x256xbf16>, vector<1x256xf32> -> vector<1x256xf32>
      %c0_15 = arith.constant 0 : index
      %c0_16 = arith.constant 0 : index
      %21 = vector.load %arg4[%c0_15, %c0_16] : memref<1x256xf32, #tpu.memory_space<vmem>>, vector<1x256xf32>
      %22 = arith.addf %20, %21 : vector<1x256xf32>
      %c0_17 = arith.constant 0 : index
      %c0_18 = arith.constant 0 : index
      %23 = vector.load %arg5[%c0_17, %c0_18] : memref<2048x128xbf16, #tpu.memory_space<vmem>>, vector<2048x128xbf16>
      %cst_19 = arith.constant dense<0.000000e+00> : vector<1x128xf32>
      %24 = tpu.matmul %18, %23, %cst_19 {dimension_numbers = #tpu.dot_dimension_numbers<[1], [0], [0], [1], [0, 0, 1, 1], [], []>} : vector<1x2048xbf16>, vector<2048x128xbf16>, vector<1x128xf32> -> vector<1x128xf32>
      %c0_20 = arith.constant 0 : index
      %c0_21 = arith.constant 0 : index
      %25 = vector.load %arg6[%c0_20, %c0_21] : memref<1x128xf32, #tpu.memory_space<vmem>>, vector<1x128xf32>
      %26 = arith.addf %24, %25 : vector<1x128xf32>
      %27 = vector.extract_strided_slice %22 {offsets = [0, 0], sizes = [1, 128], strides = [1, 1]} : vector<1x256xf32> to vector<1x128xf32>
      %28 = vector.extract_strided_slice %22 {offsets = [0, 128], sizes = [1, 128], strides = [1, 1]} : vector<1x256xf32> to vector<1x128xf32>
      %29 = arith.mulf %27, %27 : vector<1x128xf32>
      %cst_22 = arith.constant dense<0.000000e+00> : vector<1xf32>
      %30 = vector.multi_reduction <add>, %29, %cst_22 [1] : vector<1x128xf32> to vector<1xf32>
      %31 = vector.shape_cast %30 : vector<1xf32> to vector<1x1xf32>
      %32 = math.sqrt %31 : vector<1x1xf32>
      %cst_23 = arith.constant 9.99999997E-7 : f32
      %33 = vector.broadcast %cst_23 : f32 to vector<1x1xf32>
      %34 = arith.addf %32, %33 : vector<1x1xf32>
      %35 = vector.broadcast %34 : vector<1x1xf32> to vector<1x128xf32>
      %36 = arith.divf %27, %35 : vector<1x128xf32>
      %37 = arith.mulf %26, %26 : vector<1x128xf32>
      %cst_24 = arith.constant dense<0.000000e+00> : vector<1xf32>
      %38 = vector.multi_reduction <add>, %37, %cst_24 [1] : vector<1x128xf32> to vector<1xf32>
      %39 = vector.shape_cast %38 : vector<1xf32> to vector<1x1xf32>
      %40 = math.sqrt %39 : vector<1x1xf32>
      %cst_25 = arith.constant 9.99999997E-7 : f32
      %41 = vector.broadcast %cst_25 : f32 to vector<1x1xf32>
      %42 = arith.addf %40, %41 : vector<1x1xf32>
      %43 = vector.broadcast %42 : vector<1x1xf32> to vector<1x128xf32>
      %44 = arith.divf %26, %43 : vector<1x128xf32>
      %45 = arith.mulf %36, %36 : vector<1x128xf32>
      %cst_26 = arith.constant dense<0.000000e+00> : vector<1xf32>
      %46 = vector.multi_reduction <add>, %45, %cst_26 [1] : vector<1x128xf32> to vector<1xf32>
      %47 = vector.shape_cast %46 : vector<1xf32> to vector<1x1xf32>
      %48 = arith.mulf %44, %44 : vector<1x128xf32>
      %cst_27 = arith.constant dense<0.000000e+00> : vector<1xf32>
      %49 = vector.multi_reduction <add>, %48, %cst_27 [1] : vector<1x128xf32> to vector<1xf32>
      %50 = vector.shape_cast %49 : vector<1xf32> to vector<1x1xf32>
      %51 = arith.addf %47, %50 : vector<1x1xf32>
      %52 = math.sqrt %51 : vector<1x1xf32>
      %cst_28 = arith.constant 9.99999997E-7 : f32
      %53 = vector.broadcast %cst_28 : f32 to vector<1x1xf32>
      %54 = arith.addf %52, %53 : vector<1x1xf32>
      %cst_29 = arith.constant 1.000000e+00 : f32
      %55 = vector.broadcast %cst_29 : f32 to vector<1x1xf32>
      %56 = arith.divf %55, %54 : vector<1x1xf32>
      %57 = vector.broadcast %56 : vector<1x1xf32> to vector<1x128xf32>
      %58 = arith.mulf %36, %57 : vector<1x128xf32>
      %59 = vector.shape_cast %58 : vector<1x128xf32> to vector<1x1x128xf32>
      %c0_30 = arith.constant 0 : index
      %c0_31 = arith.constant 0 : index
      %c0_32 = arith.constant 0 : index
      %60 = vector.load %arg7[%c0_30, %c0_31, %c0_32] : memref<1x1x256xf32, #tpu.memory_space<vmem>>, vector<1x1x128xf32>
      tpu.vector_store %arg7[%c0_30, %c0_31, %c0_32], %59 {strides = array<i32>} : memref<1x1x256xf32, #tpu.memory_space<vmem>>, vector<1x1x128xf32>,
      %61 = vector.broadcast %56 : vector<1x1xf32> to vector<1x128xf32>
      %62 = arith.mulf %44, %61 : vector<1x128xf32>
      %63 = vector.shape_cast %62 : vector<1x128xf32> to vector<1x1x128xf32>
      %c0_33 = arith.constant 0 : index
      %c0_34 = arith.constant 0 : index
      %c128 = arith.constant 128 : index
      %64 = vector.load %arg7[%c0_33, %c0_34, %c128] : memref<1x1x256xf32, #tpu.memory_space<vmem>>, vector<1x1x128xf32>
      tpu.vector_store %arg7[%c0_33, %c0_34, %c128], %63 {strides = array<i32>} : memref<1x1x256xf32, #tpu.memory_space<vmem>>, vector<1x1x128xf32>,
      %65 = vector.shape_cast %28 : vector<1x128xf32> to vector<1x1x128xf32>
      %c0_35 = arith.constant 0 : index
      %c0_36 = arith.constant 0 : index
      %c0_37 = arith.constant 0 : index
      %66 = vector.load %arg8[%c0_35, %c0_36, %c0_37] : memref<1x1x128xf32, #tpu.memory_space<vmem>>, vector<1x1x128xf32>
      tpu.vector_store %arg8[%c0_35, %c0_36, %c0_37], %65 {strides = array<i32>} : memref<1x1x128xf32, #tpu.memory_space<vmem>>, vector<1x1x128xf32>,
    } else {
    }
    return
  }
  func.func @transform_0(%arg0: i32, %arg1: i32) -> (i32, i32, i32) {
    %c0_i32 = arith.constant 0 : i32
    %c0_i32_0 = arith.constant 0 : i32
    return %arg0, %arg1, %c0_i32 : i32, i32, i32
  }
  func.func @transform_1(%arg0: i32, %arg1: i32) -> (i32, i32) {
    %c0_i32 = arith.constant 0 : i32
    %c0_i32_0 = arith.constant 0 : i32
    %c0_i32_1 = arith.constant 0 : i32
    return %c0_i32, %c0_i32_0 : i32, i32
  }
  func.func @transform_2(%arg0: i32, %arg1: i32) -> (i32, i32) {
    %c0_i32 = arith.constant 0 : i32
    %c0_i32_0 = arith.constant 0 : i32
    %c0_i32_1 = arith.constant 0 : i32
    return %c0_i32, %c0_i32_0 : i32, i32
  }
  func.func @transform_3(%arg0: i32, %arg1: i32) -> (i32, i32) {
    %c0_i32 = arith.constant 0 : i32
    %c0_i32_0 = arith.constant 0 : i32
    %c0_i32_1 = arith.constant 0 : i32
    return %c0_i32, %c0_i32_0 : i32, i32
  }
  func.func @transform_4(%arg0: i32, %arg1: i32) -> (i32, i32) {
    %c0_i32 = arith.constant 0 : i32
    %c0_i32_0 = arith.constant 0 : i32
    %c0_i32_1 = arith.constant 0 : i32
    return %c0_i32, %c0_i32_0 : i32, i32
  }
  func.func @transform_5(%arg0: i32, %arg1: i32) -> (i32, i32, i32) {
    %c0_i32 = arith.constant 0 : i32
    %c0_i32_0 = arith.constant 0 : i32
    %c0_i32_1 = arith.constant 0 : i32
    return %arg0, %c0_i32, %c0_i32_0 : i32, i32, i32
  }
  func.func @transform_6(%arg0: i32, %arg1: i32) -> (i32, i32, i32) {
    %c0_i32 = arith.constant 0 : i32
    %c0_i32_0 = arith.constant 0 : i32
    %c0_i32_1 = arith.constant 0 : i32
    return %arg0, %c0_i32, %c0_i32_0 : i32, i32, i32
  }
}

module attributes {stable_mosaic.version = 11 : i64} {
  func.func @cgd_kernel(%arg0: i32, %arg1: i32, %arg2: memref<1x64x2048xf32, #tpu.memory_space<vmem>>, %arg3: memref<2048x256xbf16, #tpu.memory_space<vmem>>, %arg4: memref<1x256xf32, #tpu.memory_space<vmem>>, %arg5: memref<2048x128xbf16, #tpu.memory_space<vmem>>, %arg6: memref<1x128xf32, #tpu.memory_space<vmem>>, %arg7: memref<1x1x256xf32, #tpu.memory_space<vmem>>, %arg8: memref<1x1x128xf32, #tpu.memory_space<vmem>>, %arg9: memref<1x2048xf32, #tpu.memory_space<vmem>>, %arg10: memref<1x2048xf32, #tpu.memory_space<vmem>>) attributes {dimension_semantics = [#tpu.dimension_semantics<parallel>, #tpu.dimension_semantics<arbitrary>], iteration_bounds = array<i64: 2, 4>, scalar_prefetch = 0 : i64, scratch_operands = 2 : i64, tpu.core_type = #tpu.core_type<tc>, window_params = [{transform_indices = @transform_0, window_bounds = array<i64: 1, 64, 2048>}, {pipeline_mode = #tpu.pipeline_mode<synchronous>, transform_indices = @transform_1, window_bounds = array<i64: 2048, 256>}, {pipeline_mode = #tpu.pipeline_mode<synchronous>, transform_indices = @transform_2, window_bounds = array<i64: 1, 256>}, {pipeline_mode = #tpu.pipeline_mode<synchronous>, transform_indices = @transform_3, window_bounds = array<i64: 2048, 128>}, {pipeline_mode = #tpu.pipeline_mode<synchronous>, transform_indices = @transform_4, window_bounds = array<i64: 1, 128>}, {transform_indices = @transform_5, window_bounds = array<i64: 1, 1, 256>}, {transform_indices = @transform_6, window_bounds = array<i64: 1, 1, 128>}]} {
    %c0_i32 = arith.constant 0 : i32
    %0 = arith.cmpi eq, %arg1, %c0_i32 : i32
    %1 = arith.extui %0 : i1 to i32
    %c0_i32_0 = arith.constant 0 : i32
    %2 = arith.cmpi ne, %1, %c0_i32_0 : i32
    scf.if %2 {
      %cst = arith.constant 0.000000e+00 : f32
      %13 = vector.broadcast %cst : f32 to vector<1x2048xf32>
      %c0_8 = arith.constant 0 : index
      %c0_9 = arith.constant 0 : index
      %14 = vector.load %arg9[%c0_8, %c0_9] : memref<1x2048xf32, #tpu.memory_space<vmem>>, vector<1x2048xf32>
      tpu.vector_store %arg9[%c0_8, %c0_9], %13 {strides = array<i32>} : memref<1x2048xf32, #tpu.memory_space<vmem>>, vector<1x2048xf32>,
      %cst_10 = arith.constant 0xFF800000 : f32
      %15 = vector.broadcast %cst_10 : f32 to vector<1x2048xf32>
      %c0_11 = arith.constant 0 : index
      %c0_12 = arith.constant 0 : index
      %16 = vector.load %arg10[%c0_11, %c0_12] : memref<1x2048xf32, #tpu.memory_space<vmem>>, vector<1x2048xf32>
      tpu.vector_store %arg10[%c0_11, %c0_12], %15 {strides = array<i32>} : memref<1x2048xf32, #tpu.memory_space<vmem>>, vector<1x2048xf32>,
    } else {
    }
    %c0 = arith.constant 0 : index
    %c0_1 = arith.constant 0 : index
    %c0_2 = arith.constant 0 : index
    %3 = vector.load %arg2[%c0, %c0_1, %c0_2] : memref<1x64x2048xf32, #tpu.memory_space<vmem>>, vector<1x64x2048xf32>
    %c3_i32 = arith.constant 3 : i32
    %4 = arith.cmpi slt, %arg1, %c3_i32 : i32
    %5 = arith.extui %4 : i1 to i32
    %c0_i32_3 = arith.constant 0 : i32
    %6 = arith.cmpi ne, %5, %c0_i32_3 : i32
    scf.if %6 {
      %c0_8 = arith.constant 0 : index
      %c0_9 = arith.constant 0 : index
      %13 = vector.load %arg9[%c0_8, %c0_9] : memref<1x2048xf32, #tpu.memory_space<vmem>>, vector<1x2048xf32>
      %cst = arith.constant dense<0.000000e+00> : vector<1x2048xf32>
      %14 = vector.multi_reduction <add>, %3, %cst [1] : vector<1x64x2048xf32> to vector<1x2048xf32>
      %15 = arith.addf %13, %14 : vector<1x2048xf32>
      %c0_10 = arith.constant 0 : index
      %c0_11 = arith.constant 0 : index
      %16 = vector.load %arg9[%c0_10, %c0_11] : memref<1x2048xf32, #tpu.memory_space<vmem>>, vector<1x2048xf32>
      tpu.vector_store %arg9[%c0_10, %c0_11], %15 {strides = array<i32>} : memref<1x2048xf32, #tpu.memory_space<vmem>>, vector<1x2048xf32>,
      %c0_12 = arith.constant 0 : index
      %c0_13 = arith.constant 0 : index
      %17 = vector.load %arg10[%c0_12, %c0_13] : memref<1x2048xf32, #tpu.memory_space<vmem>>, vector<1x2048xf32>
      %cst_14 = arith.constant dense<0xFF800000> : vector<1x2048xf32>
      %18 = vector.multi_reduction <maximumf>, %3, %cst_14 [1] : vector<1x64x2048xf32> to vector<1x2048xf32>
      %19 = arith.maximumf %17, %18 : vector<1x2048xf32>
      %c0_15 = arith.constant 0 : index
      %c0_16 = arith.constant 0 : index
      %20 = vector.load %arg10[%c0_15, %c0_16] : memref<1x2048xf32, #tpu.memory_space<vmem>>, vector<1x2048xf32>
      tpu.vector_store %arg10[%c0_15, %c0_16], %19 {strides = array<i32>} : memref<1x2048xf32, #tpu.memory_space<vmem>>, vector<1x2048xf32>,
    } else {
    }
    %c3_i32_4 = arith.constant 3 : i32
    %7 = arith.cmpi eq, %arg1, %c3_i32_4 : i32
    %8 = arith.extui %7 : i1 to i32
    %c0_i32_5 = arith.constant 0 : i32
    %9 = arith.cmpi ne, %8, %c0_i32_5 : i32
    scf.if %9 {
      %13 = tpu.iota {dimensions = array<i32: 1>} : vector<1x64x1xi32>
      %c64_i32 = arith.constant 64 : i32
      %14 = arith.muli %arg1, %c64_i32 : i32
      %15 = vector.broadcast %14 : i32 to vector<1x64x1xi32>
      %16 = arith.addi %15, %13 : vector<1x64x1xi32>
      %c196_i32 = arith.constant 196 : i32
      %17 = vector.broadcast %c196_i32 : i32 to vector<1x64x1xi32>
      %18 = arith.cmpi slt, %16, %17 : vector<1x64x1xi32>
      %c0_8 = arith.constant 0 : index
      %c0_9 = arith.constant 0 : index
      %19 = vector.load %arg9[%c0_8, %c0_9] : memref<1x2048xf32, #tpu.memory_space<vmem>>, vector<1x2048xf32>
      %cst = arith.constant 0.000000e+00 : f32
      %20 = vector.shape_cast %18 : vector<1x64x1xi1> to vector<1x64x1xi1>
      %21 = vector.broadcast %20 : vector<1x64x1xi1> to vector<1x64x2048xi1>
      %22 = vector.broadcast %cst : f32 to vector<1x64x2048xf32>
      %23 = arith.select %21, %3, %22 : vector<1x64x2048xi1>, vector<1x64x2048xf32>
      %cst_10 = arith.constant dense<0.000000e+00> : vector<1x2048xf32>
      %24 = vector.multi_reduction <add>, %23, %cst_10 [1] : vector<1x64x2048xf32> to vector<1x2048xf32>
      %25 = arith.addf %19, %24 : vector<1x2048xf32>
      %c0_11 = arith.constant 0 : index
      %c0_12 = arith.constant 0 : index
      %26 = vector.load %arg9[%c0_11, %c0_12] : memref<1x2048xf32, #tpu.memory_space<vmem>>, vector<1x2048xf32>
      tpu.vector_store %arg9[%c0_11, %c0_12], %25 {strides = array<i32>} : memref<1x2048xf32, #tpu.memory_space<vmem>>, vector<1x2048xf32>,
      %c0_13 = arith.constant 0 : index
      %c0_14 = arith.constant 0 : index
      %27 = vector.load %arg10[%c0_13, %c0_14] : memref<1x2048xf32, #tpu.memory_space<vmem>>, vector<1x2048xf32>
      %cst_15 = arith.constant 0xFF800000 : f32
      %28 = vector.shape_cast %18 : vector<1x64x1xi1> to vector<1x64x1xi1>
      %29 = vector.broadcast %28 : vector<1x64x1xi1> to vector<1x64x2048xi1>
      %30 = vector.broadcast %cst_15 : f32 to vector<1x64x2048xf32>
      %31 = arith.select %29, %3, %30 : vector<1x64x2048xi1>, vector<1x64x2048xf32>
      %cst_16 = arith.constant dense<0xFF800000> : vector<1x2048xf32>
      %32 = vector.multi_reduction <maximumf>, %31, %cst_16 [1] : vector<1x64x2048xf32> to vector<1x2048xf32>
      %33 = arith.maximumf %27, %32 : vector<1x2048xf32>
      %c0_17 = arith.constant 0 : index
      %c0_18 = arith.constant 0 : index
      %34 = vector.load %arg10[%c0_17, %c0_18] : memref<1x2048xf32, #tpu.memory_space<vmem>>, vector<1x2048xf32>
      tpu.vector_store %arg10[%c0_17, %c0_18], %33 {strides = array<i32>} : memref<1x2048xf32, #tpu.memory_space<vmem>>, vector<1x2048xf32>,
    } else {
    }
    %c3_i32_6 = arith.constant 3 : i32
    %10 = arith.cmpi eq, %arg1, %c3_i32_6 : i32
    %11 = arith.extui %10 : i1 to i32
    %c0_i32_7 = arith.constant 0 : i32
    %12 = arith.cmpi ne, %11, %c0_i32_7 : i32
    scf.if %12 {
      %c0_8 = arith.constant 0 : index
      %c0_9 = arith.constant 0 : index
      %13 = vector.load %arg9[%c0_8, %c0_9] : memref<1x2048xf32, #tpu.memory_space<vmem>>, vector<1x2048xf32>
      %cst = arith.constant 0.00510204071 : f32
      %14 = vector.broadcast %cst : f32 to vector<1x2048xf32>
      %15 = arith.mulf %13, %14 : vector<1x2048xf32>
      %16 = arith.truncf %15 : vector<1x2048xf32> to vector<1x2048xbf16>
      %c0_10 = arith.constant 0 : index
      %c0_11 = arith.constant 0 : index
      %17 = vector.load %arg10[%c0_10, %c0_11] : memref<1x2048xf32, #tpu.memory_space<vmem>>, vector<1x2048xf32>
      %18 = arith.truncf %17 : vector<1x2048xf32> to vector<1x2048xbf16>
      %c0_12 = arith.constant 0 : index
      %c0_13 = arith.constant 0 : index
      %19 = vector.load %arg3[%c0_12, %c0_13] : memref<2048x256xbf16, #tpu.memory_space<vmem>>, vector<2048x256xbf16>
      %cst_14 = arith.constant dense<0.000000e+00> : vector<1x256xf32>
      %20 = tpu.matmul %16, %19, %cst_14 {dimension_numbers = #tpu.dot_dimension_numbers<[1], [0], [0], [1], [0, 0, 1, 1], [], []>} : vector<1x2048xbf16>, vector<2048x256xbf16>, vector<1x256xf32> -> vector<1x256xf32>
      %c0_15 = arith.constant 0 : index
      %c0_16 = arith.constant 0 : index
      %21 = vector.load %arg4[%c0_15, %c0_16] : memref<1x256xf32, #tpu.memory_space<vmem>>, vector<1x256xf32>
      %22 = arith.addf %20, %21 : vector<1x256xf32>
      %c0_17 = arith.constant 0 : index
      %c0_18 = arith.constant 0 : index
      %23 = vector.load %arg5[%c0_17, %c0_18] : memref<2048x128xbf16, #tpu.memory_space<vmem>>, vector<2048x128xbf16>
      %cst_19 = arith.constant dense<0.000000e+00> : vector<1x128xf32>
      %24 = tpu.matmul %18, %23, %cst_19 {dimension_numbers = #tpu.dot_dimension_numbers<[1], [0], [0], [1], [0, 0, 1, 1], [], []>} : vector<1x2048xbf16>, vector<2048x128xbf16>, vector<1x128xf32> -> vector<1x128xf32>
      %c0_20 = arith.constant 0 : index
      %c0_21 = arith.constant 0 : index
      %25 = vector.load %arg6[%c0_20, %c0_21] : memref<1x128xf32, #tpu.memory_space<vmem>>, vector<1x128xf32>
      %26 = arith.addf %24, %25 : vector<1x128xf32>
      %27 = vector.extract_strided_slice %22 {offsets = [0, 0], sizes = [1, 128], strides = [1, 1]} : vector<1x256xf32> to vector<1x128xf32>
      %28 = vector.extract_strided_slice %22 {offsets = [0, 128], sizes = [1, 128], strides = [1, 1]} : vector<1x256xf32> to vector<1x128xf32>
      %29 = arith.mulf %27, %27 : vector<1x128xf32>
      %cst_22 = arith.constant dense<0.000000e+00> : vector<1xf32>
      %30 = vector.multi_reduction <add>, %29, %cst_22 [1] : vector<1x128xf32> to vector<1xf32>
      %31 = vector.shape_cast %30 : vector<1xf32> to vector<1x1xf32>
      %32 = math.sqrt %31 : vector<1x1xf32>
      %cst_23 = arith.constant 9.99999997E-7 : f32
      %33 = vector.broadcast %cst_23 : f32 to vector<1x1xf32>
      %34 = arith.addf %32, %33 : vector<1x1xf32>
      %35 = vector.broadcast %34 : vector<1x1xf32> to vector<1x128xf32>
      %36 = arith.divf %27, %35 : vector<1x128xf32>
      %37 = arith.mulf %26, %26 : vector<1x128xf32>
      %cst_24 = arith.constant dense<0.000000e+00> : vector<1xf32>
      %38 = vector.multi_reduction <add>, %37, %cst_24 [1] : vector<1x128xf32> to vector<1xf32>
      %39 = vector.shape_cast %38 : vector<1xf32> to vector<1x1xf32>
      %40 = math.sqrt %39 : vector<1x1xf32>
      %cst_25 = arith.constant 9.99999997E-7 : f32
      %41 = vector.broadcast %cst_25 : f32 to vector<1x1xf32>
      %42 = arith.addf %40, %41 : vector<1x1xf32>
      %43 = vector.broadcast %42 : vector<1x1xf32> to vector<1x128xf32>
      %44 = arith.divf %26, %43 : vector<1x128xf32>
      %45 = arith.mulf %36, %36 : vector<1x128xf32>
      %cst_26 = arith.constant dense<0.000000e+00> : vector<1xf32>
      %46 = vector.multi_reduction <add>, %45, %cst_26 [1] : vector<1x128xf32> to vector<1xf32>
      %47 = vector.shape_cast %46 : vector<1xf32> to vector<1x1xf32>
      %48 = arith.mulf %44, %44 : vector<1x128xf32>
      %cst_27 = arith.constant dense<0.000000e+00> : vector<1xf32>
      %49 = vector.multi_reduction <add>, %48, %cst_27 [1] : vector<1x128xf32> to vector<1xf32>
      %50 = vector.shape_cast %49 : vector<1xf32> to vector<1x1xf32>
      %51 = arith.addf %47, %50 : vector<1x1xf32>
      %52 = math.sqrt %51 : vector<1x1xf32>
      %cst_28 = arith.constant 9.99999997E-7 : f32
      %53 = vector.broadcast %cst_28 : f32 to vector<1x1xf32>
      %54 = arith.addf %52, %53 : vector<1x1xf32>
      %cst_29 = arith.constant 1.000000e+00 : f32
      %55 = vector.broadcast %cst_29 : f32 to vector<1x1xf32>
      %56 = arith.divf %55, %54 : vector<1x1xf32>
      %57 = vector.broadcast %56 : vector<1x1xf32> to vector<1x128xf32>
      %58 = arith.mulf %36, %57 : vector<1x128xf32>
      %59 = vector.shape_cast %58 : vector<1x128xf32> to vector<1x1x128xf32>
      %c0_30 = arith.constant 0 : index
      %c0_31 = arith.constant 0 : index
      %c0_32 = arith.constant 0 : index
      %60 = vector.load %arg7[%c0_30, %c0_31, %c0_32] : memref<1x1x256xf32, #tpu.memory_space<vmem>>, vector<1x1x128xf32>
      tpu.vector_store %arg7[%c0_30, %c0_31, %c0_32], %59 {strides = array<i32>} : memref<1x1x256xf32, #tpu.memory_space<vmem>>, vector<1x1x128xf32>,
      %61 = vector.broadcast %56 : vector<1x1xf32> to vector<1x128xf32>
      %62 = arith.mulf %44, %61 : vector<1x128xf32>
      %63 = vector.shape_cast %62 : vector<1x128xf32> to vector<1x1x128xf32>
      %c0_33 = arith.constant 0 : index
      %c0_34 = arith.constant 0 : index
      %c128 = arith.constant 128 : index
      %64 = vector.load %arg7[%c0_33, %c0_34, %c128] : memref<1x1x256xf32, #tpu.memory_space<vmem>>, vector<1x1x128xf32>
      tpu.vector_store %arg7[%c0_33, %c0_34, %c128], %63 {strides = array<i32>} : memref<1x1x256xf32, #tpu.memory_space<vmem>>, vector<1x1x128xf32>,
      %65 = vector.shape_cast %28 : vector<1x128xf32> to vector<1x1x128xf32>
      %c0_35 = arith.constant 0 : index
      %c0_36 = arith.constant 0 : index
      %c0_37 = arith.constant 0 : index
      %66 = vector.load %arg8[%c0_35, %c0_36, %c0_37] : memref<1x1x128xf32, #tpu.memory_space<vmem>>, vector<1x1x128xf32>
      tpu.vector_store %arg8[%c0_35, %c0_36, %c0_37], %65 {strides = array<i32>} : memref<1x1x128xf32, #tpu.memory_space<vmem>>, vector<1x1x128xf32>,
    } else {
    }
    return
  }
  func.func @transform_0(%arg0: i32, %arg1: i32) -> (i32, i32, i32) {
    %c0_i32 = arith.constant 0 : i32
    %c0_i32_0 = arith.constant 0 : i32
    return %arg0, %arg1, %c0_i32 : i32, i32, i32
  }
  func.func @transform_1(%arg0: i32, %arg1: i32) -> (i32, i32) {
    %c0_i32 = arith.constant 0 : i32
    %c0_i32_0 = arith.constant 0 : i32
    %c0_i32_1 = arith.constant 0 : i32
    return %c0_i32, %c0_i32_0 : i32, i32
  }
  func.func @transform_2(%arg0: i32, %arg1: i32) -> (i32, i32) {
    %c0_i32 = arith.constant 0 : i32
    %c0_i32_0 = arith.constant 0 : i32
    %c0_i32_1 = arith.constant 0 : i32
    return %c0_i32, %c0_i32_0 : i32, i32
  }
  func.func @transform_3(%arg0: i32, %arg1: i32) -> (i32, i32) {
    %c0_i32 = arith.constant 0 : i32
    %c0_i32_0 = arith.constant 0 : i32
    %c0_i32_1 = arith.constant 0 : i32
    return %c0_i32, %c0_i32_0 : i32, i32
  }
  func.func @transform_4(%arg0: i32, %arg1: i32) -> (i32, i32) {
    %c0_i32 = arith.constant 0 : i32
    %c0_i32_0 = arith.constant 0 : i32
    %c0_i32_1 = arith.constant 0 : i32
    return %c0_i32, %c0_i32_0 : i32, i32
  }
  func.func @transform_5(%arg0: i32, %arg1: i32) -> (i32, i32, i32) {
    %c0_i32 = arith.constant 0 : i32
    %c0_i32_0 = arith.constant 0 : i32
    %c0_i32_1 = arith.constant 0 : i32
    return %arg0, %c0_i32, %c0_i32_0 : i32, i32, i32
  }
  func.func @transform_6(%arg0: i32, %arg1: i32) -> (i32, i32, i32) {
    %c0_i32 = arith.constant 0 : i32
    %c0_i32_0 = arith.constant 0 : i32
    %c0_i32_1 = arith.constant 0 : i32
    return %arg0, %c0_i32, %c0_i32_0 : i32, i32, i32
  }
}

</mosaic_0001>

<llo_original>
// kernel: tpu_custom_call.1
$region0: #{tpu_custom_call.1}
  #allocation0 [shape = 'u32[]', space=smem, size = 0x4, offset = 0x4, fixed_abs, tag = 'smem constant byte address 0x4 - core index']
  #allocation1 [shape = 'u32[144,128]{1,0:T(1,128)}', space=vmem, size = 0x12000, scoped, tag = 'internal scratch']
  #allocation2 [shape = 'f32[1,2048]{1,0:T(1,128)}', space=vmem, size = 0x2000, scoped, tag = 'scratch operand']
  #allocation3 [shape = 'f32[1,2048]{1,0:T(1,128)}', space=vmem, size = 0x2000, scoped, tag = 'scratch operand']
  %s0 = inlined_call_operand.vmem [shape: f32[2,196,2048], index: 0, kind: input, shape index: {}]
  %s1 = inlined_call_operand.vmem [shape: bf16[2048,256], index: 1, kind: input, shape index: {}]
  %s2 = inlined_call_operand.vmem [shape: f32[1,256], index: 2, kind: input, shape index: {}]
  %s3 = inlined_call_operand.vmem [shape: bf16[2048,128], index: 3, kind: input, shape index: {}]
  %s4 = inlined_call_operand.vmem [shape: f32[1,128], index: 4, kind: input, shape index: {}]
  %s5 = inlined_call_operand.hbm [shape: f32[2,1,256], index: 5, kind: output, shape index: {0}]
  %s6 = inlined_call_operand.hbm [shape: f32[2,1,128], index: 6, kind: output, shape index: {1}]
  %7 = xla_tuple %s5, %s6
  %s8 = sld [smem:[#allocation0]]
  $region73: #{tpu_custom_call.1} parent=0
    _
  %s10 = ssub.s32 1, %s8
  %s11 = scalar_select 0, %s10, %s8
  $region1: #{tpu_custom_call.1} parent=0
    #allocation4 [shape = 'u8[2048]{0}', space=vmem, size = 0x800, scoped, tag = 'output window, operand 0']
    #allocation5 [shape = 's32[2]{0}', space=sflag, size = 0x8, scoped, tag = 'scoped memory for tpu_custom_call.1']
    #allocation6 [shape = 'u8[1024]{0}', space=vmem, size = 0x400, scoped, tag = 'output window, operand 1']
    #allocation7 [shape = 's32[2]{0}', space=sflag, size = 0x8, scoped, tag = 'scoped memory for tpu_custom_call.1']
    %12 = vsyncpa [#allocation5], 0
    %s13 = scalar_lea.sflag [#allocation5], 1
    %14 = vsyncpa %s13, 0
    %15 = vsyncpa [#allocation7], 0
    %s16 = scalar_lea.sflag [#allocation7], 1
    %17 = vsyncpa %s16, 0
    loop: start=0, step=1, limit=10
    $region2: #{tpu_custom_call.1} parent=1 // loop_pre_header
      _
    $region3: #{tpu_custom_call.1} parent=1 // loop_header
      %s19 = sphi 0, %s23
      %p20 = scmp.ge.s32.totalorder %s19, 10
      %s26 = sphi 0, %s38
      %s27 = sphi 0, %s34
      %s28 = sphi 0, %s26
      %s29 = sphi 0, %s27
      %s30 = sphi 0, %s28
      %s31 = sphi 0, %s29
      %s43 = sphi 0, %s45
      %s46 = sphi 0, %s43
      %s47 = sphi 0, %s46
      %s63 = sphi 0, %s47
      %s67 = sphi 0, %s67
      %s69 = sphi 0, %s67
      %s70 = sphi 0, %s69
      %s84 = sphi 0, %s70
      %s88 = sphi 0, %s88
      %s90 = sphi 0, %s88
      %s91 = sphi 0, %s90
      %s105 = sphi 0, %s91
      %s109 = sphi 0, %s109
      %s111 = sphi 0, %s109
      %s112 = sphi 0, %s111
      %s126 = sphi 0, %s112
      %s130 = sphi 0, %s130
      %s132 = sphi 0, %s130
      %s133 = sphi 0, %s132
      %s147 = sphi 0, %s133
      %s153 = sphi 0, %s155
      %s156 = sphi 0, %s153
      %s157 = sphi 0, %s156
      %s173 = sphi 0, %s157
      %s179 = sphi 0, %s181
      %s182 = sphi 0, %s179
      %s183 = sphi 0, %s182
      %s199 = sphi 0, %s183
    $region4: #{tpu_custom_call.1} parent=1 // loop_header_branch
      %22 = sbr.rel (%p20) target = $region8
    $region5: #{tpu_custom_call.1} parent=1 // loop_body
      %s24 = ssub.s32 %s19, 1
      %s25 = ssub.s32 %s19, 2
      %s32 = sadd.s32 1, %s27
      %p33 = scmp.ge.s32.totalorder %s32, 4
      %s34 = scalar_select %p33, 0, %s32
      %s35 = sadd.s32 1, %s26
      %s36 = scalar_select %p33, %s35, %s26
      %p37 = scmp.ge.s32.totalorder %s36, 2
      %s38 = scalar_select %p37, 0, %s36
      %s39 = ssub.s32 %s26, %s38
      %s40 = ssub.s32 %s27, %s34
      %s41 = sor.u32 %s39, %s40
      %p42 = scmp.eq.s32.totalorder %s41, 0
      %s44 = sadd.s32 %s43, 1
      %s45 = scalar_select %p42, %s43, %s44
      %p48 = pneg %p42
      %p49 = scmp.eq.s32.totalorder %s19, 7
      %p50 = por %p48, %p49
      %p51 = scmp.ne.s32.totalorder %s43, %s46
      %p52 = scmp.eq.s32.totalorder %s19, 0
      %p53 = por %p51, %p52
      %p54 = scmp.ne.s32.totalorder %s43, %s46
      %p55 = scmp.eq.s32.totalorder %s24, 7
      %p56 = por %p54, %p55
      %p57 = scmp.ne.s32.totalorder %s46, %s47
      %p58 = scmp.eq.s32.totalorder %s24, 0
      %p59 = por %p57, %p58
      %p60 = scmp.ne.s32.totalorder %s46, %s47
      %p61 = scmp.eq.s32.totalorder %s25, 7
      %p62 = por %p60, %p61
      %p64 = scmp.ne.s32.totalorder %s47, %s63
      %p65 = scmp.eq.s32.totalorder %s25, 0
      %p66 = por %p64, %p65
      %s68 = sadd.s32 %s67, 1
      %p71 = scmp.eq.s32.totalorder %s19, 7
      %p72 = scmp.ne.s32.totalorder %s67, %s69
      %p73 = scmp.eq.s32.totalorder %s19, 0
      %p74 = por %p72, %p73
      %p75 = scmp.ne.s32.totalorder %s67, %s69
      %p76 = scmp.eq.s32.totalorder %s24, 7
      %p77 = por %p75, %p76
      %p78 = scmp.ne.s32.totalorder %s69, %s70
      %p79 = scmp.eq.s32.totalorder %s24, 0
      %p80 = por %p78, %p79
      %p81 = scmp.ne.s32.totalorder %s69, %s70
      %p82 = scmp.eq.s32.totalorder %s25, 7
      %p83 = por %p81, %p82
      %p85 = scmp.ne.s32.totalorder %s70, %s84
      %p86 = scmp.eq.s32.totalorder %s25, 0
      %p87 = por %p85, %p86
      %s89 = sadd.s32 %s88, 1
      %p92 = scmp.eq.s32.totalorder %s19, 7
      %p93 = scmp.ne.s32.totalorder %s88, %s90
      %p94 = scmp.eq.s32.totalorder %s19, 0
      %p95 = por %p93, %p94
      %p96 = scmp.ne.s32.totalorder %s88, %s90
      %p97 = scmp.eq.s32.totalorder %s24, 7
      %p98 = por %p96, %p97
      %p99 = scmp.ne.s32.totalorder %s90, %s91
      %p100 = scmp.eq.s32.totalorder %s24, 0
      %p101 = por %p99, %p100
      %p102 = scmp.ne.s32.totalorder %s90, %s91
      %p103 = scmp.eq.s32.totalorder %s25, 7
      %p104 = por %p102, %p103
      %p106 = scmp.ne.s32.totalorder %s91, %s105
      %p107 = scmp.eq.s32.totalorder %s25, 0
      %p108 = por %p106, %p107
      %s110 = sadd.s32 %s109, 1
      %p113 = scmp.eq.s32.totalorder %s19, 7
      %p114 = scmp.ne.s32.totalorder %s109, %s111
      %p115 = scmp.eq.s32.totalorder %s19, 0
      %p116 = por %p114, %p115
      %p117 = scmp.ne.s32.totalorder %s109, %s111
      %p118 = scmp.eq.s32.totalorder %s24, 7
      %p119 = por %p117, %p118
      %p120 = scmp.ne.s32.totalorder %s111, %s112
      %p121 = scmp.eq.s32.totalorder %s24, 0
      %p122 = por %p120, %p121
      %p123 = scmp.ne.s32.totalorder %s111, %s112
      %p124 = scmp.eq.s32.totalorder %s25, 7
      %p125 = por %p123, %p124
      %p127 = scmp.ne.s32.totalorder %s112, %s126
      %p128 = scmp.eq.s32.totalorder %s25, 0
      %p129 = por %p127, %p128
      %s131 = sadd.s32 %s130, 1
      %p134 = scmp.eq.s32.totalorder %s19, 7
      %p135 = scmp.ne.s32.totalorder %s130, %s132
      %p136 = scmp.eq.s32.totalorder %s19, 0
      %p137 = por %p135, %p136
      %p138 = scmp.ne.s32.totalorder %s130, %s132
      %p139 = scmp.eq.s32.totalorder %s24, 7
      %p140 = por %p138, %p139
      %p141 = scmp.ne.s32.totalorder %s132, %s133
      %p142 = scmp.eq.s32.totalorder %s24, 0
      %p143 = por %p141, %p142
      %p144 = scmp.ne.s32.totalorder %s132, %s133
      %p145 = scmp.eq.s32.totalorder %s25, 7
      %p146 = por %p144, %p145
      %p148 = scmp.ne.s32.totalorder %s133, %s147
      %p149 = scmp.eq.s32.totalorder %s25, 0
      %p150 = por %p148, %p149
      %s151 = ssub.s32 %s26, %s38
      %p152 = scmp.eq.s32.totalorder %s151, 0
      %s154 = sadd.s32 %s153, 1
      %s155 = scalar_select %p152, %s153, %s154
      %p158 = pneg %p152
      %p159 = scmp.eq.s32.totalorder %s19, 7
      %p160 = por %p158, %p159
      %p161 = scmp.ne.s32.totalorder %s153, %s156
      %p162 = scmp.eq.s32.totalorder %s19, 0
      %p163 = por %p161, %p162
      %p164 = scmp.ne.s32.totalorder %s153, %s156
      %p165 = scmp.eq.s32.totalorder %s24, 7
      %p166 = por %p164, %p165
      %p167 = scmp.ne.s32.totalorder %s156, %s157
      %p168 = scmp.eq.s32.totalorder %s24, 0
      %p169 = por %p167, %p168
      %p170 = scmp.ne.s32.totalorder %s156, %s157
      %p171 = scmp.eq.s32.totalorder %s25, 7
      %p172 = por %p170, %p171
      %p174 = scmp.ne.s32.totalorder %s157, %s173
      %p175 = scmp.eq.s32.totalorder %s25, 0
      %p176 = por %p174, %p175
      %s177 = ssub.s32 %s26, %s38
      %p178 = scmp.eq.s32.totalorder %s177, 0
      %s180 = sadd.s32 %s179, 1
      %s181 = scalar_select %p178, %s179, %s180
      %p184 = pneg %p178
      %p185 = scmp.eq.s32.totalorder %s19, 7
      %p186 = por %p184, %p185
      %p187 = scmp.ne.s32.totalorder %s179, %s182
      %p188 = scmp.eq.s32.totalorder %s19, 0
      %p189 = por %p187, %p188
      %p190 = scmp.ne.s32.totalorder %s179, %s182
      %p191 = scmp.eq.s32.totalorder %s24, 7
      %p192 = por %p190, %p191
      %p193 = scmp.ne.s32.totalorder %s182, %s183
      %p194 = scmp.eq.s32.totalorder %s24, 0
      %p195 = por %p193, %p194
      %p196 = scmp.ne.s32.totalorder %s182, %s183
      %p197 = scmp.eq.s32.totalorder %s25, 7
      %p198 = por %p196, %p197
      %p200 = scmp.ne.s32.totalorder %s183, %s199
      %p201 = scmp.eq.s32.totalorder %s25, 0
      %p202 = por %p200, %p201
      %p203 = scmp.le.s32.totalorder 1, %s19
      %p204 = scmp.lt.s32.totalorder %s19, 9
      %p205 = pnand %p203, %p204
      %p206 = pneg %p205
      // Predicated region
      $region9: #{tpu_custom_call.1} parent=5 // pred_check
        _
      $region10: #{tpu_custom_call.1} parent=5 // pred_check_branch
        %208 = sbr.rel (%p205) target = $region12
      $region11: #{tpu_custom_call.1} parent=5 // pred_region
        %s209 = ssub.s32 %s19, 1
        // Predicated region
        $region13: #{tpu_custom_call.1} parent=11 // pred_check
          %p210 = pneg %p80
        $region14: #{tpu_custom_call.1} parent=11 // pred_check_branch
          %212 = sbr.rel (%p210) target = $region16
        $region15: #{tpu_custom_call.1} parent=11 // pred_region
          _
        $region16: #{tpu_custom_call.1} parent=11 // pred_fallthru
          _
        // Predicated region
        $region17: #{tpu_custom_call.1} parent=11 // pred_check
          %p213 = pneg %p101
        $region18: #{tpu_custom_call.1} parent=11 // pred_check_branch
          %215 = sbr.rel (%p213) target = $region20
        $region19: #{tpu_custom_call.1} parent=11 // pred_region
          _
        $region20: #{tpu_custom_call.1} parent=11 // pred_fallthru
          _
        // Predicated region
        $region21: #{tpu_custom_call.1} parent=11 // pred_check
          %p216 = pneg %p122
        $region22: #{tpu_custom_call.1} parent=11 // pred_check_branch
          %218 = sbr.rel (%p216) target = $region24
        $region23: #{tpu_custom_call.1} parent=11 // pred_region
          _
        $region24: #{tpu_custom_call.1} parent=11 // pred_fallthru
          _
        // Predicated region
        $region25: #{tpu_custom_call.1} parent=11 // pred_check
          %p219 = pneg %p143
        $region26: #{tpu_custom_call.1} parent=11 // pred_check_branch
          %221 = sbr.rel (%p219) target = $region28
        $region27: #{tpu_custom_call.1} parent=11 // pred_region
          _
        $region28: #{tpu_custom_call.1} parent=11 // pred_fallthru
          _
      $region12: #{tpu_custom_call.1} parent=5 // pred_fallthru
        _
      %p222 = scmp.lt.s32.totalorder %s19, 8
      // Predicated region
      $region29: #{tpu_custom_call.1} parent=5 // pred_check
        %p223 = pneg %p222
      $region30: #{tpu_custom_call.1} parent=5 // pred_check_branch
        %225 = sbr.rel (%p223) target = $region32
      $region31: #{tpu_custom_call.1} parent=5 // pred_region
        // Predicated region
        $region33: #{tpu_custom_call.1} parent=31 // pred_check
          %p226 = pneg %p53
        $region34: #{tpu_custom_call.1} parent=31 // pred_check_branch
          %228 = sbr.rel (%p226) target = $region36
        $region35: #{tpu_custom_call.1} parent=31 // pred_region
          %s229 = smul.u32 8, %s27
          %s230 = ssub.s32 25, %s229
          %p231 = scmp.lt.s32.totalorder %s230, 8
          %s232 = scalar_select %p231, %s230, 8
          %s233 = smul.u32 128, %s232
          %s234 = smul.u32 %s233, 16
          %p235 = scmp.lt.s32.totalorder %s26, 1
          %s236 = scalar_select %p235, %s26, 1
          %p237 = scmp.lt.s32.totalorder %s229, 24
          %s238 = scalar_select %p237, %s229, 24
          %s239 = smul.addr %s238, 16
          %s240 = smul.addr %s236, 400
          %s241 = sadd.s32 %s239, %s240
          %s242 = smul.addr %s241, 8
          %s243 = scalar_lea.vmem %s0, %s242
          %s244 = smul.u32 8, %s27
          %s245 = ssub.s32 25, %s244
          %p246 = scmp.lt.s32.totalorder %s245, 8
          %s247 = scalar_select %p246, %s245, 8
          %s248 = smul.u32 128, %s247
          %s249 = smul.u32 %s248, 16
        $region36: #{tpu_custom_call.1} parent=31 // pred_fallthru
          _
      $region32: #{tpu_custom_call.1} parent=5 // pred_fallthru
        _
      %p250 = scmp.le.s32.totalorder 1, %s19
      %p251 = scmp.lt.s32.totalorder %s19, 9
      %p252 = pnand %p250, %p251
      %p253 = pneg %p252
      // Predicated region
      $region37: #{tpu_custom_call.1} parent=5 // pred_check
        _
      $region38: #{tpu_custom_call.1} parent=5 // pred_check_branch
        %255 = sbr.rel (%p252) target = $region40
      $region39: #{tpu_custom_call.1} parent=5 // pred_region
        %s256 = ssub.s32 %s19, 1
        %s257 = smul.u32 8, %s29
        %s258 = ssub.s32 25, %s257
        %p259 = scmp.lt.s32.totalorder %s258, 8
        %s260 = scalar_select %p259, %s258, 8
        %s261 = smul.u32 128, %s260
        %s262 = smul.u32 %s261, 16
        %p263 = scmp.lt.s32.totalorder %s28, 1
        %s264 = scalar_select %p263, %s28, 1
        %p265 = scmp.lt.s32.totalorder %s257, 24
        %s266 = scalar_select %p265, %s257, 24
        %s267 = smul.addr %s266, 16
        %s268 = smul.addr %s264, 400
        %s269 = sadd.s32 %s267, %s268
        %s270 = smul.addr %s269, 8
        %s271 = scalar_lea.vmem %s0, %s270
        %p272 = pneg %p59
        %p273 = pneg %p56
        %p274 = pneg %p80
        %p275 = pneg %p77
        %p276 = pneg %p101
        %p277 = pneg %p98
        %p278 = pneg %p122
        %p279 = pneg %p119
        %p280 = pneg %p143
        %p281 = pneg %p140
        %p282 = pneg %p169
        %p283 = pneg %p166
        %s284 = sand.u32 %s156, 1
        %s285 = scalar_lea.sflag [#allocation5], %s284
        %s286 = sand.u32 %s156, 1
        %s287 = smul.addr %s286, 2
        %s288 = scalar_lea.vmem [#allocation4], %s287
        %p289 = pneg %p195
        %p290 = pneg %p192
        %s291 = sand.u32 %s182, 1
        %s292 = scalar_lea.sflag [#allocation7], %s291
        %s293 = sand.u32 %s182, 1
        %s294 = scalar_lea.vmem [#allocation6], %s293
        %s295 = smul.u32 8, %s29
        %s296 = ssub.s32 25, %s295
        %p297 = scmp.lt.s32.totalorder %s296, 8
        %s298 = scalar_select %p297, %s296, 8
        %s299 = smul.u32 128, %s298
        %s300 = smul.u32 %s299, 16
        %p301 = scmp.lt.s32.totalorder %s28, 1
        %s302 = scalar_select %p301, %s28, 1
        %p303 = scmp.lt.s32.totalorder %s295, 24
        %s304 = scalar_select %p303, %s295, 24
        %s305 = smul.addr %s304, 16
        %s306 = smul.addr %s302, 400
        %s307 = sadd.s32 %s305, %s306
        %s308 = smul.addr %s307, 8
        %s309 = scalar_lea.vmem %s0, %s308
        %s310 = smul.u32 8, %s29
        %s311 = ssub.s32 25, %s310
        %p312 = scmp.lt.s32.totalorder %s311, 8
        %s313 = scalar_select %p312, %s311, 8
        %s314 = smul.u32 128, %s313
        %s315 = smul.u32 %s314, 16
        %p317 = scmp.eq.s32.totalorder %s29, 0
        // Predicated region
        $region41: #{tpu_custom_call.1} parent=39 // pred_check
          %p318 = pneg %p317
        $region42: #{tpu_custom_call.1} parent=39 // pred_check_branch
          %320 = sbr.rel (%p318) target = $region44
        $region43: #{tpu_custom_call.1} parent=39 // pred_region
          %321 = vst [vmem:[#allocation2] sm:$0xff] 0.0
          %322 = vst [vmem:[#allocation2 + $0x8] sm:$0xff] 0.0
          %323 = vst [vmem:[#allocation3] sm:$0xff] -inf
          %324 = vst [vmem:[#allocation3 + $0x8] sm:$0xff] -inf
        $region44: #{tpu_custom_call.1} parent=39 // pred_fallthru
          _
        %v325 = vld [vmem:[%s309] sm:$0xff]
        %v326 = vld [vmem:[%s309 + $0x8] sm:$0xff]
        %v327 = vld [vmem:[%s309 + $0x10] sm:$0xff]
        %v328 = vld [vmem:[%s309 + $0x18] sm:$0xff]
        %v329 = vld [vmem:[%s309 + $0x20] sm:$0xff]
        %v330 = vld [vmem:[%s309 + $0x28] sm:$0xff]
        %v331 = vld [vmem:[%s309 + $0x30] sm:$0xff]
        %v332 = vld [vmem:[%s309 + $0x38] sm:$0xff]
        %v333 = vld [vmem:[%s309 + $0x40] sm:$0xff]
        %v334 = vld [vmem:[%s309 + $0x48] sm:$0xff]
        %v335 = vld [vmem:[%s309 + $0x50] sm:$0xff]
        %v336 = vld [vmem:[%s309 + $0x58] sm:$0xff]
        %v337 = vld [vmem:[%s309 + $0x60] sm:$0xff]
        %v338 = vld [vmem:[%s309 + $0x68] sm:$0xff]
        %v339 = vld [vmem:[%s309 + $0x70] sm:$0xff]
        %v340 = vld [vmem:[%s309 + $0x78] sm:$0xff]
        %v341 = vld [vmem:[%s309 + $0x80] sm:$0xff]
        %v342 = vld [vmem:[%s309 + $0x88] sm:$0xff]
        %v343 = vld [vmem:[%s309 + $0x90] sm:$0xff]
        %v344 = vld [vmem:[%s309 + $0x98] sm:$0xff]
        %v345 = vld [vmem:[%s309 + $0xa0] sm:$0xff]
        %v346 = vld [vmem:[%s309 + $0xa8] sm:$0xff]
        %v347 = vld [vmem:[%s309 + $0xb0] sm:$0xff]
        %v348 = vld [vmem:[%s309 + $0xb8] sm:$0xff]
        %v349 = vld [vmem:[%s309 + $0xc0] sm:$0xff]
        %v350 = vld [vmem:[%s309 + $0xc8] sm:$0xff]
        %v351 = vld [vmem:[%s309 + $0xd0] sm:$0xff]
        %v352 = vld [vmem:[%s309 + $0xd8] sm:$0xff]
        %v353 = vld [vmem:[%s309 + $0xe0] sm:$0xff]
        %v354 = vld [vmem:[%s309 + $0xe8] sm:$0xff]
        %v355 = vld [vmem:[%s309 + $0xf0] sm:$0xff]
        %v356 = vld [vmem:[%s309 + $0xf8] sm:$0xff]
        %v357 = vld [vmem:[%s309 + $0x100] sm:$0xff]
        %v358 = vld [vmem:[%s309 + $0x108] sm:$0xff]
        %v359 = vld [vmem:[%s309 + $0x110] sm:$0xff]
        %v360 = vld [vmem:[%s309 + $0x118] sm:$0xff]
        %v361 = vld [vmem:[%s309 + $0x120] sm:$0xff]
        %v362 = vld [vmem:[%s309 + $0x128] sm:$0xff]
        %v363 = vld [vmem:[%s309 + $0x130] sm:$0xff]
        %v364 = vld [vmem:[%s309 + $0x138] sm:$0xff]
        %v365 = vld [vmem:[%s309 + $0x140] sm:$0xff]
        %v366 = vld [vmem:[%s309 + $0x148] sm:$0xff]
        %v367 = vld [vmem:[%s309 + $0x150] sm:$0xff]
        %v368 = vld [vmem:[%s309 + $0x158] sm:$0xff]
        %v369 = vld [vmem:[%s309 + $0x160] sm:$0xff]
        %v370 = vld [vmem:[%s309 + $0x168] sm:$0xff]
        %v371 = vld [vmem:[%s309 + $0x170] sm:$0xff]
        %v372 = vld [vmem:[%s309 + $0x178] sm:$0xff]
        %v373 = vld [vmem:[%s309 + $0x180] sm:$0xff]
        %v374 = vld [vmem:[%s309 + $0x188] sm:$0xff]
        %v375 = vld [vmem:[%s309 + $0x190] sm:$0xff]
        %v376 = vld [vmem:[%s309 + $0x198] sm:$0xff]
        %v377 = vld [vmem:[%s309 + $0x1a0] sm:$0xff]
        %v378 = vld [vmem:[%s309 + $0x1a8] sm:$0xff]
        %v379 = vld [vmem:[%s309 + $0x1b0] sm:$0xff]
        %v380 = vld [vmem:[%s309 + $0x1b8] sm:$0xff]
        %v381 = vld [vmem:[%s309 + $0x1c0] sm:$0xff]
        %v382 = vld [vmem:[%s309 + $0x1c8] sm:$0xff]
        %v383 = vld [vmem:[%s309 + $0x1d0] sm:$0xff]
        %v384 = vld [vmem:[%s309 + $0x1d8] sm:$0xff]
        %v385 = vld [vmem:[%s309 + $0x1e0] sm:$0xff]
        %v386 = vld [vmem:[%s309 + $0x1e8] sm:$0xff]
        %v387 = vld [vmem:[%s309 + $0x1f0] sm:$0xff]
        %v388 = vld [vmem:[%s309 + $0x1f8] sm:$0xff]
        %v389 = vld [vmem:[%s309 + $0x200] sm:$0xff]
        %v390 = vld [vmem:[%s309 + $0x208] sm:$0xff]
        %v391 = vld [vmem:[%s309 + $0x210] sm:$0xff]
        %v392 = vld [vmem:[%s309 + $0x218] sm:$0xff]
        %v393 = vld [vmem:[%s309 + $0x220] sm:$0xff]
        %v394 = vld [vmem:[%s309 + $0x228] sm:$0xff]
        %v395 = vld [vmem:[%s309 + $0x230] sm:$0xff]
        %v396 = vld [vmem:[%s309 + $0x238] sm:$0xff]
        %v397 = vld [vmem:[%s309 + $0x240] sm:$0xff]
        %v398 = vld [vmem:[%s309 + $0x248] sm:$0xff]
        %v399 = vld [vmem:[%s309 + $0x250] sm:$0xff]
        %v400 = vld [vmem:[%s309 + $0x258] sm:$0xff]
        %v401 = vld [vmem:[%s309 + $0x260] sm:$0xff]
        %v402 = vld [vmem:[%s309 + $0x268] sm:$0xff]
        %v403 = vld [vmem:[%s309 + $0x270] sm:$0xff]
        %v404 = vld [vmem:[%s309 + $0x278] sm:$0xff]
        %v405 = vld [vmem:[%s309 + $0x280] sm:$0xff]
        %v406 = vld [vmem:[%s309 + $0x288] sm:$0xff]
        %v407 = vld [vmem:[%s309 + $0x290] sm:$0xff]
        %v408 = vld [vmem:[%s309 + $0x298] sm:$0xff]
        %v409 = vld [vmem:[%s309 + $0x2a0] sm:$0xff]
        %v410 = vld [vmem:[%s309 + $0x2a8] sm:$0xff]
        %v411 = vld [vmem:[%s309 + $0x2b0] sm:$0xff]
        %v412 = vld [vmem:[%s309 + $0x2b8] sm:$0xff]
        %v413 = vld [vmem:[%s309 + $0x2c0] sm:$0xff]
        %v414 = vld [vmem:[%s309 + $0x2c8] sm:$0xff]
        %v415 = vld [vmem:[%s309 + $0x2d0] sm:$0xff]
        %v416 = vld [vmem:[%s309 + $0x2d8] sm:$0xff]
        %v417 = vld [vmem:[%s309 + $0x2e0] sm:$0xff]
        %v418 = vld [vmem:[%s309 + $0x2e8] sm:$0xff]
        %v419 = vld [vmem:[%s309 + $0x2f0] sm:$0xff]
        %v420 = vld [vmem:[%s309 + $0x2f8] sm:$0xff]
        %v421 = vld [vmem:[%s309 + $0x300] sm:$0xff]
        %v422 = vld [vmem:[%s309 + $0x308] sm:$0xff]
        %v423 = vld [vmem:[%s309 + $0x310] sm:$0xff]
        %v424 = vld [vmem:[%s309 + $0x318] sm:$0xff]
        %v425 = vld [vmem:[%s309 + $0x320] sm:$0xff]
        %v426 = vld [vmem:[%s309 + $0x328] sm:$0xff]
        %v427 = vld [vmem:[%s309 + $0x330] sm:$0xff]
        %v428 = vld [vmem:[%s309 + $0x338] sm:$0xff]
        %v429 = vld [vmem:[%s309 + $0x340] sm:$0xff]
        %v430 = vld [vmem:[%s309 + $0x348] sm:$0xff]
        %v431 = vld [vmem:[%s309 + $0x350] sm:$0xff]
        %v432 = vld [vmem:[%s309 + $0x358] sm:$0xff]
        %v433 = vld [vmem:[%s309 + $0x360] sm:$0xff]
        %v434 = vld [vmem:[%s309 + $0x368] sm:$0xff]
        %v435 = vld [vmem:[%s309 + $0x370] sm:$0xff]
        %v436 = vld [vmem:[%s309 + $0x378] sm:$0xff]
        %v437 = vld [vmem:[%s309 + $0x380] sm:$0xff]
        %v438 = vld [vmem:[%s309 + $0x388] sm:$0xff]
        %v439 = vld [vmem:[%s309 + $0x390] sm:$0xff]
        %v440 = vld [vmem:[%s309 + $0x398] sm:$0xff]
        %v441 = vld [vmem:[%s309 + $0x3a0] sm:$0xff]
        %v442 = vld [vmem:[%s309 + $0x3a8] sm:$0xff]
        %v443 = vld [vmem:[%s309 + $0x3b0] sm:$0xff]
        %v444 = vld [vmem:[%s309 + $0x3b8] sm:$0xff]
        %v445 = vld [vmem:[%s309 + $0x3c0] sm:$0xff]
        %v446 = vld [vmem:[%s309 + $0x3c8] sm:$0xff]
        %v447 = vld [vmem:[%s309 + $0x3d0] sm:$0xff]
        %v448 = vld [vmem:[%s309 + $0x3d8] sm:$0xff]
        %v449 = vld [vmem:[%s309 + $0x3e0] sm:$0xff]
        %v450 = vld [vmem:[%s309 + $0x3e8] sm:$0xff]
        %v451 = vld [vmem:[%s309 + $0x3f0] sm:$0xff]
        %v452 = vld [vmem:[%s309 + $0x3f8] sm:$0xff]
        %p453 = scmp.lt.s32.totalorder %s29, 3
        // Predicated region
        $region45: #{tpu_custom_call.1} parent=39 // pred_check
          %p454 = pneg %p453
        $region46: #{tpu_custom_call.1} parent=39 // pred_check_branch
          %456 = sbr.rel (%p454) target = $region48
        $region47: #{tpu_custom_call.1} parent=39 // pred_region
          %v457 = vld [vmem:[#allocation2] sm:$0xff]
          %v458 = vld [vmem:[#allocation2 + $0x8] sm:$0xff]
          %v459 = vadd.f32 %v325, %v341
          %v460 = vadd.f32 %v459, %v357
          %v461 = vadd.f32 %v460, %v373
          %v462 = vadd.f32 %v461, %v389
          %v463 = vadd.f32 %v462, %v405
          %v464 = vadd.f32 %v463, %v421
          %v465 = vadd.f32 %v464, %v437
          %v466 = vrot.slane %v465, 4
          %v467 = vadd.f32 %v465, %v466
          %v468 = vrot.slane %v467, 2
          %v469 = vadd.f32 %v467, %v468
          %v470 = vrot.slane %v469, 1
          %v471 = vadd.f32 %v469, %v470
          %v472 = vadd.f32 %v326, %v342
          %v473 = vadd.f32 %v472, %v358
          %v474 = vadd.f32 %v473, %v374
          %v475 = vadd.f32 %v474, %v390
          %v476 = vadd.f32 %v475, %v406
          %v477 = vadd.f32 %v476, %v422
          %v478 = vadd.f32 %v477, %v438
          %v479 = vrot.slane %v478, 4
          %v480 = vadd.f32 %v478, %v479
          %v481 = vrot.slane %v480, 2
          %v482 = vadd.f32 %v480, %v481
          %v483 = vrot.slane %v482, 1
          %v484 = vadd.f32 %v482, %v483
          %v485 = vadd.f32 %v327, %v343
          %v486 = vadd.f32 %v485, %v359
          %v487 = vadd.f32 %v486, %v375
          %v488 = vadd.f32 %v487, %v391
          %v489 = vadd.f32 %v488, %v407
          %v490 = vadd.f32 %v489, %v423
          %v491 = vadd.f32 %v490, %v439
          %v492 = vrot.slane %v491, 4
          %v493 = vadd.f32 %v491, %v492
          %v494 = vrot.slane %v493, 2
          %v495 = vadd.f32 %v493, %v494
          %v496 = vrot.slane %v495, 1
          %v497 = vadd.f32 %v495, %v496
          %v498 = vadd.f32 %v328, %v344
          %v499 = vadd.f32 %v498, %v360
          %v500 = vadd.f32 %v499, %v376
          %v501 = vadd.f32 %v500, %v392
          %v502 = vadd.f32 %v501, %v408
          %v503 = vadd.f32 %v502, %v424
          %v504 = vadd.f32 %v503, %v440
          %v505 = vrot.slane %v504, 4
          %v506 = vadd.f32 %v504, %v505
          %v507 = vrot.slane %v506, 2
          %v508 = vadd.f32 %v506, %v507
          %v509 = vrot.slane %v508, 1
          %v510 = vadd.f32 %v508, %v509
          %v511 = vadd.f32 %v329, %v345
          %v512 = vadd.f32 %v511, %v361
          %v513 = vadd.f32 %v512, %v377
          %v514 = vadd.f32 %v513, %v393
          %v515 = vadd.f32 %v514, %v409
          %v516 = vadd.f32 %v515, %v425
          %v517 = vadd.f32 %v516, %v441
          %v518 = vrot.slane %v517, 4
          %v519 = vadd.f32 %v517, %v518
          %v520 = vrot.slane %v519, 2
          %v521 = vadd.f32 %v519, %v520
          %v522 = vrot.slane %v521, 1
          %v523 = vadd.f32 %v521, %v522
          %v524 = vadd.f32 %v330, %v346
          %v525 = vadd.f32 %v524, %v362
          %v526 = vadd.f32 %v525, %v378
          %v527 = vadd.f32 %v526, %v394
          %v528 = vadd.f32 %v527, %v410
          %v529 = vadd.f32 %v528, %v426
          %v530 = vadd.f32 %v529, %v442
          %v531 = vrot.slane %v530, 4
          %v532 = vadd.f32 %v530, %v531
          %v533 = vrot.slane %v532, 2
          %v534 = vadd.f32 %v532, %v533
          %v535 = vrot.slane %v534, 1
          %v536 = vadd.f32 %v534, %v535
          %v537 = vadd.f32 %v331, %v347
          %v538 = vadd.f32 %v537, %v363
          %v539 = vadd.f32 %v538, %v379
          %v540 = vadd.f32 %v539, %v395
          %v541 = vadd.f32 %v540, %v411
          %v542 = vadd.f32 %v541, %v427
          %v543 = vadd.f32 %v542, %v443
          %v544 = vrot.slane %v543, 4
          %v545 = vadd.f32 %v543, %v544
          %v546 = vrot.slane %v545, 2
          %v547 = vadd.f32 %v545, %v546
          %v548 = vrot.slane %v547, 1
          %v549 = vadd.f32 %v547, %v548
          %v550 = vadd.f32 %v332, %v348
          %v551 = vadd.f32 %v550, %v364
          %v552 = vadd.f32 %v551, %v380
          %v553 = vadd.f32 %v552, %v396
          %v554 = vadd.f32 %v553, %v412
          %v555 = vadd.f32 %v554, %v428
          %v556 = vadd.f32 %v555, %v444
          %v557 = vrot.slane %v556, 4
          %v558 = vadd.f32 %v556, %v557
          %v559 = vrot.slane %v558, 2
          %v560 = vadd.f32 %v558, %v559
          %v561 = vrot.slane %v560, 1
          %v562 = vadd.f32 %v560, %v561
          %v563 = vadd.f32 %v333, %v349
          %v564 = vadd.f32 %v563, %v365
          %v565 = vadd.f32 %v564, %v381
          %v566 = vadd.f32 %v565, %v397
          %v567 = vadd.f32 %v566, %v413
          %v568 = vadd.f32 %v567, %v429
          %v569 = vadd.f32 %v568, %v445
          %v570 = vrot.slane %v569, 4
          %v571 = vadd.f32 %v569, %v570
          %v572 = vrot.slane %v571, 2
          %v573 = vadd.f32 %v571, %v572
          %v574 = vrot.slane %v573, 1
          %v575 = vadd.f32 %v573, %v574
          %v576 = vadd.f32 %v334, %v350
          %v577 = vadd.f32 %v576, %v366
          %v578 = vadd.f32 %v577, %v382
          %v579 = vadd.f32 %v578, %v398
          %v580 = vadd.f32 %v579, %v414
          %v581 = vadd.f32 %v580, %v430
          %v582 = vadd.f32 %v581, %v446
          %v583 = vrot.slane %v582, 4
          %v584 = vadd.f32 %v582, %v583
          %v585 = vrot.slane %v584, 2
          %v586 = vadd.f32 %v584, %v585
          %v587 = vrot.slane %v586, 1
          %v588 = vadd.f32 %v586, %v587
          %v589 = vadd.f32 %v335, %v351
          %v590 = vadd.f32 %v589, %v367
          %v591 = vadd.f32 %v590, %v383
          %v592 = vadd.f32 %v591, %v399
          %v593 = vadd.f32 %v592, %v415
          %v594 = vadd.f32 %v593, %v431
          %v595 = vadd.f32 %v594, %v447
          %v596 = vrot.slane %v595, 4
          %v597 = vadd.f32 %v595, %v596
          %v598 = vrot.slane %v597, 2
          %v599 = vadd.f32 %v597, %v598
          %v600 = vrot.slane %v599, 1
          %v601 = vadd.f32 %v599, %v600
          %v602 = vadd.f32 %v336, %v352
          %v603 = vadd.f32 %v602, %v368
          %v604 = vadd.f32 %v603, %v384
          %v605 = vadd.f32 %v604, %v400
          %v606 = vadd.f32 %v605, %v416
          %v607 = vadd.f32 %v606, %v432
          %v608 = vadd.f32 %v607, %v448
          %v609 = vrot.slane %v608, 4
          %v610 = vadd.f32 %v608, %v609
          %v611 = vrot.slane %v610, 2
          %v612 = vadd.f32 %v610, %v611
          %v613 = vrot.slane %v612, 1
          %v614 = vadd.f32 %v612, %v613
          %v615 = vadd.f32 %v337, %v353
          %v616 = vadd.f32 %v615, %v369
          %v617 = vadd.f32 %v616, %v385
          %v618 = vadd.f32 %v617, %v401
          %v619 = vadd.f32 %v618, %v417
          %v620 = vadd.f32 %v619, %v433
          %v621 = vadd.f32 %v620, %v449
          %v622 = vrot.slane %v621, 4
          %v623 = vadd.f32 %v621, %v622
          %v624 = vrot.slane %v623, 2
          %v625 = vadd.f32 %v623, %v624
          %v626 = vrot.slane %v625, 1
          %v627 = vadd.f32 %v625, %v626
          %v628 = vadd.f32 %v338, %v354
          %v629 = vadd.f32 %v628, %v370
          %v630 = vadd.f32 %v629, %v386
          %v631 = vadd.f32 %v630, %v402
          %v632 = vadd.f32 %v631, %v418
          %v633 = vadd.f32 %v632, %v434
          %v634 = vadd.f32 %v633, %v450
          %v635 = vrot.slane %v634, 4
          %v636 = vadd.f32 %v634, %v635
          %v637 = vrot.slane %v636, 2
          %v638 = vadd.f32 %v636, %v637
          %v639 = vrot.slane %v638, 1
          %v640 = vadd.f32 %v638, %v639
          %v641 = vadd.f32 %v339, %v355
          %v642 = vadd.f32 %v641, %v371
          %v643 = vadd.f32 %v642, %v387
          %v644 = vadd.f32 %v643, %v403
          %v645 = vadd.f32 %v644, %v419
          %v646 = vadd.f32 %v645, %v435
          %v647 = vadd.f32 %v646, %v451
          %v648 = vrot.slane %v647, 4
          %v649 = vadd.f32 %v647, %v648
          %v650 = vrot.slane %v649, 2
          %v651 = vadd.f32 %v649, %v650
          %v652 = vrot.slane %v651, 1
          %v653 = vadd.f32 %v651, %v652
          %v654 = vadd.f32 %v340, %v356
          %v655 = vadd.f32 %v654, %v372
          %v656 = vadd.f32 %v655, %v388
          %v657 = vadd.f32 %v656, %v404
          %v658 = vadd.f32 %v657, %v420
          %v659 = vadd.f32 %v658, %v436
          %v660 = vadd.f32 %v659, %v452
          %v661 = vrot.slane %v660, 4
          %v662 = vadd.f32 %v660, %v661
          %v663 = vrot.slane %v662, 2
          %v664 = vadd.f32 %v662, %v663
          %v665 = vrot.slane %v664, 1
          %v666 = vadd.f32 %v664, %v665
          %v683 = vcombine.low %v471, %v484
          %v684 = vcombine.low %v497, %v510
          %v685 = vcombine.low %v523, %v536
          %v686 = vcombine.low %v549, %v562
          %v688 = vunpack.c.l.s4 1966171168
          %v689 = vunpack.c.0.s8 %v688
          %v690 = vlaneseq
          %v691 = vshrl.u32 %v690, 7
          %v692 = vsub.s32 %v689, %v691
          %v693 = vrot.slane %v683, %v692
          %v695 = vunpack.c.l.s4 1966171168
          %v696 = vunpack.c.0.s8 %v695
          %v697 = vlaneseq
          %v698 = vshrl.u32 %v697, 7
          %v699 = vsub.s32 %v696, %v698
          %v700 = vrot.slane %v684, %v699
          %v702 = vunpack.c.l.s4 1966171168
          %v703 = vunpack.c.0.s8 %v702
          %v704 = vlaneseq
          %v705 = vshrl.u32 %v704, 7
          %v706 = vsub.s32 %v703, %v705
          %v707 = vrot.slane %v685, %v706
          %v709 = vunpack.c.l.s4 1966171168
          %v710 = vunpack.c.0.s8 %v709
          %v711 = vlaneseq
          %v712 = vshrl.u32 %v711, 7
          %v713 = vsub.s32 %v710, %v712
          %v714 = vrot.slane %v686, %v713
          %v715 = vcombine.low %v693, %v700
          %v716 = vcombine.low %v707, %v714
          %v718 = vunpack.c.l.s4 1966171168
          %v719 = vunpack.c.0.s8 %v718
          %v720 = vlaneseq
          %v721 = vshrl.u32 %v720, 7
          %v722 = vsub.s32 %v719, %v721
          %v723 = vrot.slane %v715, %v722
          %v725 = vunpack.c.l.s4 1966171168
          %v726 = vunpack.c.0.s8 %v725
          %v727 = vlaneseq
          %v728 = vshrl.u32 %v727, 7
          %v729 = vsub.s32 %v726, %v728
          %v730 = vrot.slane %v716, %v729
          %v731 = vcombine.low %v723, %v730
          %v732 = vcombine.low %v575, %v588
          %v733 = vcombine.low %v601, %v614
          %v734 = vcombine.low %v627, %v640
          %v735 = vcombine.low %v653, %v666
          %v737 = vunpack.c.l.s4 1966171168
          %v738 = vunpack.c.0.s8 %v737
          %v739 = vlaneseq
          %v740 = vshrl.u32 %v739, 7
          %v741 = vsub.s32 %v738, %v740
          %v742 = vrot.slane %v732, %v741
          %v744 = vunpack.c.l.s4 1966171168
          %v745 = vunpack.c.0.s8 %v744
          %v746 = vlaneseq
          %v747 = vshrl.u32 %v746, 7
          %v748 = vsub.s32 %v745, %v747
          %v749 = vrot.slane %v733, %v748
          %v751 = vunpack.c.l.s4 1966171168
          %v752 = vunpack.c.0.s8 %v751
          %v753 = vlaneseq
          %v754 = vshrl.u32 %v753, 7
          %v755 = vsub.s32 %v752, %v754
          %v756 = vrot.slane %v734, %v755
          %v758 = vunpack.c.l.s4 1966171168
          %v759 = vunpack.c.0.s8 %v758
          %v760 = vlaneseq
          %v761 = vshrl.u32 %v760, 7
          %v762 = vsub.s32 %v759, %v761
          %v763 = vrot.slane %v735, %v762
          %v764 = vcombine.low %v742, %v749
          %v765 = vcombine.low %v756, %v763
          %v767 = vunpack.c.l.s4 1966171168
          %v768 = vunpack.c.0.s8 %v767
          %v769 = vlaneseq
          %v770 = vshrl.u32 %v769, 7
          %v771 = vsub.s32 %v768, %v770
          %v772 = vrot.slane %v764, %v771
          %v774 = vunpack.c.l.s4 1966171168
          %v775 = vunpack.c.0.s8 %v774
          %v776 = vlaneseq
          %v777 = vshrl.u32 %v776, 7
          %v778 = vsub.s32 %v775, %v777
          %v779 = vrot.slane %v765, %v778
          %v780 = vcombine.low %v772, %v779
          %v783 = vadd.f32 %v457, %v731
          %v784 = vadd.f32 %v458, %v780
          %785 = vst [vmem:[#allocation2] sm:$0xff] %v783
          %786 = vst [vmem:[#allocation2 + $0x8] sm:$0xff] %v784
          %v787 = vld [vmem:[#allocation3] sm:$0xff]
          %v788 = vld [vmem:[#allocation3 + $0x8] sm:$0xff]
          %v789 = vmax.f32 %v325, %v341
          %v790 = vmax.f32 %v789, %v357
          %v791 = vmax.f32 %v790, %v373
          %v792 = vmax.f32 %v791, %v389
          %v793 = vmax.f32 %v792, %v405
          %v794 = vmax.f32 %v793, %v421
          %v795 = vmax.f32 %v794, %v437
          %v796 = vrot.slane %v795, 4
          %v797 = vmax.f32 %v795, %v796
          %v798 = vrot.slane %v797, 2
          %v799 = vmax.f32 %v797, %v798
          %v800 = vrot.slane %v799, 1
          %v801 = vmax.f32 %v799, %v800
          %v802 = vmax.f32 %v326, %v342
          %v803 = vmax.f32 %v802, %v358
          %v804 = vmax.f32 %v803, %v374
          %v805 = vmax.f32 %v804, %v390
          %v806 = vmax.f32 %v805, %v406
          %v807 = vmax.f32 %v806, %v422
          %v808 = vmax.f32 %v807, %v438
          %v809 = vrot.slane %v808, 4
          %v810 = vmax.f32 %v808, %v809
          %v811 = vrot.slane %v810, 2
          %v812 = vmax.f32 %v810, %v811
          %v813 = vrot.slane %v812, 1
          %v814 = vmax.f32 %v812, %v813
          %v815 = vmax.f32 %v327, %v343
          %v816 = vmax.f32 %v815, %v359
          %v817 = vmax.f32 %v816, %v375
          %v818 = vmax.f32 %v817, %v391
          %v819 = vmax.f32 %v818, %v407
          %v820 = vmax.f32 %v819, %v423
          %v821 = vmax.f32 %v820, %v439
          %v822 = vrot.slane %v821, 4
          %v823 = vmax.f32 %v821, %v822
          %v824 = vrot.slane %v823, 2
          %v825 = vmax.f32 %v823, %v824
          %v826 = vrot.slane %v825, 1
          %v827 = vmax.f32 %v825, %v826
          %v828 = vmax.f32 %v328, %v344
          %v829 = vmax.f32 %v828, %v360
          %v830 = vmax.f32 %v829, %v376
          %v831 = vmax.f32 %v830, %v392
          %v832 = vmax.f32 %v831, %v408
          %v833 = vmax.f32 %v832, %v424
          %v834 = vmax.f32 %v833, %v440
          %v835 = vrot.slane %v834, 4
          %v836 = vmax.f32 %v834, %v835
          %v837 = vrot.slane %v836, 2
          %v838 = vmax.f32 %v836, %v837
          %v839 = vrot.slane %v838, 1
          %v840 = vmax.f32 %v838, %v839
          %v841 = vmax.f32 %v329, %v345
          %v842 = vmax.f32 %v841, %v361
          %v843 = vmax.f32 %v842, %v377
          %v844 = vmax.f32 %v843, %v393
          %v845 = vmax.f32 %v844, %v409
          %v846 = vmax.f32 %v845, %v425
          %v847 = vmax.f32 %v846, %v441
          %v848 = vrot.slane %v847, 4
          %v849 = vmax.f32 %v847, %v848
          %v850 = vrot.slane %v849, 2
          %v851 = vmax.f32 %v849, %v850
          %v852 = vrot.slane %v851, 1
          %v853 = vmax.f32 %v851, %v852
          %v854 = vmax.f32 %v330, %v346
          %v855 = vmax.f32 %v854, %v362
          %v856 = vmax.f32 %v855, %v378
          %v857 = vmax.f32 %v856, %v394
          %v858 = vmax.f32 %v857, %v410
          %v859 = vmax.f32 %v858, %v426
          %v860 = vmax.f32 %v859, %v442
          %v861 = vrot.slane %v860, 4
          %v862 = vmax.f32 %v860, %v861
          %v863 = vrot.slane %v862, 2
          %v864 = vmax.f32 %v862, %v863
          %v865 = vrot.slane %v864, 1
          %v866 = vmax.f32 %v864, %v865
          %v867 = vmax.f32 %v331, %v347
          %v868 = vmax.f32 %v867, %v363
          %v869 = vmax.f32 %v868, %v379
          %v870 = vmax.f32 %v869, %v395
          %v871 = vmax.f32 %v870, %v411
          %v872 = vmax.f32 %v871, %v427
          %v873 = vmax.f32 %v872, %v443
          %v874 = vrot.slane %v873, 4
          %v875 = vmax.f32 %v873, %v874
          %v876 = vrot.slane %v875, 2
          %v877 = vmax.f32 %v875, %v876
          %v878 = vrot.slane %v877, 1
          %v879 = vmax.f32 %v877, %v878
          %v880 = vmax.f32 %v332, %v348
          %v881 = vmax.f32 %v880, %v364
          %v882 = vmax.f32 %v881, %v380
          %v883 = vmax.f32 %v882, %v396
          %v884 = vmax.f32 %v883, %v412
          %v885 = vmax.f32 %v884, %v428
          %v886 = vmax.f32 %v885, %v444
          %v887 = vrot.slane %v886, 4
          %v888 = vmax.f32 %v886, %v887
          %v889 = vrot.slane %v888, 2
          %v890 = vmax.f32 %v888, %v889
          %v891 = vrot.slane %v890, 1
          %v892 = vmax.f32 %v890, %v891
          %v893 = vmax.f32 %v333, %v349
          %v894 = vmax.f32 %v893, %v365
          %v895 = vmax.f32 %v894, %v381
          %v896 = vmax.f32 %v895, %v397
          %v897 = vmax.f32 %v896, %v413
          %v898 = vmax.f32 %v897, %v429
          %v899 = vmax.f32 %v898, %v445
          %v900 = vrot.slane %v899, 4
          %v901 = vmax.f32 %v899, %v900
          %v902 = vrot.slane %v901, 2
          %v903 = vmax.f32 %v901, %v902
          %v904 = vrot.slane %v903, 1
          %v905 = vmax.f32 %v903, %v904
          %v906 = vmax.f32 %v334, %v350
          %v907 = vmax.f32 %v906, %v366
          %v908 = vmax.f32 %v907, %v382
          %v909 = vmax.f32 %v908, %v398
          %v910 = vmax.f32 %v909, %v414
          %v911 = vmax.f32 %v910, %v430
          %v912 = vmax.f32 %v911, %v446
          %v913 = vrot.slane %v912, 4
          %v914 = vmax.f32 %v912, %v913
          %v915 = vrot.slane %v914, 2
          %v916 = vmax.f32 %v914, %v915
          %v917 = vrot.slane %v916, 1
          %v918 = vmax.f32 %v916, %v917
          %v919 = vmax.f32 %v335, %v351
          %v920 = vmax.f32 %v919, %v367
          %v921 = vmax.f32 %v920, %v383
          %v922 = vmax.f32 %v921, %v399
          %v923 = vmax.f32 %v922, %v415
          %v924 = vmax.f32 %v923, %v431
          %v925 = vmax.f32 %v924, %v447
          %v926 = vrot.slane %v925, 4
          %v927 = vmax.f32 %v925, %v926
          %v928 = vrot.slane %v927, 2
          %v929 = vmax.f32 %v927, %v928
          %v930 = vrot.slane %v929, 1
          %v931 = vmax.f32 %v929, %v930
          %v932 = vmax.f32 %v336, %v352
          %v933 = vmax.f32 %v932, %v368
          %v934 = vmax.f32 %v933, %v384
          %v935 = vmax.f32 %v934, %v400
          %v936 = vmax.f32 %v935, %v416
          %v937 = vmax.f32 %v936, %v432
          %v938 = vmax.f32 %v937, %v448
          %v939 = vrot.slane %v938, 4
          %v940 = vmax.f32 %v938, %v939
          %v941 = vrot.slane %v940, 2
          %v942 = vmax.f32 %v940, %v941
          %v943 = vrot.slane %v942, 1
          %v944 = vmax.f32 %v942, %v943
          %v945 = vmax.f32 %v337, %v353
          %v946 = vmax.f32 %v945, %v369
          %v947 = vmax.f32 %v946, %v385
          %v948 = vmax.f32 %v947, %v401
          %v949 = vmax.f32 %v948, %v417
          %v950 = vmax.f32 %v949, %v433
          %v951 = vmax.f32 %v950, %v449
          %v952 = vrot.slane %v951, 4
          %v953 = vmax.f32 %v951, %v952
          %v954 = vrot.slane %v953, 2
          %v955 = vmax.f32 %v953, %v954
          %v956 = vrot.slane %v955, 1
          %v957 = vmax.f32 %v955, %v956
          %v958 = vmax.f32 %v338, %v354
          %v959 = vmax.f32 %v958, %v370
          %v960 = vmax.f32 %v959, %v386
          %v961 = vmax.f32 %v960, %v402
          %v962 = vmax.f32 %v961, %v418
          %v963 = vmax.f32 %v962, %v434
          %v964 = vmax.f32 %v963, %v450
          %v965 = vrot.slane %v964, 4
          %v966 = vmax.f32 %v964, %v965
          %v967 = vrot.slane %v966, 2
          %v968 = vmax.f32 %v966, %v967
          %v969 = vrot.slane %v968, 1
          %v970 = vmax.f32 %v968, %v969
          %v971 = vmax.f32 %v339, %v355
          %v972 = vmax.f32 %v971, %v371
          %v973 = vmax.f32 %v972, %v387
          %v974 = vmax.f32 %v973, %v403
          %v975 = vmax.f32 %v974, %v419
          %v976 = vmax.f32 %v975, %v435
          %v977 = vmax.f32 %v976, %v451
          %v978 = vrot.slane %v977, 4
          %v979 = vmax.f32 %v977, %v978
          %v980 = vrot.slane %v979, 2
          %v981 = vmax.f32 %v979, %v980
          %v982 = vrot.slane %v981, 1
          %v983 = vmax.f32 %v981, %v982
          %v984 = vmax.f32 %v340, %v356
          %v985 = vmax.f32 %v984, %v372
          %v986 = vmax.f32 %v985, %v388
          %v987 = vmax.f32 %v986, %v404
          %v988 = vmax.f32 %v987, %v420
          %v989 = vmax.f32 %v988, %v436
          %v990 = vmax.f32 %v989, %v452
          %v991 = vrot.slane %v990, 4
          %v992 = vmax.f32 %v990, %v991
          %v993 = vrot.slane %v992, 2
          %v994 = vmax.f32 %v992, %v993
          %v995 = vrot.slane %v994, 1
          %v996 = vmax.f32 %v994, %v995
          %v1013 = vcombine.low %v801, %v814
          %v1014 = vcombine.low %v827, %v840
          %v1015 = vcombine.low %v853, %v866
          %v1016 = vcombine.low %v879, %v892
          %v1018 = vunpack.c.l.s4 1966171168
          %v1019 = vunpack.c.0.s8 %v1018
          %v1020 = vlaneseq
          %v1021 = vshrl.u32 %v1020, 7
          %v1022 = vsub.s32 %v1019, %v1021
          %v1023 = vrot.slane %v1013, %v1022
          %v1025 = vunpack.c.l.s4 1966171168
          %v1026 = vunpack.c.0.s8 %v1025
          %v1027 = vlaneseq
          %v1028 = vshrl.u32 %v1027, 7
          %v1029 = vsub.s32 %v1026, %v1028
          %v1030 = vrot.slane %v1014, %v1029
          %v1032 = vunpack.c.l.s4 1966171168
          %v1033 = vunpack.c.0.s8 %v1032
          %v1034 = vlaneseq
          %v1035 = vshrl.u32 %v1034, 7
          %v1036 = vsub.s32 %v1033, %v1035
          %v1037 = vrot.slane %v1015, %v1036
          %v1039 = vunpack.c.l.s4 1966171168
          %v1040 = vunpack.c.0.s8 %v1039
          %v1041 = vlaneseq
          %v1042 = vshrl.u32 %v1041, 7
          %v1043 = vsub.s32 %v1040, %v1042
          %v1044 = vrot.slane %v1016, %v1043
          %v1045 = vcombine.low %v1023, %v1030
          %v1046 = vcombine.low %v1037, %v1044
          %v1048 = vunpack.c.l.s4 1966171168
          %v1049 = vunpack.c.0.s8 %v1048
          %v1050 = vlaneseq
          %v1051 = vshrl.u32 %v1050, 7
          %v1052 = vsub.s32 %v1049, %v1051
          %v1053 = vrot.slane %v1045, %v1052
          %v1055 = vunpack.c.l.s4 1966171168
          %v1056 = vunpack.c.0.s8 %v1055
          %v1057 = vlaneseq
          %v1058 = vshrl.u32 %v1057, 7
          %v1059 = vsub.s32 %v1056, %v1058
          %v1060 = vrot.slane %v1046, %v1059
          %v1061 = vcombine.low %v1053, %v1060
          %v1062 = vcombine.low %v905, %v918
          %v1063 = vcombine.low %v931, %v944
          %v1064 = vcombine.low %v957, %v970
          %v1065 = vcombine.low %v983, %v996
          %v1067 = vunpack.c.l.s4 1966171168
          %v1068 = vunpack.c.0.s8 %v1067
          %v1069 = vlaneseq
          %v1070 = vshrl.u32 %v1069, 7
          %v1071 = vsub.s32 %v1068, %v1070
          %v1072 = vrot.slane %v1062, %v1071
          %v1074 = vunpack.c.l.s4 1966171168
          %v1075 = vunpack.c.0.s8 %v1074
          %v1076 = vlaneseq
          %v1077 = vshrl.u32 %v1076, 7
          %v1078 = vsub.s32 %v1075, %v1077
          %v1079 = vrot.slane %v1063, %v1078
          %v1081 = vunpack.c.l.s4 1966171168
          %v1082 = vunpack.c.0.s8 %v1081
          %v1083 = vlaneseq
          %v1084 = vshrl.u32 %v1083, 7
          %v1085 = vsub.s32 %v1082, %v1084
          %v1086 = vrot.slane %v1064, %v1085
          %v1088 = vunpack.c.l.s4 1966171168
          %v1089 = vunpack.c.0.s8 %v1088
          %v1090 = vlaneseq
          %v1091 = vshrl.u32 %v1090, 7
          %v1092 = vsub.s32 %v1089, %v1091
          %v1093 = vrot.slane %v1065, %v1092
          %v1094 = vcombine.low %v1072, %v1079
          %v1095 = vcombine.low %v1086, %v1093
          %v1097 = vunpack.c.l.s4 1966171168
          %v1098 = vunpack.c.0.s8 %v1097
          %v1099 = vlaneseq
          %v1100 = vshrl.u32 %v1099, 7
          %v1101 = vsub.s32 %v1098, %v1100
          %v1102 = vrot.slane %v1094, %v1101
          %v1104 = vunpack.c.l.s4 1966171168
          %v1105 = vunpack.c.0.s8 %v1104
          %v1106 = vlaneseq
          %v1107 = vshrl.u32 %v1106, 7
          %v1108 = vsub.s32 %v1105, %v1107
          %v1109 = vrot.slane %v1095, %v1108
          %v1110 = vcombine.low %v1102, %v1109
          %v1113 = vmax.f32 %v787, %v1061
          %v1114 = vmax.f32 %v788, %v1110
          %1115 = vst [vmem:[#allocation3] sm:$0xff] %v1113
          %1116 = vst [vmem:[#allocation3 + $0x8] sm:$0xff] %v1114
        $region48: #{tpu_custom_call.1} parent=39 // pred_fallthru
          _
        %p1117 = scmp.eq.s32.totalorder %s29, 3
        // Predicated region
        $region49: #{tpu_custom_call.1} parent=39 // pred_check
          %p1118 = pneg %p1117
        $region50: #{tpu_custom_call.1} parent=39 // pred_check_branch
          %1120 = sbr.rel (%p1118) target = $region52
        $region51: #{tpu_custom_call.1} parent=39 // pred_region
          %v1121 = vlaneseq
          %v1122 = vshrl.u32 %v1121, 7
          %v1123 = vadd.s32 %v1122, 8
          %v1124 = vadd.s32 %v1122, 16
          %v1125 = vadd.s32 %v1122, 24
          %v1126 = vadd.s32 %v1122, 32
          %v1127 = vadd.s32 %v1122, 40
          %v1128 = vadd.s32 %v1122, 48
          %v1129 = vadd.s32 %v1122, 56
          %s1130 = smul.u32 %s29, 64
          %v1131 = vstv %s1130
          %v1132 = vadd.s32 %v1131, %v1122
          %v1133 = vadd.s32 %v1131, %v1123
          %v1134 = vadd.s32 %v1131, %v1124
          %v1135 = vadd.s32 %v1131, %v1125
          %v1136 = vadd.s32 %v1131, %v1126
          %v1137 = vadd.s32 %v1131, %v1127
          %v1138 = vadd.s32 %v1131, %v1128
          %v1139 = vadd.s32 %v1131, %v1129
          %vm1140 = vcmp.lt.s32.totalorder %v1132, 196
          %vm1141 = vcmp.lt.s32.totalorder %v1133, 196
          %vm1142 = vcmp.lt.s32.totalorder %v1134, 196
          %vm1143 = vcmp.lt.s32.totalorder %v1135, 196
          %vm1144 = vcmp.lt.s32.totalorder %v1136, 196
          %vm1145 = vcmp.lt.s32.totalorder %v1137, 196
          %vm1146 = vcmp.lt.s32.totalorder %v1138, 196
          %vm1147 = vcmp.lt.s32.totalorder %v1139, 196
          %v1148 = vld [vmem:[#allocation2] sm:$0xff]
          %v1149 = vld [vmem:[#allocation2 + $0x8] sm:$0xff]
          %v1150 = vsel %vm1140, 1, 0
          %v1151 = vsel %vm1141, 1, 0
          %v1152 = vsel %vm1142, 1, 0
          %v1153 = vsel %vm1143, 1, 0
          %v1154 = vsel %vm1144, 1, 0
          %v1155 = vsel %vm1145, 1, 0
          %v1156 = vsel %vm1146, 1, 0
          %v1157 = vsel %vm1147, 1, 0
          %vm1158 = vcmp.eq.s32.totalorder %v1150, 1
          %vm1159 = vcmp.eq.s32.totalorder %v1151, 1
          %vm1160 = vcmp.eq.s32.totalorder %v1152, 1
          %vm1161 = vcmp.eq.s32.totalorder %v1153, 1
          %vm1162 = vcmp.eq.s32.totalorder %v1154, 1
          %vm1163 = vcmp.eq.s32.totalorder %v1155, 1
          %vm1164 = vcmp.eq.s32.totalorder %v1156, 1
          %vm1165 = vcmp.eq.s32.totalorder %v1157, 1
          %v1166 = vsel %vm1158, %v325, 0.0
          %v1167 = vsel %vm1158, %v326, 0.0
          %v1168 = vsel %vm1158, %v327, 0.0
          %v1169 = vsel %vm1158, %v328, 0.0
          %v1170 = vsel %vm1158, %v329, 0.0
          %v1171 = vsel %vm1158, %v330, 0.0
          %v1172 = vsel %vm1158, %v331, 0.0
          %v1173 = vsel %vm1158, %v332, 0.0
          %v1174 = vsel %vm1158, %v333, 0.0
          %v1175 = vsel %vm1158, %v334, 0.0
          %v1176 = vsel %vm1158, %v335, 0.0
          %v1177 = vsel %vm1158, %v336, 0.0
          %v1178 = vsel %vm1158, %v337, 0.0
          %v1179 = vsel %vm1158, %v338, 0.0
          %v1180 = vsel %vm1158, %v339, 0.0
          %v1181 = vsel %vm1158, %v340, 0.0
          %v1182 = vsel %vm1159, %v341, 0.0
          %v1183 = vsel %vm1159, %v342, 0.0
          %v1184 = vsel %vm1159, %v343, 0.0
          %v1185 = vsel %vm1159, %v344, 0.0
          %v1186 = vsel %vm1159, %v345, 0.0
          %v1187 = vsel %vm1159, %v346, 0.0
          %v1188 = vsel %vm1159, %v347, 0.0
          %v1189 = vsel %vm1159, %v348, 0.0
          %v1190 = vsel %vm1159, %v349, 0.0
          %v1191 = vsel %vm1159, %v350, 0.0
          %v1192 = vsel %vm1159, %v351, 0.0
          %v1193 = vsel %vm1159, %v352, 0.0
          %v1194 = vsel %vm1159, %v353, 0.0
          %v1195 = vsel %vm1159, %v354, 0.0
          %v1196 = vsel %vm1159, %v355, 0.0
          %v1197 = vsel %vm1159, %v356, 0.0
          %v1198 = vsel %vm1160, %v357, 0.0
          %v1199 = vsel %vm1160, %v358, 0.0
          %v1200 = vsel %vm1160, %v359, 0.0
          %v1201 = vsel %vm1160, %v360, 0.0
          %v1202 = vsel %vm1160, %v361, 0.0
          %v1203 = vsel %vm1160, %v362, 0.0
          %v1204 = vsel %vm1160, %v363, 0.0
          %v1205 = vsel %vm1160, %v364, 0.0
          %v1206 = vsel %vm1160, %v365, 0.0
          %v1207 = vsel %vm1160, %v366, 0.0
          %v1208 = vsel %vm1160, %v367, 0.0
          %v1209 = vsel %vm1160, %v368, 0.0
          %v1210 = vsel %vm1160, %v369, 0.0
          %v1211 = vsel %vm1160, %v370, 0.0
          %v1212 = vsel %vm1160, %v371, 0.0
          %v1213 = vsel %vm1160, %v372, 0.0
          %v1214 = vsel %vm1161, %v373, 0.0
          %v1215 = vsel %vm1161, %v374, 0.0
          %v1216 = vsel %vm1161, %v375, 0.0
          %v1217 = vsel %vm1161, %v376, 0.0
          %v1218 = vsel %vm1161, %v377, 0.0
          %v1219 = vsel %vm1161, %v378, 0.0
          %v1220 = vsel %vm1161, %v379, 0.0
          %v1221 = vsel %vm1161, %v380, 0.0
          %v1222 = vsel %vm1161, %v381, 0.0
          %v1223 = vsel %vm1161, %v382, 0.0
          %v1224 = vsel %vm1161, %v383, 0.0
          %v1225 = vsel %vm1161, %v384, 0.0
          %v1226 = vsel %vm1161, %v385, 0.0
          %v1227 = vsel %vm1161, %v386, 0.0
          %v1228 = vsel %vm1161, %v387, 0.0
          %v1229 = vsel %vm1161, %v388, 0.0
          %v1230 = vsel %vm1162, %v389, 0.0
          %v1231 = vsel %vm1162, %v390, 0.0
          %v1232 = vsel %vm1162, %v391, 0.0
          %v1233 = vsel %vm1162, %v392, 0.0
          %v1234 = vsel %vm1162, %v393, 0.0
          %v1235 = vsel %vm1162, %v394, 0.0
          %v1236 = vsel %vm1162, %v395, 0.0
          %v1237 = vsel %vm1162, %v396, 0.0
          %v1238 = vsel %vm1162, %v397, 0.0
          %v1239 = vsel %vm1162, %v398, 0.0
          %v1240 = vsel %vm1162, %v399, 0.0
          %v1241 = vsel %vm1162, %v400, 0.0
          %v1242 = vsel %vm1162, %v401, 0.0
          %v1243 = vsel %vm1162, %v402, 0.0
          %v1244 = vsel %vm1162, %v403, 0.0
          %v1245 = vsel %vm1162, %v404, 0.0
          %v1246 = vsel %vm1163, %v405, 0.0
          %v1247 = vsel %vm1163, %v406, 0.0
          %v1248 = vsel %vm1163, %v407, 0.0
          %v1249 = vsel %vm1163, %v408, 0.0
          %v1250 = vsel %vm1163, %v409, 0.0
          %v1251 = vsel %vm1163, %v410, 0.0
          %v1252 = vsel %vm1163, %v411, 0.0
          %v1253 = vsel %vm1163, %v412, 0.0
          %v1254 = vsel %vm1163, %v413, 0.0
          %v1255 = vsel %vm1163, %v414, 0.0
          %v1256 = vsel %vm1163, %v415, 0.0
          %v1257 = vsel %vm1163, %v416, 0.0
          %v1258 = vsel %vm1163, %v417, 0.0
          %v1259 = vsel %vm1163, %v418, 0.0
          %v1260 = vsel %vm1163, %v419, 0.0
          %v1261 = vsel %vm1163, %v420, 0.0
          %v1262 = vsel %vm1164, %v421, 0.0
          %v1263 = vsel %vm1164, %v422, 0.0
          %v1264 = vsel %vm1164, %v423, 0.0
          %v1265 = vsel %vm1164, %v424, 0.0
          %v1266 = vsel %vm1164, %v425, 0.0
          %v1267 = vsel %vm1164, %v426, 0.0
          %v1268 = vsel %vm1164, %v427, 0.0
          %v1269 = vsel %vm1164, %v428, 0.0
          %v1270 = vsel %vm1164, %v429, 0.0
          %v1271 = vsel %vm1164, %v430, 0.0
          %v1272 = vsel %vm1164, %v431, 0.0
          %v1273 = vsel %vm1164, %v432, 0.0
          %v1274 = vsel %vm1164, %v433, 0.0
          %v1275 = vsel %vm1164, %v434, 0.0
          %v1276 = vsel %vm1164, %v435, 0.0
          %v1277 = vsel %vm1164, %v436, 0.0
          %v1278 = vsel %vm1165, %v437, 0.0
          %v1279 = vsel %vm1165, %v438, 0.0
          %v1280 = vsel %vm1165, %v439, 0.0
          %v1281 = vsel %vm1165, %v440, 0.0
          %v1282 = vsel %vm1165, %v441, 0.0
          %v1283 = vsel %vm1165, %v442, 0.0
          %v1284 = vsel %vm1165, %v443, 0.0
          %v1285 = vsel %vm1165, %v444, 0.0
          %v1286 = vsel %vm1165, %v445, 0.0
          %v1287 = vsel %vm1165, %v446, 0.0
          %v1288 = vsel %vm1165, %v447, 0.0
          %v1289 = vsel %vm1165, %v448, 0.0
          %v1290 = vsel %vm1165, %v449, 0.0
          %v1291 = vsel %vm1165, %v450, 0.0
          %v1292 = vsel %vm1165, %v451, 0.0
          %v1293 = vsel %vm1165, %v452, 0.0
          %v1294 = vadd.f32 %v1166, %v1182
          %v1295 = vadd.f32 %v1294, %v1198
          %v1296 = vadd.f32 %v1295, %v1214
          %v1297 = vadd.f32 %v1296, %v1230
          %v1298 = vadd.f32 %v1297, %v1246
          %v1299 = vadd.f32 %v1298, %v1262
          %v1300 = vadd.f32 %v1299, %v1278
          %v1301 = vrot.slane %v1300, 4
          %v1302 = vadd.f32 %v1300, %v1301
          %v1303 = vrot.slane %v1302, 2
          %v1304 = vadd.f32 %v1302, %v1303
          %v1305 = vrot.slane %v1304, 1
          %v1306 = vadd.f32 %v1304, %v1305
          %v1307 = vadd.f32 %v1167, %v1183
          %v1308 = vadd.f32 %v1307, %v1199
          %v1309 = vadd.f32 %v1308, %v1215
          %v1310 = vadd.f32 %v1309, %v1231
          %v1311 = vadd.f32 %v1310, %v1247
          %v1312 = vadd.f32 %v1311, %v1263
          %v1313 = vadd.f32 %v1312, %v1279
          %v1314 = vrot.slane %v1313, 4
          %v1315 = vadd.f32 %v1313, %v1314
          %v1316 = vrot.slane %v1315, 2
          %v1317 = vadd.f32 %v1315, %v1316
          %v1318 = vrot.slane %v1317, 1
          %v1319 = vadd.f32 %v1317, %v1318
          %v1320 = vadd.f32 %v1168, %v1184
          %v1321 = vadd.f32 %v1320, %v1200
          %v1322 = vadd.f32 %v1321, %v1216
          %v1323 = vadd.f32 %v1322, %v1232
          %v1324 = vadd.f32 %v1323, %v1248
          %v1325 = vadd.f32 %v1324, %v1264
          %v1326 = vadd.f32 %v1325, %v1280
          %v1327 = vrot.slane %v1326, 4
          %v1328 = vadd.f32 %v1326, %v1327
          %v1329 = vrot.slane %v1328, 2
          %v1330 = vadd.f32 %v1328, %v1329
          %v1331 = vrot.slane %v1330, 1
          %v1332 = vadd.f32 %v1330, %v1331
          %v1333 = vadd.f32 %v1169, %v1185
          %v1334 = vadd.f32 %v1333, %v1201
          %v1335 = vadd.f32 %v1334, %v1217
          %v1336 = vadd.f32 %v1335, %v1233
          %v1337 = vadd.f32 %v1336, %v1249
          %v1338 = vadd.f32 %v1337, %v1265
          %v1339 = vadd.f32 %v1338, %v1281
          %v1340 = vrot.slane %v1339, 4
          %v1341 = vadd.f32 %v1339, %v1340
          %v1342 = vrot.slane %v1341, 2
          %v1343 = vadd.f32 %v1341, %v1342
          %v1344 = vrot.slane %v1343, 1
          %v1345 = vadd.f32 %v1343, %v1344
          %v1346 = vadd.f32 %v1170, %v1186
          %v1347 = vadd.f32 %v1346, %v1202
          %v1348 = vadd.f32 %v1347, %v1218
          %v1349 = vadd.f32 %v1348, %v1234
          %v1350 = vadd.f32 %v1349, %v1250
          %v1351 = vadd.f32 %v1350, %v1266
          %v1352 = vadd.f32 %v1351, %v1282
          %v1353 = vrot.slane %v1352, 4
          %v1354 = vadd.f32 %v1352, %v1353
          %v1355 = vrot.slane %v1354, 2
          %v1356 = vadd.f32 %v1354, %v1355
          %v1357 = vrot.slane %v1356, 1
          %v1358 = vadd.f32 %v1356, %v1357
          %v1359 = vadd.f32 %v1171, %v1187
          %v1360 = vadd.f32 %v1359, %v1203
          %v1361 = vadd.f32 %v1360, %v1219
          %v1362 = vadd.f32 %v1361, %v1235
          %v1363 = vadd.f32 %v1362, %v1251
          %v1364 = vadd.f32 %v1363, %v1267
          %v1365 = vadd.f32 %v1364, %v1283
          %v1366 = vrot.slane %v1365, 4
          %v1367 = vadd.f32 %v1365, %v1366
          %v1368 = vrot.slane %v1367, 2
          %v1369 = vadd.f32 %v1367, %v1368
          %v1370 = vrot.slane %v1369, 1
          %v1371 = vadd.f32 %v1369, %v1370
          %v1372 = vadd.f32 %v1172, %v1188
          %v1373 = vadd.f32 %v1372, %v1204
          %v1374 = vadd.f32 %v1373, %v1220
          %v1375 = vadd.f32 %v1374, %v1236
          %v1376 = vadd.f32 %v1375, %v1252
          %v1377 = vadd.f32 %v1376, %v1268
          %v1378 = vadd.f32 %v1377, %v1284
          %v1379 = vrot.slane %v1378, 4
          %v1380 = vadd.f32 %v1378, %v1379
          %v1381 = vrot.slane %v1380, 2
          %v1382 = vadd.f32 %v1380, %v1381
          %v1383 = vrot.slane %v1382, 1
          %v1384 = vadd.f32 %v1382, %v1383
          %v1385 = vadd.f32 %v1173, %v1189
          %v1386 = vadd.f32 %v1385, %v1205
          %v1387 = vadd.f32 %v1386, %v1221
          %v1388 = vadd.f32 %v1387, %v1237
          %v1389 = vadd.f32 %v1388, %v1253
          %v1390 = vadd.f32 %v1389, %v1269
          %v1391 = vadd.f32 %v1390, %v1285
          %v1392 = vrot.slane %v1391, 4
          %v1393 = vadd.f32 %v1391, %v1392
          %v1394 = vrot.slane %v1393, 2
          %v1395 = vadd.f32 %v1393, %v1394
          %v1396 = vrot.slane %v1395, 1
          %v1397 = vadd.f32 %v1395, %v1396
          %v1398 = vadd.f32 %v1174, %v1190
          %v1399 = vadd.f32 %v1398, %v1206
          %v1400 = vadd.f32 %v1399, %v1222
          %v1401 = vadd.f32 %v1400, %v1238
          %v1402 = vadd.f32 %v1401, %v1254
          %v1403 = vadd.f32 %v1402, %v1270
          %v1404 = vadd.f32 %v1403, %v1286
          %v1405 = vrot.slane %v1404, 4
          %v1406 = vadd.f32 %v1404, %v1405
          %v1407 = vrot.slane %v1406, 2
          %v1408 = vadd.f32 %v1406, %v1407
          %v1409 = vrot.slane %v1408, 1
          %v1410 = vadd.f32 %v1408, %v1409
          %v1411 = vadd.f32 %v1175, %v1191
          %v1412 = vadd.f32 %v1411, %v1207
          %v1413 = vadd.f32 %v1412, %v1223
          %v1414 = vadd.f32 %v1413, %v1239
          %v1415 = vadd.f32 %v1414, %v1255
          %v1416 = vadd.f32 %v1415, %v1271
          %v1417 = vadd.f32 %v1416, %v1287
          %v1418 = vrot.slane %v1417, 4
          %v1419 = vadd.f32 %v1417, %v1418
          %v1420 = vrot.slane %v1419, 2
          %v1421 = vadd.f32 %v1419, %v1420
          %v1422 = vrot.slane %v1421, 1
          %v1423 = vadd.f32 %v1421, %v1422
          %v1424 = vadd.f32 %v1176, %v1192
          %v1425 = vadd.f32 %v1424, %v1208
          %v1426 = vadd.f32 %v1425, %v1224
          %v1427 = vadd.f32 %v1426, %v1240
          %v1428 = vadd.f32 %v1427, %v1256
          %v1429 = vadd.f32 %v1428, %v1272
          %v1430 = vadd.f32 %v1429, %v1288
          %v1431 = vrot.slane %v1430, 4
          %v1432 = vadd.f32 %v1430, %v1431
          %v1433 = vrot.slane %v1432, 2
          %v1434 = vadd.f32 %v1432, %v1433
          %v1435 = vrot.slane %v1434, 1
          %v1436 = vadd.f32 %v1434, %v1435
          %v1437 = vadd.f32 %v1177, %v1193
          %v1438 = vadd.f32 %v1437, %v1209
          %v1439 = vadd.f32 %v1438, %v1225
          %v1440 = vadd.f32 %v1439, %v1241
          %v1441 = vadd.f32 %v1440, %v1257
          %v1442 = vadd.f32 %v1441, %v1273
          %v1443 = vadd.f32 %v1442, %v1289
          %v1444 = vrot.slane %v1443, 4
          %v1445 = vadd.f32 %v1443, %v1444
          %v1446 = vrot.slane %v1445, 2
          %v1447 = vadd.f32 %v1445, %v1446
          %v1448 = vrot.slane %v1447, 1
          %v1449 = vadd.f32 %v1447, %v1448
          %v1450 = vadd.f32 %v1178, %v1194
          %v1451 = vadd.f32 %v1450, %v1210
          %v1452 = vadd.f32 %v1451, %v1226
          %v1453 = vadd.f32 %v1452, %v1242
          %v1454 = vadd.f32 %v1453, %v1258
          %v1455 = vadd.f32 %v1454, %v1274
          %v1456 = vadd.f32 %v1455, %v1290
          %v1457 = vrot.slane %v1456, 4
          %v1458 = vadd.f32 %v1456, %v1457
          %v1459 = vrot.slane %v1458, 2
          %v1460 = vadd.f32 %v1458, %v1459
          %v1461 = vrot.slane %v1460, 1
          %v1462 = vadd.f32 %v1460, %v1461
          %v1463 = vadd.f32 %v1179, %v1195
          %v1464 = vadd.f32 %v1463, %v1211
          %v1465 = vadd.f32 %v1464, %v1227
          %v1466 = vadd.f32 %v1465, %v1243
          %v1467 = vadd.f32 %v1466, %v1259
          %v1468 = vadd.f32 %v1467, %v1275
          %v1469 = vadd.f32 %v1468, %v1291
          %v1470 = vrot.slane %v1469, 4
          %v1471 = vadd.f32 %v1469, %v1470
          %v1472 = vrot.slane %v1471, 2
          %v1473 = vadd.f32 %v1471, %v1472
          %v1474 = vrot.slane %v1473, 1
          %v1475 = vadd.f32 %v1473, %v1474
          %v1476 = vadd.f32 %v1180, %v1196
          %v1477 = vadd.f32 %v1476, %v1212
          %v1478 = vadd.f32 %v1477, %v1228
          %v1479 = vadd.f32 %v1478, %v1244
          %v1480 = vadd.f32 %v1479, %v1260
          %v1481 = vadd.f32 %v1480, %v1276
          %v1482 = vadd.f32 %v1481, %v1292
          %v1483 = vrot.slane %v1482, 4
          %v1484 = vadd.f32 %v1482, %v1483
          %v1485 = vrot.slane %v1484, 2
          %v1486 = vadd.f32 %v1484, %v1485
          %v1487 = vrot.slane %v1486, 1
          %v1488 = vadd.f32 %v1486, %v1487
          %v1489 = vadd.f32 %v1181, %v1197
          %v1490 = vadd.f32 %v1489, %v1213
          %v1491 = vadd.f32 %v1490, %v1229
          %v1492 = vadd.f32 %v1491, %v1245
          %v1493 = vadd.f32 %v1492, %v1261
          %v1494 = vadd.f32 %v1493, %v1277
          %v1495 = vadd.f32 %v1494, %v1293
          %v1496 = vrot.slane %v1495, 4
          %v1497 = vadd.f32 %v1495, %v1496
          %v1498 = vrot.slane %v1497, 2
          %v1499 = vadd.f32 %v1497, %v1498
          %v1500 = vrot.slane %v1499, 1
          %v1501 = vadd.f32 %v1499, %v1500
          %v1518 = vcombine.low %v1306, %v1319
          %v1519 = vcombine.low %v1332, %v1345
          %v1520 = vcombine.low %v1358, %v1371
          %v1521 = vcombine.low %v1384, %v1397
          %v1523 = vunpack.c.l.s4 1966171168
          %v1524 = vunpack.c.0.s8 %v1523
          %v1525 = vlaneseq
          %v1526 = vshrl.u32 %v1525, 7
          %v1527 = vsub.s32 %v1524, %v1526
          %v1528 = vrot.slane %v1518, %v1527
          %v1530 = vunpack.c.l.s4 1966171168
          %v1531 = vunpack.c.0.s8 %v1530
          %v1532 = vlaneseq
          %v1533 = vshrl.u32 %v1532, 7
          %v1534 = vsub.s32 %v1531, %v1533
          %v1535 = vrot.slane %v1519, %v1534
          %v1537 = vunpack.c.l.s4 1966171168
          %v1538 = vunpack.c.0.s8 %v1537
          %v1539 = vlaneseq
          %v1540 = vshrl.u32 %v1539, 7
          %v1541 = vsub.s32 %v1538, %v1540
          %v1542 = vrot.slane %v1520, %v1541
          %v1544 = vunpack.c.l.s4 1966171168
          %v1545 = vunpack.c.0.s8 %v1544
          %v1546 = vlaneseq
          %v1547 = vshrl.u32 %v1546, 7
          %v1548 = vsub.s32 %v1545, %v1547
          %v1549 = vrot.slane %v1521, %v1548
          %v1550 = vcombine.low %v1528, %v1535
          %v1551 = vcombine.low %v1542, %v1549
          %v1553 = vunpack.c.l.s4 1966171168
          %v1554 = vunpack.c.0.s8 %v1553
          %v1555 = vlaneseq
          %v1556 = vshrl.u32 %v1555, 7
          %v1557 = vsub.s32 %v1554, %v1556
          %v1558 = vrot.slane %v1550, %v1557
          %v1560 = vunpack.c.l.s4 1966171168
          %v1561 = vunpack.c.0.s8 %v1560
          %v1562 = vlaneseq
          %v1563 = vshrl.u32 %v1562, 7
          %v1564 = vsub.s32 %v1561, %v1563
          %v1565 = vrot.slane %v1551, %v1564
          %v1566 = vcombine.low %v1558, %v1565
          %v1567 = vcombine.low %v1410, %v1423
          %v1568 = vcombine.low %v1436, %v1449
          %v1569 = vcombine.low %v1462, %v1475
          %v1570 = vcombine.low %v1488, %v1501
          %v1572 = vunpack.c.l.s4 1966171168
          %v1573 = vunpack.c.0.s8 %v1572
          %v1574 = vlaneseq
          %v1575 = vshrl.u32 %v1574, 7
          %v1576 = vsub.s32 %v1573, %v1575
          %v1577 = vrot.slane %v1567, %v1576
          %v1579 = vunpack.c.l.s4 1966171168
          %v1580 = vunpack.c.0.s8 %v1579
          %v1581 = vlaneseq
          %v1582 = vshrl.u32 %v1581, 7
          %v1583 = vsub.s32 %v1580, %v1582
          %v1584 = vrot.slane %v1568, %v1583
          %v1586 = vunpack.c.l.s4 1966171168
          %v1587 = vunpack.c.0.s8 %v1586
          %v1588 = vlaneseq
          %v1589 = vshrl.u32 %v1588, 7
          %v1590 = vsub.s32 %v1587, %v1589
          %v1591 = vrot.slane %v1569, %v1590
          %v1593 = vunpack.c.l.s4 1966171168
          %v1594 = vunpack.c.0.s8 %v1593
          %v1595 = vlaneseq
          %v1596 = vshrl.u32 %v1595, 7
          %v1597 = vsub.s32 %v1594, %v1596
          %v1598 = vrot.slane %v1570, %v1597
          %v1599 = vcombine.low %v1577, %v1584
          %v1600 = vcombine.low %v1591, %v1598
          %v1602 = vunpack.c.l.s4 1966171168
          %v1603 = vunpack.c.0.s8 %v1602
          %v1604 = vlaneseq
          %v1605 = vshrl.u32 %v1604, 7
          %v1606 = vsub.s32 %v1603, %v1605
          %v1607 = vrot.slane %v1599, %v1606
          %v1609 = vunpack.c.l.s4 1966171168
          %v1610 = vunpack.c.0.s8 %v1609
          %v1611 = vlaneseq
          %v1612 = vshrl.u32 %v1611, 7
          %v1613 = vsub.s32 %v1610, %v1612
          %v1614 = vrot.slane %v1600, %v1613
          %v1615 = vcombine.low %v1607, %v1614
          %v1618 = vadd.f32 %v1148, %v1566
          %v1619 = vadd.f32 %v1149, %v1615
          %1620 = vst [vmem:[#allocation2] sm:$0xff] %v1618
          %1621 = vst [vmem:[#allocation2 + $0x8] sm:$0xff] %v1619
          %v1622 = vld [vmem:[#allocation3] sm:$0xff]
          %v1623 = vld [vmem:[#allocation3 + $0x8] sm:$0xff]
          %v1624 = vsel %vm1158, %v325, -inf
          %v1625 = vsel %vm1158, %v326, -inf
          %v1626 = vsel %vm1158, %v327, -inf
          %v1627 = vsel %vm1158, %v328, -inf
          %v1628 = vsel %vm1158, %v329, -inf
          %v1629 = vsel %vm1158, %v330, -inf
          %v1630 = vsel %vm1158, %v331, -inf
          %v1631 = vsel %vm1158, %v332, -inf
          %v1632 = vsel %vm1158, %v333, -inf
          %v1633 = vsel %vm1158, %v334, -inf
          %v1634 = vsel %vm1158, %v335, -inf
          %v1635 = vsel %vm1158, %v336, -inf
          %v1636 = vsel %vm1158, %v337, -inf
          %v1637 = vsel %vm1158, %v338, -inf
          %v1638 = vsel %vm1158, %v339, -inf
          %v1639 = vsel %vm1158, %v340, -inf
          %v1640 = vsel %vm1159, %v341, -inf
          %v1641 = vsel %vm1159, %v342, -inf
          %v1642 = vsel %vm1159, %v343, -inf
          %v1643 = vsel %vm1159, %v344, -inf
          %v1644 = vsel %vm1159, %v345, -inf
          %v1645 = vsel %vm1159, %v346, -inf
          %v1646 = vsel %vm1159, %v347, -inf
          %v1647 = vsel %vm1159, %v348, -inf
          %v1648 = vsel %vm1159, %v349, -inf
          %v1649 = vsel %vm1159, %v350, -inf
          %v1650 = vsel %vm1159, %v351, -inf
          %v1651 = vsel %vm1159, %v352, -inf
          %v1652 = vsel %vm1159, %v353, -inf
          %v1653 = vsel %vm1159, %v354, -inf
          %v1654 = vsel %vm1159, %v355, -inf
          %v1655 = vsel %vm1159, %v356, -inf
          %v1656 = vsel %vm1160, %v357, -inf
          %v1657 = vsel %vm1160, %v358, -inf
          %v1658 = vsel %vm1160, %v359, -inf
          %v1659 = vsel %vm1160, %v360, -inf
          %v1660 = vsel %vm1160, %v361, -inf
          %v1661 = vsel %vm1160, %v362, -inf
          %v1662 = vsel %vm1160, %v363, -inf
          %v1663 = vsel %vm1160, %v364, -inf
          %v1664 = vsel %vm1160, %v365, -inf
          %v1665 = vsel %vm1160, %v366, -inf
          %v1666 = vsel %vm1160, %v367, -inf
          %v1667 = vsel %vm1160, %v368, -inf
          %v1668 = vsel %vm1160, %v369, -inf
          %v1669 = vsel %vm1160, %v370, -inf
          %v1670 = vsel %vm1160, %v371, -inf
          %v1671 = vsel %vm1160, %v372, -inf
          %v1672 = vsel %vm1161, %v373, -inf
          %v1673 = vsel %vm1161, %v374, -inf
          %v1674 = vsel %vm1161, %v375, -inf
          %v1675 = vsel %vm1161, %v376, -inf
          %v1676 = vsel %vm1161, %v377, -inf
          %v1677 = vsel %vm1161, %v378, -inf
          %v1678 = vsel %vm1161, %v379, -inf
          %v1679 = vsel %vm1161, %v380, -inf
          %v1680 = vsel %vm1161, %v381, -inf
          %v1681 = vsel %vm1161, %v382, -inf
          %v1682 = vsel %vm1161, %v383, -inf
          %v1683 = vsel %vm1161, %v384, -inf
          %v1684 = vsel %vm1161, %v385, -inf
          %v1685 = vsel %vm1161, %v386, -inf
          %v1686 = vsel %vm1161, %v387, -inf
          %v1687 = vsel %vm1161, %v388, -inf
          %v1688 = vsel %vm1162, %v389, -inf
          %v1689 = vsel %vm1162, %v390, -inf
          %v1690 = vsel %vm1162, %v391, -inf
          %v1691 = vsel %vm1162, %v392, -inf
          %v1692 = vsel %vm1162, %v393, -inf
          %v1693 = vsel %vm1162, %v394, -inf
          %v1694 = vsel %vm1162, %v395, -inf
          %v1695 = vsel %vm1162, %v396, -inf
          %v1696 = vsel %vm1162, %v397, -inf
          %v1697 = vsel %vm1162, %v398, -inf
          %v1698 = vsel %vm1162, %v399, -inf
          %v1699 = vsel %vm1162, %v400, -inf
          %v1700 = vsel %vm1162, %v401, -inf
          %v1701 = vsel %vm1162, %v402, -inf
          %v1702 = vsel %vm1162, %v403, -inf
          %v1703 = vsel %vm1162, %v404, -inf
          %v1704 = vsel %vm1163, %v405, -inf
          %v1705 = vsel %vm1163, %v406, -inf
          %v1706 = vsel %vm1163, %v407, -inf
          %v1707 = vsel %vm1163, %v408, -inf
          %v1708 = vsel %vm1163, %v409, -inf
          %v1709 = vsel %vm1163, %v410, -inf
          %v1710 = vsel %vm1163, %v411, -inf
          %v1711 = vsel %vm1163, %v412, -inf
          %v1712 = vsel %vm1163, %v413, -inf
          %v1713 = vsel %vm1163, %v414, -inf
          %v1714 = vsel %vm1163, %v415, -inf
          %v1715 = vsel %vm1163, %v416, -inf
          %v1716 = vsel %vm1163, %v417, -inf
          %v1717 = vsel %vm1163, %v418, -inf
          %v1718 = vsel %vm1163, %v419, -inf
          %v1719 = vsel %vm1163, %v420, -inf
          %v1720 = vsel %vm1164, %v421, -inf
          %v1721 = vsel %vm1164, %v422, -inf
          %v1722 = vsel %vm1164, %v423, -inf
          %v1723 = vsel %vm1164, %v424, -inf
          %v1724 = vsel %vm1164, %v425, -inf
          %v1725 = vsel %vm1164, %v426, -inf
          %v1726 = vsel %vm1164, %v427, -inf
          %v1727 = vsel %vm1164, %v428, -inf
          %v1728 = vsel %vm1164, %v429, -inf
          %v1729 = vsel %vm1164, %v430, -inf
          %v1730 = vsel %vm1164, %v431, -inf
          %v1731 = vsel %vm1164, %v432, -inf
          %v1732 = vsel %vm1164, %v433, -inf
          %v1733 = vsel %vm1164, %v434, -inf
          %v1734 = vsel %vm1164, %v435, -inf
          %v1735 = vsel %vm1164, %v436, -inf
          %v1736 = vsel %vm1165, %v437, -inf
          %v1737 = vsel %vm1165, %v438, -inf
          %v1738 = vsel %vm1165, %v439, -inf
          %v1739 = vsel %vm1165, %v440, -inf
          %v1740 = vsel %vm1165, %v441, -inf
          %v1741 = vsel %vm1165, %v442, -inf
          %v1742 = vsel %vm1165, %v443, -inf
          %v1743 = vsel %vm1165, %v444, -inf
          %v1744 = vsel %vm1165, %v445, -inf
          %v1745 = vsel %vm1165, %v446, -inf
          %v1746 = vsel %vm1165, %v447, -inf
          %v1747 = vsel %vm1165, %v448, -inf
          %v1748 = vsel %vm1165, %v449, -inf
          %v1749 = vsel %vm1165, %v450, -inf
          %v1750 = vsel %vm1165, %v451, -inf
          %v1751 = vsel %vm1165, %v452, -inf
          %v1752 = vmax.f32 %v1624, %v1640
          %v1753 = vmax.f32 %v1752, %v1656
          %v1754 = vmax.f32 %v1753, %v1672
          %v1755 = vmax.f32 %v1754, %v1688
          %v1756 = vmax.f32 %v1755, %v1704
          %v1757 = vmax.f32 %v1756, %v1720
          %v1758 = vmax.f32 %v1757, %v1736
          %v1759 = vrot.slane %v1758, 4
          %v1760 = vmax.f32 %v1758, %v1759
          %v1761 = vrot.slane %v1760, 2
          %v1762 = vmax.f32 %v1760, %v1761
          %v1763 = vrot.slane %v1762, 1
          %v1764 = vmax.f32 %v1762, %v1763
          %v1765 = vmax.f32 %v1625, %v1641
          %v1766 = vmax.f32 %v1765, %v1657
          %v1767 = vmax.f32 %v1766, %v1673
          %v1768 = vmax.f32 %v1767, %v1689
          %v1769 = vmax.f32 %v1768, %v1705
          %v1770 = vmax.f32 %v1769, %v1721
          %v1771 = vmax.f32 %v1770, %v1737
          %v1772 = vrot.slane %v1771, 4
          %v1773 = vmax.f32 %v1771, %v1772
          %v1774 = vrot.slane %v1773, 2
          %v1775 = vmax.f32 %v1773, %v1774
          %v1776 = vrot.slane %v1775, 1
          %v1777 = vmax.f32 %v1775, %v1776
          %v1778 = vmax.f32 %v1626, %v1642
          %v1779 = vmax.f32 %v1778, %v1658
          %v1780 = vmax.f32 %v1779, %v1674
          %v1781 = vmax.f32 %v1780, %v1690
          %v1782 = vmax.f32 %v1781, %v1706
          %v1783 = vmax.f32 %v1782, %v1722
          %v1784 = vmax.f32 %v1783, %v1738
          %v1785 = vrot.slane %v1784, 4
          %v1786 = vmax.f32 %v1784, %v1785
          %v1787 = vrot.slane %v1786, 2
          %v1788 = vmax.f32 %v1786, %v1787
          %v1789 = vrot.slane %v1788, 1
          %v1790 = vmax.f32 %v1788, %v1789
          %v1791 = vmax.f32 %v1627, %v1643
          %v1792 = vmax.f32 %v1791, %v1659
          %v1793 = vmax.f32 %v1792, %v1675
          %v1794 = vmax.f32 %v1793, %v1691
          %v1795 = vmax.f32 %v1794, %v1707
          %v1796 = vmax.f32 %v1795, %v1723
          %v1797 = vmax.f32 %v1796, %v1739
          %v1798 = vrot.slane %v1797, 4
          %v1799 = vmax.f32 %v1797, %v1798
          %v1800 = vrot.slane %v1799, 2
          %v1801 = vmax.f32 %v1799, %v1800
          %v1802 = vrot.slane %v1801, 1
          %v1803 = vmax.f32 %v1801, %v1802
          %v1804 = vmax.f32 %v1628, %v1644
          %v1805 = vmax.f32 %v1804, %v1660
          %v1806 = vmax.f32 %v1805, %v1676
          %v1807 = vmax.f32 %v1806, %v1692
          %v1808 = vmax.f32 %v1807, %v1708
          %v1809 = vmax.f32 %v1808, %v1724
          %v1810 = vmax.f32 %v1809, %v1740
          %v1811 = vrot.slane %v1810, 4
          %v1812 = vmax.f32 %v1810, %v1811
          %v1813 = vrot.slane %v1812, 2
          %v1814 = vmax.f32 %v1812, %v1813
          %v1815 = vrot.slane %v1814, 1
          %v1816 = vmax.f32 %v1814, %v1815
          %v1817 = vmax.f32 %v1629, %v1645
          %v1818 = vmax.f32 %v1817, %v1661
          %v1819 = vmax.f32 %v1818, %v1677
          %v1820 = vmax.f32 %v1819, %v1693
          %v1821 = vmax.f32 %v1820, %v1709
          %v1822 = vmax.f32 %v1821, %v1725
          %v1823 = vmax.f32 %v1822, %v1741
          %v1824 = vrot.slane %v1823, 4
          %v1825 = vmax.f32 %v1823, %v1824
          %v1826 = vrot.slane %v1825, 2
          %v1827 = vmax.f32 %v1825, %v1826
          %v1828 = vrot.slane %v1827, 1
          %v1829 = vmax.f32 %v1827, %v1828
          %v1830 = vmax.f32 %v1630, %v1646
          %v1831 = vmax.f32 %v1830, %v1662
          %v1832 = vmax.f32 %v1831, %v1678
          %v1833 = vmax.f32 %v1832, %v1694
          %v1834 = vmax.f32 %v1833, %v1710
          %v1835 = vmax.f32 %v1834, %v1726
          %v1836 = vmax.f32 %v1835, %v1742
          %v1837 = vrot.slane %v1836, 4
          %v1838 = vmax.f32 %v1836, %v1837
          %v1839 = vrot.slane %v1838, 2
          %v1840 = vmax.f32 %v1838, %v1839
          %v1841 = vrot.slane %v1840, 1
          %v1842 = vmax.f32 %v1840, %v1841
          %v1843 = vmax.f32 %v1631, %v1647
          %v1844 = vmax.f32 %v1843, %v1663
          %v1845 = vmax.f32 %v1844, %v1679
          %v1846 = vmax.f32 %v1845, %v1695
          %v1847 = vmax.f32 %v1846, %v1711
          %v1848 = vmax.f32 %v1847, %v1727
          %v1849 = vmax.f32 %v1848, %v1743
          %v1850 = vrot.slane %v1849, 4
          %v1851 = vmax.f32 %v1849, %v1850
          %v1852 = vrot.slane %v1851, 2
          %v1853 = vmax.f32 %v1851, %v1852
          %v1854 = vrot.slane %v1853, 1
          %v1855 = vmax.f32 %v1853, %v1854
          %v1856 = vmax.f32 %v1632, %v1648
          %v1857 = vmax.f32 %v1856, %v1664
          %v1858 = vmax.f32 %v1857, %v1680
          %v1859 = vmax.f32 %v1858, %v1696
          %v1860 = vmax.f32 %v1859, %v1712
          %v1861 = vmax.f32 %v1860, %v1728
          %v1862 = vmax.f32 %v1861, %v1744
          %v1863 = vrot.slane %v1862, 4
          %v1864 = vmax.f32 %v1862, %v1863
          %v1865 = vrot.slane %v1864, 2
          %v1866 = vmax.f32 %v1864, %v1865
          %v1867 = vrot.slane %v1866, 1
          %v1868 = vmax.f32 %v1866, %v1867
          %v1869 = vmax.f32 %v1633, %v1649
          %v1870 = vmax.f32 %v1869, %v1665
          %v1871 = vmax.f32 %v1870, %v1681
          %v1872 = vmax.f32 %v1871, %v1697
          %v1873 = vmax.f32 %v1872, %v1713
          %v1874 = vmax.f32 %v1873, %v1729
          %v1875 = vmax.f32 %v1874, %v1745
          %v1876 = vrot.slane %v1875, 4
          %v1877 = vmax.f32 %v1875, %v1876
          %v1878 = vrot.slane %v1877, 2
          %v1879 = vmax.f32 %v1877, %v1878
          %v1880 = vrot.slane %v1879, 1
          %v1881 = vmax.f32 %v1879, %v1880
          %v1882 = vmax.f32 %v1634, %v1650
          %v1883 = vmax.f32 %v1882, %v1666
          %v1884 = vmax.f32 %v1883, %v1682
          %v1885 = vmax.f32 %v1884, %v1698
          %v1886 = vmax.f32 %v1885, %v1714
          %v1887 = vmax.f32 %v1886, %v1730
          %v1888 = vmax.f32 %v1887, %v1746
          %v1889 = vrot.slane %v1888, 4
          %v1890 = vmax.f32 %v1888, %v1889
          %v1891 = vrot.slane %v1890, 2
          %v1892 = vmax.f32 %v1890, %v1891
          %v1893 = vrot.slane %v1892, 1
          %v1894 = vmax.f32 %v1892, %v1893
          %v1895 = vmax.f32 %v1635, %v1651
          %v1896 = vmax.f32 %v1895, %v1667
          %v1897 = vmax.f32 %v1896, %v1683
          %v1898 = vmax.f32 %v1897, %v1699
          %v1899 = vmax.f32 %v1898, %v1715
          %v1900 = vmax.f32 %v1899, %v1731
          %v1901 = vmax.f32 %v1900, %v1747
          %v1902 = vrot.slane %v1901, 4
          %v1903 = vmax.f32 %v1901, %v1902
          %v1904 = vrot.slane %v1903, 2
          %v1905 = vmax.f32 %v1903, %v1904
          %v1906 = vrot.slane %v1905, 1
          %v1907 = vmax.f32 %v1905, %v1906
          %v1908 = vmax.f32 %v1636, %v1652
          %v1909 = vmax.f32 %v1908, %v1668
          %v1910 = vmax.f32 %v1909, %v1684
          %v1911 = vmax.f32 %v1910, %v1700
          %v1912 = vmax.f32 %v1911, %v1716
          %v1913 = vmax.f32 %v1912, %v1732
          %v1914 = vmax.f32 %v1913, %v1748
          %v1915 = vrot.slane %v1914, 4
          %v1916 = vmax.f32 %v1914, %v1915
          %v1917 = vrot.slane %v1916, 2
          %v1918 = vmax.f32 %v1916, %v1917
          %v1919 = vrot.slane %v1918, 1
          %v1920 = vmax.f32 %v1918, %v1919
          %v1921 = vmax.f32 %v1637, %v1653
          %v1922 = vmax.f32 %v1921, %v1669
          %v1923 = vmax.f32 %v1922, %v1685
          %v1924 = vmax.f32 %v1923, %v1701
          %v1925 = vmax.f32 %v1924, %v1717
          %v1926 = vmax.f32 %v1925, %v1733
          %v1927 = vmax.f32 %v1926, %v1749
          %v1928 = vrot.slane %v1927, 4
          %v1929 = vmax.f32 %v1927, %v1928
          %v1930 = vrot.slane %v1929, 2
          %v1931 = vmax.f32 %v1929, %v1930
          %v1932 = vrot.slane %v1931, 1
          %v1933 = vmax.f32 %v1931, %v1932
          %v1934 = vmax.f32 %v1638, %v1654
          %v1935 = vmax.f32 %v1934, %v1670
          %v1936 = vmax.f32 %v1935, %v1686
          %v1937 = vmax.f32 %v1936, %v1702
          %v1938 = vmax.f32 %v1937, %v1718
          %v1939 = vmax.f32 %v1938, %v1734
          %v1940 = vmax.f32 %v1939, %v1750
          %v1941 = vrot.slane %v1940, 4
          %v1942 = vmax.f32 %v1940, %v1941
          %v1943 = vrot.slane %v1942, 2
          %v1944 = vmax.f32 %v1942, %v1943
          %v1945 = vrot.slane %v1944, 1
          %v1946 = vmax.f32 %v1944, %v1945
          %v1947 = vmax.f32 %v1639, %v1655
          %v1948 = vmax.f32 %v1947, %v1671
          %v1949 = vmax.f32 %v1948, %v1687
          %v1950 = vmax.f32 %v1949, %v1703
          %v1951 = vmax.f32 %v1950, %v1719
          %v1952 = vmax.f32 %v1951, %v1735
          %v1953 = vmax.f32 %v1952, %v1751
          %v1954 = vrot.slane %v1953, 4
          %v1955 = vmax.f32 %v1953, %v1954
          %v1956 = vrot.slane %v1955, 2
          %v1957 = vmax.f32 %v1955, %v1956
          %v1958 = vrot.slane %v1957, 1
          %v1959 = vmax.f32 %v1957, %v1958
          %v1976 = vcombine.low %v1764, %v1777
          %v1977 = vcombine.low %v1790, %v1803
          %v1978 = vcombine.low %v1816, %v1829
          %v1979 = vcombine.low %v1842, %v1855
          %v1981 = vunpack.c.l.s4 1966171168
          %v1982 = vunpack.c.0.s8 %v1981
          %v1983 = vlaneseq
          %v1984 = vshrl.u32 %v1983, 7
          %v1985 = vsub.s32 %v1982, %v1984
          %v1986 = vrot.slane %v1976, %v1985
          %v1988 = vunpack.c.l.s4 1966171168
          %v1989 = vunpack.c.0.s8 %v1988
          %v1990 = vlaneseq
          %v1991 = vshrl.u32 %v1990, 7
          %v1992 = vsub.s32 %v1989, %v1991
          %v1993 = vrot.slane %v1977, %v1992
          %v1995 = vunpack.c.l.s4 1966171168
          %v1996 = vunpack.c.0.s8 %v1995
          %v1997 = vlaneseq
          %v1998 = vshrl.u32 %v1997, 7
          %v1999 = vsub.s32 %v1996, %v1998
          %v2000 = vrot.slane %v1978, %v1999
          %v2002 = vunpack.c.l.s4 1966171168
          %v2003 = vunpack.c.0.s8 %v2002
          %v2004 = vlaneseq
          %v2005 = vshrl.u32 %v2004, 7
          %v2006 = vsub.s32 %v2003, %v2005
          %v2007 = vrot.slane %v1979, %v2006
          %v2008 = vcombine.low %v1986, %v1993
          %v2009 = vcombine.low %v2000, %v2007
          %v2011 = vunpack.c.l.s4 1966171168
          %v2012 = vunpack.c.0.s8 %v2011
          %v2013 = vlaneseq
          %v2014 = vshrl.u32 %v2013, 7
          %v2015 = vsub.s32 %v2012, %v2014
          %v2016 = vrot.slane %v2008, %v2015
          %v2018 = vunpack.c.l.s4 1966171168
          %v2019 = vunpack.c.0.s8 %v2018
          %v2020 = vlaneseq
          %v2021 = vshrl.u32 %v2020, 7
          %v2022 = vsub.s32 %v2019, %v2021
          %v2023 = vrot.slane %v2009, %v2022
          %v2024 = vcombine.low %v2016, %v2023
          %v2025 = vcombine.low %v1868, %v1881
          %v2026 = vcombine.low %v1894, %v1907
          %v2027 = vcombine.low %v1920, %v1933
          %v2028 = vcombine.low %v1946, %v1959
          %v2030 = vunpack.c.l.s4 1966171168
          %v2031 = vunpack.c.0.s8 %v2030
          %v2032 = vlaneseq
          %v2033 = vshrl.u32 %v2032, 7
          %v2034 = vsub.s32 %v2031, %v2033
          %v2035 = vrot.slane %v2025, %v2034
          %v2037 = vunpack.c.l.s4 1966171168
          %v2038 = vunpack.c.0.s8 %v2037
          %v2039 = vlaneseq
          %v2040 = vshrl.u32 %v2039, 7
          %v2041 = vsub.s32 %v2038, %v2040
          %v2042 = vrot.slane %v2026, %v2041
          %v2044 = vunpack.c.l.s4 1966171168
          %v2045 = vunpack.c.0.s8 %v2044
          %v2046 = vlaneseq
          %v2047 = vshrl.u32 %v2046, 7
          %v2048 = vsub.s32 %v2045, %v2047
          %v2049 = vrot.slane %v2027, %v2048
          %v2051 = vunpack.c.l.s4 1966171168
          %v2052 = vunpack.c.0.s8 %v2051
          %v2053 = vlaneseq
          %v2054 = vshrl.u32 %v2053, 7
          %v2055 = vsub.s32 %v2052, %v2054
          %v2056 = vrot.slane %v2028, %v2055
          %v2057 = vcombine.low %v2035, %v2042
          %v2058 = vcombine.low %v2049, %v2056
          %v2060 = vunpack.c.l.s4 1966171168
          %v2061 = vunpack.c.0.s8 %v2060
          %v2062 = vlaneseq
          %v2063 = vshrl.u32 %v2062, 7
          %v2064 = vsub.s32 %v2061, %v2063
          %v2065 = vrot.slane %v2057, %v2064
          %v2067 = vunpack.c.l.s4 1966171168
          %v2068 = vunpack.c.0.s8 %v2067
          %v2069 = vlaneseq
          %v2070 = vshrl.u32 %v2069, 7
          %v2071 = vsub.s32 %v2068, %v2070
          %v2072 = vrot.slane %v2058, %v2071
          %v2073 = vcombine.low %v2065, %v2072
          %v2076 = vmax.f32 %v1622, %v2024
          %v2077 = vmax.f32 %v1623, %v2073
          %2078 = vst [vmem:[#allocation3] sm:$0xff] %v2076
          %2079 = vst [vmem:[#allocation3 + $0x8] sm:$0xff] %v2077
          %v2080 = vld [vmem:[#allocation2] sm:$0xff]
          %v2081 = vld [vmem:[#allocation2 + $0x8] sm:$0xff]
          %v2082 = vmul.f32 %v2080, 0.0051020407
          %v2083 = vmul.f32 %v2081, 0.0051020407
          %v2086 = vlaneseq
          %v2087 = vshrl.u32 %v2086, 7
          %v2088 = vsub.s32 0, %v2087
          %v2089 = vrot.slane %v2082, %v2088
          %v2090 = vlaneseq
          %v2091 = vshrl.u32 %v2090, 7
          %v2092 = vsub.s32 1, %v2091
          %v2093 = vrot.slane %v2082, %v2092
          %v2094 = vlaneseq
          %v2095 = vshrl.u32 %v2094, 7
          %v2096 = vsub.s32 2, %v2095
          %v2097 = vrot.slane %v2082, %v2096
          %v2098 = vlaneseq
          %v2099 = vshrl.u32 %v2098, 7
          %v2100 = vsub.s32 3, %v2099
          %v2101 = vrot.slane %v2082, %v2100
          %v2102 = vlaneseq
          %v2103 = vshrl.u32 %v2102, 7
          %v2104 = vsub.s32 4, %v2103
          %v2105 = vrot.slane %v2082, %v2104
          %v2106 = vlaneseq
          %v2107 = vshrl.u32 %v2106, 7
          %v2108 = vsub.s32 5, %v2107
          %v2109 = vrot.slane %v2082, %v2108
          %v2110 = vlaneseq
          %v2111 = vshrl.u32 %v2110, 7
          %v2112 = vsub.s32 6, %v2111
          %v2113 = vrot.slane %v2082, %v2112
          %v2114 = vlaneseq
          %v2115 = vshrl.u32 %v2114, 7
          %v2116 = vsub.s32 7, %v2115
          %v2117 = vrot.slane %v2082, %v2116
          %v2118 = vlaneseq
          %v2119 = vshrl.u32 %v2118, 7
          %v2120 = vsub.s32 0, %v2119
          %v2121 = vrot.slane %v2083, %v2120
          %v2122 = vlaneseq
          %v2123 = vshrl.u32 %v2122, 7
          %v2124 = vsub.s32 1, %v2123
          %v2125 = vrot.slane %v2083, %v2124
          %v2126 = vlaneseq
          %v2127 = vshrl.u32 %v2126, 7
          %v2128 = vsub.s32 2, %v2127
          %v2129 = vrot.slane %v2083, %v2128
          %v2130 = vlaneseq
          %v2131 = vshrl.u32 %v2130, 7
          %v2132 = vsub.s32 3, %v2131
          %v2133 = vrot.slane %v2083, %v2132
          %v2134 = vlaneseq
          %v2135 = vshrl.u32 %v2134, 7
          %v2136 = vsub.s32 4, %v2135
          %v2137 = vrot.slane %v2083, %v2136
          %v2138 = vlaneseq
          %v2139 = vshrl.u32 %v2138, 7
          %v2140 = vsub.s32 5, %v2139
          %v2141 = vrot.slane %v2083, %v2140
          %v2142 = vlaneseq
          %v2143 = vshrl.u32 %v2142, 7
          %v2144 = vsub.s32 6, %v2143
          %v2145 = vrot.slane %v2083, %v2144
          %v2146 = vlaneseq
          %v2147 = vshrl.u32 %v2146, 7
          %v2148 = vsub.s32 7, %v2147
          %v2149 = vrot.slane %v2083, %v2148
          %v2166 = vpack.c.bf16 %v2089, %v2089
          %v2167 = vpack.c.bf16 %v2093, %v2093
          %v2168 = vpack.c.bf16 %v2097, %v2097
          %v2169 = vpack.c.bf16 %v2101, %v2101
          %v2170 = vpack.c.bf16 %v2105, %v2105
          %v2171 = vpack.c.bf16 %v2109, %v2109
          %v2172 = vpack.c.bf16 %v2113, %v2113
          %v2173 = vpack.c.bf16 %v2117, %v2117
          %v2174 = vpack.c.bf16 %v2121, %v2121
          %v2175 = vpack.c.bf16 %v2125, %v2125
          %v2176 = vpack.c.bf16 %v2129, %v2129
          %v2177 = vpack.c.bf16 %v2133, %v2133
          %v2178 = vpack.c.bf16 %v2137, %v2137
          %v2179 = vpack.c.bf16 %v2141, %v2141
          %v2180 = vpack.c.bf16 %v2145, %v2145
          %v2181 = vpack.c.bf16 %v2149, %v2149
          %v2182 = vld [vmem:[#allocation3] sm:$0xff]
          %v2183 = vld [vmem:[#allocation3 + $0x8] sm:$0xff]
          %v2186 = vlaneseq
          %v2187 = vshrl.u32 %v2186, 7
          %v2188 = vsub.s32 0, %v2187
          %v2189 = vrot.slane %v2182, %v2188
          %v2190 = vlaneseq
          %v2191 = vshrl.u32 %v2190, 7
          %v2192 = vsub.s32 1, %v2191
          %v2193 = vrot.slane %v2182, %v2192
          %v2194 = vlaneseq
          %v2195 = vshrl.u32 %v2194, 7
          %v2196 = vsub.s32 2, %v2195
          %v2197 = vrot.slane %v2182, %v2196
          %v2198 = vlaneseq
          %v2199 = vshrl.u32 %v2198, 7
          %v2200 = vsub.s32 3, %v2199
          %v2201 = vrot.slane %v2182, %v2200
          %v2202 = vlaneseq
          %v2203 = vshrl.u32 %v2202, 7
          %v2204 = vsub.s32 4, %v2203
          %v2205 = vrot.slane %v2182, %v2204
          %v2206 = vlaneseq
          %v2207 = vshrl.u32 %v2206, 7
          %v2208 = vsub.s32 5, %v2207
          %v2209 = vrot.slane %v2182, %v2208
          %v2210 = vlaneseq
          %v2211 = vshrl.u32 %v2210, 7
          %v2212 = vsub.s32 6, %v2211
          %v2213 = vrot.slane %v2182, %v2212
          %v2214 = vlaneseq
          %v2215 = vshrl.u32 %v2214, 7
          %v2216 = vsub.s32 7, %v2215
          %v2217 = vrot.slane %v2182, %v2216
          %v2218 = vlaneseq
          %v2219 = vshrl.u32 %v2218, 7
          %v2220 = vsub.s32 0, %v2219
          %v2221 = vrot.slane %v2183, %v2220
          %v2222 = vlaneseq
          %v2223 = vshrl.u32 %v2222, 7
          %v2224 = vsub.s32 1, %v2223
          %v2225 = vrot.slane %v2183, %v2224
          %v2226 = vlaneseq
          %v2227 = vshrl.u32 %v2226, 7
          %v2228 = vsub.s32 2, %v2227
          %v2229 = vrot.slane %v2183, %v2228
          %v2230 = vlaneseq
          %v2231 = vshrl.u32 %v2230, 7
          %v2232 = vsub.s32 3, %v2231
          %v2233 = vrot.slane %v2183, %v2232
          %v2234 = vlaneseq
          %v2235 = vshrl.u32 %v2234, 7
          %v2236 = vsub.s32 4, %v2235
          %v2237 = vrot.slane %v2183, %v2236
          %v2238 = vlaneseq
          %v2239 = vshrl.u32 %v2238, 7
          %v2240 = vsub.s32 5, %v2239
          %v2241 = vrot.slane %v2183, %v2240
          %v2242 = vlaneseq
          %v2243 = vshrl.u32 %v2242, 7
          %v2244 = vsub.s32 6, %v2243
          %v2245 = vrot.slane %v2183, %v2244
          %v2246 = vlaneseq
          %v2247 = vshrl.u32 %v2246, 7
          %v2248 = vsub.s32 7, %v2247
          %v2249 = vrot.slane %v2183, %v2248
          %v2266 = vpack.c.bf16 %v2189, %v2189
          %v2267 = vpack.c.bf16 %v2193, %v2193
          %v2268 = vpack.c.bf16 %v2197, %v2197
          %v2269 = vpack.c.bf16 %v2201, %v2201
          %v2270 = vpack.c.bf16 %v2205, %v2205
          %v2271 = vpack.c.bf16 %v2209, %v2209
          %v2272 = vpack.c.bf16 %v2213, %v2213
          %v2273 = vpack.c.bf16 %v2217, %v2217
          %v2274 = vpack.c.bf16 %v2221, %v2221
          %v2275 = vpack.c.bf16 %v2225, %v2225
          %v2276 = vpack.c.bf16 %v2229, %v2229
          %v2277 = vpack.c.bf16 %v2233, %v2233
          %v2278 = vpack.c.bf16 %v2237, %v2237
          %v2279 = vpack.c.bf16 %v2241, %v2241
          %v2280 = vpack.c.bf16 %v2245, %v2245
          %v2281 = vpack.c.bf16 %v2249, %v2249
          %v2282 = vld [vmem:[%s1] sm:$0xff]
          %v2283 = vld [vmem:[%s1 + $0x8] sm:$0xff]
          %v2284 = vld [vmem:[%s1 + $0x10] sm:$0xff]
          %v2285 = vld [vmem:[%s1 + $0x18] sm:$0xff]
          %v2286 = vld [vmem:[%s1 + $0x20] sm:$0xff]
          %v2287 = vld [vmem:[%s1 + $0x28] sm:$0xff]
          %v2288 = vld [vmem:[%s1 + $0x30] sm:$0xff]
          %v2289 = vld [vmem:[%s1 + $0x38] sm:$0xff]
          %v2290 = vld [vmem:[%s1 + $0x40] sm:$0xff]
          %v2291 = vld [vmem:[%s1 + $0x48] sm:$0xff]
          %v2292 = vld [vmem:[%s1 + $0x50] sm:$0xff]
          %v2293 = vld [vmem:[%s1 + $0x58] sm:$0xff]
          %v2294 = vld [vmem:[%s1 + $0x60] sm:$0xff]
          %v2295 = vld [vmem:[%s1 + $0x68] sm:$0xff]
          %v2296 = vld [vmem:[%s1 + $0x70] sm:$0xff]
          %v2297 = vld [vmem:[%s1 + $0x78] sm:$0xff]
          %v2298 = vld [vmem:[%s1 + $0x80] sm:$0xff]
          %v2299 = vld [vmem:[%s1 + $0x88] sm:$0xff]
          %v2300 = vld [vmem:[%s1 + $0x90] sm:$0xff]
          %v2301 = vld [vmem:[%s1 + $0x98] sm:$0xff]
          %v2302 = vld [vmem:[%s1 + $0xa0] sm:$0xff]
          %v2303 = vld [vmem:[%s1 + $0xa8] sm:$0xff]
          %v2304 = vld [vmem:[%s1 + $0xb0] sm:$0xff]
          %v2305 = vld [vmem:[%s1 + $0xb8] sm:$0xff]
          %v2306 = vld [vmem:[%s1 + $0xc0] sm:$0xff]
          %v2307 = vld [vmem:[%s1 + $0xc8] sm:$0xff]
          %v2308 = vld [vmem:[%s1 + $0xd0] sm:$0xff]
          %v2309 = vld [vmem:[%s1 + $0xd8] sm:$0xff]
          %v2310 = vld [vmem:[%s1 + $0xe0] sm:$0xff]
          %v2311 = vld [vmem:[%s1 + $0xe8] sm:$0xff]
          %v2312 = vld [vmem:[%s1 + $0xf0] sm:$0xff]
          %v2313 = vld [vmem:[%s1 + $0xf8] sm:$0xff]
          %v2314 = vld [vmem:[%s1 + $0x100] sm:$0xff]
          %v2315 = vld [vmem:[%s1 + $0x108] sm:$0xff]
          %v2316 = vld [vmem:[%s1 + $0x110] sm:$0xff]
          %v2317 = vld [vmem:[%s1 + $0x118] sm:$0xff]
          %v2318 = vld [vmem:[%s1 + $0x120] sm:$0xff]
          %v2319 = vld [vmem:[%s1 + $0x128] sm:$0xff]
          %v2320 = vld [vmem:[%s1 + $0x130] sm:$0xff]
          %v2321 = vld [vmem:[%s1 + $0x138] sm:$0xff]
          %v2322 = vld [vmem:[%s1 + $0x140] sm:$0xff]
          %v2323 = vld [vmem:[%s1 + $0x148] sm:$0xff]
          %v2324 = vld [vmem:[%s1 + $0x150] sm:$0xff]
          %v2325 = vld [vmem:[%s1 + $0x158] sm:$0xff]
          %v2326 = vld [vmem:[%s1 + $0x160] sm:$0xff]
          %v2327 = vld [vmem:[%s1 + $0x168] sm:$0xff]
          %v2328 = vld [vmem:[%s1 + $0x170] sm:$0xff]
          %v2329 = vld [vmem:[%s1 + $0x178] sm:$0xff]
          %v2330 = vld [vmem:[%s1 + $0x180] sm:$0xff]
          %v2331 = vld [vmem:[%s1 + $0x188] sm:$0xff]
          %v2332 = vld [vmem:[%s1 + $0x190] sm:$0xff]
          %v2333 = vld [vmem:[%s1 + $0x198] sm:$0xff]
          %v2334 = vld [vmem:[%s1 + $0x1a0] sm:$0xff]
          %v2335 = vld [vmem:[%s1 + $0x1a8] sm:$0xff]
          %v2336 = vld [vmem:[%s1 + $0x1b0] sm:$0xff]
          %v2337 = vld [vmem:[%s1 + $0x1b8] sm:$0xff]
          %v2338 = vld [vmem:[%s1 + $0x1c0] sm:$0xff]
          %v2339 = vld [vmem:[%s1 + $0x1c8] sm:$0xff]
          %v2340 = vld [vmem:[%s1 + $0x1d0] sm:$0xff]
          %v2341 = vld [vmem:[%s1 + $0x1d8] sm:$0xff]
          %v2342 = vld [vmem:[%s1 + $0x1e0] sm:$0xff]
          %v2343 = vld [vmem:[%s1 + $0x1e8] sm:$0xff]
          %v2344 = vld [vmem:[%s1 + $0x1f0] sm:$0xff]
          %v2345 = vld [vmem:[%s1 + $0x1f8] sm:$0xff]
          %v2346 = vld [vmem:[%s1 + $0x200] sm:$0xff]
          %v2347 = vld [vmem:[%s1 + $0x208] sm:$0xff]
          %v2348 = vld [vmem:[%s1 + $0x210] sm:$0xff]
          %v2349 = vld [vmem:[%s1 + $0x218] sm:$0xff]
          %v2350 = vld [vmem:[%s1 + $0x220] sm:$0xff]
          %v2351 = vld [vmem:[%s1 + $0x228] sm:$0xff]
          %v2352 = vld [vmem:[%s1 + $0x230] sm:$0xff]
          %v2353 = vld [vmem:[%s1 + $0x238] sm:$0xff]
          %v2354 = vld [vmem:[%s1 + $0x240] sm:$0xff]
          %v2355 = vld [vmem:[%s1 + $0x248] sm:$0xff]
          %v2356 = vld [vmem:[%s1 + $0x250] sm:$0xff]
          %v2357 = vld [vmem:[%s1 + $0x258] sm:$0xff]
          %v2358 = vld [vmem:[%s1 + $0x260] sm:$0xff]
          %v2359 = vld [vmem:[%s1 + $0x268] sm:$0xff]
          %v2360 = vld [vmem:[%s1 + $0x270] sm:$0xff]
          %v2361 = vld [vmem:[%s1 + $0x278] sm:$0xff]
          %v2362 = vld [vmem:[%s1 + $0x280] sm:$0xff]
          %v2363 = vld [vmem:[%s1 + $0x288] sm:$0xff]
          %v2364 = vld [vmem:[%s1 + $0x290] sm:$0xff]
          %v2365 = vld [vmem:[%s1 + $0x298] sm:$0xff]
          %v2366 = vld [vmem:[%s1 + $0x2a0] sm:$0xff]
          %v2367 = vld [vmem:[%s1 + $0x2a8] sm:$0xff]
          %v2368 = vld [vmem:[%s1 + $0x2b0] sm:$0xff]
          %v2369 = vld [vmem:[%s1 + $0x2b8] sm:$0xff]
          %v2370 = vld [vmem:[%s1 + $0x2c0] sm:$0xff]
          %v2371 = vld [vmem:[%s1 + $0x2c8] sm:$0xff]
          %v2372 = vld [vmem:[%s1 + $0x2d0] sm:$0xff]
          %v2373 = vld [vmem:[%s1 + $0x2d8] sm:$0xff]
          %v2374 = vld [vmem:[%s1 + $0x2e0] sm:$0xff]
          %v2375 = vld [vmem:[%s1 + $0x2e8] sm:$0xff]
          %v2376 = vld [vmem:[%s1 + $0x2f0] sm:$0xff]
          %v2377 = vld [vmem:[%s1 + $0x2f8] sm:$0xff]
          %v2378 = vld [vmem:[%s1 + $0x300] sm:$0xff]
          %v2379 = vld [vmem:[%s1 + $0x308] sm:$0xff]
          %v2380 = vld [vmem:[%s1 + $0x310] sm:$0xff]
          %v2381 = vld [vmem:[%s1 + $0x318] sm:$0xff]
          %v2382 = vld [vmem:[%s1 + $0x320] sm:$0xff]
          %v2383 = vld [vmem:[%s1 + $0x328] sm:$0xff]
          %v2384 = vld [vmem:[%s1 + $0x330] sm:$0xff]
          %v2385 = vld [vmem:[%s1 + $0x338] sm:$0xff]
          %v2386 = vld [vmem:[%s1 + $0x340] sm:$0xff]
          %v2387 = vld [vmem:[%s1 + $0x348] sm:$0xff]
          %v2388 = vld [vmem:[%s1 + $0x350] sm:$0xff]
          %v2389 = vld [vmem:[%s1 + $0x358] sm:$0xff]
          %v2390 = vld [vmem:[%s1 + $0x360] sm:$0xff]
          %v2391 = vld [vmem:[%s1 + $0x368] sm:$0xff]
          %v2392 = vld [vmem:[%s1 + $0x370] sm:$0xff]
          %v2393 = vld [vmem:[%s1 + $0x378] sm:$0xff]
          %v2394 = vld [vmem:[%s1 + $0x380] sm:$0xff]
          %v2395 = vld [vmem:[%s1 + $0x388] sm:$0xff]
          %v2396 = vld [vmem:[%s1 + $0x390] sm:$0xff]
          %v2397 = vld [vmem:[%s1 + $0x398] sm:$0xff]
          %v2398 = vld [vmem:[%s1 + $0x3a0] sm:$0xff]
          %v2399 = vld [vmem:[%s1 + $0x3a8] sm:$0xff]
          %v2400 = vld [vmem:[%s1 + $0x3b0] sm:$0xff]
          %v2401 = vld [vmem:[%s1 + $0x3b8] sm:$0xff]
          %v2402 = vld [vmem:[%s1 + $0x3c0] sm:$0xff]
          %v2403 = vld [vmem:[%s1 + $0x3c8] sm:$0xff]
          %v2404 = vld [vmem:[%s1 + $0x3d0] sm:$0xff]
          %v2405 = vld [vmem:[%s1 + $0x3d8] sm:$0xff]
          %v2406 = vld [vmem:[%s1 + $0x3e0] sm:$0xff]
          %v2407 = vld [vmem:[%s1 + $0x3e8] sm:$0xff]
          %v2408 = vld [vmem:[%s1 + $0x3f0] sm:$0xff]
          %v2409 = vld [vmem:[%s1 + $0x3f8] sm:$0xff]
          %v2410 = vld [vmem:[%s1 + $0x400] sm:$0xff]
          %v2411 = vld [vmem:[%s1 + $0x408] sm:$0xff]
          %v2412 = vld [vmem:[%s1 + $0x410] sm:$0xff]
          %v2413 = vld [vmem:[%s1 + $0x418] sm:$0xff]
          %v2414 = vld [vmem:[%s1 + $0x420] sm:$0xff]
          %v2415 = vld [vmem:[%s1 + $0x428] sm:$0xff]
          %v2416 = vld [vmem:[%s1 + $0x430] sm:$0xff]
          %v2417 = vld [vmem:[%s1 + $0x438] sm:$0xff]
          %v2418 = vld [vmem:[%s1 + $0x440] sm:$0xff]
          %v2419 = vld [vmem:[%s1 + $0x448] sm:$0xff]
          %v2420 = vld [vmem:[%s1 + $0x450] sm:$0xff]
          %v2421 = vld [vmem:[%s1 + $0x458] sm:$0xff]
          %v2422 = vld [vmem:[%s1 + $0x460] sm:$0xff]
          %v2423 = vld [vmem:[%s1 + $0x468] sm:$0xff]
          %v2424 = vld [vmem:[%s1 + $0x470] sm:$0xff]
          %v2425 = vld [vmem:[%s1 + $0x478] sm:$0xff]
          %v2426 = vld [vmem:[%s1 + $0x480] sm:$0xff]
          %v2427 = vld [vmem:[%s1 + $0x488] sm:$0xff]
          %v2428 = vld [vmem:[%s1 + $0x490] sm:$0xff]
          %v2429 = vld [vmem:[%s1 + $0x498] sm:$0xff]
          %v2430 = vld [vmem:[%s1 + $0x4a0] sm:$0xff]
          %v2431 = vld [vmem:[%s1 + $0x4a8] sm:$0xff]
          %v2432 = vld [vmem:[%s1 + $0x4b0] sm:$0xff]
          %v2433 = vld [vmem:[%s1 + $0x4b8] sm:$0xff]
          %v2434 = vld [vmem:[%s1 + $0x4c0] sm:$0xff]
          %v2435 = vld [vmem:[%s1 + $0x4c8] sm:$0xff]
          %v2436 = vld [vmem:[%s1 + $0x4d0] sm:$0xff]
          %v2437 = vld [vmem:[%s1 + $0x4d8] sm:$0xff]
          %v2438 = vld [vmem:[%s1 + $0x4e0] sm:$0xff]
          %v2439 = vld [vmem:[%s1 + $0x4e8] sm:$0xff]
          %v2440 = vld [vmem:[%s1 + $0x4f0] sm:$0xff]
          %v2441 = vld [vmem:[%s1 + $0x4f8] sm:$0xff]
          %v2442 = vld [vmem:[%s1 + $0x500] sm:$0xff]
          %v2443 = vld [vmem:[%s1 + $0x508] sm:$0xff]
          %v2444 = vld [vmem:[%s1 + $0x510] sm:$0xff]
          %v2445 = vld [vmem:[%s1 + $0x518] sm:$0xff]
          %v2446 = vld [vmem:[%s1 + $0x520] sm:$0xff]
          %v2447 = vld [vmem:[%s1 + $0x528] sm:$0xff]
          %v2448 = vld [vmem:[%s1 + $0x530] sm:$0xff]
          %v2449 = vld [vmem:[%s1 + $0x538] sm:$0xff]
          %v2450 = vld [vmem:[%s1 + $0x540] sm:$0xff]
          %v2451 = vld [vmem:[%s1 + $0x548] sm:$0xff]
          %v2452 = vld [vmem:[%s1 + $0x550] sm:$0xff]
          %v2453 = vld [vmem:[%s1 + $0x558] sm:$0xff]
          %v2454 = vld [vmem:[%s1 + $0x560] sm:$0xff]
          %v2455 = vld [vmem:[%s1 + $0x568] sm:$0xff]
          %v2456 = vld [vmem:[%s1 + $0x570] sm:$0xff]
          %v2457 = vld [vmem:[%s1 + $0x578] sm:$0xff]
          %v2458 = vld [vmem:[%s1 + $0x580] sm:$0xff]
          %v2459 = vld [vmem:[%s1 + $0x588] sm:$0xff]
          %v2460 = vld [vmem:[%s1 + $0x590] sm:$0xff]
          %v2461 = vld [vmem:[%s1 + $0x598] sm:$0xff]
          %v2462 = vld [vmem:[%s1 + $0x5a0] sm:$0xff]
          %v2463 = vld [vmem:[%s1 + $0x5a8] sm:$0xff]
          %v2464 = vld [vmem:[%s1 + $0x5b0] sm:$0xff]
          %v2465 = vld [vmem:[%s1 + $0x5b8] sm:$0xff]
          %v2466 = vld [vmem:[%s1 + $0x5c0] sm:$0xff]
          %v2467 = vld [vmem:[%s1 + $0x5c8] sm:$0xff]
          %v2468 = vld [vmem:[%s1 + $0x5d0] sm:$0xff]
          %v2469 = vld [vmem:[%s1 + $0x5d8] sm:$0xff]
          %v2470 = vld [vmem:[%s1 + $0x5e0] sm:$0xff]
          %v2471 = vld [vmem:[%s1 + $0x5e8] sm:$0xff]
          %v2472 = vld [vmem:[%s1 + $0x5f0] sm:$0xff]
          %v2473 = vld [vmem:[%s1 + $0x5f8] sm:$0xff]
          %v2474 = vld [vmem:[%s1 + $0x600] sm:$0xff]
          %v2475 = vld [vmem:[%s1 + $0x608] sm:$0xff]
          %v2476 = vld [vmem:[%s1 + $0x610] sm:$0xff]
          %v2477 = vld [vmem:[%s1 + $0x618] sm:$0xff]
          %v2478 = vld [vmem:[%s1 + $0x620] sm:$0xff]
          %v2479 = vld [vmem:[%s1 + $0x628] sm:$0xff]
          %v2480 = vld [vmem:[%s1 + $0x630] sm:$0xff]
          %v2481 = vld [vmem:[%s1 + $0x638] sm:$0xff]
          %v2482 = vld [vmem:[%s1 + $0x640] sm:$0xff]
          %v2483 = vld [vmem:[%s1 + $0x648] sm:$0xff]
          %v2484 = vld [vmem:[%s1 + $0x650] sm:$0xff]
          %v2485 = vld [vmem:[%s1 + $0x658] sm:$0xff]
          %v2486 = vld [vmem:[%s1 + $0x660] sm:$0xff]
          %v2487 = vld [vmem:[%s1 + $0x668] sm:$0xff]
          %v2488 = vld [vmem:[%s1 + $0x670] sm:$0xff]
          %v2489 = vld [vmem:[%s1 + $0x678] sm:$0xff]
          %v2490 = vld [vmem:[%s1 + $0x680] sm:$0xff]
          %v2491 = vld [vmem:[%s1 + $0x688] sm:$0xff]
          %v2492 = vld [vmem:[%s1 + $0x690] sm:$0xff]
          %v2493 = vld [vmem:[%s1 + $0x698] sm:$0xff]
          %v2494 = vld [vmem:[%s1 + $0x6a0] sm:$0xff]
          %v2495 = vld [vmem:[%s1 + $0x6a8] sm:$0xff]
          %v2496 = vld [vmem:[%s1 + $0x6b0] sm:$0xff]
          %v2497 = vld [vmem:[%s1 + $0x6b8] sm:$0xff]
          %v2498 = vld [vmem:[%s1 + $0x6c0] sm:$0xff]
          %v2499 = vld [vmem:[%s1 + $0x6c8] sm:$0xff]
          %v2500 = vld [vmem:[%s1 + $0x6d0] sm:$0xff]
          %v2501 = vld [vmem:[%s1 + $0x6d8] sm:$0xff]
          %v2502 = vld [vmem:[%s1 + $0x6e0] sm:$0xff]
          %v2503 = vld [vmem:[%s1 + $0x6e8] sm:$0xff]
          %v2504 = vld [vmem:[%s1 + $0x6f0] sm:$0xff]
          %v2505 = vld [vmem:[%s1 + $0x6f8] sm:$0xff]
          %v2506 = vld [vmem:[%s1 + $0x700] sm:$0xff]
          %v2507 = vld [vmem:[%s1 + $0x708] sm:$0xff]
          %v2508 = vld [vmem:[%s1 + $0x710] sm:$0xff]
          %v2509 = vld [vmem:[%s1 + $0x718] sm:$0xff]
          %v2510 = vld [vmem:[%s1 + $0x720] sm:$0xff]
          %v2511 = vld [vmem:[%s1 + $0x728] sm:$0xff]
          %v2512 = vld [vmem:[%s1 + $0x730] sm:$0xff]
          %v2513 = vld [vmem:[%s1 + $0x738] sm:$0xff]
          %v2514 = vld [vmem:[%s1 + $0x740] sm:$0xff]
          %v2515 = vld [vmem:[%s1 + $0x748] sm:$0xff]
          %v2516 = vld [vmem:[%s1 + $0x750] sm:$0xff]
          %v2517 = vld [vmem:[%s1 + $0x758] sm:$0xff]
          %v2518 = vld [vmem:[%s1 + $0x760] sm:$0xff]
          %v2519 = vld [vmem:[%s1 + $0x768] sm:$0xff]
          %v2520 = vld [vmem:[%s1 + $0x770] sm:$0xff]
          %v2521 = vld [vmem:[%s1 + $0x778] sm:$0xff]
          %v2522 = vld [vmem:[%s1 + $0x780] sm:$0xff]
          %v2523 = vld [vmem:[%s1 + $0x788] sm:$0xff]
          %v2524 = vld [vmem:[%s1 + $0x790] sm:$0xff]
          %v2525 = vld [vmem:[%s1 + $0x798] sm:$0xff]
          %v2526 = vld [vmem:[%s1 + $0x7a0] sm:$0xff]
          %v2527 = vld [vmem:[%s1 + $0x7a8] sm:$0xff]
          %v2528 = vld [vmem:[%s1 + $0x7b0] sm:$0xff]
          %v2529 = vld [vmem:[%s1 + $0x7b8] sm:$0xff]
          %v2530 = vld [vmem:[%s1 + $0x7c0] sm:$0xff]
          %v2531 = vld [vmem:[%s1 + $0x7c8] sm:$0xff]
          %v2532 = vld [vmem:[%s1 + $0x7d0] sm:$0xff]
          %v2533 = vld [vmem:[%s1 + $0x7d8] sm:$0xff]
          %v2534 = vld [vmem:[%s1 + $0x7e0] sm:$0xff]
          %v2535 = vld [vmem:[%s1 + $0x7e8] sm:$0xff]
          %v2536 = vld [vmem:[%s1 + $0x7f0] sm:$0xff]
          %v2537 = vld [vmem:[%s1 + $0x7f8] sm:$0xff]
          %v2538 = vld [vmem:[%s2] sm:$0x3]
          %v2795 = vunpack.c.l.b16 %v2282
          %v2796 = vunpack.c.h.b16 %v2282
          %v2797 = vunpack.c.l.b16 %v2283
          %v2798 = vunpack.c.h.b16 %v2283
          %v2799 = vunpack.c.l.b16 %v2284
          %v2800 = vunpack.c.h.b16 %v2284
          %v2801 = vunpack.c.l.b16 %v2285
          %v2802 = vunpack.c.h.b16 %v2285
          %v2803 = vunpack.c.l.b16 %v2286
          %v2804 = vunpack.c.h.b16 %v2286
          %v2805 = vunpack.c.l.b16 %v2287
          %v2806 = vunpack.c.h.b16 %v2287
          %v2807 = vunpack.c.l.b16 %v2288
          %v2808 = vunpack.c.h.b16 %v2288
          %v2809 = vunpack.c.l.b16 %v2289
          %v2810 = vunpack.c.h.b16 %v2289
          %v2811 = vunpack.c.l.b16 %v2290
          %v2812 = vunpack.c.h.b16 %v2290
          %v2813 = vunpack.c.l.b16 %v2291
          %v2814 = vunpack.c.h.b16 %v2291
          %v2815 = vunpack.c.l.b16 %v2292
          %v2816 = vunpack.c.h.b16 %v2292
          %v2817 = vunpack.c.l.b16 %v2293
          %v2818 = vunpack.c.h.b16 %v2293
          %v2819 = vunpack.c.l.b16 %v2294
          %v2820 = vunpack.c.h.b16 %v2294
          %v2821 = vunpack.c.l.b16 %v2295
          %v2822 = vunpack.c.h.b16 %v2295
          %v2823 = vunpack.c.l.b16 %v2296
          %v2824 = vunpack.c.h.b16 %v2296
          %v2825 = vunpack.c.l.b16 %v2297
          %v2826 = vunpack.c.h.b16 %v2297
          %v2827 = vunpack.c.l.b16 %v2298
          %v2828 = vunpack.c.h.b16 %v2298
          %v2829 = vunpack.c.l.b16 %v2299
          %v2830 = vunpack.c.h.b16 %v2299
          %v2831 = vunpack.c.l.b16 %v2300
          %v2832 = vunpack.c.h.b16 %v2300
          %v2833 = vunpack.c.l.b16 %v2301
          %v2834 = vunpack.c.h.b16 %v2301
          %v2835 = vunpack.c.l.b16 %v2302
          %v2836 = vunpack.c.h.b16 %v2302
          %v2837 = vunpack.c.l.b16 %v2303
          %v2838 = vunpack.c.h.b16 %v2303
          %v2839 = vunpack.c.l.b16 %v2304
          %v2840 = vunpack.c.h.b16 %v2304
          %v2841 = vunpack.c.l.b16 %v2305
          %v2842 = vunpack.c.h.b16 %v2305
          %v2843 = vunpack.c.l.b16 %v2306
          %v2844 = vunpack.c.h.b16 %v2306
          %v2845 = vunpack.c.l.b16 %v2307
          %v2846 = vunpack.c.h.b16 %v2307
          %v2847 = vunpack.c.l.b16 %v2308
          %v2848 = vunpack.c.h.b16 %v2308
          %v2849 = vunpack.c.l.b16 %v2309
          %v2850 = vunpack.c.h.b16 %v2309
          %v2851 = vunpack.c.l.b16 %v2310
          %v2852 = vunpack.c.h.b16 %v2310
          %v2853 = vunpack.c.l.b16 %v2311
          %v2854 = vunpack.c.h.b16 %v2311
          %v2855 = vunpack.c.l.b16 %v2312
          %v2856 = vunpack.c.h.b16 %v2312
          %v2857 = vunpack.c.l.b16 %v2313
          %v2858 = vunpack.c.h.b16 %v2313
          %v2859 = vunpack.c.l.b16 %v2314
          %v2860 = vunpack.c.h.b16 %v2314
          %v2861 = vunpack.c.l.b16 %v2315
          %v2862 = vunpack.c.h.b16 %v2315
          %v2863 = vunpack.c.l.b16 %v2316
          %v2864 = vunpack.c.h.b16 %v2316
          %v2865 = vunpack.c.l.b16 %v2317
          %v2866 = vunpack.c.h.b16 %v2317
          %v2867 = vunpack.c.l.b16 %v2318
          %v2868 = vunpack.c.h.b16 %v2318
          %v2869 = vunpack.c.l.b16 %v2319
          %v2870 = vunpack.c.h.b16 %v2319
          %v2871 = vunpack.c.l.b16 %v2320
          %v2872 = vunpack.c.h.b16 %v2320
          %v2873 = vunpack.c.l.b16 %v2321
          %v2874 = vunpack.c.h.b16 %v2321
          %v2875 = vunpack.c.l.b16 %v2322
          %v2876 = vunpack.c.h.b16 %v2322
          %v2877 = vunpack.c.l.b16 %v2323
          %v2878 = vunpack.c.h.b16 %v2323
          %v2879 = vunpack.c.l.b16 %v2324
          %v2880 = vunpack.c.h.b16 %v2324
          %v2881 = vunpack.c.l.b16 %v2325
          %v2882 = vunpack.c.h.b16 %v2325
          %v2883 = vunpack.c.l.b16 %v2326
          %v2884 = vunpack.c.h.b16 %v2326
          %v2885 = vunpack.c.l.b16 %v2327
          %v2886 = vunpack.c.h.b16 %v2327
          %v2887 = vunpack.c.l.b16 %v2328
          %v2888 = vunpack.c.h.b16 %v2328
          %v2889 = vunpack.c.l.b16 %v2329
          %v2890 = vunpack.c.h.b16 %v2329
          %v2891 = vunpack.c.l.b16 %v2330
          %v2892 = vunpack.c.h.b16 %v2330
          %v2893 = vunpack.c.l.b16 %v2331
          %v2894 = vunpack.c.h.b16 %v2331
          %v2895 = vunpack.c.l.b16 %v2332
          %v2896 = vunpack.c.h.b16 %v2332
          %v2897 = vunpack.c.l.b16 %v2333
          %v2898 = vunpack.c.h.b16 %v2333
          %v2899 = vunpack.c.l.b16 %v2334
          %v2900 = vunpack.c.h.b16 %v2334
          %v2901 = vunpack.c.l.b16 %v2335
          %v2902 = vunpack.c.h.b16 %v2335
          %v2903 = vunpack.c.l.b16 %v2336
          %v2904 = vunpack.c.h.b16 %v2336
          %v2905 = vunpack.c.l.b16 %v2337
          %v2906 = vunpack.c.h.b16 %v2337
          %v2907 = vunpack.c.l.b16 %v2338
          %v2908 = vunpack.c.h.b16 %v2338
          %v2909 = vunpack.c.l.b16 %v2339
          %v2910 = vunpack.c.h.b16 %v2339
          %v2911 = vunpack.c.l.b16 %v2340
          %v2912 = vunpack.c.h.b16 %v2340
          %v2913 = vunpack.c.l.b16 %v2341
          %v2914 = vunpack.c.h.b16 %v2341
          %v2915 = vunpack.c.l.b16 %v2342
          %v2916 = vunpack.c.h.b16 %v2342
          %v2917 = vunpack.c.l.b16 %v2343
          %v2918 = vunpack.c.h.b16 %v2343
          %v2919 = vunpack.c.l.b16 %v2344
          %v2920 = vunpack.c.h.b16 %v2344
          %v2921 = vunpack.c.l.b16 %v2345
          %v2922 = vunpack.c.h.b16 %v2345
          %v2923 = vunpack.c.l.b16 %v2346
          %v2924 = vunpack.c.h.b16 %v2346
          %v2925 = vunpack.c.l.b16 %v2347
          %v2926 = vunpack.c.h.b16 %v2347
          %v2927 = vunpack.c.l.b16 %v2348
          %v2928 = vunpack.c.h.b16 %v2348
          %v2929 = vunpack.c.l.b16 %v2349
          %v2930 = vunpack.c.h.b16 %v2349
          %v2931 = vunpack.c.l.b16 %v2350
          %v2932 = vunpack.c.h.b16 %v2350
          %v2933 = vunpack.c.l.b16 %v2351
          %v2934 = vunpack.c.h.b16 %v2351
          %v2935 = vunpack.c.l.b16 %v2352
          %v2936 = vunpack.c.h.b16 %v2352
          %v2937 = vunpack.c.l.b16 %v2353
          %v2938 = vunpack.c.h.b16 %v2353
          %v2939 = vunpack.c.l.b16 %v2354
          %v2940 = vunpack.c.h.b16 %v2354
          %v2941 = vunpack.c.l.b16 %v2355
          %v2942 = vunpack.c.h.b16 %v2355
          %v2943 = vunpack.c.l.b16 %v2356
          %v2944 = vunpack.c.h.b16 %v2356
          %v2945 = vunpack.c.l.b16 %v2357
          %v2946 = vunpack.c.h.b16 %v2357
          %v2947 = vunpack.c.l.b16 %v2358
          %v2948 = vunpack.c.h.b16 %v2358
          %v2949 = vunpack.c.l.b16 %v2359
          %v2950 = vunpack.c.h.b16 %v2359
          %v2951 = vunpack.c.l.b16 %v2360
          %v2952 = vunpack.c.h.b16 %v2360
          %v2953 = vunpack.c.l.b16 %v2361
          %v2954 = vunpack.c.h.b16 %v2361
          %v2955 = vunpack.c.l.b16 %v2362
          %v2956 = vunpack.c.h.b16 %v2362
          %v2957 = vunpack.c.l.b16 %v2363
          %v2958 = vunpack.c.h.b16 %v2363
          %v2959 = vunpack.c.l.b16 %v2364
          %v2960 = vunpack.c.h.b16 %v2364
          %v2961 = vunpack.c.l.b16 %v2365
          %v2962 = vunpack.c.h.b16 %v2365
          %v2963 = vunpack.c.l.b16 %v2366
          %v2964 = vunpack.c.h.b16 %v2366
          %v2965 = vunpack.c.l.b16 %v2367
          %v2966 = vunpack.c.h.b16 %v2367
          %v2967 = vunpack.c.l.b16 %v2368
          %v2968 = vunpack.c.h.b16 %v2368
          %v2969 = vunpack.c.l.b16 %v2369
          %v2970 = vunpack.c.h.b16 %v2369
          %v2971 = vunpack.c.l.b16 %v2370
          %v2972 = vunpack.c.h.b16 %v2370
          %v2973 = vunpack.c.l.b16 %v2371
          %v2974 = vunpack.c.h.b16 %v2371
          %v2975 = vunpack.c.l.b16 %v2372
          %v2976 = vunpack.c.h.b16 %v2372
          %v2977 = vunpack.c.l.b16 %v2373
          %v2978 = vunpack.c.h.b16 %v2373
          %v2979 = vunpack.c.l.b16 %v2374
          %v2980 = vunpack.c.h.b16 %v2374
          %v2981 = vunpack.c.l.b16 %v2375
          %v2982 = vunpack.c.h.b16 %v2375
          %v2983 = vunpack.c.l.b16 %v2376
          %v2984 = vunpack.c.h.b16 %v2376
          %v2985 = vunpack.c.l.b16 %v2377
          %v2986 = vunpack.c.h.b16 %v2377
          %v2987 = vunpack.c.l.b16 %v2378
          %v2988 = vunpack.c.h.b16 %v2378
          %v2989 = vunpack.c.l.b16 %v2379
          %v2990 = vunpack.c.h.b16 %v2379
          %v2991 = vunpack.c.l.b16 %v2380
          %v2992 = vunpack.c.h.b16 %v2380
          %v2993 = vunpack.c.l.b16 %v2381
          %v2994 = vunpack.c.h.b16 %v2381
          %v2995 = vunpack.c.l.b16 %v2382
          %v2996 = vunpack.c.h.b16 %v2382
          %v2997 = vunpack.c.l.b16 %v2383
          %v2998 = vunpack.c.h.b16 %v2383
          %v2999 = vunpack.c.l.b16 %v2384
          %v3000 = vunpack.c.h.b16 %v2384
          %v3001 = vunpack.c.l.b16 %v2385
          %v3002 = vunpack.c.h.b16 %v2385
          %v3003 = vunpack.c.l.b16 %v2386
          %v3004 = vunpack.c.h.b16 %v2386
          %v3005 = vunpack.c.l.b16 %v2387
          %v3006 = vunpack.c.h.b16 %v2387
          %v3007 = vunpack.c.l.b16 %v2388
          %v3008 = vunpack.c.h.b16 %v2388
          %v3009 = vunpack.c.l.b16 %v2389
          %v3010 = vunpack.c.h.b16 %v2389
          %v3011 = vunpack.c.l.b16 %v2390
          %v3012 = vunpack.c.h.b16 %v2390
          %v3013 = vunpack.c.l.b16 %v2391
          %v3014 = vunpack.c.h.b16 %v2391
          %v3015 = vunpack.c.l.b16 %v2392
          %v3016 = vunpack.c.h.b16 %v2392
          %v3017 = vunpack.c.l.b16 %v2393
          %v3018 = vunpack.c.h.b16 %v2393
          %v3019 = vunpack.c.l.b16 %v2394
          %v3020 = vunpack.c.h.b16 %v2394
          %v3021 = vunpack.c.l.b16 %v2395
          %v3022 = vunpack.c.h.b16 %v2395
          %v3023 = vunpack.c.l.b16 %v2396
          %v3024 = vunpack.c.h.b16 %v2396
          %v3025 = vunpack.c.l.b16 %v2397
          %v3026 = vunpack.c.h.b16 %v2397
          %v3027 = vunpack.c.l.b16 %v2398
          %v3028 = vunpack.c.h.b16 %v2398
          %v3029 = vunpack.c.l.b16 %v2399
          %v3030 = vunpack.c.h.b16 %v2399
          %v3031 = vunpack.c.l.b16 %v2400
          %v3032 = vunpack.c.h.b16 %v2400
          %v3033 = vunpack.c.l.b16 %v2401
          %v3034 = vunpack.c.h.b16 %v2401
          %v3035 = vunpack.c.l.b16 %v2402
          %v3036 = vunpack.c.h.b16 %v2402
          %v3037 = vunpack.c.l.b16 %v2403
          %v3038 = vunpack.c.h.b16 %v2403
          %v3039 = vunpack.c.l.b16 %v2404
          %v3040 = vunpack.c.h.b16 %v2404
          %v3041 = vunpack.c.l.b16 %v2405
          %v3042 = vunpack.c.h.b16 %v2405
          %v3043 = vunpack.c.l.b16 %v2406
          %v3044 = vunpack.c.h.b16 %v2406
          %v3045 = vunpack.c.l.b16 %v2407
          %v3046 = vunpack.c.h.b16 %v2407
          %v3047 = vunpack.c.l.b16 %v2408
          %v3048 = vunpack.c.h.b16 %v2408
          %v3049 = vunpack.c.l.b16 %v2409
          %v3050 = vunpack.c.h.b16 %v2409
          %v3051 = vunpack.c.l.b16 %v2410
          %v3052 = vunpack.c.h.b16 %v2410
          %v3053 = vunpack.c.l.b16 %v2411
          %v3054 = vunpack.c.h.b16 %v2411
          %v3055 = vunpack.c.l.b16 %v2412
          %v3056 = vunpack.c.h.b16 %v2412
          %v3057 = vunpack.c.l.b16 %v2413
          %v3058 = vunpack.c.h.b16 %v2413
          %v3059 = vunpack.c.l.b16 %v2414
          %v3060 = vunpack.c.h.b16 %v2414
          %v3061 = vunpack.c.l.b16 %v2415
          %v3062 = vunpack.c.h.b16 %v2415
          %v3063 = vunpack.c.l.b16 %v2416
          %v3064 = vunpack.c.h.b16 %v2416
          %v3065 = vunpack.c.l.b16 %v2417
          %v3066 = vunpack.c.h.b16 %v2417
          %v3067 = vunpack.c.l.b16 %v2418
          %v3068 = vunpack.c.h.b16 %v2418
          %v3069 = vunpack.c.l.b16 %v2419
          %v3070 = vunpack.c.h.b16 %v2419
          %v3071 = vunpack.c.l.b16 %v2420
          %v3072 = vunpack.c.h.b16 %v2420
          %v3073 = vunpack.c.l.b16 %v2421
          %v3074 = vunpack.c.h.b16 %v2421
          %v3075 = vunpack.c.l.b16 %v2422
          %v3076 = vunpack.c.h.b16 %v2422
          %v3077 = vunpack.c.l.b16 %v2423
          %v3078 = vunpack.c.h.b16 %v2423
          %v3079 = vunpack.c.l.b16 %v2424
          %v3080 = vunpack.c.h.b16 %v2424
          %v3081 = vunpack.c.l.b16 %v2425
          %v3082 = vunpack.c.h.b16 %v2425
          %v3083 = vunpack.c.l.b16 %v2426
          %v3084 = vunpack.c.h.b16 %v2426
          %v3085 = vunpack.c.l.b16 %v2427
          %v3086 = vunpack.c.h.b16 %v2427
          %v3087 = vunpack.c.l.b16 %v2428
          %v3088 = vunpack.c.h.b16 %v2428
          %v3089 = vunpack.c.l.b16 %v2429
          %v3090 = vunpack.c.h.b16 %v2429
          %v3091 = vunpack.c.l.b16 %v2430
          %v3092 = vunpack.c.h.b16 %v2430
          %v3093 = vunpack.c.l.b16 %v2431
          %v3094 = vunpack.c.h.b16 %v2431
          %v3095 = vunpack.c.l.b16 %v2432
          %v3096 = vunpack.c.h.b16 %v2432
          %v3097 = vunpack.c.l.b16 %v2433
          %v3098 = vunpack.c.h.b16 %v2433
          %v3099 = vunpack.c.l.b16 %v2434
          %v3100 = vunpack.c.h.b16 %v2434
          %v3101 = vunpack.c.l.b16 %v2435
          %v3102 = vunpack.c.h.b16 %v2435
          %v3103 = vunpack.c.l.b16 %v2436
          %v3104 = vunpack.c.h.b16 %v2436
          %v3105 = vunpack.c.l.b16 %v2437
          %v3106 = vunpack.c.h.b16 %v2437
          %v3107 = vunpack.c.l.b16 %v2438
          %v3108 = vunpack.c.h.b16 %v2438
          %v3109 = vunpack.c.l.b16 %v2439
          %v3110 = vunpack.c.h.b16 %v2439
          %v3111 = vunpack.c.l.b16 %v2440
          %v3112 = vunpack.c.h.b16 %v2440
          %v3113 = vunpack.c.l.b16 %v2441
          %v3114 = vunpack.c.h.b16 %v2441
          %v3115 = vunpack.c.l.b16 %v2442
          %v3116 = vunpack.c.h.b16 %v2442
          %v3117 = vunpack.c.l.b16 %v2443
          %v3118 = vunpack.c.h.b16 %v2443
          %v3119 = vunpack.c.l.b16 %v2444
          %v3120 = vunpack.c.h.b16 %v2444
          %v3121 = vunpack.c.l.b16 %v2445
          %v3122 = vunpack.c.h.b16 %v2445
          %v3123 = vunpack.c.l.b16 %v2446
          %v3124 = vunpack.c.h.b16 %v2446
          %v3125 = vunpack.c.l.b16 %v2447
          %v3126 = vunpack.c.h.b16 %v2447
          %v3127 = vunpack.c.l.b16 %v2448
          %v3128 = vunpack.c.h.b16 %v2448
          %v3129 = vunpack.c.l.b16 %v2449
          %v3130 = vunpack.c.h.b16 %v2449
          %v3131 = vunpack.c.l.b16 %v2450
          %v3132 = vunpack.c.h.b16 %v2450
          %v3133 = vunpack.c.l.b16 %v2451
          %v3134 = vunpack.c.h.b16 %v2451
          %v3135 = vunpack.c.l.b16 %v2452
          %v3136 = vunpack.c.h.b16 %v2452
          %v3137 = vunpack.c.l.b16 %v2453
          %v3138 = vunpack.c.h.b16 %v2453
          %v3139 = vunpack.c.l.b16 %v2454
          %v3140 = vunpack.c.h.b16 %v2454
          %v3141 = vunpack.c.l.b16 %v2455
          %v3142 = vunpack.c.h.b16 %v2455
          %v3143 = vunpack.c.l.b16 %v2456
          %v3144 = vunpack.c.h.b16 %v2456
          %v3145 = vunpack.c.l.b16 %v2457
          %v3146 = vunpack.c.h.b16 %v2457
          %v3147 = vunpack.c.l.b16 %v2458
          %v3148 = vunpack.c.h.b16 %v2458
          %v3149 = vunpack.c.l.b16 %v2459
          %v3150 = vunpack.c.h.b16 %v2459
          %v3151 = vunpack.c.l.b16 %v2460
          %v3152 = vunpack.c.h.b16 %v2460
          %v3153 = vunpack.c.l.b16 %v2461
          %v3154 = vunpack.c.h.b16 %v2461
          %v3155 = vunpack.c.l.b16 %v2462
          %v3156 = vunpack.c.h.b16 %v2462
          %v3157 = vunpack.c.l.b16 %v2463
          %v3158 = vunpack.c.h.b16 %v2463
          %v3159 = vunpack.c.l.b16 %v2464
          %v3160 = vunpack.c.h.b16 %v2464
          %v3161 = vunpack.c.l.b16 %v2465
          %v3162 = vunpack.c.h.b16 %v2465
          %v3163 = vunpack.c.l.b16 %v2466
          %v3164 = vunpack.c.h.b16 %v2466
          %v3165 = vunpack.c.l.b16 %v2467
          %v3166 = vunpack.c.h.b16 %v2467
          %v3167 = vunpack.c.l.b16 %v2468
          %v3168 = vunpack.c.h.b16 %v2468
          %v3169 = vunpack.c.l.b16 %v2469
          %v3170 = vunpack.c.h.b16 %v2469
          %v3171 = vunpack.c.l.b16 %v2470
          %v3172 = vunpack.c.h.b16 %v2470
          %v3173 = vunpack.c.l.b16 %v2471
          %v3174 = vunpack.c.h.b16 %v2471
          %v3175 = vunpack.c.l.b16 %v2472
          %v3176 = vunpack.c.h.b16 %v2472
          %v3177 = vunpack.c.l.b16 %v2473
          %v3178 = vunpack.c.h.b16 %v2473
          %v3179 = vunpack.c.l.b16 %v2474
          %v3180 = vunpack.c.h.b16 %v2474
          %v3181 = vunpack.c.l.b16 %v2475
          %v3182 = vunpack.c.h.b16 %v2475
          %v3183 = vunpack.c.l.b16 %v2476
          %v3184 = vunpack.c.h.b16 %v2476
          %v3185 = vunpack.c.l.b16 %v2477
          %v3186 = vunpack.c.h.b16 %v2477
          %v3187 = vunpack.c.l.b16 %v2478
          %v3188 = vunpack.c.h.b16 %v2478
          %v3189 = vunpack.c.l.b16 %v2479
          %v3190 = vunpack.c.h.b16 %v2479
          %v3191 = vunpack.c.l.b16 %v2480
          %v3192 = vunpack.c.h.b16 %v2480
          %v3193 = vunpack.c.l.b16 %v2481
          %v3194 = vunpack.c.h.b16 %v2481
          %v3195 = vunpack.c.l.b16 %v2482
          %v3196 = vunpack.c.h.b16 %v2482
          %v3197 = vunpack.c.l.b16 %v2483
          %v3198 = vunpack.c.h.b16 %v2483
          %v3199 = vunpack.c.l.b16 %v2484
          %v3200 = vunpack.c.h.b16 %v2484
          %v3201 = vunpack.c.l.b16 %v2485
          %v3202 = vunpack.c.h.b16 %v2485
          %v3203 = vunpack.c.l.b16 %v2486
          %v3204 = vunpack.c.h.b16 %v2486
          %v3205 = vunpack.c.l.b16 %v2487
          %v3206 = vunpack.c.h.b16 %v2487
          %v3207 = vunpack.c.l.b16 %v2488
          %v3208 = vunpack.c.h.b16 %v2488
          %v3209 = vunpack.c.l.b16 %v2489
          %v3210 = vunpack.c.h.b16 %v2489
          %v3211 = vunpack.c.l.b16 %v2490
          %v3212 = vunpack.c.h.b16 %v2490
          %v3213 = vunpack.c.l.b16 %v2491
          %v3214 = vunpack.c.h.b16 %v2491
          %v3215 = vunpack.c.l.b16 %v2492
          %v3216 = vunpack.c.h.b16 %v2492
          %v3217 = vunpack.c.l.b16 %v2493
          %v3218 = vunpack.c.h.b16 %v2493
          %v3219 = vunpack.c.l.b16 %v2494
          %v3220 = vunpack.c.h.b16 %v2494
          %v3221 = vunpack.c.l.b16 %v2495
          %v3222 = vunpack.c.h.b16 %v2495
          %v3223 = vunpack.c.l.b16 %v2496
          %v3224 = vunpack.c.h.b16 %v2496
          %v3225 = vunpack.c.l.b16 %v2497
          %v3226 = vunpack.c.h.b16 %v2497
          %v3227 = vunpack.c.l.b16 %v2498
          %v3228 = vunpack.c.h.b16 %v2498
          %v3229 = vunpack.c.l.b16 %v2499
          %v3230 = vunpack.c.h.b16 %v2499
          %v3231 = vunpack.c.l.b16 %v2500
          %v3232 = vunpack.c.h.b16 %v2500
          %v3233 = vunpack.c.l.b16 %v2501
          %v3234 = vunpack.c.h.b16 %v2501
          %v3235 = vunpack.c.l.b16 %v2502
          %v3236 = vunpack.c.h.b16 %v2502
          %v3237 = vunpack.c.l.b16 %v2503
          %v3238 = vunpack.c.h.b16 %v2503
          %v3239 = vunpack.c.l.b16 %v2504
          %v3240 = vunpack.c.h.b16 %v2504
          %v3241 = vunpack.c.l.b16 %v2505
          %v3242 = vunpack.c.h.b16 %v2505
          %v3243 = vunpack.c.l.b16 %v2506
          %v3244 = vunpack.c.h.b16 %v2506
          %v3245 = vunpack.c.l.b16 %v2507
          %v3246 = vunpack.c.h.b16 %v2507
          %v3247 = vunpack.c.l.b16 %v2508
          %v3248 = vunpack.c.h.b16 %v2508
          %v3249 = vunpack.c.l.b16 %v2509
          %v3250 = vunpack.c.h.b16 %v2509
          %v3251 = vunpack.c.l.b16 %v2510
          %v3252 = vunpack.c.h.b16 %v2510
          %v3253 = vunpack.c.l.b16 %v2511
          %v3254 = vunpack.c.h.b16 %v2511
          %v3255 = vunpack.c.l.b16 %v2512
          %v3256 = vunpack.c.h.b16 %v2512
          %v3257 = vunpack.c.l.b16 %v2513
          %v3258 = vunpack.c.h.b16 %v2513
          %v3259 = vunpack.c.l.b16 %v2514
          %v3260 = vunpack.c.h.b16 %v2514
          %v3261 = vunpack.c.l.b16 %v2515
          %v3262 = vunpack.c.h.b16 %v2515
          %v3263 = vunpack.c.l.b16 %v2516
          %v3264 = vunpack.c.h.b16 %v2516
          %v3265 = vunpack.c.l.b16 %v2517
          %v3266 = vunpack.c.h.b16 %v2517
          %v3267 = vunpack.c.l.b16 %v2518
          %v3268 = vunpack.c.h.b16 %v2518
          %v3269 = vunpack.c.l.b16 %v2519
          %v3270 = vunpack.c.h.b16 %v2519
          %v3271 = vunpack.c.l.b16 %v2520
          %v3272 = vunpack.c.h.b16 %v2520
          %v3273 = vunpack.c.l.b16 %v2521
          %v3274 = vunpack.c.h.b16 %v2521
          %v3275 = vunpack.c.l.b16 %v2522
          %v3276 = vunpack.c.h.b16 %v2522
          %v3277 = vunpack.c.l.b16 %v2523
          %v3278 = vunpack.c.h.b16 %v2523
          %v3279 = vunpack.c.l.b16 %v2524
          %v3280 = vunpack.c.h.b16 %v2524
          %v3281 = vunpack.c.l.b16 %v2525
          %v3282 = vunpack.c.h.b16 %v2525
          %v3283 = vunpack.c.l.b16 %v2526
          %v3284 = vunpack.c.h.b16 %v2526
          %v3285 = vunpack.c.l.b16 %v2527
          %v3286 = vunpack.c.h.b16 %v2527
          %v3287 = vunpack.c.l.b16 %v2528
          %v3288 = vunpack.c.h.b16 %v2528
          %v3289 = vunpack.c.l.b16 %v2529
          %v3290 = vunpack.c.h.b16 %v2529
          %v3291 = vunpack.c.l.b16 %v2530
          %v3292 = vunpack.c.h.b16 %v2530
          %v3293 = vunpack.c.l.b16 %v2531
          %v3294 = vunpack.c.h.b16 %v2531
          %v3295 = vunpack.c.l.b16 %v2532
          %v3296 = vunpack.c.h.b16 %v2532
          %v3297 = vunpack.c.l.b16 %v2533
          %v3298 = vunpack.c.h.b16 %v2533
          %v3299 = vunpack.c.l.b16 %v2534
          %v3300 = vunpack.c.h.b16 %v2534
          %v3301 = vunpack.c.l.b16 %v2535
          %v3302 = vunpack.c.h.b16 %v2535
          %v3303 = vunpack.c.l.b16 %v2536
          %v3304 = vunpack.c.h.b16 %v2536
          %v3305 = vunpack.c.l.b16 %v2537
          %v3306 = vunpack.c.h.b16 %v2537
          %v3307 = vpack.c.b16 %v2797, %v2795
          %v3308 = vpack.c.b16 %v2798, %v2796
          %v3309 = vpack.c.b16 %v2801, %v2799
          %v3310 = vpack.c.b16 %v2802, %v2800
          %v3311 = vpack.c.b16 %v2805, %v2803
          %v3312 = vpack.c.b16 %v2806, %v2804
          %v3313 = vpack.c.b16 %v2809, %v2807
          %v3314 = vpack.c.b16 %v2810, %v2808
          %v3315 = vpack.c.b16 %v2813, %v2811
          %v3316 = vpack.c.b16 %v2814, %v2812
          %v3317 = vpack.c.b16 %v2817, %v2815
          %v3318 = vpack.c.b16 %v2818, %v2816
          %v3319 = vpack.c.b16 %v2821, %v2819
          %v3320 = vpack.c.b16 %v2822, %v2820
          %v3321 = vpack.c.b16 %v2825, %v2823
          %v3322 = vpack.c.b16 %v2826, %v2824
          %v3323 = vpack.c.b16 %v2829, %v2827
          %v3324 = vpack.c.b16 %v2830, %v2828
          %v3325 = vpack.c.b16 %v2833, %v2831
          %v3326 = vpack.c.b16 %v2834, %v2832
          %v3327 = vpack.c.b16 %v2837, %v2835
          %v3328 = vpack.c.b16 %v2838, %v2836
          %v3329 = vpack.c.b16 %v2841, %v2839
          %v3330 = vpack.c.b16 %v2842, %v2840
          %v3331 = vpack.c.b16 %v2845, %v2843
          %v3332 = vpack.c.b16 %v2846, %v2844
          %v3333 = vpack.c.b16 %v2849, %v2847
          %v3334 = vpack.c.b16 %v2850, %v2848
          %v3335 = vpack.c.b16 %v2853, %v2851
          %v3336 = vpack.c.b16 %v2854, %v2852
          %v3337 = vpack.c.b16 %v2857, %v2855
          %v3338 = vpack.c.b16 %v2858, %v2856
          %v3339 = vpack.c.b16 %v2861, %v2859
          %v3340 = vpack.c.b16 %v2862, %v2860
          %v3341 = vpack.c.b16 %v2865, %v2863
          %v3342 = vpack.c.b16 %v2866, %v2864
          %v3343 = vpack.c.b16 %v2869, %v2867
          %v3344 = vpack.c.b16 %v2870, %v2868
          %v3345 = vpack.c.b16 %v2873, %v2871
          %v3346 = vpack.c.b16 %v2874, %v2872
          %v3347 = vpack.c.b16 %v2877, %v2875
          %v3348 = vpack.c.b16 %v2878, %v2876
          %v3349 = vpack.c.b16 %v2881, %v2879
          %v3350 = vpack.c.b16 %v2882, %v2880
          %v3351 = vpack.c.b16 %v2885, %v2883
          %v3352 = vpack.c.b16 %v2886, %v2884
          %v3353 = vpack.c.b16 %v2889, %v2887
          %v3354 = vpack.c.b16 %v2890, %v2888
          %v3355 = vpack.c.b16 %v2893, %v2891
          %v3356 = vpack.c.b16 %v2894, %v2892
          %v3357 = vpack.c.b16 %v2897, %v2895
          %v3358 = vpack.c.b16 %v2898, %v2896
          %v3359 = vpack.c.b16 %v2901, %v2899
          %v3360 = vpack.c.b16 %v2902, %v2900
          %v3361 = vpack.c.b16 %v2905, %v2903
          %v3362 = vpack.c.b16 %v2906, %v2904
          %v3363 = vpack.c.b16 %v2909, %v2907
          %v3364 = vpack.c.b16 %v2910, %v2908
          %v3365 = vpack.c.b16 %v2913, %v2911
          %v3366 = vpack.c.b16 %v2914, %v2912
          %v3367 = vpack.c.b16 %v2917, %v2915
          %v3368 = vpack.c.b16 %v2918, %v2916
          %v3369 = vpack.c.b16 %v2921, %v2919
          %v3370 = vpack.c.b16 %v2922, %v2920
          %v3371 = vpack.c.b16 %v2925, %v2923
          %v3372 = vpack.c.b16 %v2926, %v2924
          %v3373 = vpack.c.b16 %v2929, %v2927
          %v3374 = vpack.c.b16 %v2930, %v2928
          %v3375 = vpack.c.b16 %v2933, %v2931
          %v3376 = vpack.c.b16 %v2934, %v2932
          %v3377 = vpack.c.b16 %v2937, %v2935
          %v3378 = vpack.c.b16 %v2938, %v2936
          %v3379 = vpack.c.b16 %v2941, %v2939
          %v3380 = vpack.c.b16 %v2942, %v2940
          %v3381 = vpack.c.b16 %v2945, %v2943
          %v3382 = vpack.c.b16 %v2946, %v2944
          %v3383 = vpack.c.b16 %v2949, %v2947
          %v3384 = vpack.c.b16 %v2950, %v2948
          %v3385 = vpack.c.b16 %v2953, %v2951
          %v3386 = vpack.c.b16 %v2954, %v2952
          %v3387 = vpack.c.b16 %v2957, %v2955
          %v3388 = vpack.c.b16 %v2958, %v2956
          %v3389 = vpack.c.b16 %v2961, %v2959
          %v3390 = vpack.c.b16 %v2962, %v2960
          %v3391 = vpack.c.b16 %v2965, %v2963
          %v3392 = vpack.c.b16 %v2966, %v2964
          %v3393 = vpack.c.b16 %v2969, %v2967
          %v3394 = vpack.c.b16 %v2970, %v2968
          %v3395 = vpack.c.b16 %v2973, %v2971
          %v3396 = vpack.c.b16 %v2974, %v2972
          %v3397 = vpack.c.b16 %v2977, %v2975
          %v3398 = vpack.c.b16 %v2978, %v2976
          %v3399 = vpack.c.b16 %v2981, %v2979
          %v3400 = vpack.c.b16 %v2982, %v2980
          %v3401 = vpack.c.b16 %v2985, %v2983
          %v3402 = vpack.c.b16 %v2986, %v2984
          %v3403 = vpack.c.b16 %v2989, %v2987
          %v3404 = vpack.c.b16 %v2990, %v2988
          %v3405 = vpack.c.b16 %v2993, %v2991
          %v3406 = vpack.c.b16 %v2994, %v2992
          %v3407 = vpack.c.b16 %v2997, %v2995
          %v3408 = vpack.c.b16 %v2998, %v2996
          %v3409 = vpack.c.b16 %v3001, %v2999
          %v3410 = vpack.c.b16 %v3002, %v3000
          %v3411 = vpack.c.b16 %v3005, %v3003
          %v3412 = vpack.c.b16 %v3006, %v3004
          %v3413 = vpack.c.b16 %v3009, %v3007
          %v3414 = vpack.c.b16 %v3010, %v3008
          %v3415 = vpack.c.b16 %v3013, %v3011
          %v3416 = vpack.c.b16 %v3014, %v3012
          %v3417 = vpack.c.b16 %v3017, %v3015
          %v3418 = vpack.c.b16 %v3018, %v3016
          %v3419 = vpack.c.b16 %v3021, %v3019
          %v3420 = vpack.c.b16 %v3022, %v3020
          %v3421 = vpack.c.b16 %v3025, %v3023
          %v3422 = vpack.c.b16 %v3026, %v3024
          %v3423 = vpack.c.b16 %v3029, %v3027
          %v3424 = vpack.c.b16 %v3030, %v3028
          %v3425 = vpack.c.b16 %v3033, %v3031
          %v3426 = vpack.c.b16 %v3034, %v3032
          %v3427 = vpack.c.b16 %v3037, %v3035
          %v3428 = vpack.c.b16 %v3038, %v3036
          %v3429 = vpack.c.b16 %v3041, %v3039
          %v3430 = vpack.c.b16 %v3042, %v3040
          %v3431 = vpack.c.b16 %v3045, %v3043
          %v3432 = vpack.c.b16 %v3046, %v3044
          %v3433 = vpack.c.b16 %v3049, %v3047
          %v3434 = vpack.c.b16 %v3050, %v3048
          %v3435 = vpack.c.b16 %v3053, %v3051
          %v3436 = vpack.c.b16 %v3054, %v3052
          %v3437 = vpack.c.b16 %v3057, %v3055
          %v3438 = vpack.c.b16 %v3058, %v3056
          %v3439 = vpack.c.b16 %v3061, %v3059
          %v3440 = vpack.c.b16 %v3062, %v3060
          %v3441 = vpack.c.b16 %v3065, %v3063
          %v3442 = vpack.c.b16 %v3066, %v3064
          %v3443 = vpack.c.b16 %v3069, %v3067
          %v3444 = vpack.c.b16 %v3070, %v3068
          %v3445 = vpack.c.b16 %v3073, %v3071
          %v3446 = vpack.c.b16 %v3074, %v3072
          %v3447 = vpack.c.b16 %v3077, %v3075
          %v3448 = vpack.c.b16 %v3078, %v3076
          %v3449 = vpack.c.b16 %v3081, %v3079
          %v3450 = vpack.c.b16 %v3082, %v3080
          %v3451 = vpack.c.b16 %v3085, %v3083
          %v3452 = vpack.c.b16 %v3086, %v3084
          %v3453 = vpack.c.b16 %v3089, %v3087
          %v3454 = vpack.c.b16 %v3090, %v3088
          %v3455 = vpack.c.b16 %v3093, %v3091
          %v3456 = vpack.c.b16 %v3094, %v3092
          %v3457 = vpack.c.b16 %v3097, %v3095
          %v3458 = vpack.c.b16 %v3098, %v3096
          %v3459 = vpack.c.b16 %v3101, %v3099
          %v3460 = vpack.c.b16 %v3102, %v3100
          %v3461 = vpack.c.b16 %v3105, %v3103
          %v3462 = vpack.c.b16 %v3106, %v3104
          %v3463 = vpack.c.b16 %v3109, %v3107
          %v3464 = vpack.c.b16 %v3110, %v3108
          %v3465 = vpack.c.b16 %v3113, %v3111
          %v3466 = vpack.c.b16 %v3114, %v3112
          %v3467 = vpack.c.b16 %v3117, %v3115
          %v3468 = vpack.c.b16 %v3118, %v3116
          %v3469 = vpack.c.b16 %v3121, %v3119
          %v3470 = vpack.c.b16 %v3122, %v3120
          %v3471 = vpack.c.b16 %v3125, %v3123
          %v3472 = vpack.c.b16 %v3126, %v3124
          %v3473 = vpack.c.b16 %v3129, %v3127
          %v3474 = vpack.c.b16 %v3130, %v3128
          %v3475 = vpack.c.b16 %v3133, %v3131
          %v3476 = vpack.c.b16 %v3134, %v3132
          %v3477 = vpack.c.b16 %v3137, %v3135
          %v3478 = vpack.c.b16 %v3138, %v3136
          %v3479 = vpack.c.b16 %v3141, %v3139
          %v3480 = vpack.c.b16 %v3142, %v3140
          %v3481 = vpack.c.b16 %v3145, %v3143
          %v3482 = vpack.c.b16 %v3146, %v3144
          %v3483 = vpack.c.b16 %v3149, %v3147
          %v3484 = vpack.c.b16 %v3150, %v3148
          %v3485 = vpack.c.b16 %v3153, %v3151
          %v3486 = vpack.c.b16 %v3154, %v3152
          %v3487 = vpack.c.b16 %v3157, %v3155
          %v3488 = vpack.c.b16 %v3158, %v3156
          %v3489 = vpack.c.b16 %v3161, %v3159
          %v3490 = vpack.c.b16 %v3162, %v3160
          %v3491 = vpack.c.b16 %v3165, %v3163
          %v3492 = vpack.c.b16 %v3166, %v3164
          %v3493 = vpack.c.b16 %v3169, %v3167
          %v3494 = vpack.c.b16 %v3170, %v3168
          %v3495 = vpack.c.b16 %v3173, %v3171
          %v3496 = vpack.c.b16 %v3174, %v3172
          %v3497 = vpack.c.b16 %v3177, %v3175
          %v3498 = vpack.c.b16 %v3178, %v3176
          %v3499 = vpack.c.b16 %v3181, %v3179
          %v3500 = vpack.c.b16 %v3182, %v3180
          %v3501 = vpack.c.b16 %v3185, %v3183
          %v3502 = vpack.c.b16 %v3186, %v3184
          %v3503 = vpack.c.b16 %v3189, %v3187
          %v3504 = vpack.c.b16 %v3190, %v3188
          %v3505 = vpack.c.b16 %v3193, %v3191
          %v3506 = vpack.c.b16 %v3194, %v3192
          %v3507 = vpack.c.b16 %v3197, %v3195
          %v3508 = vpack.c.b16 %v3198, %v3196
          %v3509 = vpack.c.b16 %v3201, %v3199
          %v3510 = vpack.c.b16 %v3202, %v3200
          %v3511 = vpack.c.b16 %v3205, %v3203
          %v3512 = vpack.c.b16 %v3206, %v3204
          %v3513 = vpack.c.b16 %v3209, %v3207
          %v3514 = vpack.c.b16 %v3210, %v3208
          %v3515 = vpack.c.b16 %v3213, %v3211
          %v3516 = vpack.c.b16 %v3214, %v3212
          %v3517 = vpack.c.b16 %v3217, %v3215
          %v3518 = vpack.c.b16 %v3218, %v3216
          %v3519 = vpack.c.b16 %v3221, %v3219
          %v3520 = vpack.c.b16 %v3222, %v3220
          %v3521 = vpack.c.b16 %v3225, %v3223
          %v3522 = vpack.c.b16 %v3226, %v3224
          %v3523 = vpack.c.b16 %v3229, %v3227
          %v3524 = vpack.c.b16 %v3230, %v3228
          %v3525 = vpack.c.b16 %v3233, %v3231
          %v3526 = vpack.c.b16 %v3234, %v3232
          %v3527 = vpack.c.b16 %v3237, %v3235
          %v3528 = vpack.c.b16 %v3238, %v3236
          %v3529 = vpack.c.b16 %v3241, %v3239
          %v3530 = vpack.c.b16 %v3242, %v3240
          %v3531 = vpack.c.b16 %v3245, %v3243
          %v3532 = vpack.c.b16 %v3246, %v3244
          %v3533 = vpack.c.b16 %v3249, %v3247
          %v3534 = vpack.c.b16 %v3250, %v3248
          %v3535 = vpack.c.b16 %v3253, %v3251
          %v3536 = vpack.c.b16 %v3254, %v3252
          %v3537 = vpack.c.b16 %v3257, %v3255
          %v3538 = vpack.c.b16 %v3258, %v3256
          %v3539 = vpack.c.b16 %v3261, %v3259
          %v3540 = vpack.c.b16 %v3262, %v3260
          %v3541 = vpack.c.b16 %v3265, %v3263
          %v3542 = vpack.c.b16 %v3266, %v3264
          %v3543 = vpack.c.b16 %v3269, %v3267
          %v3544 = vpack.c.b16 %v3270, %v3268
          %v3545 = vpack.c.b16 %v3273, %v3271
          %v3546 = vpack.c.b16 %v3274, %v3272
          %v3547 = vpack.c.b16 %v3277, %v3275
          %v3548 = vpack.c.b16 %v3278, %v3276
          %v3549 = vpack.c.b16 %v3281, %v3279
          %v3550 = vpack.c.b16 %v3282, %v3280
          %v3551 = vpack.c.b16 %v3285, %v3283
          %v3552 = vpack.c.b16 %v3286, %v3284
          %v3553 = vpack.c.b16 %v3289, %v3287
          %v3554 = vpack.c.b16 %v3290, %v3288
          %v3555 = vpack.c.b16 %v3293, %v3291
          %v3556 = vpack.c.b16 %v3294, %v3292
          %v3557 = vpack.c.b16 %v3297, %v3295
          %v3558 = vpack.c.b16 %v3298, %v3296
          %v3559 = vpack.c.b16 %v3301, %v3299
          %v3560 = vpack.c.b16 %v3302, %v3300
          %v3561 = vpack.c.b16 %v3305, %v3303
          %v3562 = vpack.c.b16 %v3306, %v3304
          %v3820 = vlaneseq
          %v3821 = vshrl.u32 %v3820, 7
          %v3822 = vsub.s32 0, %v3821
          %v3823 = vrot.slane %v2538, %v3822
          %v3824 = vlaneseq
          %v3825 = vshrl.u32 %v3824, 7
          %v3826 = vsub.s32 1, %v3825
          %v3827 = vrot.slane %v2538, %v3826
          %3830 = vmatprep.subr.bf16.mxu0 %v3308
          %3831 = vmatpush1.bf16.msra.mxu0 %v3307
          %3832 = vmatprep.subr.bf16.mxu0 %v3310
          %3833 = vmatpush1.bf16.msra.mxu0 %v3309
          %3834 = vmatprep.subr.bf16.mxu0 %v3312
          %3835 = vmatpush1.bf16.msra.mxu0 %v3311
          %3836 = vmatprep.subr.bf16.mxu0 %v3314
          %3837 = vmatpush1.bf16.msra.mxu0 %v3313
          %3838 = vmatprep.subr.bf16.mxu0 %v3316
          %3839 = vmatpush1.bf16.msra.mxu0 %v3315
          %3840 = vmatprep.subr.bf16.mxu0 %v3318
          %3841 = vmatpush1.bf16.msra.mxu0 %v3317
          %3842 = vmatprep.subr.bf16.mxu0 %v3320
          %3843 = vmatpush1.bf16.msra.mxu0 %v3319
          %3844 = vmatprep.subr.bf16.mxu0 %v3322
          %3845 = vmatpush1.bf16.msra.mxu0 %v3321
          %3846 = vmatprep.subr.bf16.mxu0 %v3324
          %3847 = vmatpush1.bf16.msra.mxu0 %v3323
          %3848 = vmatprep.subr.bf16.mxu0 %v3326
          %3849 = vmatpush1.bf16.msra.mxu0 %v3325
          %3850 = vmatprep.subr.bf16.mxu0 %v3328
          %3851 = vmatpush1.bf16.msra.mxu0 %v3327
          %3852 = vmatprep.subr.bf16.mxu0 %v3330
          %3853 = vmatpush1.bf16.msra.mxu0 %v3329
          %3854 = vmatprep.subr.bf16.mxu0 %v3332
          %3855 = vmatpush1.bf16.msra.mxu0 %v3331
          %3856 = vmatprep.subr.bf16.mxu0 %v3334
          %3857 = vmatpush1.bf16.msra.mxu0 %v3333
          %3858 = vmatprep.subr.bf16.mxu0 %v3336
          %3859 = vmatpush1.bf16.msra.mxu0 %v3335
          %3860 = vmatprep.subr.bf16.mxu0 %v3338
          %3861 = vmatpush1.bf16.msra.mxu0 %v3337
          %3862 = vmatprep.mubr.bf16.mxu0 %v2167
          %3863 = vmatmul.mubr.bf16.gmra.mrb[0].mxu0 %v2166
          %v3864 = vpop.f32.mrb[0].mxu0
          %v3865 = vadd.f32 %v3823, %v3864
          %v3866 = vpop.f32.mrb[0].mxu0
          %v3867 = vadd.f32 %v3827, %v3866
          %v3868 = vpop.f32.mrb[0].mxu0
          %v3869 = vpop.f32.mrb[0].mxu0
          %3870 = vdwg.mxu0
          %3871 = vmatprep.subr.bf16.mxu0 %v3340
          %3872 = vmatpush1.bf16.msra.mxu0 %v3339
          %3873 = vmatprep.subr.bf16.mxu0 %v3342
          %3874 = vmatpush1.bf16.msra.mxu0 %v3341
          %3875 = vmatprep.subr.bf16.mxu0 %v3344
          %3876 = vmatpush1.bf16.msra.mxu0 %v3343
          %3877 = vmatprep.subr.bf16.mxu0 %v3346
          %3878 = vmatpush1.bf16.msra.mxu0 %v3345
          %3879 = vmatprep.subr.bf16.mxu0 %v3348
          %3880 = vmatpush1.bf16.msra.mxu0 %v3347
          %3881 = vmatprep.subr.bf16.mxu0 %v3350
          %3882 = vmatpush1.bf16.msra.mxu0 %v3349
          %3883 = vmatprep.subr.bf16.mxu0 %v3352
          %3884 = vmatpush1.bf16.msra.mxu0 %v3351
          %3885 = vmatprep.subr.bf16.mxu0 %v3354
          %3886 = vmatpush1.bf16.msra.mxu0 %v3353
          %3887 = vmatprep.subr.bf16.mxu0 %v3356
          %3888 = vmatpush1.bf16.msra.mxu0 %v3355
          %3889 = vmatprep.subr.bf16.mxu0 %v3358
          %3890 = vmatpush1.bf16.msra.mxu0 %v3357
          %3891 = vmatprep.subr.bf16.mxu0 %v3360
          %3892 = vmatpush1.bf16.msra.mxu0 %v3359
          %3893 = vmatprep.subr.bf16.mxu0 %v3362
          %3894 = vmatpush1.bf16.msra.mxu0 %v3361
          %3895 = vmatprep.subr.bf16.mxu0 %v3364
          %3896 = vmatpush1.bf16.msra.mxu0 %v3363
          %3897 = vmatprep.subr.bf16.mxu0 %v3366
          %3898 = vmatpush1.bf16.msra.mxu0 %v3365
          %3899 = vmatprep.subr.bf16.mxu0 %v3368
          %3900 = vmatpush1.bf16.msra.mxu0 %v3367
          %3901 = vmatprep.subr.bf16.mxu0 %v3370
          %3902 = vmatpush1.bf16.msra.mxu0 %v3369
          %3903 = vmatprep.mubr.bf16.mxu0 %v2169
          %3904 = vmatmul.mubr.bf16.gmra.mrb[0].mxu0 %v2168
          %v3905 = vpop.f32.mrb[0].mxu0
          %v3906 = vadd.f32 %v3865, %v3905
          %v3907 = vpop.f32.mrb[0].mxu0
          %v3908 = vadd.f32 %v3867, %v3907
          %v3909 = vpop.f32.mrb[0].mxu0
          %v3910 = vpop.f32.mrb[0].mxu0
          %3911 = vdwg.mxu0
          %3912 = vmatprep.subr.bf16.mxu0 %v3372
          %3913 = vmatpush1.bf16.msra.mxu0 %v3371
          %3914 = vmatprep.subr.bf16.mxu0 %v3374
          %3915 = vmatpush1.bf16.msra.mxu0 %v3373
          %3916 = vmatprep.subr.bf16.mxu0 %v3376
          %3917 = vmatpush1.bf16.msra.mxu0 %v3375
          %3918 = vmatprep.subr.bf16.mxu0 %v3378
          %3919 = vmatpush1.bf16.msra.mxu0 %v3377
          %3920 = vmatprep.subr.bf16.mxu0 %v3380
          %3921 = vmatpush1.bf16.msra.mxu0 %v3379
          %3922 = vmatprep.subr.bf16.mxu0 %v3382
          %3923 = vmatpush1.bf16.msra.mxu0 %v3381
          %3924 = vmatprep.subr.bf16.mxu0 %v3384
          %3925 = vmatpush1.bf16.msra.mxu0 %v3383
          %3926 = vmatprep.subr.bf16.mxu0 %v3386
          %3927 = vmatpush1.bf16.msra.mxu0 %v3385
          %3928 = vmatprep.subr.bf16.mxu0 %v3388
          %3929 = vmatpush1.bf16.msra.mxu0 %v3387
          %3930 = vmatprep.subr.bf16.mxu0 %v3390
          %3931 = vmatpush1.bf16.msra.mxu0 %v3389
          %3932 = vmatprep.subr.bf16.mxu0 %v3392
          %3933 = vmatpush1.bf16.msra.mxu0 %v3391
          %3934 = vmatprep.subr.bf16.mxu0 %v3394
          %3935 = vmatpush1.bf16.msra.mxu0 %v3393
          %3936 = vmatprep.subr.bf16.mxu0 %v3396
          %3937 = vmatpush1.bf16.msra.mxu0 %v3395
          %3938 = vmatprep.subr.bf16.mxu0 %v3398
          %3939 = vmatpush1.bf16.msra.mxu0 %v3397
          %3940 = vmatprep.subr.bf16.mxu0 %v3400
          %3941 = vmatpush1.bf16.msra.mxu0 %v3399
          %3942 = vmatprep.subr.bf16.mxu0 %v3402
          %3943 = vmatpush1.bf16.msra.mxu0 %v3401
          %3944 = vmatprep.mubr.bf16.mxu0 %v2171
          %3945 = vmatmul.mubr.bf16.gmra.mrb[0].mxu0 %v2170
          %v3946 = vpop.f32.mrb[0].mxu0
          %v3947 = vadd.f32 %v3906, %v3946
          %v3948 = vpop.f32.mrb[0].mxu0
          %v3949 = vadd.f32 %v3908, %v3948
          %v3950 = vpop.f32.mrb[0].mxu0
          %v3951 = vpop.f32.mrb[0].mxu0
          %3952 = vdwg.mxu0
          %3953 = vmatprep.subr.bf16.mxu0 %v3404
          %3954 = vmatpush1.bf16.msra.mxu0 %v3403
          %3955 = vmatprep.subr.bf16.mxu0 %v3406
          %3956 = vmatpush1.bf16.msra.mxu0 %v3405
          %3957 = vmatprep.subr.bf16.mxu0 %v3408
          %3958 = vmatpush1.bf16.msra.mxu0 %v3407
          %3959 = vmatprep.subr.bf16.mxu0 %v3410
          %3960 = vmatpush1.bf16.msra.mxu0 %v3409
          %3961 = vmatprep.subr.bf16.mxu0 %v3412
          %3962 = vmatpush1.bf16.msra.mxu0 %v3411
          %3963 = vmatprep.subr.bf16.mxu0 %v3414
          %3964 = vmatpush1.bf16.msra.mxu0 %v3413
          %3965 = vmatprep.subr.bf16.mxu0 %v3416
          %3966 = vmatpush1.bf16.msra.mxu0 %v3415
          %3967 = vmatprep.subr.bf16.mxu0 %v3418
          %3968 = vmatpush1.bf16.msra.mxu0 %v3417
          %3969 = vmatprep.subr.bf16.mxu0 %v3420
          %3970 = vmatpush1.bf16.msra.mxu0 %v3419
          %3971 = vmatprep.subr.bf16.mxu0 %v3422
          %3972 = vmatpush1.bf16.msra.mxu0 %v3421
          %3973 = vmatprep.subr.bf16.mxu0 %v3424
          %3974 = vmatpush1.bf16.msra.mxu0 %v3423
          %3975 = vmatprep.subr.bf16.mxu0 %v3426
          %3976 = vmatpush1.bf16.msra.mxu0 %v3425
          %3977 = vmatprep.subr.bf16.mxu0 %v3428
          %3978 = vmatpush1.bf16.msra.mxu0 %v3427
          %3979 = vmatprep.subr.bf16.mxu0 %v3430
          %3980 = vmatpush1.bf16.msra.mxu0 %v3429
          %3981 = vmatprep.subr.bf16.mxu0 %v3432
          %3982 = vmatpush1.bf16.msra.mxu0 %v3431
          %3983 = vmatprep.subr.bf16.mxu0 %v3434
          %3984 = vmatpush1.bf16.msra.mxu0 %v3433
          %3985 = vmatprep.mubr.bf16.mxu0 %v2173
          %3986 = vmatmul.mubr.bf16.gmra.mrb[0].mxu0 %v2172
          %v3987 = vpop.f32.mrb[0].mxu0
          %v3988 = vadd.f32 %v3947, %v3987
          %v3989 = vpop.f32.mrb[0].mxu0
          %v3990 = vadd.f32 %v3949, %v3989
          %v3991 = vpop.f32.mrb[0].mxu0
          %v3992 = vpop.f32.mrb[0].mxu0
          %3993 = vdwg.mxu0
          %3994 = vmatprep.subr.bf16.mxu0 %v3436
          %3995 = vmatpush1.bf16.msra.mxu0 %v3435
          %3996 = vmatprep.subr.bf16.mxu0 %v3438
          %3997 = vmatpush1.bf16.msra.mxu0 %v3437
          %3998 = vmatprep.subr.bf16.mxu0 %v3440
          %3999 = vmatpush1.bf16.msra.mxu0 %v3439
          %4000 = vmatprep.subr.bf16.mxu0 %v3442
          %4001 = vmatpush1.bf16.msra.mxu0 %v3441
          %4002 = vmatprep.subr.bf16.mxu0 %v3444
          %4003 = vmatpush1.bf16.msra.mxu0 %v3443
          %4004 = vmatprep.subr.bf16.mxu0 %v3446
          %4005 = vmatpush1.bf16.msra.mxu0 %v3445
          %4006 = vmatprep.subr.bf16.mxu0 %v3448
          %4007 = vmatpush1.bf16.msra.mxu0 %v3447
          %4008 = vmatprep.subr.bf16.mxu0 %v3450
          %4009 = vmatpush1.bf16.msra.mxu0 %v3449
          %4010 = vmatprep.subr.bf16.mxu0 %v3452
          %4011 = vmatpush1.bf16.msra.mxu0 %v3451
          %4012 = vmatprep.subr.bf16.mxu0 %v3454
          %4013 = vmatpush1.bf16.msra.mxu0 %v3453
          %4014 = vmatprep.subr.bf16.mxu0 %v3456
          %4015 = vmatpush1.bf16.msra.mxu0 %v3455
          %4016 = vmatprep.subr.bf16.mxu0 %v3458
          %4017 = vmatpush1.bf16.msra.mxu0 %v3457
          %4018 = vmatprep.subr.bf16.mxu0 %v3460
          %4019 = vmatpush1.bf16.msra.mxu0 %v3459
          %4020 = vmatprep.subr.bf16.mxu0 %v3462
          %4021 = vmatpush1.bf16.msra.mxu0 %v3461
          %4022 = vmatprep.subr.bf16.mxu0 %v3464
          %4023 = vmatpush1.bf16.msra.mxu0 %v3463
          %4024 = vmatprep.subr.bf16.mxu0 %v3466
          %4025 = vmatpush1.bf16.msra.mxu0 %v3465
          %4026 = vmatprep.mubr.bf16.mxu0 %v2175
          %4027 = vmatmul.mubr.bf16.gmra.mrb[0].mxu0 %v2174
          %v4028 = vpop.f32.mrb[0].mxu0
          %v4029 = vadd.f32 %v3988, %v4028
          %v4030 = vpop.f32.mrb[0].mxu0
          %v4031 = vadd.f32 %v3990, %v4030
          %v4032 = vpop.f32.mrb[0].mxu0
          %v4033 = vpop.f32.mrb[0].mxu0
          %4034 = vdwg.mxu0
          %4035 = vmatprep.subr.bf16.mxu0 %v3468
          %4036 = vmatpush1.bf16.msra.mxu0 %v3467
          %4037 = vmatprep.subr.bf16.mxu0 %v3470
          %4038 = vmatpush1.bf16.msra.mxu0 %v3469
          %4039 = vmatprep.subr.bf16.mxu0 %v3472
          %4040 = vmatpush1.bf16.msra.mxu0 %v3471
          %4041 = vmatprep.subr.bf16.mxu0 %v3474
          %4042 = vmatpush1.bf16.msra.mxu0 %v3473
          %4043 = vmatprep.subr.bf16.mxu0 %v3476
          %4044 = vmatpush1.bf16.msra.mxu0 %v3475
          %4045 = vmatprep.subr.bf16.mxu0 %v3478
          %4046 = vmatpush1.bf16.msra.mxu0 %v3477
          %4047 = vmatprep.subr.bf16.mxu0 %v3480
          %4048 = vmatpush1.bf16.msra.mxu0 %v3479
          %4049 = vmatprep.subr.bf16.mxu0 %v3482
          %4050 = vmatpush1.bf16.msra.mxu0 %v3481
          %4051 = vmatprep.subr.bf16.mxu0 %v3484
          %4052 = vmatpush1.bf16.msra.mxu0 %v3483
          %4053 = vmatprep.subr.bf16.mxu0 %v3486
          %4054 = vmatpush1.bf16.msra.mxu0 %v3485
          %4055 = vmatprep.subr.bf16.mxu0 %v3488
          %4056 = vmatpush1.bf16.msra.mxu0 %v3487
          %4057 = vmatprep.subr.bf16.mxu0 %v3490
          %4058 = vmatpush1.bf16.msra.mxu0 %v3489
          %4059 = vmatprep.subr.bf16.mxu0 %v3492
          %4060 = vmatpush1.bf16.msra.mxu0 %v3491
          %4061 = vmatprep.subr.bf16.mxu0 %v3494
          %4062 = vmatpush1.bf16.msra.mxu0 %v3493
          %4063 = vmatprep.subr.bf16.mxu0 %v3496
          %4064 = vmatpush1.bf16.msra.mxu0 %v3495
          %4065 = vmatprep.subr.bf16.mxu0 %v3498
          %4066 = vmatpush1.bf16.msra.mxu0 %v3497
          %4067 = vmatprep.mubr.bf16.mxu0 %v2177
          %4068 = vmatmul.mubr.bf16.gmra.mrb[0].mxu0 %v2176
          %v4069 = vpop.f32.mrb[0].mxu0
          %v4070 = vadd.f32 %v4029, %v4069
          %v4071 = vpop.f32.mrb[0].mxu0
          %v4072 = vadd.f32 %v4031, %v4071
          %v4073 = vpop.f32.mrb[0].mxu0
          %v4074 = vpop.f32.mrb[0].mxu0
          %4075 = vdwg.mxu0
          %4076 = vmatprep.subr.bf16.mxu0 %v3500
          %4077 = vmatpush1.bf16.msra.mxu0 %v3499
          %4078 = vmatprep.subr.bf16.mxu0 %v3502
          %4079 = vmatpush1.bf16.msra.mxu0 %v3501
          %4080 = vmatprep.subr.bf16.mxu0 %v3504
          %4081 = vmatpush1.bf16.msra.mxu0 %v3503
          %4082 = vmatprep.subr.bf16.mxu0 %v3506
          %4083 = vmatpush1.bf16.msra.mxu0 %v3505
          %4084 = vmatprep.subr.bf16.mxu0 %v3508
          %4085 = vmatpush1.bf16.msra.mxu0 %v3507
          %4086 = vmatprep.subr.bf16.mxu0 %v3510
          %4087 = vmatpush1.bf16.msra.mxu0 %v3509
          %4088 = vmatprep.subr.bf16.mxu0 %v3512
          %4089 = vmatpush1.bf16.msra.mxu0 %v3511
          %4090 = vmatprep.subr.bf16.mxu0 %v3514
          %4091 = vmatpush1.bf16.msra.mxu0 %v3513
          %4092 = vmatprep.subr.bf16.mxu0 %v3516
          %4093 = vmatpush1.bf16.msra.mxu0 %v3515
          %4094 = vmatprep.subr.bf16.mxu0 %v3518
          %4095 = vmatpush1.bf16.msra.mxu0 %v3517
          %4096 = vmatprep.subr.bf16.mxu0 %v3520
          %4097 = vmatpush1.bf16.msra.mxu0 %v3519
          %4098 = vmatprep.subr.bf16.mxu0 %v3522
          %4099 = vmatpush1.bf16.msra.mxu0 %v3521
          %4100 = vmatprep.subr.bf16.mxu0 %v3524
          %4101 = vmatpush1.bf16.msra.mxu0 %v3523
          %4102 = vmatprep.subr.bf16.mxu0 %v3526
          %4103 = vmatpush1.bf16.msra.mxu0 %v3525
          %4104 = vmatprep.subr.bf16.mxu0 %v3528
          %4105 = vmatpush1.bf16.msra.mxu0 %v3527
          %4106 = vmatprep.subr.bf16.mxu0 %v3530
          %4107 = vmatpush1.bf16.msra.mxu0 %v3529
          %4108 = vmatprep.mubr.bf16.mxu0 %v2179
          %4109 = vmatmul.mubr.bf16.gmra.mrb[0].mxu0 %v2178
          %v4110 = vpop.f32.mrb[0].mxu0
          %v4111 = vadd.f32 %v4070, %v4110
          %v4112 = vpop.f32.mrb[0].mxu0
          %v4113 = vadd.f32 %v4072, %v4112
          %v4114 = vpop.f32.mrb[0].mxu0
          %v4115 = vpop.f32.mrb[0].mxu0
          %4116 = vdwg.mxu0
          %4117 = vmatprep.subr.bf16.mxu0 %v3532
          %4118 = vmatpush1.bf16.msra.mxu0 %v3531
          %4119 = vmatprep.subr.bf16.mxu0 %v3534
          %4120 = vmatpush1.bf16.msra.mxu0 %v3533
          %4121 = vmatprep.subr.bf16.mxu0 %v3536
          %4122 = vmatpush1.bf16.msra.mxu0 %v3535
          %4123 = vmatprep.subr.bf16.mxu0 %v3538
          %4124 = vmatpush1.bf16.msra.mxu0 %v3537
          %4125 = vmatprep.subr.bf16.mxu0 %v3540
          %4126 = vmatpush1.bf16.msra.mxu0 %v3539
          %4127 = vmatprep.subr.bf16.mxu0 %v3542
          %4128 = vmatpush1.bf16.msra.mxu0 %v3541
          %4129 = vmatprep.subr.bf16.mxu0 %v3544
          %4130 = vmatpush1.bf16.msra.mxu0 %v3543
          %4131 = vmatprep.subr.bf16.mxu0 %v3546
          %4132 = vmatpush1.bf16.msra.mxu0 %v3545
          %4133 = vmatprep.subr.bf16.mxu0 %v3548
          %4134 = vmatpush1.bf16.msra.mxu0 %v3547
          %4135 = vmatprep.subr.bf16.mxu0 %v3550
          %4136 = vmatpush1.bf16.msra.mxu0 %v3549
          %4137 = vmatprep.subr.bf16.mxu0 %v3552
          %4138 = vmatpush1.bf16.msra.mxu0 %v3551
          %4139 = vmatprep.subr.bf16.mxu0 %v3554
          %4140 = vmatpush1.bf16.msra.mxu0 %v3553
          %4141 = vmatprep.subr.bf16.mxu0 %v3556
          %4142 = vmatpush1.bf16.msra.mxu0 %v3555
          %4143 = vmatprep.subr.bf16.mxu0 %v3558
          %4144 = vmatpush1.bf16.msra.mxu0 %v3557
          %4145 = vmatprep.subr.bf16.mxu0 %v3560
          %4146 = vmatpush1.bf16.msra.mxu0 %v3559
          %4147 = vmatprep.subr.bf16.mxu0 %v3562
          %4148 = vmatpush1.bf16.msra.mxu0 %v3561
          %4149 = vmatprep.mubr.bf16.mxu0 %v2181
          %4150 = vmatmul.mubr.bf16.gmra.mrb[0].mxu0 %v2180
          %v4151 = vpop.f32.mrb[0].mxu0
          %v4152 = vadd.f32 %v4111, %v4151
          %v4153 = vpop.f32.mrb[0].mxu0
          %v4154 = vadd.f32 %v4113, %v4153
          %v4155 = vpop.f32.mrb[0].mxu0
          %v4156 = vpop.f32.mrb[0].mxu0
          %4157 = vdwg.mxu0
          %v4158 = vld [vmem:[%s3] sm:$0xf]
          %v4159 = vld [vmem:[%s3 + $0x4] sm:$0xf]
          %v4160 = vld [vmem:[%s3 + $0x8] sm:$0xf]
          %v4161 = vld [vmem:[%s3 + $0xc] sm:$0xf]
          %v4162 = vld [vmem:[%s3 + $0x10] sm:$0xf]
          %v4163 = vld [vmem:[%s3 + $0x14] sm:$0xf]
          %v4164 = vld [vmem:[%s3 + $0x18] sm:$0xf]
          %v4165 = vld [vmem:[%s3 + $0x1c] sm:$0xf]
          %v4166 = vld [vmem:[%s3 + $0x20] sm:$0xf]
          %v4167 = vld [vmem:[%s3 + $0x24] sm:$0xf]
          %v4168 = vld [vmem:[%s3 + $0x28] sm:$0xf]
          %v4169 = vld [vmem:[%s3 + $0x2c] sm:$0xf]
          %v4170 = vld [vmem:[%s3 + $0x30] sm:$0xf]
          %v4171 = vld [vmem:[%s3 + $0x34] sm:$0xf]
          %v4172 = vld [vmem:[%s3 + $0x38] sm:$0xf]
          %v4173 = vld [vmem:[%s3 + $0x3c] sm:$0xf]
          %v4174 = vld [vmem:[%s3 + $0x40] sm:$0xf]
          %v4175 = vld [vmem:[%s3 + $0x44] sm:$0xf]
          %v4176 = vld [vmem:[%s3 + $0x48] sm:$0xf]
          %v4177 = vld [vmem:[%s3 + $0x4c] sm:$0xf]
          %v4178 = vld [vmem:[%s3 + $0x50] sm:$0xf]
          %v4179 = vld [vmem:[%s3 + $0x54] sm:$0xf]
          %v4180 = vld [vmem:[%s3 + $0x58] sm:$0xf]
          %v4181 = vld [vmem:[%s3 + $0x5c] sm:$0xf]
          %v4182 = vld [vmem:[%s3 + $0x60] sm:$0xf]
          %v4183 = vld [vmem:[%s3 + $0x64] sm:$0xf]
          %v4184 = vld [vmem:[%s3 + $0x68] sm:$0xf]
          %v4185 = vld [vmem:[%s3 + $0x6c] sm:$0xf]
          %v4186 = vld [vmem:[%s3 + $0x70] sm:$0xf]
          %v4187 = vld [vmem:[%s3 + $0x74] sm:$0xf]
          %v4188 = vld [vmem:[%s3 + $0x78] sm:$0xf]
          %v4189 = vld [vmem:[%s3 + $0x7c] sm:$0xf]
          %v4190 = vld [vmem:[%s3 + $0x80] sm:$0xf]
          %v4191 = vld [vmem:[%s3 + $0x84] sm:$0xf]
          %v4192 = vld [vmem:[%s3 + $0x88] sm:$0xf]
          %v4193 = vld [vmem:[%s3 + $0x8c] sm:$0xf]
          %v4194 = vld [vmem:[%s3 + $0x90] sm:$0xf]
          %v4195 = vld [vmem:[%s3 + $0x94] sm:$0xf]
          %v4196 = vld [vmem:[%s3 + $0x98] sm:$0xf]
          %v4197 = vld [vmem:[%s3 + $0x9c] sm:$0xf]
          %v4198 = vld [vmem:[%s3 + $0xa0] sm:$0xf]
          %v4199 = vld [vmem:[%s3 + $0xa4] sm:$0xf]
          %v4200 = vld [vmem:[%s3 + $0xa8] sm:$0xf]
          %v4201 = vld [vmem:[%s3 + $0xac] sm:$0xf]
          %v4202 = vld [vmem:[%s3 + $0xb0] sm:$0xf]
          %v4203 = vld [vmem:[%s3 + $0xb4] sm:$0xf]
          %v4204 = vld [vmem:[%s3 + $0xb8] sm:$0xf]
          %v4205 = vld [vmem:[%s3 + $0xbc] sm:$0xf]
          %v4206 = vld [vmem:[%s3 + $0xc0] sm:$0xf]
          %v4207 = vld [vmem:[%s3 + $0xc4] sm:$0xf]
          %v4208 = vld [vmem:[%s3 + $0xc8] sm:$0xf]
          %v4209 = vld [vmem:[%s3 + $0xcc] sm:$0xf]
          %v4210 = vld [vmem:[%s3 + $0xd0] sm:$0xf]
          %v4211 = vld [vmem:[%s3 + $0xd4] sm:$0xf]
          %v4212 = vld [vmem:[%s3 + $0xd8] sm:$0xf]
          %v4213 = vld [vmem:[%s3 + $0xdc] sm:$0xf]
          %v4214 = vld [vmem:[%s3 + $0xe0] sm:$0xf]
          %v4215 = vld [vmem:[%s3 + $0xe4] sm:$0xf]
          %v4216 = vld [vmem:[%s3 + $0xe8] sm:$0xf]
          %v4217 = vld [vmem:[%s3 + $0xec] sm:$0xf]
          %v4218 = vld [vmem:[%s3 + $0xf0] sm:$0xf]
          %v4219 = vld [vmem:[%s3 + $0xf4] sm:$0xf]
          %v4220 = vld [vmem:[%s3 + $0xf8] sm:$0xf]
          %v4221 = vld [vmem:[%s3 + $0xfc] sm:$0xf]
          %v4222 = vld [vmem:[%s3 + $0x100] sm:$0xf]
          %v4223 = vld [vmem:[%s3 + $0x104] sm:$0xf]
          %v4224 = vld [vmem:[%s3 + $0x108] sm:$0xf]
          %v4225 = vld [vmem:[%s3 + $0x10c] sm:$0xf]
          %v4226 = vld [vmem:[%s3 + $0x110] sm:$0xf]
          %v4227 = vld [vmem:[%s3 + $0x114] sm:$0xf]
          %v4228 = vld [vmem:[%s3 + $0x118] sm:$0xf]
          %v4229 = vld [vmem:[%s3 + $0x11c] sm:$0xf]
          %v4230 = vld [vmem:[%s3 + $0x120] sm:$0xf]
          %v4231 = vld [vmem:[%s3 + $0x124] sm:$0xf]
          %v4232 = vld [vmem:[%s3 + $0x128] sm:$0xf]
          %v4233 = vld [vmem:[%s3 + $0x12c] sm:$0xf]
          %v4234 = vld [vmem:[%s3 + $0x130] sm:$0xf]
          %v4235 = vld [vmem:[%s3 + $0x134] sm:$0xf]
          %v4236 = vld [vmem:[%s3 + $0x138] sm:$0xf]
          %v4237 = vld [vmem:[%s3 + $0x13c] sm:$0xf]
          %v4238 = vld [vmem:[%s3 + $0x140] sm:$0xf]
          %v4239 = vld [vmem:[%s3 + $0x144] sm:$0xf]
          %v4240 = vld [vmem:[%s3 + $0x148] sm:$0xf]
          %v4241 = vld [vmem:[%s3 + $0x14c] sm:$0xf]
          %v4242 = vld [vmem:[%s3 + $0x150] sm:$0xf]
          %v4243 = vld [vmem:[%s3 + $0x154] sm:$0xf]
          %v4244 = vld [vmem:[%s3 + $0x158] sm:$0xf]
          %v4245 = vld [vmem:[%s3 + $0x15c] sm:$0xf]
          %v4246 = vld [vmem:[%s3 + $0x160] sm:$0xf]
          %v4247 = vld [vmem:[%s3 + $0x164] sm:$0xf]
          %v4248 = vld [vmem:[%s3 + $0x168] sm:$0xf]
          %v4249 = vld [vmem:[%s3 + $0x16c] sm:$0xf]
          %v4250 = vld [vmem:[%s3 + $0x170] sm:$0xf]
          %v4251 = vld [vmem:[%s3 + $0x174] sm:$0xf]
          %v4252 = vld [vmem:[%s3 + $0x178] sm:$0xf]
          %v4253 = vld [vmem:[%s3 + $0x17c] sm:$0xf]
          %v4254 = vld [vmem:[%s3 + $0x180] sm:$0xf]
          %v4255 = vld [vmem:[%s3 + $0x184] sm:$0xf]
          %v4256 = vld [vmem:[%s3 + $0x188] sm:$0xf]
          %v4257 = vld [vmem:[%s3 + $0x18c] sm:$0xf]
          %v4258 = vld [vmem:[%s3 + $0x190] sm:$0xf]
          %v4259 = vld [vmem:[%s3 + $0x194] sm:$0xf]
          %v4260 = vld [vmem:[%s3 + $0x198] sm:$0xf]
          %v4261 = vld [vmem:[%s3 + $0x19c] sm:$0xf]
          %v4262 = vld [vmem:[%s3 + $0x1a0] sm:$0xf]
          %v4263 = vld [vmem:[%s3 + $0x1a4] sm:$0xf]
          %v4264 = vld [vmem:[%s3 + $0x1a8] sm:$0xf]
          %v4265 = vld [vmem:[%s3 + $0x1ac] sm:$0xf]
          %v4266 = vld [vmem:[%s3 + $0x1b0] sm:$0xf]
          %v4267 = vld [vmem:[%s3 + $0x1b4] sm:$0xf]
          %v4268 = vld [vmem:[%s3 + $0x1b8] sm:$0xf]
          %v4269 = vld [vmem:[%s3 + $0x1bc] sm:$0xf]
          %v4270 = vld [vmem:[%s3 + $0x1c0] sm:$0xf]
          %v4271 = vld [vmem:[%s3 + $0x1c4] sm:$0xf]
          %v4272 = vld [vmem:[%s3 + $0x1c8] sm:$0xf]
          %v4273 = vld [vmem:[%s3 + $0x1cc] sm:$0xf]
          %v4274 = vld [vmem:[%s3 + $0x1d0] sm:$0xf]
          %v4275 = vld [vmem:[%s3 + $0x1d4] sm:$0xf]
          %v4276 = vld [vmem:[%s3 + $0x1d8] sm:$0xf]
          %v4277 = vld [vmem:[%s3 + $0x1dc] sm:$0xf]
          %v4278 = vld [vmem:[%s3 + $0x1e0] sm:$0xf]
          %v4279 = vld [vmem:[%s3 + $0x1e4] sm:$0xf]
          %v4280 = vld [vmem:[%s3 + $0x1e8] sm:$0xf]
          %v4281 = vld [vmem:[%s3 + $0x1ec] sm:$0xf]
          %v4282 = vld [vmem:[%s3 + $0x1f0] sm:$0xf]
          %v4283 = vld [vmem:[%s3 + $0x1f4] sm:$0xf]
          %v4284 = vld [vmem:[%s3 + $0x1f8] sm:$0xf]
          %v4285 = vld [vmem:[%s3 + $0x1fc] sm:$0xf]
          %v4286 = vld [vmem:[%s3 + $0x200] sm:$0xf]
          %v4287 = vld [vmem:[%s3 + $0x204] sm:$0xf]
          %v4288 = vld [vmem:[%s3 + $0x208] sm:$0xf]
          %v4289 = vld [vmem:[%s3 + $0x20c] sm:$0xf]
          %v4290 = vld [vmem:[%s3 + $0x210] sm:$0xf]
          %v4291 = vld [vmem:[%s3 + $0x214] sm:$0xf]
          %v4292 = vld [vmem:[%s3 + $0x218] sm:$0xf]
          %v4293 = vld [vmem:[%s3 + $0x21c] sm:$0xf]
          %v4294 = vld [vmem:[%s3 + $0x220] sm:$0xf]
          %v4295 = vld [vmem:[%s3 + $0x224] sm:$0xf]
          %v4296 = vld [vmem:[%s3 + $0x228] sm:$0xf]
          %v4297 = vld [vmem:[%s3 + $0x22c] sm:$0xf]
          %v4298 = vld [vmem:[%s3 + $0x230] sm:$0xf]
          %v4299 = vld [vmem:[%s3 + $0x234] sm:$0xf]
          %v4300 = vld [vmem:[%s3 + $0x238] sm:$0xf]
          %v4301 = vld [vmem:[%s3 + $0x23c] sm:$0xf]
          %v4302 = vld [vmem:[%s3 + $0x240] sm:$0xf]
          %v4303 = vld [vmem:[%s3 + $0x244] sm:$0xf]
          %v4304 = vld [vmem:[%s3 + $0x248] sm:$0xf]
          %v4305 = vld [vmem:[%s3 + $0x24c] sm:$0xf]
          %v4306 = vld [vmem:[%s3 + $0x250] sm:$0xf]
          %v4307 = vld [vmem:[%s3 + $0x254] sm:$0xf]
          %v4308 = vld [vmem:[%s3 + $0x258] sm:$0xf]
          %v4309 = vld [vmem:[%s3 + $0x25c] sm:$0xf]
          %v4310 = vld [vmem:[%s3 + $0x260] sm:$0xf]
          %v4311 = vld [vmem:[%s3 + $0x264] sm:$0xf]
          %v4312 = vld [vmem:[%s3 + $0x268] sm:$0xf]
          %v4313 = vld [vmem:[%s3 + $0x26c] sm:$0xf]
          %v4314 = vld [vmem:[%s3 + $0x270] sm:$0xf]
          %v4315 = vld [vmem:[%s3 + $0x274] sm:$0xf]
          %v4316 = vld [vmem:[%s3 + $0x278] sm:$0xf]
          %v4317 = vld [vmem:[%s3 + $0x27c] sm:$0xf]
          %v4318 = vld [vmem:[%s3 + $0x280] sm:$0xf]
          %v4319 = vld [vmem:[%s3 + $0x284] sm:$0xf]
          %v4320 = vld [vmem:[%s3 + $0x288] sm:$0xf]
          %v4321 = vld [vmem:[%s3 + $0x28c] sm:$0xf]
          %v4322 = vld [vmem:[%s3 + $0x290] sm:$0xf]
          %v4323 = vld [vmem:[%s3 + $0x294] sm:$0xf]
          %v4324 = vld [vmem:[%s3 + $0x298] sm:$0xf]
          %v4325 = vld [vmem:[%s3 + $0x29c] sm:$0xf]
          %v4326 = vld [vmem:[%s3 + $0x2a0] sm:$0xf]
          %v4327 = vld [vmem:[%s3 + $0x2a4] sm:$0xf]
          %v4328 = vld [vmem:[%s3 + $0x2a8] sm:$0xf]
          %v4329 = vld [vmem:[%s3 + $0x2ac] sm:$0xf]
          %v4330 = vld [vmem:[%s3 + $0x2b0] sm:$0xf]
          %v4331 = vld [vmem:[%s3 + $0x2b4] sm:$0xf]
          %v4332 = vld [vmem:[%s3 + $0x2b8] sm:$0xf]
          %v4333 = vld [vmem:[%s3 + $0x2bc] sm:$0xf]
          %v4334 = vld [vmem:[%s3 + $0x2c0] sm:$0xf]
          %v4335 = vld [vmem:[%s3 + $0x2c4] sm:$0xf]
          %v4336 = vld [vmem:[%s3 + $0x2c8] sm:$0xf]
          %v4337 = vld [vmem:[%s3 + $0x2cc] sm:$0xf]
          %v4338 = vld [vmem:[%s3 + $0x2d0] sm:$0xf]
          %v4339 = vld [vmem:[%s3 + $0x2d4] sm:$0xf]
          %v4340 = vld [vmem:[%s3 + $0x2d8] sm:$0xf]
          %v4341 = vld [vmem:[%s3 + $0x2dc] sm:$0xf]
          %v4342 = vld [vmem:[%s3 + $0x2e0] sm:$0xf]
          %v4343 = vld [vmem:[%s3 + $0x2e4] sm:$0xf]
          %v4344 = vld [vmem:[%s3 + $0x2e8] sm:$0xf]
          %v4345 = vld [vmem:[%s3 + $0x2ec] sm:$0xf]
          %v4346 = vld [vmem:[%s3 + $0x2f0] sm:$0xf]
          %v4347 = vld [vmem:[%s3 + $0x2f4] sm:$0xf]
          %v4348 = vld [vmem:[%s3 + $0x2f8] sm:$0xf]
          %v4349 = vld [vmem:[%s3 + $0x2fc] sm:$0xf]
          %v4350 = vld [vmem:[%s3 + $0x300] sm:$0xf]
          %v4351 = vld [vmem:[%s3 + $0x304] sm:$0xf]
          %v4352 = vld [vmem:[%s3 + $0x308] sm:$0xf]
          %v4353 = vld [vmem:[%s3 + $0x30c] sm:$0xf]
          %v4354 = vld [vmem:[%s3 + $0x310] sm:$0xf]
          %v4355 = vld [vmem:[%s3 + $0x314] sm:$0xf]
          %v4356 = vld [vmem:[%s3 + $0x318] sm:$0xf]
          %v4357 = vld [vmem:[%s3 + $0x31c] sm:$0xf]
          %v4358 = vld [vmem:[%s3 + $0x320] sm:$0xf]
          %v4359 = vld [vmem:[%s3 + $0x324] sm:$0xf]
          %v4360 = vld [vmem:[%s3 + $0x328] sm:$0xf]
          %v4361 = vld [vmem:[%s3 + $0x32c] sm:$0xf]
          %v4362 = vld [vmem:[%s3 + $0x330] sm:$0xf]
          %v4363 = vld [vmem:[%s3 + $0x334] sm:$0xf]
          %v4364 = vld [vmem:[%s3 + $0x338] sm:$0xf]
          %v4365 = vld [vmem:[%s3 + $0x33c] sm:$0xf]
          %v4366 = vld [vmem:[%s3 + $0x340] sm:$0xf]
          %v4367 = vld [vmem:[%s3 + $0x344] sm:$0xf]
          %v4368 = vld [vmem:[%s3 + $0x348] sm:$0xf]
          %v4369 = vld [vmem:[%s3 + $0x34c] sm:$0xf]
          %v4370 = vld [vmem:[%s3 + $0x350] sm:$0xf]
          %v4371 = vld [vmem:[%s3 + $0x354] sm:$0xf]
          %v4372 = vld [vmem:[%s3 + $0x358] sm:$0xf]
          %v4373 = vld [vmem:[%s3 + $0x35c] sm:$0xf]
          %v4374 = vld [vmem:[%s3 + $0x360] sm:$0xf]
          %v4375 = vld [vmem:[%s3 + $0x364] sm:$0xf]
          %v4376 = vld [vmem:[%s3 + $0x368] sm:$0xf]
          %v4377 = vld [vmem:[%s3 + $0x36c] sm:$0xf]
          %v4378 = vld [vmem:[%s3 + $0x370] sm:$0xf]
          %v4379 = vld [vmem:[%s3 + $0x374] sm:$0xf]
          %v4380 = vld [vmem:[%s3 + $0x378] sm:$0xf]
          %v4381 = vld [vmem:[%s3 + $0x37c] sm:$0xf]
          %v4382 = vld [vmem:[%s3 + $0x380] sm:$0xf]
          %v4383 = vld [vmem:[%s3 + $0x384] sm:$0xf]
          %v4384 = vld [vmem:[%s3 + $0x388] sm:$0xf]
          %v4385 = vld [vmem:[%s3 + $0x38c] sm:$0xf]
          %v4386 = vld [vmem:[%s3 + $0x390] sm:$0xf]
          %v4387 = vld [vmem:[%s3 + $0x394] sm:$0xf]
          %v4388 = vld [vmem:[%s3 + $0x398] sm:$0xf]
          %v4389 = vld [vmem:[%s3 + $0x39c] sm:$0xf]
          %v4390 = vld [vmem:[%s3 + $0x3a0] sm:$0xf]
          %v4391 = vld [vmem:[%s3 + $0x3a4] sm:$0xf]
          %v4392 = vld [vmem:[%s3 + $0x3a8] sm:$0xf]
          %v4393 = vld [vmem:[%s3 + $0x3ac] sm:$0xf]
          %v4394 = vld [vmem:[%s3 + $0x3b0] sm:$0xf]
          %v4395 = vld [vmem:[%s3 + $0x3b4] sm:$0xf]
          %v4396 = vld [vmem:[%s3 + $0x3b8] sm:$0xf]
          %v4397 = vld [vmem:[%s3 + $0x3bc] sm:$0xf]
          %v4398 = vld [vmem:[%s3 + $0x3c0] sm:$0xf]
          %v4399 = vld [vmem:[%s3 + $0x3c4] sm:$0xf]
          %v4400 = vld [vmem:[%s3 + $0x3c8] sm:$0xf]
          %v4401 = vld [vmem:[%s3 + $0x3cc] sm:$0xf]
          %v4402 = vld [vmem:[%s3 + $0x3d0] sm:$0xf]
          %v4403 = vld [vmem:[%s3 + $0x3d4] sm:$0xf]
          %v4404 = vld [vmem:[%s3 + $0x3d8] sm:$0xf]
          %v4405 = vld [vmem:[%s3 + $0x3dc] sm:$0xf]
          %v4406 = vld [vmem:[%s3 + $0x3e0] sm:$0xf]
          %v4407 = vld [vmem:[%s3 + $0x3e4] sm:$0xf]
          %v4408 = vld [vmem:[%s3 + $0x3e8] sm:$0xf]
          %v4409 = vld [vmem:[%s3 + $0x3ec] sm:$0xf]
          %v4410 = vld [vmem:[%s3 + $0x3f0] sm:$0xf]
          %v4411 = vld [vmem:[%s3 + $0x3f4] sm:$0xf]
          %v4412 = vld [vmem:[%s3 + $0x3f8] sm:$0xf]
          %v4413 = vld [vmem:[%s3 + $0x3fc] sm:$0xf]
          %v4414 = vld [vmem:[%s4] sm:$0x1]
          %v4671 = vunpack.c.l.b16 %v4158
          %v4672 = vunpack.c.l.b16 %v4159
          %v4673 = vunpack.c.l.b16 %v4160
          %v4674 = vunpack.c.l.b16 %v4161
          %v4675 = vunpack.c.l.b16 %v4162
          %v4676 = vunpack.c.l.b16 %v4163
          %v4677 = vunpack.c.l.b16 %v4164
          %v4678 = vunpack.c.l.b16 %v4165
          %v4679 = vunpack.c.l.b16 %v4166
          %v4680 = vunpack.c.l.b16 %v4167
          %v4681 = vunpack.c.l.b16 %v4168
          %v4682 = vunpack.c.l.b16 %v4169
          %v4683 = vunpack.c.l.b16 %v4170
          %v4684 = vunpack.c.l.b16 %v4171
          %v4685 = vunpack.c.l.b16 %v4172
          %v4686 = vunpack.c.l.b16 %v4173
          %v4687 = vunpack.c.l.b16 %v4174
          %v4688 = vunpack.c.l.b16 %v4175
          %v4689 = vunpack.c.l.b16 %v4176
          %v4690 = vunpack.c.l.b16 %v4177
          %v4691 = vunpack.c.l.b16 %v4178
          %v4692 = vunpack.c.l.b16 %v4179
          %v4693 = vunpack.c.l.b16 %v4180
          %v4694 = vunpack.c.l.b16 %v4181
          %v4695 = vunpack.c.l.b16 %v4182
          %v4696 = vunpack.c.l.b16 %v4183
          %v4697 = vunpack.c.l.b16 %v4184
          %v4698 = vunpack.c.l.b16 %v4185
          %v4699 = vunpack.c.l.b16 %v4186
          %v4700 = vunpack.c.l.b16 %v4187
          %v4701 = vunpack.c.l.b16 %v4188
          %v4702 = vunpack.c.l.b16 %v4189
          %v4703 = vunpack.c.l.b16 %v4190
          %v4704 = vunpack.c.l.b16 %v4191
          %v4705 = vunpack.c.l.b16 %v4192
          %v4706 = vunpack.c.l.b16 %v4193
          %v4707 = vunpack.c.l.b16 %v4194
          %v4708 = vunpack.c.l.b16 %v4195
          %v4709 = vunpack.c.l.b16 %v4196
          %v4710 = vunpack.c.l.b16 %v4197
          %v4711 = vunpack.c.l.b16 %v4198
          %v4712 = vunpack.c.l.b16 %v4199
          %v4713 = vunpack.c.l.b16 %v4200
          %v4714 = vunpack.c.l.b16 %v4201
          %v4715 = vunpack.c.l.b16 %v4202
          %v4716 = vunpack.c.l.b16 %v4203
          %v4717 = vunpack.c.l.b16 %v4204
          %v4718 = vunpack.c.l.b16 %v4205
          %v4719 = vunpack.c.l.b16 %v4206
          %v4720 = vunpack.c.l.b16 %v4207
          %v4721 = vunpack.c.l.b16 %v4208
          %v4722 = vunpack.c.l.b16 %v4209
          %v4723 = vunpack.c.l.b16 %v4210
          %v4724 = vunpack.c.l.b16 %v4211
          %v4725 = vunpack.c.l.b16 %v4212
          %v4726 = vunpack.c.l.b16 %v4213
          %v4727 = vunpack.c.l.b16 %v4214
          %v4728 = vunpack.c.l.b16 %v4215
          %v4729 = vunpack.c.l.b16 %v4216
          %v4730 = vunpack.c.l.b16 %v4217
          %v4731 = vunpack.c.l.b16 %v4218
          %v4732 = vunpack.c.l.b16 %v4219
          %v4733 = vunpack.c.l.b16 %v4220
          %v4734 = vunpack.c.l.b16 %v4221
          %v4735 = vunpack.c.l.b16 %v4222
          %v4736 = vunpack.c.l.b16 %v4223
          %v4737 = vunpack.c.l.b16 %v4224
          %v4738 = vunpack.c.l.b16 %v4225
          %v4739 = vunpack.c.l.b16 %v4226
          %v4740 = vunpack.c.l.b16 %v4227
          %v4741 = vunpack.c.l.b16 %v4228
          %v4742 = vunpack.c.l.b16 %v4229
          %v4743 = vunpack.c.l.b16 %v4230
          %v4744 = vunpack.c.l.b16 %v4231
          %v4745 = vunpack.c.l.b16 %v4232
          %v4746 = vunpack.c.l.b16 %v4233
          %v4747 = vunpack.c.l.b16 %v4234
          %v4748 = vunpack.c.l.b16 %v4235
          %v4749 = vunpack.c.l.b16 %v4236
          %v4750 = vunpack.c.l.b16 %v4237
          %v4751 = vunpack.c.l.b16 %v4238
          %v4752 = vunpack.c.l.b16 %v4239
          %v4753 = vunpack.c.l.b16 %v4240
          %v4754 = vunpack.c.l.b16 %v4241
          %v4755 = vunpack.c.l.b16 %v4242
          %v4756 = vunpack.c.l.b16 %v4243
          %v4757 = vunpack.c.l.b16 %v4244
          %v4758 = vunpack.c.l.b16 %v4245
          %v4759 = vunpack.c.l.b16 %v4246
          %v4760 = vunpack.c.l.b16 %v4247
          %v4761 = vunpack.c.l.b16 %v4248
          %v4762 = vunpack.c.l.b16 %v4249
          %v4763 = vunpack.c.l.b16 %v4250
          %v4764 = vunpack.c.l.b16 %v4251
          %v4765 = vunpack.c.l.b16 %v4252
          %v4766 = vunpack.c.l.b16 %v4253
          %v4767 = vunpack.c.l.b16 %v4254
          %v4768 = vunpack.c.l.b16 %v4255
          %v4769 = vunpack.c.l.b16 %v4256
          %v4770 = vunpack.c.l.b16 %v4257
          %v4771 = vunpack.c.l.b16 %v4258
          %v4772 = vunpack.c.l.b16 %v4259
          %v4773 = vunpack.c.l.b16 %v4260
          %v4774 = vunpack.c.l.b16 %v4261
          %v4775 = vunpack.c.l.b16 %v4262
          %v4776 = vunpack.c.l.b16 %v4263
          %v4777 = vunpack.c.l.b16 %v4264
          %v4778 = vunpack.c.l.b16 %v4265
          %v4779 = vunpack.c.l.b16 %v4266
          %v4780 = vunpack.c.l.b16 %v4267
          %v4781 = vunpack.c.l.b16 %v4268
          %v4782 = vunpack.c.l.b16 %v4269
          %v4783 = vunpack.c.l.b16 %v4270
          %v4784 = vunpack.c.l.b16 %v4271
          %v4785 = vunpack.c.l.b16 %v4272
          %v4786 = vunpack.c.l.b16 %v4273
          %v4787 = vunpack.c.l.b16 %v4274
          %v4788 = vunpack.c.l.b16 %v4275
          %v4789 = vunpack.c.l.b16 %v4276
          %v4790 = vunpack.c.l.b16 %v4277
          %v4791 = vunpack.c.l.b16 %v4278
          %v4792 = vunpack.c.l.b16 %v4279
          %v4793 = vunpack.c.l.b16 %v4280
          %v4794 = vunpack.c.l.b16 %v4281
          %v4795 = vunpack.c.l.b16 %v4282
          %v4796 = vunpack.c.l.b16 %v4283
          %v4797 = vunpack.c.l.b16 %v4284
          %v4798 = vunpack.c.l.b16 %v4285
          %v4799 = vunpack.c.l.b16 %v4286
          %v4800 = vunpack.c.l.b16 %v4287
          %v4801 = vunpack.c.l.b16 %v4288
          %v4802 = vunpack.c.l.b16 %v4289
          %v4803 = vunpack.c.l.b16 %v4290
          %v4804 = vunpack.c.l.b16 %v4291
          %v4805 = vunpack.c.l.b16 %v4292
          %v4806 = vunpack.c.l.b16 %v4293
          %v4807 = vunpack.c.l.b16 %v4294
          %v4808 = vunpack.c.l.b16 %v4295
          %v4809 = vunpack.c.l.b16 %v4296
          %v4810 = vunpack.c.l.b16 %v4297
          %v4811 = vunpack.c.l.b16 %v4298
          %v4812 = vunpack.c.l.b16 %v4299
          %v4813 = vunpack.c.l.b16 %v4300
          %v4814 = vunpack.c.l.b16 %v4301
          %v4815 = vunpack.c.l.b16 %v4302
          %v4816 = vunpack.c.l.b16 %v4303
          %v4817 = vunpack.c.l.b16 %v4304
          %v4818 = vunpack.c.l.b16 %v4305
          %v4819 = vunpack.c.l.b16 %v4306
          %v4820 = vunpack.c.l.b16 %v4307
          %v4821 = vunpack.c.l.b16 %v4308
          %v4822 = vunpack.c.l.b16 %v4309
          %v4823 = vunpack.c.l.b16 %v4310
          %v4824 = vunpack.c.l.b16 %v4311
          %v4825 = vunpack.c.l.b16 %v4312
          %v4826 = vunpack.c.l.b16 %v4313
          %v4827 = vunpack.c.l.b16 %v4314
          %v4828 = vunpack.c.l.b16 %v4315
          %v4829 = vunpack.c.l.b16 %v4316
          %v4830 = vunpack.c.l.b16 %v4317
          %v4831 = vunpack.c.l.b16 %v4318
          %v4832 = vunpack.c.l.b16 %v4319
          %v4833 = vunpack.c.l.b16 %v4320
          %v4834 = vunpack.c.l.b16 %v4321
          %v4835 = vunpack.c.l.b16 %v4322
          %v4836 = vunpack.c.l.b16 %v4323
          %v4837 = vunpack.c.l.b16 %v4324
          %v4838 = vunpack.c.l.b16 %v4325
          %v4839 = vunpack.c.l.b16 %v4326
          %v4840 = vunpack.c.l.b16 %v4327
          %v4841 = vunpack.c.l.b16 %v4328
          %v4842 = vunpack.c.l.b16 %v4329
          %v4843 = vunpack.c.l.b16 %v4330
          %v4844 = vunpack.c.l.b16 %v4331
          %v4845 = vunpack.c.l.b16 %v4332
          %v4846 = vunpack.c.l.b16 %v4333
          %v4847 = vunpack.c.l.b16 %v4334
          %v4848 = vunpack.c.l.b16 %v4335
          %v4849 = vunpack.c.l.b16 %v4336
          %v4850 = vunpack.c.l.b16 %v4337
          %v4851 = vunpack.c.l.b16 %v4338
          %v4852 = vunpack.c.l.b16 %v4339
          %v4853 = vunpack.c.l.b16 %v4340
          %v4854 = vunpack.c.l.b16 %v4341
          %v4855 = vunpack.c.l.b16 %v4342
          %v4856 = vunpack.c.l.b16 %v4343
          %v4857 = vunpack.c.l.b16 %v4344
          %v4858 = vunpack.c.l.b16 %v4345
          %v4859 = vunpack.c.l.b16 %v4346
          %v4860 = vunpack.c.l.b16 %v4347
          %v4861 = vunpack.c.l.b16 %v4348
          %v4862 = vunpack.c.l.b16 %v4349
          %v4863 = vunpack.c.l.b16 %v4350
          %v4864 = vunpack.c.l.b16 %v4351
          %v4865 = vunpack.c.l.b16 %v4352
          %v4866 = vunpack.c.l.b16 %v4353
          %v4867 = vunpack.c.l.b16 %v4354
          %v4868 = vunpack.c.l.b16 %v4355
          %v4869 = vunpack.c.l.b16 %v4356
          %v4870 = vunpack.c.l.b16 %v4357
          %v4871 = vunpack.c.l.b16 %v4358
          %v4872 = vunpack.c.l.b16 %v4359
          %v4873 = vunpack.c.l.b16 %v4360
          %v4874 = vunpack.c.l.b16 %v4361
          %v4875 = vunpack.c.l.b16 %v4362
          %v4876 = vunpack.c.l.b16 %v4363
          %v4877 = vunpack.c.l.b16 %v4364
          %v4878 = vunpack.c.l.b16 %v4365
          %v4879 = vunpack.c.l.b16 %v4366
          %v4880 = vunpack.c.l.b16 %v4367
          %v4881 = vunpack.c.l.b16 %v4368
          %v4882 = vunpack.c.l.b16 %v4369
          %v4883 = vunpack.c.l.b16 %v4370
          %v4884 = vunpack.c.l.b16 %v4371
          %v4885 = vunpack.c.l.b16 %v4372
          %v4886 = vunpack.c.l.b16 %v4373
          %v4887 = vunpack.c.l.b16 %v4374
          %v4888 = vunpack.c.l.b16 %v4375
          %v4889 = vunpack.c.l.b16 %v4376
          %v4890 = vunpack.c.l.b16 %v4377
          %v4891 = vunpack.c.l.b16 %v4378
          %v4892 = vunpack.c.l.b16 %v4379
          %v4893 = vunpack.c.l.b16 %v4380
          %v4894 = vunpack.c.l.b16 %v4381
          %v4895 = vunpack.c.l.b16 %v4382
          %v4896 = vunpack.c.l.b16 %v4383
          %v4897 = vunpack.c.l.b16 %v4384
          %v4898 = vunpack.c.l.b16 %v4385
          %v4899 = vunpack.c.l.b16 %v4386
          %v4900 = vunpack.c.l.b16 %v4387
          %v4901 = vunpack.c.l.b16 %v4388
          %v4902 = vunpack.c.l.b16 %v4389
          %v4903 = vunpack.c.l.b16 %v4390
          %v4904 = vunpack.c.l.b16 %v4391
          %v4905 = vunpack.c.l.b16 %v4392
          %v4906 = vunpack.c.l.b16 %v4393
          %v4907 = vunpack.c.l.b16 %v4394
          %v4908 = vunpack.c.l.b16 %v4395
          %v4909 = vunpack.c.l.b16 %v4396
          %v4910 = vunpack.c.l.b16 %v4397
          %v4911 = vunpack.c.l.b16 %v4398
          %v4912 = vunpack.c.l.b16 %v4399
          %v4913 = vunpack.c.l.b16 %v4400
          %v4914 = vunpack.c.l.b16 %v4401
          %v4915 = vunpack.c.l.b16 %v4402
          %v4916 = vunpack.c.l.b16 %v4403
          %v4917 = vunpack.c.l.b16 %v4404
          %v4918 = vunpack.c.l.b16 %v4405
          %v4919 = vunpack.c.l.b16 %v4406
          %v4920 = vunpack.c.l.b16 %v4407
          %v4921 = vunpack.c.l.b16 %v4408
          %v4922 = vunpack.c.l.b16 %v4409
          %v4923 = vunpack.c.l.b16 %v4410
          %v4924 = vunpack.c.l.b16 %v4411
          %v4925 = vunpack.c.l.b16 %v4412
          %v4926 = vunpack.c.l.b16 %v4413
          %v4927 = vpack.c.b16 %v4672, %v4671
          %v4928 = vpack.c.b16 %v4674, %v4673
          %v4929 = vpack.c.b16 %v4676, %v4675
          %v4930 = vpack.c.b16 %v4678, %v4677
          %v4931 = vpack.c.b16 %v4680, %v4679
          %v4932 = vpack.c.b16 %v4682, %v4681
          %v4933 = vpack.c.b16 %v4684, %v4683
          %v4934 = vpack.c.b16 %v4686, %v4685
          %v4935 = vpack.c.b16 %v4688, %v4687
          %v4936 = vpack.c.b16 %v4690, %v4689
          %v4937 = vpack.c.b16 %v4692, %v4691
          %v4938 = vpack.c.b16 %v4694, %v4693
          %v4939 = vpack.c.b16 %v4696, %v4695
          %v4940 = vpack.c.b16 %v4698, %v4697
          %v4941 = vpack.c.b16 %v4700, %v4699
          %v4942 = vpack.c.b16 %v4702, %v4701
          %v4943 = vpack.c.b16 %v4704, %v4703
          %v4944 = vpack.c.b16 %v4706, %v4705
          %v4945 = vpack.c.b16 %v4708, %v4707
          %v4946 = vpack.c.b16 %v4710, %v4709
          %v4947 = vpack.c.b16 %v4712, %v4711
          %v4948 = vpack.c.b16 %v4714, %v4713
          %v4949 = vpack.c.b16 %v4716, %v4715
          %v4950 = vpack.c.b16 %v4718, %v4717
          %v4951 = vpack.c.b16 %v4720, %v4719
          %v4952 = vpack.c.b16 %v4722, %v4721
          %v4953 = vpack.c.b16 %v4724, %v4723
          %v4954 = vpack.c.b16 %v4726, %v4725
          %v4955 = vpack.c.b16 %v4728, %v4727
          %v4956 = vpack.c.b16 %v4730, %v4729
          %v4957 = vpack.c.b16 %v4732, %v4731
          %v4958 = vpack.c.b16 %v4734, %v4733
          %v4959 = vpack.c.b16 %v4736, %v4735
          %v4960 = vpack.c.b16 %v4738, %v4737
          %v4961 = vpack.c.b16 %v4740, %v4739
          %v4962 = vpack.c.b16 %v4742, %v4741
          %v4963 = vpack.c.b16 %v4744, %v4743
          %v4964 = vpack.c.b16 %v4746, %v4745
          %v4965 = vpack.c.b16 %v4748, %v4747
          %v4966 = vpack.c.b16 %v4750, %v4749
          %v4967 = vpack.c.b16 %v4752, %v4751
          %v4968 = vpack.c.b16 %v4754, %v4753
          %v4969 = vpack.c.b16 %v4756, %v4755
          %v4970 = vpack.c.b16 %v4758, %v4757
          %v4971 = vpack.c.b16 %v4760, %v4759
          %v4972 = vpack.c.b16 %v4762, %v4761
          %v4973 = vpack.c.b16 %v4764, %v4763
          %v4974 = vpack.c.b16 %v4766, %v4765
          %v4975 = vpack.c.b16 %v4768, %v4767
          %v4976 = vpack.c.b16 %v4770, %v4769
          %v4977 = vpack.c.b16 %v4772, %v4771
          %v4978 = vpack.c.b16 %v4774, %v4773
          %v4979 = vpack.c.b16 %v4776, %v4775
          %v4980 = vpack.c.b16 %v4778, %v4777
          %v4981 = vpack.c.b16 %v4780, %v4779
          %v4982 = vpack.c.b16 %v4782, %v4781
          %v4983 = vpack.c.b16 %v4784, %v4783
          %v4984 = vpack.c.b16 %v4786, %v4785
          %v4985 = vpack.c.b16 %v4788, %v4787
          %v4986 = vpack.c.b16 %v4790, %v4789
          %v4987 = vpack.c.b16 %v4792, %v4791
          %v4988 = vpack.c.b16 %v4794, %v4793
          %v4989 = vpack.c.b16 %v4796, %v4795
          %v4990 = vpack.c.b16 %v4798, %v4797
          %v4991 = vpack.c.b16 %v4800, %v4799
          %v4992 = vpack.c.b16 %v4802, %v4801
          %v4993 = vpack.c.b16 %v4804, %v4803
          %v4994 = vpack.c.b16 %v4806, %v4805
          %v4995 = vpack.c.b16 %v4808, %v4807
          %v4996 = vpack.c.b16 %v4810, %v4809
          %v4997 = vpack.c.b16 %v4812, %v4811
          %v4998 = vpack.c.b16 %v4814, %v4813
          %v4999 = vpack.c.b16 %v4816, %v4815
          %v5000 = vpack.c.b16 %v4818, %v4817
          %v5001 = vpack.c.b16 %v4820, %v4819
          %v5002 = vpack.c.b16 %v4822, %v4821
          %v5003 = vpack.c.b16 %v4824, %v4823
          %v5004 = vpack.c.b16 %v4826, %v4825
          %v5005 = vpack.c.b16 %v4828, %v4827
          %v5006 = vpack.c.b16 %v4830, %v4829
          %v5007 = vpack.c.b16 %v4832, %v4831
          %v5008 = vpack.c.b16 %v4834, %v4833
          %v5009 = vpack.c.b16 %v4836, %v4835
          %v5010 = vpack.c.b16 %v4838, %v4837
          %v5011 = vpack.c.b16 %v4840, %v4839
          %v5012 = vpack.c.b16 %v4842, %v4841
          %v5013 = vpack.c.b16 %v4844, %v4843
          %v5014 = vpack.c.b16 %v4846, %v4845
          %v5015 = vpack.c.b16 %v4848, %v4847
          %v5016 = vpack.c.b16 %v4850, %v4849
          %v5017 = vpack.c.b16 %v4852, %v4851
          %v5018 = vpack.c.b16 %v4854, %v4853
          %v5019 = vpack.c.b16 %v4856, %v4855
          %v5020 = vpack.c.b16 %v4858, %v4857
          %v5021 = vpack.c.b16 %v4860, %v4859
          %v5022 = vpack.c.b16 %v4862, %v4861
          %v5023 = vpack.c.b16 %v4864, %v4863
          %v5024 = vpack.c.b16 %v4866, %v4865
          %v5025 = vpack.c.b16 %v4868, %v4867
          %v5026 = vpack.c.b16 %v4870, %v4869
          %v5027 = vpack.c.b16 %v4872, %v4871
          %v5028 = vpack.c.b16 %v4874, %v4873
          %v5029 = vpack.c.b16 %v4876, %v4875
          %v5030 = vpack.c.b16 %v4878, %v4877
          %v5031 = vpack.c.b16 %v4880, %v4879
          %v5032 = vpack.c.b16 %v4882, %v4881
          %v5033 = vpack.c.b16 %v4884, %v4883
          %v5034 = vpack.c.b16 %v4886, %v4885
          %v5035 = vpack.c.b16 %v4888, %v4887
          %v5036 = vpack.c.b16 %v4890, %v4889
          %v5037 = vpack.c.b16 %v4892, %v4891
          %v5038 = vpack.c.b16 %v4894, %v4893
          %v5039 = vpack.c.b16 %v4896, %v4895
          %v5040 = vpack.c.b16 %v4898, %v4897
          %v5041 = vpack.c.b16 %v4900, %v4899
          %v5042 = vpack.c.b16 %v4902, %v4901
          %v5043 = vpack.c.b16 %v4904, %v4903
          %v5044 = vpack.c.b16 %v4906, %v4905
          %v5045 = vpack.c.b16 %v4908, %v4907
          %v5046 = vpack.c.b16 %v4910, %v4909
          %v5047 = vpack.c.b16 %v4912, %v4911
          %v5048 = vpack.c.b16 %v4914, %v4913
          %v5049 = vpack.c.b16 %v4916, %v4915
          %v5050 = vpack.c.b16 %v4918, %v4917
          %v5051 = vpack.c.b16 %v4920, %v4919
          %v5052 = vpack.c.b16 %v4922, %v4921
          %v5053 = vpack.c.b16 %v4924, %v4923
          %v5054 = vpack.c.b16 %v4926, %v4925
          %5183 = vmatprep.subr.bf16.mxu0 0
          %5184 = vmatpush1.bf16.msra.mxu0 %v4927
          %5185 = vmatprep.subr.bf16.mxu0 0
          %5186 = vmatpush1.bf16.msra.mxu0 %v4928
          %5187 = vmatprep.subr.bf16.mxu0 0
          %5188 = vmatpush1.bf16.msra.mxu0 %v4929
          %5189 = vmatprep.subr.bf16.mxu0 0
          %5190 = vmatpush1.bf16.msra.mxu0 %v4930
          %5191 = vmatprep.subr.bf16.mxu0 0
          %5192 = vmatpush1.bf16.msra.mxu0 %v4931
          %5193 = vmatprep.subr.bf16.mxu0 0
          %5194 = vmatpush1.bf16.msra.mxu0 %v4932
          %5195 = vmatprep.subr.bf16.mxu0 0
          %5196 = vmatpush1.bf16.msra.mxu0 %v4933
          %5197 = vmatprep.subr.bf16.mxu0 0
          %5198 = vmatpush1.bf16.msra.mxu0 %v4934
          %5199 = vmatprep.subr.bf16.mxu0 0
          %5200 = vmatpush1.bf16.msra.mxu0 %v4935
          %5201 = vmatprep.subr.bf16.mxu0 0
          %5202 = vmatpush1.bf16.msra.mxu0 %v4936
          %5203 = vmatprep.subr.bf16.mxu0 0
          %5204 = vmatpush1.bf16.msra.mxu0 %v4937
          %5205 = vmatprep.subr.bf16.mxu0 0
          %5206 = vmatpush1.bf16.msra.mxu0 %v4938
          %5207 = vmatprep.subr.bf16.mxu0 0
          %5208 = vmatpush1.bf16.msra.mxu0 %v4939
          %5209 = vmatprep.subr.bf16.mxu0 0
          %5210 = vmatpush1.bf16.msra.mxu0 %v4940
          %5211 = vmatprep.subr.bf16.mxu0 0
          %5212 = vmatpush1.bf16.msra.mxu0 %v4941
          %5213 = vmatprep.subr.bf16.mxu0 0
          %5214 = vmatpush1.bf16.msra.mxu0 %v4942
          %5215 = vmatprep.mubr.bf16.mxu0 %v2267
          %5216 = vmatmul.mubr.bf16.gmra.mrb[0].mxu0 %v2266
          %v5217 = vpop.f32.mrb[0].mxu0
          %v5218 = vadd.f32 %v4414, %v5217
          %v5219 = vpop.f32.mrb[0].mxu0
          %v5220 = vpop.f32.mrb[0].mxu0
          %v5221 = vpop.f32.mrb[0].mxu0
          %5222 = vdwg.mxu0
          %5223 = vmatprep.subr.bf16.mxu0 0
          %5224 = vmatpush1.bf16.msra.mxu0 %v4943
          %5225 = vmatprep.subr.bf16.mxu0 0
          %5226 = vmatpush1.bf16.msra.mxu0 %v4944
          %5227 = vmatprep.subr.bf16.mxu0 0
          %5228 = vmatpush1.bf16.msra.mxu0 %v4945
          %5229 = vmatprep.subr.bf16.mxu0 0
          %5230 = vmatpush1.bf16.msra.mxu0 %v4946
          %5231 = vmatprep.subr.bf16.mxu0 0
          %5232 = vmatpush1.bf16.msra.mxu0 %v4947
          %5233 = vmatprep.subr.bf16.mxu0 0
          %5234 = vmatpush1.bf16.msra.mxu0 %v4948
          %5235 = vmatprep.subr.bf16.mxu0 0
          %5236 = vmatpush1.bf16.msra.mxu0 %v4949
          %5237 = vmatprep.subr.bf16.mxu0 0
          %5238 = vmatpush1.bf16.msra.mxu0 %v4950
          %5239 = vmatprep.subr.bf16.mxu0 0
          %5240 = vmatpush1.bf16.msra.mxu0 %v4951
          %5241 = vmatprep.subr.bf16.mxu0 0
          %5242 = vmatpush1.bf16.msra.mxu0 %v4952
          %5243 = vmatprep.subr.bf16.mxu0 0
          %5244 = vmatpush1.bf16.msra.mxu0 %v4953
          %5245 = vmatprep.subr.bf16.mxu0 0
          %5246 = vmatpush1.bf16.msra.mxu0 %v4954
          %5247 = vmatprep.subr.bf16.mxu0 0
          %5248 = vmatpush1.bf16.msra.mxu0 %v4955
          %5249 = vmatprep.subr.bf16.mxu0 0
          %5250 = vmatpush1.bf16.msra.mxu0 %v4956
          %5251 = vmatprep.subr.bf16.mxu0 0
          %5252 = vmatpush1.bf16.msra.mxu0 %v4957
          %5253 = vmatprep.subr.bf16.mxu0 0
          %5254 = vmatpush1.bf16.msra.mxu0 %v4958
          %5255 = vmatprep.mubr.bf16.mxu0 %v2269
          %5256 = vmatmul.mubr.bf16.gmra.mrb[0].mxu0 %v2268
          %v5257 = vpop.f32.mrb[0].mxu0
          %v5258 = vadd.f32 %v5218, %v5257
          %v5259 = vpop.f32.mrb[0].mxu0
          %v5260 = vpop.f32.mrb[0].mxu0
          %v5261 = vpop.f32.mrb[0].mxu0
          %5262 = vdwg.mxu0
          %5263 = vmatprep.subr.bf16.mxu0 0
          %5264 = vmatpush1.bf16.msra.mxu0 %v4959
          %5265 = vmatprep.subr.bf16.mxu0 0
          %5266 = vmatpush1.bf16.msra.mxu0 %v4960
          %5267 = vmatprep.subr.bf16.mxu0 0
          %5268 = vmatpush1.bf16.msra.mxu0 %v4961
          %5269 = vmatprep.subr.bf16.mxu0 0
          %5270 = vmatpush1.bf16.msra.mxu0 %v4962
          %5271 = vmatprep.subr.bf16.mxu0 0
          %5272 = vmatpush1.bf16.msra.mxu0 %v4963
          %5273 = vmatprep.subr.bf16.mxu0 0
          %5274 = vmatpush1.bf16.msra.mxu0 %v4964
          %5275 = vmatprep.subr.bf16.mxu0 0
          %5276 = vmatpush1.bf16.msra.mxu0 %v4965
          %5277 = vmatprep.subr.bf16.mxu0 0
          %5278 = vmatpush1.bf16.msra.mxu0 %v4966
          %5279 = vmatprep.subr.bf16.mxu0 0
          %5280 = vmatpush1.bf16.msra.mxu0 %v4967
          %5281 = vmatprep.subr.bf16.mxu0 0
          %5282 = vmatpush1.bf16.msra.mxu0 %v4968
          %5283 = vmatprep.subr.bf16.mxu0 0
          %5284 = vmatpush1.bf16.msra.mxu0 %v4969
          %5285 = vmatprep.subr.bf16.mxu0 0
          %5286 = vmatpush1.bf16.msra.mxu0 %v4970
          %5287 = vmatprep.subr.bf16.mxu0 0
          %5288 = vmatpush1.bf16.msra.mxu0 %v4971
          %5289 = vmatprep.subr.bf16.mxu0 0
          %5290 = vmatpush1.bf16.msra.mxu0 %v4972
          %5291 = vmatprep.subr.bf16.mxu0 0
          %5292 = vmatpush1.bf16.msra.mxu0 %v4973
          %5293 = vmatprep.subr.bf16.mxu0 0
          %5294 = vmatpush1.bf16.msra.mxu0 %v4974
          %5295 = vmatprep.mubr.bf16.mxu0 %v2271
          %5296 = vmatmul.mubr.bf16.gmra.mrb[0].mxu0 %v2270
          %v5297 = vpop.f32.mrb[0].mxu0
          %v5298 = vadd.f32 %v5258, %v5297
          %v5299 = vpop.f32.mrb[0].mxu0
          %v5300 = vpop.f32.mrb[0].mxu0
          %v5301 = vpop.f32.mrb[0].mxu0
          %5302 = vdwg.mxu0
          %5303 = vmatprep.subr.bf16.mxu0 0
          %5304 = vmatpush1.bf16.msra.mxu0 %v4975
          %5305 = vmatprep.subr.bf16.mxu0 0
          %5306 = vmatpush1.bf16.msra.mxu0 %v4976
          %5307 = vmatprep.subr.bf16.mxu0 0
          %5308 = vmatpush1.bf16.msra.mxu0 %v4977
          %5309 = vmatprep.subr.bf16.mxu0 0
          %5310 = vmatpush1.bf16.msra.mxu0 %v4978
          %5311 = vmatprep.subr.bf16.mxu0 0
          %5312 = vmatpush1.bf16.msra.mxu0 %v4979
          %5313 = vmatprep.subr.bf16.mxu0 0
          %5314 = vmatpush1.bf16.msra.mxu0 %v4980
          %5315 = vmatprep.subr.bf16.mxu0 0
          %5316 = vmatpush1.bf16.msra.mxu0 %v4981
          %5317 = vmatprep.subr.bf16.mxu0 0
          %5318 = vmatpush1.bf16.msra.mxu0 %v4982
          %5319 = vmatprep.subr.bf16.mxu0 0
          %5320 = vmatpush1.bf16.msra.mxu0 %v4983
          %5321 = vmatprep.subr.bf16.mxu0 0
          %5322 = vmatpush1.bf16.msra.mxu0 %v4984
          %5323 = vmatprep.subr.bf16.mxu0 0
          %5324 = vmatpush1.bf16.msra.mxu0 %v4985
          %5325 = vmatprep.subr.bf16.mxu0 0
          %5326 = vmatpush1.bf16.msra.mxu0 %v4986
          %5327 = vmatprep.subr.bf16.mxu0 0
          %5328 = vmatpush1.bf16.msra.mxu0 %v4987
          %5329 = vmatprep.subr.bf16.mxu0 0
          %5330 = vmatpush1.bf16.msra.mxu0 %v4988
          %5331 = vmatprep.subr.bf16.mxu0 0
          %5332 = vmatpush1.bf16.msra.mxu0 %v4989
          %5333 = vmatprep.subr.bf16.mxu0 0
          %5334 = vmatpush1.bf16.msra.mxu0 %v4990
          %5335 = vmatprep.mubr.bf16.mxu0 %v2273
          %5336 = vmatmul.mubr.bf16.gmra.mrb[0].mxu0 %v2272
          %v5337 = vpop.f32.mrb[0].mxu0
          %v5338 = vadd.f32 %v5298, %v5337
          %v5339 = vpop.f32.mrb[0].mxu0
          %v5340 = vpop.f32.mrb[0].mxu0
          %v5341 = vpop.f32.mrb[0].mxu0
          %5342 = vdwg.mxu0
          %5343 = vmatprep.subr.bf16.mxu0 0
          %5344 = vmatpush1.bf16.msra.mxu0 %v4991
          %5345 = vmatprep.subr.bf16.mxu0 0
          %5346 = vmatpush1.bf16.msra.mxu0 %v4992
          %5347 = vmatprep.subr.bf16.mxu0 0
          %5348 = vmatpush1.bf16.msra.mxu0 %v4993
          %5349 = vmatprep.subr.bf16.mxu0 0
          %5350 = vmatpush1.bf16.msra.mxu0 %v4994
          %5351 = vmatprep.subr.bf16.mxu0 0
          %5352 = vmatpush1.bf16.msra.mxu0 %v4995
          %5353 = vmatprep.subr.bf16.mxu0 0
          %5354 = vmatpush1.bf16.msra.mxu0 %v4996
          %5355 = vmatprep.subr.bf16.mxu0 0
          %5356 = vmatpush1.bf16.msra.mxu0 %v4997
          %5357 = vmatprep.subr.bf16.mxu0 0
          %5358 = vmatpush1.bf16.msra.mxu0 %v4998
          %5359 = vmatprep.subr.bf16.mxu0 0
          %5360 = vmatpush1.bf16.msra.mxu0 %v4999
          %5361 = vmatprep.subr.bf16.mxu0 0
          %5362 = vmatpush1.bf16.msra.mxu0 %v5000
          %5363 = vmatprep.subr.bf16.mxu0 0
          %5364 = vmatpush1.bf16.msra.mxu0 %v5001
          %5365 = vmatprep.subr.bf16.mxu0 0
          %5366 = vmatpush1.bf16.msra.mxu0 %v5002
          %5367 = vmatprep.subr.bf16.mxu0 0
          %5368 = vmatpush1.bf16.msra.mxu0 %v5003
          %5369 = vmatprep.subr.bf16.mxu0 0
          %5370 = vmatpush1.bf16.msra.mxu0 %v5004
          %5371 = vmatprep.subr.bf16.mxu0 0
          %5372 = vmatpush1.bf16.msra.mxu0 %v5005
          %5373 = vmatprep.subr.bf16.mxu0 0
          %5374 = vmatpush1.bf16.msra.mxu0 %v5006
          %5375 = vmatprep.mubr.bf16.mxu0 %v2275
          %5376 = vmatmul.mubr.bf16.gmra.mrb[0].mxu0 %v2274
          %v5377 = vpop.f32.mrb[0].mxu0
          %v5378 = vadd.f32 %v5338, %v5377
          %v5379 = vpop.f32.mrb[0].mxu0
          %v5380 = vpop.f32.mrb[0].mxu0
          %v5381 = vpop.f32.mrb[0].mxu0
          %5382 = vdwg.mxu0
          %5383 = vmatprep.subr.bf16.mxu0 0
          %5384 = vmatpush1.bf16.msra.mxu0 %v5007
          %5385 = vmatprep.subr.bf16.mxu0 0
          %5386 = vmatpush1.bf16.msra.mxu0 %v5008
          %5387 = vmatprep.subr.bf16.mxu0 0
          %5388 = vmatpush1.bf16.msra.mxu0 %v5009
          %5389 = vmatprep.subr.bf16.mxu0 0
          %5390 = vmatpush1.bf16.msra.mxu0 %v5010
          %5391 = vmatprep.subr.bf16.mxu0 0
          %5392 = vmatpush1.bf16.msra.mxu0 %v5011
          %5393 = vmatprep.subr.bf16.mxu0 0
          %5394 = vmatpush1.bf16.msra.mxu0 %v5012
          %5395 = vmatprep.subr.bf16.mxu0 0
          %5396 = vmatpush1.bf16.msra.mxu0 %v5013
          %5397 = vmatprep.subr.bf16.mxu0 0
          %5398 = vmatpush1.bf16.msra.mxu0 %v5014
          %5399 = vmatprep.subr.bf16.mxu0 0
          %5400 = vmatpush1.bf16.msra.mxu0 %v5015
          %5401 = vmatprep.subr.bf16.mxu0 0
          %5402 = vmatpush1.bf16.msra.mxu0 %v5016
          %5403 = vmatprep.subr.bf16.mxu0 0
          %5404 = vmatpush1.bf16.msra.mxu0 %v5017
          %5405 = vmatprep.subr.bf16.mxu0 0
          %5406 = vmatpush1.bf16.msra.mxu0 %v5018
          %5407 = vmatprep.subr.bf16.mxu0 0
          %5408 = vmatpush1.bf16.msra.mxu0 %v5019
          %5409 = vmatprep.subr.bf16.mxu0 0
          %5410 = vmatpush1.bf16.msra.mxu0 %v5020
          %5411 = vmatprep.subr.bf16.mxu0 0
          %5412 = vmatpush1.bf16.msra.mxu0 %v5021
          %5413 = vmatprep.subr.bf16.mxu0 0
          %5414 = vmatpush1.bf16.msra.mxu0 %v5022
          %5415 = vmatprep.mubr.bf16.mxu0 %v2277
          %5416 = vmatmul.mubr.bf16.gmra.mrb[0].mxu0 %v2276
          %v5417 = vpop.f32.mrb[0].mxu0
          %v5418 = vadd.f32 %v5378, %v5417
          %v5419 = vpop.f32.mrb[0].mxu0
          %v5420 = vpop.f32.mrb[0].mxu0
          %v5421 = vpop.f32.mrb[0].mxu0
          %5422 = vdwg.mxu0
          %5423 = vmatprep.subr.bf16.mxu0 0
          %5424 = vmatpush1.bf16.msra.mxu0 %v5023
          %5425 = vmatprep.subr.bf16.mxu0 0
          %5426 = vmatpush1.bf16.msra.mxu0 %v5024
          %5427 = vmatprep.subr.bf16.mxu0 0
          %5428 = vmatpush1.bf16.msra.mxu0 %v5025
          %5429 = vmatprep.subr.bf16.mxu0 0
          %5430 = vmatpush1.bf16.msra.mxu0 %v5026
          %5431 = vmatprep.subr.bf16.mxu0 0
          %5432 = vmatpush1.bf16.msra.mxu0 %v5027
          %5433 = vmatprep.subr.bf16.mxu0 0
          %5434 = vmatpush1.bf16.msra.mxu0 %v5028
          %5435 = vmatprep.subr.bf16.mxu0 0
          %5436 = vmatpush1.bf16.msra.mxu0 %v5029
          %5437 = vmatprep.subr.bf16.mxu0 0
          %5438 = vmatpush1.bf16.msra.mxu0 %v5030
          %5439 = vmatprep.subr.bf16.mxu0 0
          %5440 = vmatpush1.bf16.msra.mxu0 %v5031
          %5441 = vmatprep.subr.bf16.mxu0 0
          %5442 = vmatpush1.bf16.msra.mxu0 %v5032
          %5443 = vmatprep.subr.bf16.mxu0 0
          %5444 = vmatpush1.bf16.msra.mxu0 %v5033
          %5445 = vmatprep.subr.bf16.mxu0 0
          %5446 = vmatpush1.bf16.msra.mxu0 %v5034
          %5447 = vmatprep.subr.bf16.mxu0 0
          %5448 = vmatpush1.bf16.msra.mxu0 %v5035
          %5449 = vmatprep.subr.bf16.mxu0 0
          %5450 = vmatpush1.bf16.msra.mxu0 %v5036
          %5451 = vmatprep.subr.bf16.mxu0 0
          %5452 = vmatpush1.bf16.msra.mxu0 %v5037
          %5453 = vmatprep.subr.bf16.mxu0 0
          %5454 = vmatpush1.bf16.msra.mxu0 %v5038
          %5455 = vmatprep.mubr.bf16.mxu0 %v2279
          %5456 = vmatmul.mubr.bf16.gmra.mrb[0].mxu0 %v2278
          %v5457 = vpop.f32.mrb[0].mxu0
          %v5458 = vadd.f32 %v5418, %v5457
          %v5459 = vpop.f32.mrb[0].mxu0
          %v5460 = vpop.f32.mrb[0].mxu0
          %v5461 = vpop.f32.mrb[0].mxu0
          %5462 = vdwg.mxu0
          %5463 = vmatprep.subr.bf16.mxu0 0
          %5464 = vmatpush1.bf16.msra.mxu0 %v5039
          %5465 = vmatprep.subr.bf16.mxu0 0
          %5466 = vmatpush1.bf16.msra.mxu0 %v5040
          %5467 = vmatprep.subr.bf16.mxu0 0
          %5468 = vmatpush1.bf16.msra.mxu0 %v5041
          %5469 = vmatprep.subr.bf16.mxu0 0
          %5470 = vmatpush1.bf16.msra.mxu0 %v5042
          %5471 = vmatprep.subr.bf16.mxu0 0
          %5472 = vmatpush1.bf16.msra.mxu0 %v5043
          %5473 = vmatprep.subr.bf16.mxu0 0
          %5474 = vmatpush1.bf16.msra.mxu0 %v5044
          %5475 = vmatprep.subr.bf16.mxu0 0
          %5476 = vmatpush1.bf16.msra.mxu0 %v5045
          %5477 = vmatprep.subr.bf16.mxu0 0
          %5478 = vmatpush1.bf16.msra.mxu0 %v5046
          %5479 = vmatprep.subr.bf16.mxu0 0
          %5480 = vmatpush1.bf16.msra.mxu0 %v5047
          %5481 = vmatprep.subr.bf16.mxu0 0
          %5482 = vmatpush1.bf16.msra.mxu0 %v5048
          %5483 = vmatprep.subr.bf16.mxu0 0
          %5484 = vmatpush1.bf16.msra.mxu0 %v5049
          %5485 = vmatprep.subr.bf16.mxu0 0
          %5486 = vmatpush1.bf16.msra.mxu0 %v5050
          %5487 = vmatprep.subr.bf16.mxu0 0
          %5488 = vmatpush1.bf16.msra.mxu0 %v5051
          %5489 = vmatprep.subr.bf16.mxu0 0
          %5490 = vmatpush1.bf16.msra.mxu0 %v5052
          %5491 = vmatprep.subr.bf16.mxu0 0
          %5492 = vmatpush1.bf16.msra.mxu0 %v5053
          %5493 = vmatprep.subr.bf16.mxu0 0
          %5494 = vmatpush1.bf16.msra.mxu0 %v5054
          %5495 = vmatprep.mubr.bf16.mxu0 %v2281
          %5496 = vmatmul.mubr.bf16.gmra.mrb[0].mxu0 %v2280
          %v5497 = vpop.f32.mrb[0].mxu0
          %v5498 = vadd.f32 %v5458, %v5497
          %v5499 = vpop.f32.mrb[0].mxu0
          %v5500 = vpop.f32.mrb[0].mxu0
          %v5501 = vpop.f32.mrb[0].mxu0
          %5502 = vdwg.mxu0
          %v5503 = vmul.f32 %v4152, %v4152
          %vm5504 = vcmask 1040384
          %v5505 = vsel %vm5504, %v5503, 0.0
          %5506 = vadd.xlane.f32.xlu0 %v5505
          %v5507 = vpop.xlane.xlu0 %5506
          %v5508 = vrsqrt.pop %v5507
          %v5509 = vmul.f32 %v5507, %v5508
          %vm5510 = vcmp.eq.f32.partialorder %v5507, inf
          %v5511 = vsel %vm5510, %v5507, %v5509
          %vm5512 = vcmp.eq.f32.partialorder %v5507, 0.0
          %v5513 = vand.u32 %v5507, 2147483648
          %v5514 = vsel %vm5512, %v5513, %v5511
          %v5515 = vadd.f32 %v5514, 1e-06
          %v5516 = vrcp.pop %v5515
          %v5517 = vmul.f32 %v4152, %v5516
          %v5518 = vmul.f32 %v5498, %v5498
          %v5519 = vsel %vm5504, %v5518, 0.0
          %5520 = vadd.xlane.f32.xlu0 %v5519
          %v5521 = vpop.xlane.xlu0 %5520
          %v5522 = vrsqrt.pop %v5521
          %v5523 = vmul.f32 %v5521, %v5522
          %vm5524 = vcmp.eq.f32.partialorder %v5521, inf
          %v5525 = vsel %vm5524, %v5521, %v5523
          %vm5526 = vcmp.eq.f32.partialorder %v5521, 0.0
          %v5527 = vand.u32 %v5521, 2147483648
          %v5528 = vsel %vm5526, %v5527, %v5525
          %v5529 = vadd.f32 %v5528, 1e-06
          %v5530 = vrcp.pop %v5529
          %v5531 = vmul.f32 %v5498, %v5530
          %v5532 = vmul.f32 %v5517, %v5517
          %v5533 = vsel %vm5504, %v5532, 0.0
          %5534 = vadd.xlane.f32.xlu0 %v5533
          %v5535 = vpop.xlane.xlu0 %5534
          %v5536 = vmul.f32 %v5531, %v5531
          %v5537 = vsel %vm5504, %v5536, 0.0
          %5538 = vadd.xlane.f32.xlu0 %v5537
          %v5539 = vpop.xlane.xlu0 %5538
          %v5540 = vadd.f32 %v5535, %v5539
          %v5541 = vrsqrt.pop %v5540
          %v5542 = vmul.f32 %v5540, %v5541
          %vm5543 = vcmp.eq.f32.partialorder %v5540, inf
          %v5544 = vsel %vm5543, %v5540, %v5542
          %vm5545 = vcmp.eq.f32.partialorder %v5540, 0.0
          %v5546 = vand.u32 %v5540, 2147483648
          %v5547 = vsel %vm5545, %v5546, %v5544
          %v5548 = vadd.f32 %v5547, 1e-06
          %v5549 = vrcp.pop %v5548
          %v5550 = vmul.f32 1.0, %v5549
          %v5551 = vmul.f32 %v5517, %v5550
          %v5552 = vlaneseq
          %vm5553 = vcmp.ge.s32.totalorder %v5552, 0
          %vm5554 = vcmp.lt.s32.totalorder %v5552, 128
          %vm5555 = vmand %vm5553, %vm5554
          %5556 = vst.msk [vmem:[%s288] sm:$0x1] %vm5555, %v5551
          %v5557 = vmul.f32 %v5531, %v5550
          %5558 = vst.msk [vmem:[%s288 + $0x1] sm:$0x1] %vm5555, %v5557
          %5559 = vst [vmem:[%s294] sm:$0x1] %v4154
        $region52: #{tpu_custom_call.1} parent=39 // pred_fallthru
          _
        %s5560 = sand.u32 %s156, 1
        %s5561 = scalar_lea.sflag [#allocation5], %s5560
        %s5562 = sand.u32 %s156, 1
        %s5563 = smul.addr %s5562, 2
        %s5564 = scalar_lea.vmem [#allocation4], %s5563
        %s5565 = sand.u32 %s182, 1
        %s5566 = scalar_lea.sflag [#allocation7], %s5565
        %s5567 = sand.u32 %s182, 1
        %s5568 = scalar_lea.vmem [#allocation6], %s5567
        // Predicated region
        $region53: #{tpu_custom_call.1} parent=39 // pred_check
          %p5569 = pneg %p166
        $region54: #{tpu_custom_call.1} parent=39 // pred_check_branch
          %5571 = sbr.rel (%p5569) target = $region56
        $region55: #{tpu_custom_call.1} parent=39 // pred_region
          %s5573 = ssub.s32 32, 32
          %5574 = vsyncadd %s5561, %s5573
          %s5575 = smul.addr %s28, 2
          %s5576 = smul.addr %s5575, 16
          %s5577 = scalar_lea.hbm %s5, %s5576
          %s5579 = sshll.u32 %s5564, 4
          %s5580 = int_to_ptr.vmem [resolvable:$true] %s5579
          %5582 = dma.vmem_to_hbm [thread:$0]  %s5580, 32, %s5577, %s5561
        $region56: #{tpu_custom_call.1} parent=39 // pred_fallthru
          _
        // Predicated region
        $region57: #{tpu_custom_call.1} parent=39 // pred_check
          %p5583 = pneg %p192
        $region58: #{tpu_custom_call.1} parent=39 // pred_check_branch
          %5585 = sbr.rel (%p5583) target = $region60
        $region59: #{tpu_custom_call.1} parent=39 // pred_region
          %s5587 = ssub.s32 16, 16
          %5588 = vsyncadd %s5566, %s5587
          %s5589 = smul.addr %s28, 16
          %s5590 = scalar_lea.hbm %s6, %s5589
          %s5592 = sshll.u32 %s5568, 4
          %s5593 = int_to_ptr.vmem [resolvable:$true] %s5592
          %5595 = dma.vmem_to_hbm [thread:$0]  %s5593, 16, %s5590, %s5566
        $region60: #{tpu_custom_call.1} parent=39 // pred_fallthru
          _
      $region40: #{tpu_custom_call.1} parent=5 // pred_fallthru
        _
      %p5596 = scmp.le.s32.totalorder 2, %s19
      // Predicated region
      $region61: #{tpu_custom_call.1} parent=5 // pred_check
        %p5597 = pneg %p5596
      $region62: #{tpu_custom_call.1} parent=5 // pred_check_branch
        %5599 = sbr.rel (%p5597) target = $region64
      $region63: #{tpu_custom_call.1} parent=5 // pred_region
        %s5600 = ssub.s32 %s19, 2
        // Predicated region
        $region65: #{tpu_custom_call.1} parent=63 // pred_check
          %p5601 = pneg %p172
        $region66: #{tpu_custom_call.1} parent=63 // pred_check_branch
          %5603 = sbr.rel (%p5601) target = $region68
        $region67: #{tpu_custom_call.1} parent=63 // pred_region
          %s5604 = sand.u32 %s157, 1
          %s5605 = scalar_lea.sflag [#allocation5], %s5604
          %s5606 = sand.u32 %s157, 1
          %s5607 = smul.addr %s5606, 2
          %s5608 = scalar_lea.vmem [#allocation4], %s5607
          %5609 = dma.done %s5605, 32
        $region68: #{tpu_custom_call.1} parent=63 // pred_fallthru
          _
        // Predicated region
        $region69: #{tpu_custom_call.1} parent=63 // pred_check
          %p5610 = pneg %p198
        $region70: #{tpu_custom_call.1} parent=63 // pred_check_branch
          %5612 = sbr.rel (%p5610) target = $region72
        $region71: #{tpu_custom_call.1} parent=63 // pred_region
          %s5613 = sand.u32 %s183, 1
          %s5614 = scalar_lea.sflag [#allocation7], %s5613
          %s5615 = sand.u32 %s183, 1
          %s5616 = scalar_lea.vmem [#allocation6], %s5615
          %5617 = dma.done %s5614, 16
        $region72: #{tpu_custom_call.1} parent=63 // pred_fallthru
          _
      $region64: #{tpu_custom_call.1} parent=5 // pred_fallthru
        _
    $region6: #{tpu_custom_call.1} parent=1 // loop_footer
      %s23 = sadd.s32 1, %s19
    $region7: #{tpu_custom_call.1} parent=1 // loop_footer_branch
      %18 = sbr.rel target = $region3
    $region8: #{tpu_custom_call.1} parent=1 // loop_exit
      _
    %5618 = vsyncpa [#allocation5], 1
    %s5619 = scalar_lea.sflag [#allocation5], 1
    %5620 = vsyncpa %s5619, 1
    %5621 = vsyncpa [#allocation7], 1
    %s5622 = scalar_lea.sflag [#allocation7], 1
    %5623 = vsyncpa %s5622, 1

// kernel: tpu_custom_call.1
$region0: #{tpu_custom_call.1}
  #allocation0 [shape = 'u32[]', space=smem, size = 0x4, offset = 0x4, fixed_abs, tag = 'smem constant byte address 0x4 - core index']
  #allocation1 [shape = 'u32[144,128]{1,0:T(1,128)}', space=vmem, size = 0x12000, scoped, tag = 'internal scratch']
  #allocation2 [shape = 'f32[1,2048]{1,0:T(1,128)}', space=vmem, size = 0x2000, scoped, tag = 'scratch operand']
  #allocation3 [shape = 'f32[1,2048]{1,0:T(1,128)}', space=vmem, size = 0x2000, scoped, tag = 'scratch operand']
  %s0 = inlined_call_operand.vmem [shape: f32[2,196,2048], index: 0, kind: input, shape index: {}]
  %s1 = inlined_call_operand.vmem [shape: bf16[2048,256], index: 1, kind: input, shape index: {}]
  %s2 = inlined_call_operand.vmem [shape: f32[1,256], index: 2, kind: input, shape index: {}]
  %s3 = inlined_call_operand.vmem [shape: bf16[2048,128], index: 3, kind: input, shape index: {}]
  %s4 = inlined_call_operand.vmem [shape: f32[1,128], index: 4, kind: input, shape index: {}]
  %s5 = inlined_call_operand.hbm [shape: f32[2,1,256], index: 5, kind: output, shape index: {0}]
  %s6 = inlined_call_operand.hbm [shape: f32[2,1,128], index: 6, kind: output, shape index: {1}]
  %7 = xla_tuple %s5, %s6
  %s8 = sld [smem:[#allocation0]]
  $region73: #{tpu_custom_call.1} parent=0
    _
  %s10 = ssub.s32 1, %s8
  %s11 = scalar_select 0, %s10, %s8
  $region1: #{tpu_custom_call.1} parent=0
    #allocation4 [shape = 'u8[2048]{0}', space=vmem, size = 0x800, scoped, tag = 'output window, operand 0']
    #allocation5 [shape = 's32[2]{0}', space=sflag, size = 0x8, scoped, tag = 'scoped memory for tpu_custom_call.1']
    #allocation6 [shape = 'u8[1024]{0}', space=vmem, size = 0x400, scoped, tag = 'output window, operand 1']
    #allocation7 [shape = 's32[2]{0}', space=sflag, size = 0x8, scoped, tag = 'scoped memory for tpu_custom_call.1']
    %12 = vsyncpa [#allocation5], 0
    %s13 = scalar_lea.sflag [#allocation5], 1
    %14 = vsyncpa %s13, 0
    %15 = vsyncpa [#allocation7], 0
    %s16 = scalar_lea.sflag [#allocation7], 1
    %17 = vsyncpa %s16, 0
    loop: start=0, step=1, limit=10
    $region2: #{tpu_custom_call.1} parent=1 // loop_pre_header
      _
    $region3: #{tpu_custom_call.1} parent=1 // loop_header
      %s19 = sphi 0, %s23
      %p20 = scmp.ge.s32.totalorder %s19, 10
      %s26 = sphi 0, %s38
      %s27 = sphi 0, %s34
      %s28 = sphi 0, %s26
      %s29 = sphi 0, %s27
      %s30 = sphi 0, %s28
      %s31 = sphi 0, %s29
      %s43 = sphi 0, %s45
      %s46 = sphi 0, %s43
      %s47 = sphi 0, %s46
      %s63 = sphi 0, %s47
      %s67 = sphi 0, %s67
      %s69 = sphi 0, %s67
      %s70 = sphi 0, %s69
      %s84 = sphi 0, %s70
      %s88 = sphi 0, %s88
      %s90 = sphi 0, %s88
      %s91 = sphi 0, %s90
      %s105 = sphi 0, %s91
      %s109 = sphi 0, %s109
      %s111 = sphi 0, %s109
      %s112 = sphi 0, %s111
      %s126 = sphi 0, %s112
      %s130 = sphi 0, %s130
      %s132 = sphi 0, %s130
      %s133 = sphi 0, %s132
      %s147 = sphi 0, %s133
      %s153 = sphi 0, %s155
      %s156 = sphi 0, %s153
      %s157 = sphi 0, %s156
      %s173 = sphi 0, %s157
      %s179 = sphi 0, %s181
      %s182 = sphi 0, %s179
      %s183 = sphi 0, %s182
      %s199 = sphi 0, %s183
    $region4: #{tpu_custom_call.1} parent=1 // loop_header_branch
      %22 = sbr.rel (%p20) target = $region8
    $region5: #{tpu_custom_call.1} parent=1 // loop_body
      %s24 = ssub.s32 %s19, 1
      %s25 = ssub.s32 %s19, 2
      %s32 = sadd.s32 1, %s27
      %p33 = scmp.ge.s32.totalorder %s32, 4
      %s34 = scalar_select %p33, 0, %s32
      %s35 = sadd.s32 1, %s26
      %s36 = scalar_select %p33, %s35, %s26
      %p37 = scmp.ge.s32.totalorder %s36, 2
      %s38 = scalar_select %p37, 0, %s36
      %s39 = ssub.s32 %s26, %s38
      %s40 = ssub.s32 %s27, %s34
      %s41 = sor.u32 %s39, %s40
      %p42 = scmp.eq.s32.totalorder %s41, 0
      %s44 = sadd.s32 %s43, 1
      %s45 = scalar_select %p42, %s43, %s44
      %p48 = pneg %p42
      %p49 = scmp.eq.s32.totalorder %s19, 7
      %p50 = por %p48, %p49
      %p51 = scmp.ne.s32.totalorder %s43, %s46
      %p52 = scmp.eq.s32.totalorder %s19, 0
      %p53 = por %p51, %p52
      %p54 = scmp.ne.s32.totalorder %s43, %s46
      %p55 = scmp.eq.s32.totalorder %s24, 7
      %p56 = por %p54, %p55
      %p57 = scmp.ne.s32.totalorder %s46, %s47
      %p58 = scmp.eq.s32.totalorder %s24, 0
      %p59 = por %p57, %p58
      %p60 = scmp.ne.s32.totalorder %s46, %s47
      %p61 = scmp.eq.s32.totalorder %s25, 7
      %p62 = por %p60, %p61
      %p64 = scmp.ne.s32.totalorder %s47, %s63
      %p65 = scmp.eq.s32.totalorder %s25, 0
      %p66 = por %p64, %p65
      %s68 = sadd.s32 %s67, 1
      %p71 = scmp.eq.s32.totalorder %s19, 7
      %p72 = scmp.ne.s32.totalorder %s67, %s69
      %p73 = scmp.eq.s32.totalorder %s19, 0
      %p74 = por %p72, %p73
      %p75 = scmp.ne.s32.totalorder %s67, %s69
      %p76 = scmp.eq.s32.totalorder %s24, 7
      %p77 = por %p75, %p76
      %p78 = scmp.ne.s32.totalorder %s69, %s70
      %p79 = scmp.eq.s32.totalorder %s24, 0
      %p80 = por %p78, %p79
      %p81 = scmp.ne.s32.totalorder %s69, %s70
      %p82 = scmp.eq.s32.totalorder %s25, 7
      %p83 = por %p81, %p82
      %p85 = scmp.ne.s32.totalorder %s70, %s84
      %p86 = scmp.eq.s32.totalorder %s25, 0
      %p87 = por %p85, %p86
      %s89 = sadd.s32 %s88, 1
      %p92 = scmp.eq.s32.totalorder %s19, 7
      %p93 = scmp.ne.s32.totalorder %s88, %s90
      %p94 = scmp.eq.s32.totalorder %s19, 0
      %p95 = por %p93, %p94
      %p96 = scmp.ne.s32.totalorder %s88, %s90
      %p97 = scmp.eq.s32.totalorder %s24, 7
      %p98 = por %p96, %p97
      %p99 = scmp.ne.s32.totalorder %s90, %s91
      %p100 = scmp.eq.s32.totalorder %s24, 0
      %p101 = por %p99, %p100
      %p102 = scmp.ne.s32.totalorder %s90, %s91
      %p103 = scmp.eq.s32.totalorder %s25, 7
      %p104 = por %p102, %p103
      %p106 = scmp.ne.s32.totalorder %s91, %s105
      %p107 = scmp.eq.s32.totalorder %s25, 0
      %p108 = por %p106, %p107
      %s110 = sadd.s32 %s109, 1
      %p113 = scmp.eq.s32.totalorder %s19, 7
      %p114 = scmp.ne.s32.totalorder %s109, %s111
      %p115 = scmp.eq.s32.totalorder %s19, 0
      %p116 = por %p114, %p115
      %p117 = scmp.ne.s32.totalorder %s109, %s111
      %p118 = scmp.eq.s32.totalorder %s24, 7
      %p119 = por %p117, %p118
      %p120 = scmp.ne.s32.totalorder %s111, %s112
      %p121 = scmp.eq.s32.totalorder %s24, 0
      %p122 = por %p120, %p121
      %p123 = scmp.ne.s32.totalorder %s111, %s112
      %p124 = scmp.eq.s32.totalorder %s25, 7
      %p125 = por %p123, %p124
      %p127 = scmp.ne.s32.totalorder %s112, %s126
      %p128 = scmp.eq.s32.totalorder %s25, 0
      %p129 = por %p127, %p128
      %s131 = sadd.s32 %s130, 1
      %p134 = scmp.eq.s32.totalorder %s19, 7
      %p135 = scmp.ne.s32.totalorder %s130, %s132
      %p136 = scmp.eq.s32.totalorder %s19, 0
      %p137 = por %p135, %p136
      %p138 = scmp.ne.s32.totalorder %s130, %s132
      %p139 = scmp.eq.s32.totalorder %s24, 7
      %p140 = por %p138, %p139
      %p141 = scmp.ne.s32.totalorder %s132, %s133
      %p142 = scmp.eq.s32.totalorder %s24, 0
      %p143 = por %p141, %p142
      %p144 = scmp.ne.s32.totalorder %s132, %s133
      %p145 = scmp.eq.s32.totalorder %s25, 7
      %p146 = por %p144, %p145
      %p148 = scmp.ne.s32.totalorder %s133, %s147
      %p149 = scmp.eq.s32.totalorder %s25, 0
      %p150 = por %p148, %p149
      %s151 = ssub.s32 %s26, %s38
      %p152 = scmp.eq.s32.totalorder %s151, 0
      %s154 = sadd.s32 %s153, 1
      %s155 = scalar_select %p152, %s153, %s154
      %p158 = pneg %p152
      %p159 = scmp.eq.s32.totalorder %s19, 7
      %p160 = por %p158, %p159
      %p161 = scmp.ne.s32.totalorder %s153, %s156
      %p162 = scmp.eq.s32.totalorder %s19, 0
      %p163 = por %p161, %p162
      %p164 = scmp.ne.s32.totalorder %s153, %s156
      %p165 = scmp.eq.s32.totalorder %s24, 7
      %p166 = por %p164, %p165
      %p167 = scmp.ne.s32.totalorder %s156, %s157
      %p168 = scmp.eq.s32.totalorder %s24, 0
      %p169 = por %p167, %p168
      %p170 = scmp.ne.s32.totalorder %s156, %s157
      %p171 = scmp.eq.s32.totalorder %s25, 7
      %p172 = por %p170, %p171
      %p174 = scmp.ne.s32.totalorder %s157, %s173
      %p175 = scmp.eq.s32.totalorder %s25, 0
      %p176 = por %p174, %p175
      %s177 = ssub.s32 %s26, %s38
      %p178 = scmp.eq.s32.totalorder %s177, 0
      %s180 = sadd.s32 %s179, 1
      %s181 = scalar_select %p178, %s179, %s180
      %p184 = pneg %p178
      %p185 = scmp.eq.s32.totalorder %s19, 7
      %p186 = por %p184, %p185
      %p187 = scmp.ne.s32.totalorder %s179, %s182
      %p188 = scmp.eq.s32.totalorder %s19, 0
      %p189 = por %p187, %p188
      %p190 = scmp.ne.s32.totalorder %s179, %s182
      %p191 = scmp.eq.s32.totalorder %s24, 7
      %p192 = por %p190, %p191
      %p193 = scmp.ne.s32.totalorder %s182, %s183
      %p194 = scmp.eq.s32.totalorder %s24, 0
      %p195 = por %p193, %p194
      %p196 = scmp.ne.s32.totalorder %s182, %s183
      %p197 = scmp.eq.s32.totalorder %s25, 7
      %p198 = por %p196, %p197
      %p200 = scmp.ne.s32.totalorder %s183, %s199
      %p201 = scmp.eq.s32.totalorder %s25, 0
      %p202 = por %p200, %p201
      %p203 = scmp.le.s32.totalorder 1, %s19
      %p204 = scmp.lt.s32.totalorder %s19, 9
      %p205 = pnand %p203, %p204
      %p206 = pneg %p205
      // Predicated region
      $region9: #{tpu_custom_call.1} parent=5 // pred_check
        _
      $region10: #{tpu_custom_call.1} parent=5 // pred_check_branch
        %208 = sbr.rel (%p205) target = $region12
      $region11: #{tpu_custom_call.1} parent=5 // pred_region
        %s209 = ssub.s32 %s19, 1
        // Predicated region
        $region13: #{tpu_custom_call.1} parent=11 // pred_check
          %p210 = pneg %p80
        $region14: #{tpu_custom_call.1} parent=11 // pred_check_branch
          %212 = sbr.rel (%p210) target = $region16
        $region15: #{tpu_custom_call.1} parent=11 // pred_region
          _
        $region16: #{tpu_custom_call.1} parent=11 // pred_fallthru
          _
        // Predicated region
        $region17: #{tpu_custom_call.1} parent=11 // pred_check
          %p213 = pneg %p101
        $region18: #{tpu_custom_call.1} parent=11 // pred_check_branch
          %215 = sbr.rel (%p213) target = $region20
        $region19: #{tpu_custom_call.1} parent=11 // pred_region
          _
        $region20: #{tpu_custom_call.1} parent=11 // pred_fallthru
          _
        // Predicated region
        $region21: #{tpu_custom_call.1} parent=11 // pred_check
          %p216 = pneg %p122
        $region22: #{tpu_custom_call.1} parent=11 // pred_check_branch
          %218 = sbr.rel (%p216) target = $region24
        $region23: #{tpu_custom_call.1} parent=11 // pred_region
          _
        $region24: #{tpu_custom_call.1} parent=11 // pred_fallthru
          _
        // Predicated region
        $region25: #{tpu_custom_call.1} parent=11 // pred_check
          %p219 = pneg %p143
        $region26: #{tpu_custom_call.1} parent=11 // pred_check_branch
          %221 = sbr.rel (%p219) target = $region28
        $region27: #{tpu_custom_call.1} parent=11 // pred_region
          _
        $region28: #{tpu_custom_call.1} parent=11 // pred_fallthru
          _
      $region12: #{tpu_custom_call.1} parent=5 // pred_fallthru
        _
      %p222 = scmp.lt.s32.totalorder %s19, 8
      // Predicated region
      $region29: #{tpu_custom_call.1} parent=5 // pred_check
        %p223 = pneg %p222
      $region30: #{tpu_custom_call.1} parent=5 // pred_check_branch
        %225 = sbr.rel (%p223) target = $region32
      $region31: #{tpu_custom_call.1} parent=5 // pred_region
        // Predicated region
        $region33: #{tpu_custom_call.1} parent=31 // pred_check
          %p226 = pneg %p53
        $region34: #{tpu_custom_call.1} parent=31 // pred_check_branch
          %228 = sbr.rel (%p226) target = $region36
        $region35: #{tpu_custom_call.1} parent=31 // pred_region
          %s229 = smul.u32 8, %s27
          %s230 = ssub.s32 25, %s229
          %p231 = scmp.lt.s32.totalorder %s230, 8
          %s232 = scalar_select %p231, %s230, 8
          %s233 = smul.u32 128, %s232
          %s234 = smul.u32 %s233, 16
          %p235 = scmp.lt.s32.totalorder %s26, 1
          %s236 = scalar_select %p235, %s26, 1
          %p237 = scmp.lt.s32.totalorder %s229, 24
          %s238 = scalar_select %p237, %s229, 24
          %s239 = smul.addr %s238, 16
          %s240 = smul.addr %s236, 400
          %s241 = sadd.s32 %s239, %s240
          %s242 = smul.addr %s241, 8
          %s243 = scalar_lea.vmem %s0, %s242
          %s244 = smul.u32 8, %s27
          %s245 = ssub.s32 25, %s244
          %p246 = scmp.lt.s32.totalorder %s245, 8
          %s247 = scalar_select %p246, %s245, 8
          %s248 = smul.u32 128, %s247
          %s249 = smul.u32 %s248, 16
        $region36: #{tpu_custom_call.1} parent=31 // pred_fallthru
          _
      $region32: #{tpu_custom_call.1} parent=5 // pred_fallthru
        _
      %p250 = scmp.le.s32.totalorder 1, %s19
      %p251 = scmp.lt.s32.totalorder %s19, 9
      %p252 = pnand %p250, %p251
      %p253 = pneg %p252
      // Predicated region
      $region37: #{tpu_custom_call.1} parent=5 // pred_check
        _
      $region38: #{tpu_custom_call.1} parent=5 // pred_check_branch
        %255 = sbr.rel (%p252) target = $region40
      $region39: #{tpu_custom_call.1} parent=5 // pred_region
        %s256 = ssub.s32 %s19, 1
        %s257 = smul.u32 8, %s29
        %s258 = ssub.s32 25, %s257
        %p259 = scmp.lt.s32.totalorder %s258, 8
        %s260 = scalar_select %p259, %s258, 8
        %s261 = smul.u32 128, %s260
        %s262 = smul.u32 %s261, 16
        %p263 = scmp.lt.s32.totalorder %s28, 1
        %s264 = scalar_select %p263, %s28, 1
        %p265 = scmp.lt.s32.totalorder %s257, 24
        %s266 = scalar_select %p265, %s257, 24
        %s267 = smul.addr %s266, 16
        %s268 = smul.addr %s264, 400
        %s269 = sadd.s32 %s267, %s268
        %s270 = smul.addr %s269, 8
        %s271 = scalar_lea.vmem %s0, %s270
        %p272 = pneg %p59
        %p273 = pneg %p56
        %p274 = pneg %p80
        %p275 = pneg %p77
        %p276 = pneg %p101
        %p277 = pneg %p98
        %p278 = pneg %p122
        %p279 = pneg %p119
        %p280 = pneg %p143
        %p281 = pneg %p140
        %p282 = pneg %p169
        %p283 = pneg %p166
        %s284 = sand.u32 %s156, 1
        %s285 = scalar_lea.sflag [#allocation5], %s284
        %s286 = sand.u32 %s156, 1
        %s287 = smul.addr %s286, 2
        %s288 = scalar_lea.vmem [#allocation4], %s287
        %p289 = pneg %p195
        %p290 = pneg %p192
        %s291 = sand.u32 %s182, 1
        %s292 = scalar_lea.sflag [#allocation7], %s291
        %s293 = sand.u32 %s182, 1
        %s294 = scalar_lea.vmem [#allocation6], %s293
        %s295 = smul.u32 8, %s29
        %s296 = ssub.s32 25, %s295
        %p297 = scmp.lt.s32.totalorder %s296, 8
        %s298 = scalar_select %p297, %s296, 8
        %s299 = smul.u32 128, %s298
        %s300 = smul.u32 %s299, 16
        %p301 = scmp.lt.s32.totalorder %s28, 1
        %s302 = scalar_select %p301, %s28, 1
        %p303 = scmp.lt.s32.totalorder %s295, 24
        %s304 = scalar_select %p303, %s295, 24
        %s305 = smul.addr %s304, 16
        %s306 = smul.addr %s302, 400
        %s307 = sadd.s32 %s305, %s306
        %s308 = smul.addr %s307, 8
        %s309 = scalar_lea.vmem %s0, %s308
        %s310 = smul.u32 8, %s29
        %s311 = ssub.s32 25, %s310
        %p312 = scmp.lt.s32.totalorder %s311, 8
        %s313 = scalar_select %p312, %s311, 8
        %s314 = smul.u32 128, %s313
        %s315 = smul.u32 %s314, 16
        %p317 = scmp.eq.s32.totalorder %s29, 0
        // Predicated region
        $region41: #{tpu_custom_call.1} parent=39 // pred_check
          %p318 = pneg %p317
        $region42: #{tpu_custom_call.1} parent=39 // pred_check_branch
          %320 = sbr.rel (%p318) target = $region44
        $region43: #{tpu_custom_call.1} parent=39 // pred_region
          %321 = vst [vmem:[#allocation2] sm:$0xff] 0.0
          %322 = vst [vmem:[#allocation2 + $0x8] sm:$0xff] 0.0
          %323 = vst [vmem:[#allocation3] sm:$0xff] -inf
          %324 = vst [vmem:[#allocation3 + $0x8] sm:$0xff] -inf
        $region44: #{tpu_custom_call.1} parent=39 // pred_fallthru
          _
        %v325 = vld [vmem:[%s309] sm:$0xff]
        %v326 = vld [vmem:[%s309 + $0x8] sm:$0xff]
        %v327 = vld [vmem:[%s309 + $0x10] sm:$0xff]
        %v328 = vld [vmem:[%s309 + $0x18] sm:$0xff]
        %v329 = vld [vmem:[%s309 + $0x20] sm:$0xff]
        %v330 = vld [vmem:[%s309 + $0x28] sm:$0xff]
        %v331 = vld [vmem:[%s309 + $0x30] sm:$0xff]
        %v332 = vld [vmem:[%s309 + $0x38] sm:$0xff]
        %v333 = vld [vmem:[%s309 + $0x40] sm:$0xff]
        %v334 = vld [vmem:[%s309 + $0x48] sm:$0xff]
        %v335 = vld [vmem:[%s309 + $0x50] sm:$0xff]
        %v336 = vld [vmem:[%s309 + $0x58] sm:$0xff]
        %v337 = vld [vmem:[%s309 + $0x60] sm:$0xff]
        %v338 = vld [vmem:[%s309 + $0x68] sm:$0xff]
        %v339 = vld [vmem:[%s309 + $0x70] sm:$0xff]
        %v340 = vld [vmem:[%s309 + $0x78] sm:$0xff]
        %v341 = vld [vmem:[%s309 + $0x80] sm:$0xff]
        %v342 = vld [vmem:[%s309 + $0x88] sm:$0xff]
        %v343 = vld [vmem:[%s309 + $0x90] sm:$0xff]
        %v344 = vld [vmem:[%s309 + $0x98] sm:$0xff]
        %v345 = vld [vmem:[%s309 + $0xa0] sm:$0xff]
        %v346 = vld [vmem:[%s309 + $0xa8] sm:$0xff]
        %v347 = vld [vmem:[%s309 + $0xb0] sm:$0xff]
        %v348 = vld [vmem:[%s309 + $0xb8] sm:$0xff]
        %v349 = vld [vmem:[%s309 + $0xc0] sm:$0xff]
        %v350 = vld [vmem:[%s309 + $0xc8] sm:$0xff]
        %v351 = vld [vmem:[%s309 + $0xd0] sm:$0xff]
        %v352 = vld [vmem:[%s309 + $0xd8] sm:$0xff]
        %v353 = vld [vmem:[%s309 + $0xe0] sm:$0xff]
        %v354 = vld [vmem:[%s309 + $0xe8] sm:$0xff]
        %v355 = vld [vmem:[%s309 + $0xf0] sm:$0xff]
        %v356 = vld [vmem:[%s309 + $0xf8] sm:$0xff]
        %v357 = vld [vmem:[%s309 + $0x100] sm:$0xff]
        %v358 = vld [vmem:[%s309 + $0x108] sm:$0xff]
        %v359 = vld [vmem:[%s309 + $0x110] sm:$0xff]
        %v360 = vld [vmem:[%s309 + $0x118] sm:$0xff]
        %v361 = vld [vmem:[%s309 + $0x120] sm:$0xff]
        %v362 = vld [vmem:[%s309 + $0x128] sm:$0xff]
        %v363 = vld [vmem:[%s309 + $0x130] sm:$0xff]
        %v364 = vld [vmem:[%s309 + $0x138] sm:$0xff]
        %v365 = vld [vmem:[%s309 + $0x140] sm:$0xff]
        %v366 = vld [vmem:[%s309 + $0x148] sm:$0xff]
        %v367 = vld [vmem:[%s309 + $0x150] sm:$0xff]
        %v368 = vld [vmem:[%s309 + $0x158] sm:$0xff]
        %v369 = vld [vmem:[%s309 + $0x160] sm:$0xff]
        %v370 = vld [vmem:[%s309 + $0x168] sm:$0xff]
        %v371 = vld [vmem:[%s309 + $0x170] sm:$0xff]
        %v372 = vld [vmem:[%s309 + $0x178] sm:$0xff]
        %v373 = vld [vmem:[%s309 + $0x180] sm:$0xff]
        %v374 = vld [vmem:[%s309 + $0x188] sm:$0xff]
        %v375 = vld [vmem:[%s309 + $0x190] sm:$0xff]
        %v376 = vld [vmem:[%s309 + $0x198] sm:$0xff]
        %v377 = vld [vmem:[%s309 + $0x1a0] sm:$0xff]
        %v378 = vld [vmem:[%s309 + $0x1a8] sm:$0xff]
        %v379 = vld [vmem:[%s309 + $0x1b0] sm:$0xff]
        %v380 = vld [vmem:[%s309 + $0x1b8] sm:$0xff]
        %v381 = vld [vmem:[%s309 + $0x1c0] sm:$0xff]
        %v382 = vld [vmem:[%s309 + $0x1c8] sm:$0xff]
        %v383 = vld [vmem:[%s309 + $0x1d0] sm:$0xff]
        %v384 = vld [vmem:[%s309 + $0x1d8] sm:$0xff]
        %v385 = vld [vmem:[%s309 + $0x1e0] sm:$0xff]
        %v386 = vld [vmem:[%s309 + $0x1e8] sm:$0xff]
        %v387 = vld [vmem:[%s309 + $0x1f0] sm:$0xff]
        %v388 = vld [vmem:[%s309 + $0x1f8] sm:$0xff]
        %v389 = vld [vmem:[%s309 + $0x200] sm:$0xff]
        %v390 = vld [vmem:[%s309 + $0x208] sm:$0xff]
        %v391 = vld [vmem:[%s309 + $0x210] sm:$0xff]
        %v392 = vld [vmem:[%s309 + $0x218] sm:$0xff]
        %v393 = vld [vmem:[%s309 + $0x220] sm:$0xff]
        %v394 = vld [vmem:[%s309 + $0x228] sm:$0xff]
        %v395 = vld [vmem:[%s309 + $0x230] sm:$0xff]
        %v396 = vld [vmem:[%s309 + $0x238] sm:$0xff]
        %v397 = vld [vmem:[%s309 + $0x240] sm:$0xff]
        %v398 = vld [vmem:[%s309 + $0x248] sm:$0xff]
        %v399 = vld [vmem:[%s309 + $0x250] sm:$0xff]
        %v400 = vld [vmem:[%s309 + $0x258] sm:$0xff]
        %v401 = vld [vmem:[%s309 + $0x260] sm:$0xff]
        %v402 = vld [vmem:[%s309 + $0x268] sm:$0xff]
        %v403 = vld [vmem:[%s309 + $0x270] sm:$0xff]
        %v404 = vld [vmem:[%s309 + $0x278] sm:$0xff]
        %v405 = vld [vmem:[%s309 + $0x280] sm:$0xff]
        %v406 = vld [vmem:[%s309 + $0x288] sm:$0xff]
        %v407 = vld [vmem:[%s309 + $0x290] sm:$0xff]
        %v408 = vld [vmem:[%s309 + $0x298] sm:$0xff]
        %v409 = vld [vmem:[%s309 + $0x2a0] sm:$0xff]
        %v410 = vld [vmem:[%s309 + $0x2a8] sm:$0xff]
        %v411 = vld [vmem:[%s309 + $0x2b0] sm:$0xff]
        %v412 = vld [vmem:[%s309 + $0x2b8] sm:$0xff]
        %v413 = vld [vmem:[%s309 + $0x2c0] sm:$0xff]
        %v414 = vld [vmem:[%s309 + $0x2c8] sm:$0xff]
        %v415 = vld [vmem:[%s309 + $0x2d0] sm:$0xff]
        %v416 = vld [vmem:[%s309 + $0x2d8] sm:$0xff]
        %v417 = vld [vmem:[%s309 + $0x2e0] sm:$0xff]
        %v418 = vld [vmem:[%s309 + $0x2e8] sm:$0xff]
        %v419 = vld [vmem:[%s309 + $0x2f0] sm:$0xff]
        %v420 = vld [vmem:[%s309 + $0x2f8] sm:$0xff]
        %v421 = vld [vmem:[%s309 + $0x300] sm:$0xff]
        %v422 = vld [vmem:[%s309 + $0x308] sm:$0xff]
        %v423 = vld [vmem:[%s309 + $0x310] sm:$0xff]
        %v424 = vld [vmem:[%s309 + $0x318] sm:$0xff]
        %v425 = vld [vmem:[%s309 + $0x320] sm:$0xff]
        %v426 = vld [vmem:[%s309 + $0x328] sm:$0xff]
        %v427 = vld [vmem:[%s309 + $0x330] sm:$0xff]
        %v428 = vld [vmem:[%s309 + $0x338] sm:$0xff]
        %v429 = vld [vmem:[%s309 + $0x340] sm:$0xff]
        %v430 = vld [vmem:[%s309 + $0x348] sm:$0xff]
        %v431 = vld [vmem:[%s309 + $0x350] sm:$0xff]
        %v432 = vld [vmem:[%s309 + $0x358] sm:$0xff]
        %v433 = vld [vmem:[%s309 + $0x360] sm:$0xff]
        %v434 = vld [vmem:[%s309 + $0x368] sm:$0xff]
        %v435 = vld [vmem:[%s309 + $0x370] sm:$0xff]
        %v436 = vld [vmem:[%s309 + $0x378] sm:$0xff]
        %v437 = vld [vmem:[%s309 + $0x380] sm:$0xff]
        %v438 = vld [vmem:[%s309 + $0x388] sm:$0xff]
        %v439 = vld [vmem:[%s309 + $0x390] sm:$0xff]
        %v440 = vld [vmem:[%s309 + $0x398] sm:$0xff]
        %v441 = vld [vmem:[%s309 + $0x3a0] sm:$0xff]
        %v442 = vld [vmem:[%s309 + $0x3a8] sm:$0xff]
        %v443 = vld [vmem:[%s309 + $0x3b0] sm:$0xff]
        %v444 = vld [vmem:[%s309 + $0x3b8] sm:$0xff]
        %v445 = vld [vmem:[%s309 + $0x3c0] sm:$0xff]
        %v446 = vld [vmem:[%s309 + $0x3c8] sm:$0xff]
        %v447 = vld [vmem:[%s309 + $0x3d0] sm:$0xff]
        %v448 = vld [vmem:[%s309 + $0x3d8] sm:$0xff]
        %v449 = vld [vmem:[%s309 + $0x3e0] sm:$0xff]
        %v450 = vld [vmem:[%s309 + $0x3e8] sm:$0xff]
        %v451 = vld [vmem:[%s309 + $0x3f0] sm:$0xff]
        %v452 = vld [vmem:[%s309 + $0x3f8] sm:$0xff]
        %p453 = scmp.lt.s32.totalorder %s29, 3
        // Predicated region
        $region45: #{tpu_custom_call.1} parent=39 // pred_check
          %p454 = pneg %p453
        $region46: #{tpu_custom_call.1} parent=39 // pred_check_branch
          %456 = sbr.rel (%p454) target = $region48
        $region47: #{tpu_custom_call.1} parent=39 // pred_region
          %v457 = vld [vmem:[#allocation2] sm:$0xff]
          %v458 = vld [vmem:[#allocation2 + $0x8] sm:$0xff]
          %v459 = vadd.f32 %v325, %v341
          %v460 = vadd.f32 %v459, %v357
          %v461 = vadd.f32 %v460, %v373
          %v462 = vadd.f32 %v461, %v389
          %v463 = vadd.f32 %v462, %v405
          %v464 = vadd.f32 %v463, %v421
          %v465 = vadd.f32 %v464, %v437
          %v466 = vrot.slane %v465, 4
          %v467 = vadd.f32 %v465, %v466
          %v468 = vrot.slane %v467, 2
          %v469 = vadd.f32 %v467, %v468
          %v470 = vrot.slane %v469, 1
          %v471 = vadd.f32 %v469, %v470
          %v472 = vadd.f32 %v326, %v342
          %v473 = vadd.f32 %v472, %v358
          %v474 = vadd.f32 %v473, %v374
          %v475 = vadd.f32 %v474, %v390
          %v476 = vadd.f32 %v475, %v406
          %v477 = vadd.f32 %v476, %v422
          %v478 = vadd.f32 %v477, %v438
          %v479 = vrot.slane %v478, 4
          %v480 = vadd.f32 %v478, %v479
          %v481 = vrot.slane %v480, 2
          %v482 = vadd.f32 %v480, %v481
          %v483 = vrot.slane %v482, 1
          %v484 = vadd.f32 %v482, %v483
          %v485 = vadd.f32 %v327, %v343
          %v486 = vadd.f32 %v485, %v359
          %v487 = vadd.f32 %v486, %v375
          %v488 = vadd.f32 %v487, %v391
          %v489 = vadd.f32 %v488, %v407
          %v490 = vadd.f32 %v489, %v423
          %v491 = vadd.f32 %v490, %v439
          %v492 = vrot.slane %v491, 4
          %v493 = vadd.f32 %v491, %v492
          %v494 = vrot.slane %v493, 2
          %v495 = vadd.f32 %v493, %v494
          %v496 = vrot.slane %v495, 1
          %v497 = vadd.f32 %v495, %v496
          %v498 = vadd.f32 %v328, %v344
          %v499 = vadd.f32 %v498, %v360
          %v500 = vadd.f32 %v499, %v376
          %v501 = vadd.f32 %v500, %v392
          %v502 = vadd.f32 %v501, %v408
          %v503 = vadd.f32 %v502, %v424
          %v504 = vadd.f32 %v503, %v440
          %v505 = vrot.slane %v504, 4
          %v506 = vadd.f32 %v504, %v505
          %v507 = vrot.slane %v506, 2
          %v508 = vadd.f32 %v506, %v507
          %v509 = vrot.slane %v508, 1
          %v510 = vadd.f32 %v508, %v509
          %v511 = vadd.f32 %v329, %v345
          %v512 = vadd.f32 %v511, %v361
          %v513 = vadd.f32 %v512, %v377
          %v514 = vadd.f32 %v513, %v393
          %v515 = vadd.f32 %v514, %v409
          %v516 = vadd.f32 %v515, %v425
          %v517 = vadd.f32 %v516, %v441
          %v518 = vrot.slane %v517, 4
          %v519 = vadd.f32 %v517, %v518
          %v520 = vrot.slane %v519, 2
          %v521 = vadd.f32 %v519, %v520
          %v522 = vrot.slane %v521, 1
          %v523 = vadd.f32 %v521, %v522
          %v524 = vadd.f32 %v330, %v346
          %v525 = vadd.f32 %v524, %v362
          %v526 = vadd.f32 %v525, %v378
          %v527 = vadd.f32 %v526, %v394
          %v528 = vadd.f32 %v527, %v410
          %v529 = vadd.f32 %v528, %v426
          %v530 = vadd.f32 %v529, %v442
          %v531 = vrot.slane %v530, 4
          %v532 = vadd.f32 %v530, %v531
          %v533 = vrot.slane %v532, 2
          %v534 = vadd.f32 %v532, %v533
          %v535 = vrot.slane %v534, 1
          %v536 = vadd.f32 %v534, %v535
          %v537 = vadd.f32 %v331, %v347
          %v538 = vadd.f32 %v537, %v363
          %v539 = vadd.f32 %v538, %v379
          %v540 = vadd.f32 %v539, %v395
          %v541 = vadd.f32 %v540, %v411
          %v542 = vadd.f32 %v541, %v427
          %v543 = vadd.f32 %v542, %v443
          %v544 = vrot.slane %v543, 4
          %v545 = vadd.f32 %v543, %v544
          %v546 = vrot.slane %v545, 2
          %v547 = vadd.f32 %v545, %v546
          %v548 = vrot.slane %v547, 1
          %v549 = vadd.f32 %v547, %v548
          %v550 = vadd.f32 %v332, %v348
          %v551 = vadd.f32 %v550, %v364
          %v552 = vadd.f32 %v551, %v380
          %v553 = vadd.f32 %v552, %v396
          %v554 = vadd.f32 %v553, %v412
          %v555 = vadd.f32 %v554, %v428
          %v556 = vadd.f32 %v555, %v444
          %v557 = vrot.slane %v556, 4
          %v558 = vadd.f32 %v556, %v557
          %v559 = vrot.slane %v558, 2
          %v560 = vadd.f32 %v558, %v559
          %v561 = vrot.slane %v560, 1
          %v562 = vadd.f32 %v560, %v561
          %v563 = vadd.f32 %v333, %v349
          %v564 = vadd.f32 %v563, %v365
          %v565 = vadd.f32 %v564, %v381
          %v566 = vadd.f32 %v565, %v397
          %v567 = vadd.f32 %v566, %v413
          %v568 = vadd.f32 %v567, %v429
          %v569 = vadd.f32 %v568, %v445
          %v570 = vrot.slane %v569, 4
          %v571 = vadd.f32 %v569, %v570
          %v572 = vrot.slane %v571, 2
          %v573 = vadd.f32 %v571, %v572
          %v574 = vrot.slane %v573, 1
          %v575 = vadd.f32 %v573, %v574
          %v576 = vadd.f32 %v334, %v350
          %v577 = vadd.f32 %v576, %v366
          %v578 = vadd.f32 %v577, %v382
          %v579 = vadd.f32 %v578, %v398
          %v580 = vadd.f32 %v579, %v414
          %v581 = vadd.f32 %v580, %v430
          %v582 = vadd.f32 %v581, %v446
          %v583 = vrot.slane %v582, 4
          %v584 = vadd.f32 %v582, %v583
          %v585 = vrot.slane %v584, 2
          %v586 = vadd.f32 %v584, %v585
          %v587 = vrot.slane %v586, 1
          %v588 = vadd.f32 %v586, %v587
          %v589 = vadd.f32 %v335, %v351
          %v590 = vadd.f32 %v589, %v367
          %v591 = vadd.f32 %v590, %v383
          %v592 = vadd.f32 %v591, %v399
          %v593 = vadd.f32 %v592, %v415
          %v594 = vadd.f32 %v593, %v431
          %v595 = vadd.f32 %v594, %v447
          %v596 = vrot.slane %v595, 4
          %v597 = vadd.f32 %v595, %v596
          %v598 = vrot.slane %v597, 2
          %v599 = vadd.f32 %v597, %v598
          %v600 = vrot.slane %v599, 1
          %v601 = vadd.f32 %v599, %v600
          %v602 = vadd.f32 %v336, %v352
          %v603 = vadd.f32 %v602, %v368
          %v604 = vadd.f32 %v603, %v384
          %v605 = vadd.f32 %v604, %v400
          %v606 = vadd.f32 %v605, %v416
          %v607 = vadd.f32 %v606, %v432
          %v608 = vadd.f32 %v607, %v448
          %v609 = vrot.slane %v608, 4
          %v610 = vadd.f32 %v608, %v609
          %v611 = vrot.slane %v610, 2
          %v612 = vadd.f32 %v610, %v611
          %v613 = vrot.slane %v612, 1
          %v614 = vadd.f32 %v612, %v613
          %v615 = vadd.f32 %v337, %v353
          %v616 = vadd.f32 %v615, %v369
          %v617 = vadd.f32 %v616, %v385
          %v618 = vadd.f32 %v617, %v401
          %v619 = vadd.f32 %v618, %v417
          %v620 = vadd.f32 %v619, %v433
          %v621 = vadd.f32 %v620, %v449
          %v622 = vrot.slane %v621, 4
          %v623 = vadd.f32 %v621, %v622
          %v624 = vrot.slane %v623, 2
          %v625 = vadd.f32 %v623, %v624
          %v626 = vrot.slane %v625, 1
          %v627 = vadd.f32 %v625, %v626
          %v628 = vadd.f32 %v338, %v354
          %v629 = vadd.f32 %v628, %v370
          %v630 = vadd.f32 %v629, %v386
          %v631 = vadd.f32 %v630, %v402
          %v632 = vadd.f32 %v631, %v418
          %v633 = vadd.f32 %v632, %v434
          %v634 = vadd.f32 %v633, %v450
          %v635 = vrot.slane %v634, 4
          %v636 = vadd.f32 %v634, %v635
          %v637 = vrot.slane %v636, 2
          %v638 = vadd.f32 %v636, %v637
          %v639 = vrot.slane %v638, 1
          %v640 = vadd.f32 %v638, %v639
          %v641 = vadd.f32 %v339, %v355
          %v642 = vadd.f32 %v641, %v371
          %v643 = vadd.f32 %v642, %v387
          %v644 = vadd.f32 %v643, %v403
          %v645 = vadd.f32 %v644, %v419
          %v646 = vadd.f32 %v645, %v435
          %v647 = vadd.f32 %v646, %v451
          %v648 = vrot.slane %v647, 4
          %v649 = vadd.f32 %v647, %v648
          %v650 = vrot.slane %v649, 2
          %v651 = vadd.f32 %v649, %v650
          %v652 = vrot.slane %v651, 1
          %v653 = vadd.f32 %v651, %v652
          %v654 = vadd.f32 %v340, %v356
          %v655 = vadd.f32 %v654, %v372
          %v656 = vadd.f32 %v655, %v388
          %v657 = vadd.f32 %v656, %v404
          %v658 = vadd.f32 %v657, %v420
          %v659 = vadd.f32 %v658, %v436
          %v660 = vadd.f32 %v659, %v452
          %v661 = vrot.slane %v660, 4
          %v662 = vadd.f32 %v660, %v661
          %v663 = vrot.slane %v662, 2
          %v664 = vadd.f32 %v662, %v663
          %v665 = vrot.slane %v664, 1
          %v666 = vadd.f32 %v664, %v665
          %v683 = vcombine.low %v471, %v484
          %v684 = vcombine.low %v497, %v510
          %v685 = vcombine.low %v523, %v536
          %v686 = vcombine.low %v549, %v562
          %v688 = vunpack.c.l.s4 1966171168
          %v689 = vunpack.c.0.s8 %v688
          %v690 = vlaneseq
          %v691 = vshrl.u32 %v690, 7
          %v692 = vsub.s32 %v689, %v691
          %v693 = vrot.slane %v683, %v692
          %v695 = vunpack.c.l.s4 1966171168
          %v696 = vunpack.c.0.s8 %v695
          %v697 = vlaneseq
          %v698 = vshrl.u32 %v697, 7
          %v699 = vsub.s32 %v696, %v698
          %v700 = vrot.slane %v684, %v699
          %v702 = vunpack.c.l.s4 1966171168
          %v703 = vunpack.c.0.s8 %v702
          %v704 = vlaneseq
          %v705 = vshrl.u32 %v704, 7
          %v706 = vsub.s32 %v703, %v705
          %v707 = vrot.slane %v685, %v706
          %v709 = vunpack.c.l.s4 1966171168
          %v710 = vunpack.c.0.s8 %v709
          %v711 = vlaneseq
          %v712 = vshrl.u32 %v711, 7
          %v713 = vsub.s32 %v710, %v712
          %v714 = vrot.slane %v686, %v713
          %v715 = vcombine.low %v693, %v700
          %v716 = vcombine.low %v707, %v714
          %v718 = vunpack.c.l.s4 1966171168
          %v719 = vunpack.c.0.s8 %v718
          %v720 = vlaneseq
          %v721 = vshrl.u32 %v720, 7
          %v722 = vsub.s32 %v719, %v721
          %v723 = vrot.slane %v715, %v722
          %v725 = vunpack.c.l.s4 1966171168
          %v726 = vunpack.c.0.s8 %v725
          %v727 = vlaneseq
          %v728 = vshrl.u32 %v727, 7
          %v729 = vsub.s32 %v726, %v728
          %v730 = vrot.slane %v716, %v729
          %v731 = vcombine.low %v723, %v730
          %v732 = vcombine.low %v575, %v588
          %v733 = vcombine.low %v601, %v614
          %v734 = vcombine.low %v627, %v640
          %v735 = vcombine.low %v653, %v666
          %v737 = vunpack.c.l.s4 1966171168
          %v738 = vunpack.c.0.s8 %v737
          %v739 = vlaneseq
          %v740 = vshrl.u32 %v739, 7
          %v741 = vsub.s32 %v738, %v740
          %v742 = vrot.slane %v732, %v741
          %v744 = vunpack.c.l.s4 1966171168
          %v745 = vunpack.c.0.s8 %v744
          %v746 = vlaneseq
          %v747 = vshrl.u32 %v746, 7
          %v748 = vsub.s32 %v745, %v747
          %v749 = vrot.slane %v733, %v748
          %v751 = vunpack.c.l.s4 1966171168
          %v752 = vunpack.c.0.s8 %v751
          %v753 = vlaneseq
          %v754 = vshrl.u32 %v753, 7
          %v755 = vsub.s32 %v752, %v754
          %v756 = vrot.slane %v734, %v755
          %v758 = vunpack.c.l.s4 1966171168
          %v759 = vunpack.c.0.s8 %v758
          %v760 = vlaneseq
          %v761 = vshrl.u32 %v760, 7
          %v762 = vsub.s32 %v759, %v761
          %v763 = vrot.slane %v735, %v762
          %v764 = vcombine.low %v742, %v749
          %v765 = vcombine.low %v756, %v763
          %v767 = vunpack.c.l.s4 1966171168
          %v768 = vunpack.c.0.s8 %v767
          %v769 = vlaneseq
          %v770 = vshrl.u32 %v769, 7
          %v771 = vsub.s32 %v768, %v770
          %v772 = vrot.slane %v764, %v771
          %v774 = vunpack.c.l.s4 1966171168
          %v775 = vunpack.c.0.s8 %v774
          %v776 = vlaneseq
          %v777 = vshrl.u32 %v776, 7
          %v778 = vsub.s32 %v775, %v777
          %v779 = vrot.slane %v765, %v778
          %v780 = vcombine.low %v772, %v779
          %v783 = vadd.f32 %v457, %v731
          %v784 = vadd.f32 %v458, %v780
          %785 = vst [vmem:[#allocation2] sm:$0xff] %v783
          %786 = vst [vmem:[#allocation2 + $0x8] sm:$0xff] %v784
          %v787 = vld [vmem:[#allocation3] sm:$0xff]
          %v788 = vld [vmem:[#allocation3 + $0x8] sm:$0xff]
          %v789 = vmax.f32 %v325, %v341
          %v790 = vmax.f32 %v789, %v357
          %v791 = vmax.f32 %v790, %v373
          %v792 = vmax.f32 %v791, %v389
          %v793 = vmax.f32 %v792, %v405
          %v794 = vmax.f32 %v793, %v421
          %v795 = vmax.f32 %v794, %v437
          %v796 = vrot.slane %v795, 4
          %v797 = vmax.f32 %v795, %v796
          %v798 = vrot.slane %v797, 2
          %v799 = vmax.f32 %v797, %v798
          %v800 = vrot.slane %v799, 1
          %v801 = vmax.f32 %v799, %v800
          %v802 = vmax.f32 %v326, %v342
          %v803 = vmax.f32 %v802, %v358
          %v804 = vmax.f32 %v803, %v374
          %v805 = vmax.f32 %v804, %v390
          %v806 = vmax.f32 %v805, %v406
          %v807 = vmax.f32 %v806, %v422
          %v808 = vmax.f32 %v807, %v438
          %v809 = vrot.slane %v808, 4
          %v810 = vmax.f32 %v808, %v809
          %v811 = vrot.slane %v810, 2
          %v812 = vmax.f32 %v810, %v811
          %v813 = vrot.slane %v812, 1
          %v814 = vmax.f32 %v812, %v813
          %v815 = vmax.f32 %v327, %v343
          %v816 = vmax.f32 %v815, %v359
          %v817 = vmax.f32 %v816, %v375
          %v818 = vmax.f32 %v817, %v391
          %v819 = vmax.f32 %v818, %v407
          %v820 = vmax.f32 %v819, %v423
          %v821 = vmax.f32 %v820, %v439
          %v822 = vrot.slane %v821, 4
          %v823 = vmax.f32 %v821, %v822
          %v824 = vrot.slane %v823, 2
          %v825 = vmax.f32 %v823, %v824
          %v826 = vrot.slane %v825, 1
          %v827 = vmax.f32 %v825, %v826
          %v828 = vmax.f32 %v328, %v344
          %v829 = vmax.f32 %v828, %v360
          %v830 = vmax.f32 %v829, %v376
          %v831 = vmax.f32 %v830, %v392
          %v832 = vmax.f32 %v831, %v408
          %v833 = vmax.f32 %v832, %v424
          %v834 = vmax.f32 %v833, %v440
          %v835 = vrot.slane %v834, 4
          %v836 = vmax.f32 %v834, %v835
          %v837 = vrot.slane %v836, 2
          %v838 = vmax.f32 %v836, %v837
          %v839 = vrot.slane %v838, 1
          %v840 = vmax.f32 %v838, %v839
          %v841 = vmax.f32 %v329, %v345
          %v842 = vmax.f32 %v841, %v361
          %v843 = vmax.f32 %v842, %v377
          %v844 = vmax.f32 %v843, %v393
          %v845 = vmax.f32 %v844, %v409
          %v846 = vmax.f32 %v845, %v425
          %v847 = vmax.f32 %v846, %v441
          %v848 = vrot.slane %v847, 4
          %v849 = vmax.f32 %v847, %v848
          %v850 = vrot.slane %v849, 2
          %v851 = vmax.f32 %v849, %v850
          %v852 = vrot.slane %v851, 1
          %v853 = vmax.f32 %v851, %v852
          %v854 = vmax.f32 %v330, %v346
          %v855 = vmax.f32 %v854, %v362
          %v856 = vmax.f32 %v855, %v378
          %v857 = vmax.f32 %v856, %v394
          %v858 = vmax.f32 %v857, %v410
          %v859 = vmax.f32 %v858, %v426
          %v860 = vmax.f32 %v859, %v442
          %v861 = vrot.slane %v860, 4
          %v862 = vmax.f32 %v860, %v861
          %v863 = vrot.slane %v862, 2
          %v864 = vmax.f32 %v862, %v863
          %v865 = vrot.slane %v864, 1
          %v866 = vmax.f32 %v864, %v865
          %v867 = vmax.f32 %v331, %v347
          %v868 = vmax.f32 %v867, %v363
          %v869 = vmax.f32 %v868, %v379
          %v870 = vmax.f32 %v869, %v395
          %v871 = vmax.f32 %v870, %v411
          %v872 = vmax.f32 %v871, %v427
          %v873 = vmax.f32 %v872, %v443
          %v874 = vrot.slane %v873, 4
          %v875 = vmax.f32 %v873, %v874
          %v876 = vrot.slane %v875, 2
          %v877 = vmax.f32 %v875, %v876
          %v878 = vrot.slane %v877, 1
          %v879 = vmax.f32 %v877, %v878
          %v880 = vmax.f32 %v332, %v348
          %v881 = vmax.f32 %v880, %v364
          %v882 = vmax.f32 %v881, %v380
          %v883 = vmax.f32 %v882, %v396
          %v884 = vmax.f32 %v883, %v412
          %v885 = vmax.f32 %v884, %v428
          %v886 = vmax.f32 %v885, %v444
          %v887 = vrot.slane %v886, 4
          %v888 = vmax.f32 %v886, %v887
          %v889 = vrot.slane %v888, 2
          %v890 = vmax.f32 %v888, %v889
          %v891 = vrot.slane %v890, 1
          %v892 = vmax.f32 %v890, %v891
          %v893 = vmax.f32 %v333, %v349
          %v894 = vmax.f32 %v893, %v365
          %v895 = vmax.f32 %v894, %v381
          %v896 = vmax.f32 %v895, %v397
          %v897 = vmax.f32 %v896, %v413
          %v898 = vmax.f32 %v897, %v429
          %v899 = vmax.f32 %v898, %v445
          %v900 = vrot.slane %v899, 4
          %v901 = vmax.f32 %v899, %v900
          %v902 = vrot.slane %v901, 2
          %v903 = vmax.f32 %v901, %v902
          %v904 = vrot.slane %v903, 1
          %v905 = vmax.f32 %v903, %v904
          %v906 = vmax.f32 %v334, %v350
          %v907 = vmax.f32 %v906, %v366
          %v908 = vmax.f32 %v907, %v382
          %v909 = vmax.f32 %v908, %v398
          %v910 = vmax.f32 %v909, %v414
          %v911 = vmax.f32 %v910, %v430
          %v912 = vmax.f32 %v911, %v446
          %v913 = vrot.slane %v912, 4
          %v914 = vmax.f32 %v912, %v913
          %v915 = vrot.slane %v914, 2
          %v916 = vmax.f32 %v914, %v915
          %v917 = vrot.slane %v916, 1
          %v918 = vmax.f32 %v916, %v917
          %v919 = vmax.f32 %v335, %v351
          %v920 = vmax.f32 %v919, %v367
          %v921 = vmax.f32 %v920, %v383
          %v922 = vmax.f32 %v921, %v399
          %v923 = vmax.f32 %v922, %v415
          %v924 = vmax.f32 %v923, %v431
          %v925 = vmax.f32 %v924, %v447
          %v926 = vrot.slane %v925, 4
          %v927 = vmax.f32 %v925, %v926
          %v928 = vrot.slane %v927, 2
          %v929 = vmax.f32 %v927, %v928
          %v930 = vrot.slane %v929, 1
          %v931 = vmax.f32 %v929, %v930
          %v932 = vmax.f32 %v336, %v352
          %v933 = vmax.f32 %v932, %v368
          %v934 = vmax.f32 %v933, %v384
          %v935 = vmax.f32 %v934, %v400
          %v936 = vmax.f32 %v935, %v416
          %v937 = vmax.f32 %v936, %v432
          %v938 = vmax.f32 %v937, %v448
          %v939 = vrot.slane %v938, 4
          %v940 = vmax.f32 %v938, %v939
          %v941 = vrot.slane %v940, 2
          %v942 = vmax.f32 %v940, %v941
          %v943 = vrot.slane %v942, 1
          %v944 = vmax.f32 %v942, %v943
          %v945 = vmax.f32 %v337, %v353
          %v946 = vmax.f32 %v945, %v369
          %v947 = vmax.f32 %v946, %v385
          %v948 = vmax.f32 %v947, %v401
          %v949 = vmax.f32 %v948, %v417
          %v950 = vmax.f32 %v949, %v433
          %v951 = vmax.f32 %v950, %v449
          %v952 = vrot.slane %v951, 4
          %v953 = vmax.f32 %v951, %v952
          %v954 = vrot.slane %v953, 2
          %v955 = vmax.f32 %v953, %v954
          %v956 = vrot.slane %v955, 1
          %v957 = vmax.f32 %v955, %v956
          %v958 = vmax.f32 %v338, %v354
          %v959 = vmax.f32 %v958, %v370
          %v960 = vmax.f32 %v959, %v386
          %v961 = vmax.f32 %v960, %v402
          %v962 = vmax.f32 %v961, %v418
          %v963 = vmax.f32 %v962, %v434
          %v964 = vmax.f32 %v963, %v450
          %v965 = vrot.slane %v964, 4
          %v966 = vmax.f32 %v964, %v965
          %v967 = vrot.slane %v966, 2
          %v968 = vmax.f32 %v966, %v967
          %v969 = vrot.slane %v968, 1
          %v970 = vmax.f32 %v968, %v969
          %v971 = vmax.f32 %v339, %v355
          %v972 = vmax.f32 %v971, %v371
          %v973 = vmax.f32 %v972, %v387
          %v974 = vmax.f32 %v973, %v403
          %v975 = vmax.f32 %v974, %v419
          %v976 = vmax.f32 %v975, %v435
          %v977 = vmax.f32 %v976, %v451
          %v978 = vrot.slane %v977, 4
          %v979 = vmax.f32 %v977, %v978
          %v980 = vrot.slane %v979, 2
          %v981 = vmax.f32 %v979, %v980
          %v982 = vrot.slane %v981, 1
          %v983 = vmax.f32 %v981, %v982
          %v984 = vmax.f32 %v340, %v356
          %v985 = vmax.f32 %v984, %v372
          %v986 = vmax.f32 %v985, %v388
          %v987 = vmax.f32 %v986, %v404
          %v988 = vmax.f32 %v987, %v420
          %v989 = vmax.f32 %v988, %v436
          %v990 = vmax.f32 %v989, %v452
          %v991 = vrot.slane %v990, 4
          %v992 = vmax.f32 %v990, %v991
          %v993 = vrot.slane %v992, 2
          %v994 = vmax.f32 %v992, %v993
          %v995 = vrot.slane %v994, 1
          %v996 = vmax.f32 %v994, %v995
          %v1013 = vcombine.low %v801, %v814
          %v1014 = vcombine.low %v827, %v840
          %v1015 = vcombine.low %v853, %v866
          %v1016 = vcombine.low %v879, %v892
          %v1018 = vunpack.c.l.s4 1966171168
          %v1019 = vunpack.c.0.s8 %v1018
          %v1020 = vlaneseq
          %v1021 = vshrl.u32 %v1020, 7
          %v1022 = vsub.s32 %v1019, %v1021
          %v1023 = vrot.slane %v1013, %v1022
          %v1025 = vunpack.c.l.s4 1966171168
          %v1026 = vunpack.c.0.s8 %v1025
          %v1027 = vlaneseq
          %v1028 = vshrl.u32 %v1027, 7
          %v1029 = vsub.s32 %v1026, %v1028
          %v1030 = vrot.slane %v1014, %v1029
          %v1032 = vunpack.c.l.s4 1966171168
          %v1033 = vunpack.c.0.s8 %v1032
          %v1034 = vlaneseq
          %v1035 = vshrl.u32 %v1034, 7
          %v1036 = vsub.s32 %v1033, %v1035
          %v1037 = vrot.slane %v1015, %v1036
          %v1039 = vunpack.c.l.s4 1966171168
          %v1040 = vunpack.c.0.s8 %v1039
          %v1041 = vlaneseq
          %v1042 = vshrl.u32 %v1041, 7
          %v1043 = vsub.s32 %v1040, %v1042
          %v1044 = vrot.slane %v1016, %v1043
          %v1045 = vcombine.low %v1023, %v1030
          %v1046 = vcombine.low %v1037, %v1044
          %v1048 = vunpack.c.l.s4 1966171168
          %v1049 = vunpack.c.0.s8 %v1048
          %v1050 = vlaneseq
          %v1051 = vshrl.u32 %v1050, 7
          %v1052 = vsub.s32 %v1049, %v1051
          %v1053 = vrot.slane %v1045, %v1052
          %v1055 = vunpack.c.l.s4 1966171168
          %v1056 = vunpack.c.0.s8 %v1055
          %v1057 = vlaneseq
          %v1058 = vshrl.u32 %v1057, 7
          %v1059 = vsub.s32 %v1056, %v1058
          %v1060 = vrot.slane %v1046, %v1059
          %v1061 = vcombine.low %v1053, %v1060
          %v1062 = vcombine.low %v905, %v918
          %v1063 = vcombine.low %v931, %v944
          %v1064 = vcombine.low %v957, %v970
          %v1065 = vcombine.low %v983, %v996
          %v1067 = vunpack.c.l.s4 1966171168
          %v1068 = vunpack.c.0.s8 %v1067
          %v1069 = vlaneseq
          %v1070 = vshrl.u32 %v1069, 7
          %v1071 = vsub.s32 %v1068, %v1070
          %v1072 = vrot.slane %v1062, %v1071
          %v1074 = vunpack.c.l.s4 1966171168
          %v1075 = vunpack.c.0.s8 %v1074
          %v1076 = vlaneseq
          %v1077 = vshrl.u32 %v1076, 7
          %v1078 = vsub.s32 %v1075, %v1077
          %v1079 = vrot.slane %v1063, %v1078
          %v1081 = vunpack.c.l.s4 1966171168
          %v1082 = vunpack.c.0.s8 %v1081
          %v1083 = vlaneseq
          %v1084 = vshrl.u32 %v1083, 7
          %v1085 = vsub.s32 %v1082, %v1084
          %v1086 = vrot.slane %v1064, %v1085
          %v1088 = vunpack.c.l.s4 1966171168
          %v1089 = vunpack.c.0.s8 %v1088
          %v1090 = vlaneseq
          %v1091 = vshrl.u32 %v1090, 7
          %v1092 = vsub.s32 %v1089, %v1091
          %v1093 = vrot.slane %v1065, %v1092
          %v1094 = vcombine.low %v1072, %v1079
          %v1095 = vcombine.low %v1086, %v1093
          %v1097 = vunpack.c.l.s4 1966171168
          %v1098 = vunpack.c.0.s8 %v1097
          %v1099 = vlaneseq
          %v1100 = vshrl.u32 %v1099, 7
          %v1101 = vsub.s32 %v1098, %v1100
          %v1102 = vrot.slane %v1094, %v1101
          %v1104 = vunpack.c.l.s4 1966171168
          %v1105 = vunpack.c.0.s8 %v1104
          %v1106 = vlaneseq
          %v1107 = vshrl.u32 %v1106, 7
          %v1108 = vsub.s32 %v1105, %v1107
          %v1109 = vrot.slane %v1095, %v1108
          %v1110 = vcombine.low %v1102, %v1109
          %v1113 = vmax.f32 %v787, %v1061
          %v1114 = vmax.f32 %v788, %v1110
          %1115 = vst [vmem:[#allocation3] sm:$0xff] %v1113
          %1116 = vst [vmem:[#allocation3 + $0x8] sm:$0xff] %v1114
        $region48: #{tpu_custom_call.1} parent=39 // pred_fallthru
          _
        %p1117 = scmp.eq.s32.totalorder %s29, 3
        // Predicated region
        $region49: #{tpu_custom_call.1} parent=39 // pred_check
          %p1118 = pneg %p1117
        $region50: #{tpu_custom_call.1} parent=39 // pred_check_branch
          %1120 = sbr.rel (%p1118) target = $region52
        $region51: #{tpu_custom_call.1} parent=39 // pred_region
          %v1121 = vlaneseq
          %v1122 = vshrl.u32 %v1121, 7
          %v1123 = vadd.s32 %v1122, 8
          %v1124 = vadd.s32 %v1122, 16
          %v1125 = vadd.s32 %v1122, 24
          %v1126 = vadd.s32 %v1122, 32
          %v1127 = vadd.s32 %v1122, 40
          %v1128 = vadd.s32 %v1122, 48
          %v1129 = vadd.s32 %v1122, 56
          %s1130 = smul.u32 %s29, 64
          %v1131 = vstv %s1130
          %v1132 = vadd.s32 %v1131, %v1122
          %v1133 = vadd.s32 %v1131, %v1123
          %v1134 = vadd.s32 %v1131, %v1124
          %v1135 = vadd.s32 %v1131, %v1125
          %v1136 = vadd.s32 %v1131, %v1126
          %v1137 = vadd.s32 %v1131, %v1127
          %v1138 = vadd.s32 %v1131, %v1128
          %v1139 = vadd.s32 %v1131, %v1129
          %vm1140 = vcmp.lt.s32.totalorder %v1132, 196
          %vm1141 = vcmp.lt.s32.totalorder %v1133, 196
          %vm1142 = vcmp.lt.s32.totalorder %v1134, 196
          %vm1143 = vcmp.lt.s32.totalorder %v1135, 196
          %vm1144 = vcmp.lt.s32.totalorder %v1136, 196
          %vm1145 = vcmp.lt.s32.totalorder %v1137, 196
          %vm1146 = vcmp.lt.s32.totalorder %v1138, 196
          %vm1147 = vcmp.lt.s32.totalorder %v1139, 196
          %v1148 = vld [vmem:[#allocation2] sm:$0xff]
          %v1149 = vld [vmem:[#allocation2 + $0x8] sm:$0xff]
          %v1150 = vsel %vm1140, 1, 0
          %v1151 = vsel %vm1141, 1, 0
          %v1152 = vsel %vm1142, 1, 0
          %v1153 = vsel %vm1143, 1, 0
          %v1154 = vsel %vm1144, 1, 0
          %v1155 = vsel %vm1145, 1, 0
          %v1156 = vsel %vm1146, 1, 0
          %v1157 = vsel %vm1147, 1, 0
          %vm1158 = vcmp.eq.s32.totalorder %v1150, 1
          %vm1159 = vcmp.eq.s32.totalorder %v1151, 1
          %vm1160 = vcmp.eq.s32.totalorder %v1152, 1
          %vm1161 = vcmp.eq.s32.totalorder %v1153, 1
          %vm1162 = vcmp.eq.s32.totalorder %v1154, 1
          %vm1163 = vcmp.eq.s32.totalorder %v1155, 1
          %vm1164 = vcmp.eq.s32.totalorder %v1156, 1
          %vm1165 = vcmp.eq.s32.totalorder %v1157, 1
          %v1166 = vsel %vm1158, %v325, 0.0
          %v1167 = vsel %vm1158, %v326, 0.0
          %v1168 = vsel %vm1158, %v327, 0.0
          %v1169 = vsel %vm1158, %v328, 0.0
          %v1170 = vsel %vm1158, %v329, 0.0
          %v1171 = vsel %vm1158, %v330, 0.0
          %v1172 = vsel %vm1158, %v331, 0.0
          %v1173 = vsel %vm1158, %v332, 0.0
          %v1174 = vsel %vm1158, %v333, 0.0
          %v1175 = vsel %vm1158, %v334, 0.0
          %v1176 = vsel %vm1158, %v335, 0.0
          %v1177 = vsel %vm1158, %v336, 0.0
          %v1178 = vsel %vm1158, %v337, 0.0
          %v1179 = vsel %vm1158, %v338, 0.0
          %v1180 = vsel %vm1158, %v339, 0.0
          %v1181 = vsel %vm1158, %v340, 0.0
          %v1182 = vsel %vm1159, %v341, 0.0
          %v1183 = vsel %vm1159, %v342, 0.0
          %v1184 = vsel %vm1159, %v343, 0.0
          %v1185 = vsel %vm1159, %v344, 0.0
          %v1186 = vsel %vm1159, %v345, 0.0
          %v1187 = vsel %vm1159, %v346, 0.0
          %v1188 = vsel %vm1159, %v347, 0.0
          %v1189 = vsel %vm1159, %v348, 0.0
          %v1190 = vsel %vm1159, %v349, 0.0
          %v1191 = vsel %vm1159, %v350, 0.0
          %v1192 = vsel %vm1159, %v351, 0.0
          %v1193 = vsel %vm1159, %v352, 0.0
          %v1194 = vsel %vm1159, %v353, 0.0
          %v1195 = vsel %vm1159, %v354, 0.0
          %v1196 = vsel %vm1159, %v355, 0.0
          %v1197 = vsel %vm1159, %v356, 0.0
          %v1198 = vsel %vm1160, %v357, 0.0
          %v1199 = vsel %vm1160, %v358, 0.0
          %v1200 = vsel %vm1160, %v359, 0.0
          %v1201 = vsel %vm1160, %v360, 0.0
          %v1202 = vsel %vm1160, %v361, 0.0
          %v1203 = vsel %vm1160, %v362, 0.0
          %v1204 = vsel %vm1160, %v363, 0.0
          %v1205 = vsel %vm1160, %v364, 0.0
          %v1206 = vsel %vm1160, %v365, 0.0
          %v1207 = vsel %vm1160, %v366, 0.0
          %v1208 = vsel %vm1160, %v367, 0.0
          %v1209 = vsel %vm1160, %v368, 0.0
          %v1210 = vsel %vm1160, %v369, 0.0
          %v1211 = vsel %vm1160, %v370, 0.0
          %v1212 = vsel %vm1160, %v371, 0.0
          %v1213 = vsel %vm1160, %v372, 0.0
          %v1214 = vsel %vm1161, %v373, 0.0
          %v1215 = vsel %vm1161, %v374, 0.0
          %v1216 = vsel %vm1161, %v375, 0.0
          %v1217 = vsel %vm1161, %v376, 0.0
          %v1218 = vsel %vm1161, %v377, 0.0
          %v1219 = vsel %vm1161, %v378, 0.0
          %v1220 = vsel %vm1161, %v379, 0.0
          %v1221 = vsel %vm1161, %v380, 0.0
          %v1222 = vsel %vm1161, %v381, 0.0
          %v1223 = vsel %vm1161, %v382, 0.0
          %v1224 = vsel %vm1161, %v383, 0.0
          %v1225 = vsel %vm1161, %v384, 0.0
          %v1226 = vsel %vm1161, %v385, 0.0
          %v1227 = vsel %vm1161, %v386, 0.0
          %v1228 = vsel %vm1161, %v387, 0.0
          %v1229 = vsel %vm1161, %v388, 0.0
          %v1230 = vsel %vm1162, %v389, 0.0
          %v1231 = vsel %vm1162, %v390, 0.0
          %v1232 = vsel %vm1162, %v391, 0.0
          %v1233 = vsel %vm1162, %v392, 0.0
          %v1234 = vsel %vm1162, %v393, 0.0
          %v1235 = vsel %vm1162, %v394, 0.0
          %v1236 = vsel %vm1162, %v395, 0.0
          %v1237 = vsel %vm1162, %v396, 0.0
          %v1238 = vsel %vm1162, %v397, 0.0
          %v1239 = vsel %vm1162, %v398, 0.0
          %v1240 = vsel %vm1162, %v399, 0.0
          %v1241 = vsel %vm1162, %v400, 0.0
          %v1242 = vsel %vm1162, %v401, 0.0
          %v1243 = vsel %vm1162, %v402, 0.0
          %v1244 = vsel %vm1162, %v403, 0.0
          %v1245 = vsel %vm1162, %v404, 0.0
          %v1246 = vsel %vm1163, %v405, 0.0
          %v1247 = vsel %vm1163, %v406, 0.0
          %v1248 = vsel %vm1163, %v407, 0.0
          %v1249 = vsel %vm1163, %v408, 0.0
          %v1250 = vsel %vm1163, %v409, 0.0
          %v1251 = vsel %vm1163, %v410, 0.0
          %v1252 = vsel %vm1163, %v411, 0.0
          %v1253 = vsel %vm1163, %v412, 0.0
          %v1254 = vsel %vm1163, %v413, 0.0
          %v1255 = vsel %vm1163, %v414, 0.0
          %v1256 = vsel %vm1163, %v415, 0.0
          %v1257 = vsel %vm1163, %v416, 0.0
          %v1258 = vsel %vm1163, %v417, 0.0
          %v1259 = vsel %vm1163, %v418, 0.0
          %v1260 = vsel %vm1163, %v419, 0.0
          %v1261 = vsel %vm1163, %v420, 0.0
          %v1262 = vsel %vm1164, %v421, 0.0
          %v1263 = vsel %vm1164, %v422, 0.0
          %v1264 = vsel %vm1164, %v423, 0.0
          %v1265 = vsel %vm1164, %v424, 0.0
          %v1266 = vsel %vm1164, %v425, 0.0
          %v1267 = vsel %vm1164, %v426, 0.0
          %v1268 = vsel %vm1164, %v427, 0.0
          %v1269 = vsel %vm1164, %v428, 0.0
          %v1270 = vsel %vm1164, %v429, 0.0
          %v1271 = vsel %vm1164, %v430, 0.0
          %v1272 = vsel %vm1164, %v431, 0.0
          %v1273 = vsel %vm1164, %v432, 0.0
          %v1274 = vsel %vm1164, %v433, 0.0
          %v1275 = vsel %vm1164, %v434, 0.0
          %v1276 = vsel %vm1164, %v435, 0.0
          %v1277 = vsel %vm1164, %v436, 0.0
          %v1278 = vsel %vm1165, %v437, 0.0
          %v1279 = vsel %vm1165, %v438, 0.0
          %v1280 = vsel %vm1165, %v439, 0.0
          %v1281 = vsel %vm1165, %v440, 0.0
          %v1282 = vsel %vm1165, %v441, 0.0
          %v1283 = vsel %vm1165, %v442, 0.0
          %v1284 = vsel %vm1165, %v443, 0.0
          %v1285 = vsel %vm1165, %v444, 0.0
          %v1286 = vsel %vm1165, %v445, 0.0
          %v1287 = vsel %vm1165, %v446, 0.0
          %v1288 = vsel %vm1165, %v447, 0.0
          %v1289 = vsel %vm1165, %v448, 0.0
          %v1290 = vsel %vm1165, %v449, 0.0
          %v1291 = vsel %vm1165, %v450, 0.0
          %v1292 = vsel %vm1165, %v451, 0.0
          %v1293 = vsel %vm1165, %v452, 0.0
          %v1294 = vadd.f32 %v1166, %v1182
          %v1295 = vadd.f32 %v1294, %v1198
          %v1296 = vadd.f32 %v1295, %v1214
          %v1297 = vadd.f32 %v1296, %v1230
          %v1298 = vadd.f32 %v1297, %v1246
          %v1299 = vadd.f32 %v1298, %v1262
          %v1300 = vadd.f32 %v1299, %v1278
          %v1301 = vrot.slane %v1300, 4
          %v1302 = vadd.f32 %v1300, %v1301
          %v1303 = vrot.slane %v1302, 2
          %v1304 = vadd.f32 %v1302, %v1303
          %v1305 = vrot.slane %v1304, 1
          %v1306 = vadd.f32 %v1304, %v1305
          %v1307 = vadd.f32 %v1167, %v1183
          %v1308 = vadd.f32 %v1307, %v1199
          %v1309 = vadd.f32 %v1308, %v1215
          %v1310 = vadd.f32 %v1309, %v1231
          %v1311 = vadd.f32 %v1310, %v1247
          %v1312 = vadd.f32 %v1311, %v1263
          %v1313 = vadd.f32 %v1312, %v1279
          %v1314 = vrot.slane %v1313, 4
          %v1315 = vadd.f32 %v1313, %v1314
          %v1316 = vrot.slane %v1315, 2
          %v1317 = vadd.f32 %v1315, %v1316
          %v1318 = vrot.slane %v1317, 1
          %v1319 = vadd.f32 %v1317, %v1318
          %v1320 = vadd.f32 %v1168, %v1184
          %v1321 = vadd.f32 %v1320, %v1200
          %v1322 = vadd.f32 %v1321, %v1216
          %v1323 = vadd.f32 %v1322, %v1232
          %v1324 = vadd.f32 %v1323, %v1248
          %v1325 = vadd.f32 %v1324, %v1264
          %v1326 = vadd.f32 %v1325, %v1280
          %v1327 = vrot.slane %v1326, 4
          %v1328 = vadd.f32 %v1326, %v1327
          %v1329 = vrot.slane %v1328, 2
          %v1330 = vadd.f32 %v1328, %v1329
          %v1331 = vrot.slane %v1330, 1
          %v1332 = vadd.f32 %v1330, %v1331
          %v1333 = vadd.f32 %v1169, %v1185
          %v1334 = vadd.f32 %v1333, %v1201
          %v1335 = vadd.f32 %v1334, %v1217
          %v1336 = vadd.f32 %v1335, %v1233
          %v1337 = vadd.f32 %v1336, %v1249
          %v1338 = vadd.f32 %v1337, %v1265
          %v1339 = vadd.f32 %v1338, %v1281
          %v1340 = vrot.slane %v1339, 4
          %v1341 = vadd.f32 %v1339, %v1340
          %v1342 = vrot.slane %v1341, 2
          %v1343 = vadd.f32 %v1341, %v1342
          %v1344 = vrot.slane %v1343, 1
          %v1345 = vadd.f32 %v1343, %v1344
          %v1346 = vadd.f32 %v1170, %v1186
          %v1347 = vadd.f32 %v1346, %v1202
          %v1348 = vadd.f32 %v1347, %v1218
          %v1349 = vadd.f32 %v1348, %v1234
          %v1350 = vadd.f32 %v1349, %v1250
          %v1351 = vadd.f32 %v1350, %v1266
          %v1352 = vadd.f32 %v1351, %v1282
          %v1353 = vrot.slane %v1352, 4
          %v1354 = vadd.f32 %v1352, %v1353
          %v1355 = vrot.slane %v1354, 2
          %v1356 = vadd.f32 %v1354, %v1355
          %v1357 = vrot.slane %v1356, 1
          %v1358 = vadd.f32 %v1356, %v1357
          %v1359 = vadd.f32 %v1171, %v1187
          %v1360 = vadd.f32 %v1359, %v1203
          %v1361 = vadd.f32 %v1360, %v1219
          %v1362 = vadd.f32 %v1361, %v1235
          %v1363 = vadd.f32 %v1362, %v1251
          %v1364 = vadd.f32 %v1363, %v1267
          %v1365 = vadd.f32 %v1364, %v1283
          %v1366 = vrot.slane %v1365, 4
          %v1367 = vadd.f32 %v1365, %v1366
          %v1368 = vrot.slane %v1367, 2
          %v1369 = vadd.f32 %v1367, %v1368
          %v1370 = vrot.slane %v1369, 1
          %v1371 = vadd.f32 %v1369, %v1370
          %v1372 = vadd.f32 %v1172, %v1188
          %v1373 = vadd.f32 %v1372, %v1204
          %v1374 = vadd.f32 %v1373, %v1220
          %v1375 = vadd.f32 %v1374, %v1236
          %v1376 = vadd.f32 %v1375, %v1252
          %v1377 = vadd.f32 %v1376, %v1268
          %v1378 = vadd.f32 %v1377, %v1284
          %v1379 = vrot.slane %v1378, 4
          %v1380 = vadd.f32 %v1378, %v1379
          %v1381 = vrot.slane %v1380, 2
          %v1382 = vadd.f32 %v1380, %v1381
          %v1383 = vrot.slane %v1382, 1
          %v1384 = vadd.f32 %v1382, %v1383
          %v1385 = vadd.f32 %v1173, %v1189
          %v1386 = vadd.f32 %v1385, %v1205
          %v1387 = vadd.f32 %v1386, %v1221
          %v1388 = vadd.f32 %v1387, %v1237
          %v1389 = vadd.f32 %v1388, %v1253
          %v1390 = vadd.f32 %v1389, %v1269
          %v1391 = vadd.f32 %v1390, %v1285
          %v1392 = vrot.slane %v1391, 4
          %v1393 = vadd.f32 %v1391, %v1392
          %v1394 = vrot.slane %v1393, 2
          %v1395 = vadd.f32 %v1393, %v1394
          %v1396 = vrot.slane %v1395, 1
          %v1397 = vadd.f32 %v1395, %v1396
          %v1398 = vadd.f32 %v1174, %v1190
          %v1399 = vadd.f32 %v1398, %v1206
          %v1400 = vadd.f32 %v1399, %v1222
          %v1401 = vadd.f32 %v1400, %v1238
          %v1402 = vadd.f32 %v1401, %v1254
          %v1403 = vadd.f32 %v1402, %v1270
          %v1404 = vadd.f32 %v1403, %v1286
          %v1405 = vrot.slane %v1404, 4
          %v1406 = vadd.f32 %v1404, %v1405
          %v1407 = vrot.slane %v1406, 2
          %v1408 = vadd.f32 %v1406, %v1407
          %v1409 = vrot.slane %v1408, 1
          %v1410 = vadd.f32 %v1408, %v1409
          %v1411 = vadd.f32 %v1175, %v1191
          %v1412 = vadd.f32 %v1411, %v1207
          %v1413 = vadd.f32 %v1412, %v1223
          %v1414 = vadd.f32 %v1413, %v1239
          %v1415 = vadd.f32 %v1414, %v1255
          %v1416 = vadd.f32 %v1415, %v1271
          %v1417 = vadd.f32 %v1416, %v1287
          %v1418 = vrot.slane %v1417, 4
          %v1419 = vadd.f32 %v1417, %v1418
          %v1420 = vrot.slane %v1419, 2
          %v1421 = vadd.f32 %v1419, %v1420
          %v1422 = vrot.slane %v1421, 1
          %v1423 = vadd.f32 %v1421, %v1422
          %v1424 = vadd.f32 %v1176, %v1192
          %v1425 = vadd.f32 %v1424, %v1208
          %v1426 = vadd.f32 %v1425, %v1224
          %v1427 = vadd.f32 %v1426, %v1240
          %v1428 = vadd.f32 %v1427, %v1256
          %v1429 = vadd.f32 %v1428, %v1272
          %v1430 = vadd.f32 %v1429, %v1288
          %v1431 = vrot.slane %v1430, 4
          %v1432 = vadd.f32 %v1430, %v1431
          %v1433 = vrot.slane %v1432, 2
          %v1434 = vadd.f32 %v1432, %v1433
          %v1435 = vrot.slane %v1434, 1
          %v1436 = vadd.f32 %v1434, %v1435
          %v1437 = vadd.f32 %v1177, %v1193
          %v1438 = vadd.f32 %v1437, %v1209
          %v1439 = vadd.f32 %v1438, %v1225
          %v1440 = vadd.f32 %v1439, %v1241
          %v1441 = vadd.f32 %v1440, %v1257
          %v1442 = vadd.f32 %v1441, %v1273
          %v1443 = vadd.f32 %v1442, %v1289
          %v1444 = vrot.slane %v1443, 4
          %v1445 = vadd.f32 %v1443, %v1444
          %v1446 = vrot.slane %v1445, 2
          %v1447 = vadd.f32 %v1445, %v1446
          %v1448 = vrot.slane %v1447, 1
          %v1449 = vadd.f32 %v1447, %v1448
          %v1450 = vadd.f32 %v1178, %v1194
          %v1451 = vadd.f32 %v1450, %v1210
          %v1452 = vadd.f32 %v1451, %v1226
          %v1453 = vadd.f32 %v1452, %v1242
          %v1454 = vadd.f32 %v1453, %v1258
          %v1455 = vadd.f32 %v1454, %v1274
          %v1456 = vadd.f32 %v1455, %v1290
          %v1457 = vrot.slane %v1456, 4
          %v1458 = vadd.f32 %v1456, %v1457
          %v1459 = vrot.slane %v1458, 2
          %v1460 = vadd.f32 %v1458, %v1459
          %v1461 = vrot.slane %v1460, 1
          %v1462 = vadd.f32 %v1460, %v1461
          %v1463 = vadd.f32 %v1179, %v1195
          %v1464 = vadd.f32 %v1463, %v1211
          %v1465 = vadd.f32 %v1464, %v1227
          %v1466 = vadd.f32 %v1465, %v1243
          %v1467 = vadd.f32 %v1466, %v1259
          %v1468 = vadd.f32 %v1467, %v1275
          %v1469 = vadd.f32 %v1468, %v1291
          %v1470 = vrot.slane %v1469, 4
          %v1471 = vadd.f32 %v1469, %v1470
          %v1472 = vrot.slane %v1471, 2
          %v1473 = vadd.f32 %v1471, %v1472
          %v1474 = vrot.slane %v1473, 1
          %v1475 = vadd.f32 %v1473, %v1474
          %v1476 = vadd.f32 %v1180, %v1196
          %v1477 = vadd.f32 %v1476, %v1212
          %v1478 = vadd.f32 %v1477, %v1228
          %v1479 = vadd.f32 %v1478, %v1244
          %v1480 = vadd.f32 %v1479, %v1260
          %v1481 = vadd.f32 %v1480, %v1276
          %v1482 = vadd.f32 %v1481, %v1292
          %v1483 = vrot.slane %v1482, 4
          %v1484 = vadd.f32 %v1482, %v1483
          %v1485 = vrot.slane %v1484, 2
          %v1486 = vadd.f32 %v1484, %v1485
          %v1487 = vrot.slane %v1486, 1
          %v1488 = vadd.f32 %v1486, %v1487
          %v1489 = vadd.f32 %v1181, %v1197
          %v1490 = vadd.f32 %v1489, %v1213
          %v1491 = vadd.f32 %v1490, %v1229
          %v1492 = vadd.f32 %v1491, %v1245
          %v1493 = vadd.f32 %v1492, %v1261
          %v1494 = vadd.f32 %v1493, %v1277
          %v1495 = vadd.f32 %v1494, %v1293
          %v1496 = vrot.slane %v1495, 4
          %v1497 = vadd.f32 %v1495, %v1496
          %v1498 = vrot.slane %v1497, 2
          %v1499 = vadd.f32 %v1497, %v1498
          %v1500 = vrot.slane %v1499, 1
          %v1501 = vadd.f32 %v1499, %v1500
          %v1518 = vcombine.low %v1306, %v1319
          %v1519 = vcombine.low %v1332, %v1345
          %v1520 = vcombine.low %v1358, %v1371
          %v1521 = vcombine.low %v1384, %v1397
          %v1523 = vunpack.c.l.s4 1966171168
          %v1524 = vunpack.c.0.s8 %v1523
          %v1525 = vlaneseq
          %v1526 = vshrl.u32 %v1525, 7
          %v1527 = vsub.s32 %v1524, %v1526
          %v1528 = vrot.slane %v1518, %v1527
          %v1530 = vunpack.c.l.s4 1966171168
          %v1531 = vunpack.c.0.s8 %v1530
          %v1532 = vlaneseq
          %v1533 = vshrl.u32 %v1532, 7
          %v1534 = vsub.s32 %v1531, %v1533
          %v1535 = vrot.slane %v1519, %v1534
          %v1537 = vunpack.c.l.s4 1966171168
          %v1538 = vunpack.c.0.s8 %v1537
          %v1539 = vlaneseq
          %v1540 = vshrl.u32 %v1539, 7
          %v1541 = vsub.s32 %v1538, %v1540
          %v1542 = vrot.slane %v1520, %v1541
          %v1544 = vunpack.c.l.s4 1966171168
          %v1545 = vunpack.c.0.s8 %v1544
          %v1546 = vlaneseq
          %v1547 = vshrl.u32 %v1546, 7
          %v1548 = vsub.s32 %v1545, %v1547
          %v1549 = vrot.slane %v1521, %v1548
          %v1550 = vcombine.low %v1528, %v1535
          %v1551 = vcombine.low %v1542, %v1549
          %v1553 = vunpack.c.l.s4 1966171168
          %v1554 = vunpack.c.0.s8 %v1553
          %v1555 = vlaneseq
          %v1556 = vshrl.u32 %v1555, 7
          %v1557 = vsub.s32 %v1554, %v1556
          %v1558 = vrot.slane %v1550, %v1557
          %v1560 = vunpack.c.l.s4 1966171168
          %v1561 = vunpack.c.0.s8 %v1560
          %v1562 = vlaneseq
          %v1563 = vshrl.u32 %v1562, 7
          %v1564 = vsub.s32 %v1561, %v1563
          %v1565 = vrot.slane %v1551, %v1564
          %v1566 = vcombine.low %v1558, %v1565
          %v1567 = vcombine.low %v1410, %v1423
          %v1568 = vcombine.low %v1436, %v1449
          %v1569 = vcombine.low %v1462, %v1475
          %v1570 = vcombine.low %v1488, %v1501
          %v1572 = vunpack.c.l.s4 1966171168
          %v1573 = vunpack.c.0.s8 %v1572
          %v1574 = vlaneseq
          %v1575 = vshrl.u32 %v1574, 7
          %v1576 = vsub.s32 %v1573, %v1575
          %v1577 = vrot.slane %v1567, %v1576
          %v1579 = vunpack.c.l.s4 1966171168
          %v1580 = vunpack.c.0.s8 %v1579
          %v1581 = vlaneseq
          %v1582 = vshrl.u32 %v1581, 7
          %v1583 = vsub.s32 %v1580, %v1582
          %v1584 = vrot.slane %v1568, %v1583
          %v1586 = vunpack.c.l.s4 1966171168
          %v1587 = vunpack.c.0.s8 %v1586
          %v1588 = vlaneseq
          %v1589 = vshrl.u32 %v1588, 7
          %v1590 = vsub.s32 %v1587, %v1589
          %v1591 = vrot.slane %v1569, %v1590
          %v1593 = vunpack.c.l.s4 1966171168
          %v1594 = vunpack.c.0.s8 %v1593
          %v1595 = vlaneseq
          %v1596 = vshrl.u32 %v1595, 7
          %v1597 = vsub.s32 %v1594, %v1596
          %v1598 = vrot.slane %v1570, %v1597
          %v1599 = vcombine.low %v1577, %v1584
          %v1600 = vcombine.low %v1591, %v1598
          %v1602 = vunpack.c.l.s4 1966171168
          %v1603 = vunpack.c.0.s8 %v1602
          %v1604 = vlaneseq
          %v1605 = vshrl.u32 %v1604, 7
          %v1606 = vsub.s32 %v1603, %v1605
          %v1607 = vrot.slane %v1599, %v1606
          %v1609 = vunpack.c.l.s4 1966171168
          %v1610 = vunpack.c.0.s8 %v1609
          %v1611 = vlaneseq
          %v1612 = vshrl.u32 %v1611, 7
          %v1613 = vsub.s32 %v1610, %v1612
          %v1614 = vrot.slane %v1600, %v1613
          %v1615 = vcombine.low %v1607, %v1614
          %v1618 = vadd.f32 %v1148, %v1566
          %v1619 = vadd.f32 %v1149, %v1615
          %1620 = vst [vmem:[#allocation2] sm:$0xff] %v1618
          %1621 = vst [vmem:[#allocation2 + $0x8] sm:$0xff] %v1619
          %v1622 = vld [vmem:[#allocation3] sm:$0xff]
          %v1623 = vld [vmem:[#allocation3 + $0x8] sm:$0xff]
          %v1624 = vsel %vm1158, %v325, -inf
          %v1625 = vsel %vm1158, %v326, -inf
          %v1626 = vsel %vm1158, %v327, -inf
          %v1627 = vsel %vm1158, %v328, -inf
          %v1628 = vsel %vm1158, %v329, -inf
          %v1629 = vsel %vm1158, %v330, -inf
          %v1630 = vsel %vm1158, %v331, -inf
          %v1631 = vsel %vm1158, %v332, -inf
          %v1632 = vsel %vm1158, %v333, -inf
          %v1633 = vsel %vm1158, %v334, -inf
          %v1634 = vsel %vm1158, %v335, -inf
          %v1635 = vsel %vm1158, %v336, -inf
          %v1636 = vsel %vm1158, %v337, -inf
          %v1637 = vsel %vm1158, %v338, -inf
          %v1638 = vsel %vm1158, %v339, -inf
          %v1639 = vsel %vm1158, %v340, -inf
          %v1640 = vsel %vm1159, %v341, -inf
          %v1641 = vsel %vm1159, %v342, -inf
          %v1642 = vsel %vm1159, %v343, -inf
          %v1643 = vsel %vm1159, %v344, -inf
          %v1644 = vsel %vm1159, %v345, -inf
          %v1645 = vsel %vm1159, %v346, -inf
          %v1646 = vsel %vm1159, %v347, -inf
          %v1647 = vsel %vm1159, %v348, -inf
          %v1648 = vsel %vm1159, %v349, -inf
          %v1649 = vsel %vm1159, %v350, -inf
          %v1650 = vsel %vm1159, %v351, -inf
          %v1651 = vsel %vm1159, %v352, -inf
          %v1652 = vsel %vm1159, %v353, -inf
          %v1653 = vsel %vm1159, %v354, -inf
          %v1654 = vsel %vm1159, %v355, -inf
          %v1655 = vsel %vm1159, %v356, -inf
          %v1656 = vsel %vm1160, %v357, -inf
          %v1657 = vsel %vm1160, %v358, -inf
          %v1658 = vsel %vm1160, %v359, -inf
          %v1659 = vsel %vm1160, %v360, -inf
          %v1660 = vsel %vm1160, %v361, -inf
          %v1661 = vsel %vm1160, %v362, -inf
          %v1662 = vsel %vm1160, %v363, -inf
          %v1663 = vsel %vm1160, %v364, -inf
          %v1664 = vsel %vm1160, %v365, -inf
          %v1665 = vsel %vm1160, %v366, -inf
          %v1666 = vsel %vm1160, %v367, -inf
          %v1667 = vsel %vm1160, %v368, -inf
          %v1668 = vsel %vm1160, %v369, -inf
          %v1669 = vsel %vm1160, %v370, -inf
          %v1670 = vsel %vm1160, %v371, -inf
          %v1671 = vsel %vm1160, %v372, -inf
          %v1672 = vsel %vm1161, %v373, -inf
          %v1673 = vsel %vm1161, %v374, -inf
          %v1674 = vsel %vm1161, %v375, -inf
          %v1675 = vsel %vm1161, %v376, -inf
          %v1676 = vsel %vm1161, %v377, -inf
          %v1677 = vsel %vm1161, %v378, -inf
          %v1678 = vsel %vm1161, %v379, -inf
          %v1679 = vsel %vm1161, %v380, -inf
          %v1680 = vsel %vm1161, %v381, -inf
          %v1681 = vsel %vm1161, %v382, -inf
          %v1682 = vsel %vm1161, %v383, -inf
          %v1683 = vsel %vm1161, %v384, -inf
          %v1684 = vsel %vm1161, %v385, -inf
          %v1685 = vsel %vm1161, %v386, -inf
          %v1686 = vsel %vm1161, %v387, -inf
          %v1687 = vsel %vm1161, %v388, -inf
          %v1688 = vsel %vm1162, %v389, -inf
          %v1689 = vsel %vm1162, %v390, -inf
          %v1690 = vsel %vm1162, %v391, -inf
          %v1691 = vsel %vm1162, %v392, -inf
          %v1692 = vsel %vm1162, %v393, -inf
          %v1693 = vsel %vm1162, %v394, -inf
          %v1694 = vsel %vm1162, %v395, -inf
          %v1695 = vsel %vm1162, %v396, -inf
          %v1696 = vsel %vm1162, %v397, -inf
          %v1697 = vsel %vm1162, %v398, -inf
          %v1698 = vsel %vm1162, %v399, -inf
          %v1699 = vsel %vm1162, %v400, -inf
          %v1700 = vsel %vm1162, %v401, -inf
          %v1701 = vsel %vm1162, %v402, -inf
          %v1702 = vsel %vm1162, %v403, -inf
          %v1703 = vsel %vm1162, %v404, -inf
          %v1704 = vsel %vm1163, %v405, -inf
          %v1705 = vsel %vm1163, %v406, -inf
          %v1706 = vsel %vm1163, %v407, -inf
          %v1707 = vsel %vm1163, %v408, -inf
          %v1708 = vsel %vm1163, %v409, -inf
          %v1709 = vsel %vm1163, %v410, -inf
          %v1710 = vsel %vm1163, %v411, -inf
          %v1711 = vsel %vm1163, %v412, -inf
          %v1712 = vsel %vm1163, %v413, -inf
          %v1713 = vsel %vm1163, %v414, -inf
          %v1714 = vsel %vm1163, %v415, -inf
          %v1715 = vsel %vm1163, %v416, -inf
          %v1716 = vsel %vm1163, %v417, -inf
          %v1717 = vsel %vm1163, %v418, -inf
          %v1718 = vsel %vm1163, %v419, -inf
          %v1719 = vsel %vm1163, %v420, -inf
          %v1720 = vsel %vm1164, %v421, -inf
          %v1721 = vsel %vm1164, %v422, -inf
          %v1722 = vsel %vm1164, %v423, -inf
          %v1723 = vsel %vm1164, %v424, -inf
          %v1724 = vsel %vm1164, %v425, -inf
          %v1725 = vsel %vm1164, %v426, -inf
          %v1726 = vsel %vm1164, %v427, -inf
          %v1727 = vsel %vm1164, %v428, -inf
          %v1728 = vsel %vm1164, %v429, -inf
          %v1729 = vsel %vm1164, %v430, -inf
          %v1730 = vsel %vm1164, %v431, -inf
          %v1731 = vsel %vm1164, %v432, -inf
          %v1732 = vsel %vm1164, %v433, -inf
          %v1733 = vsel %vm1164, %v434, -inf
          %v1734 = vsel %vm1164, %v435, -inf
          %v1735 = vsel %vm1164, %v436, -inf
          %v1736 = vsel %vm1165, %v437, -inf
          %v1737 = vsel %vm1165, %v438, -inf
          %v1738 = vsel %vm1165, %v439, -inf
          %v1739 = vsel %vm1165, %v440, -inf
          %v1740 = vsel %vm1165, %v441, -inf
          %v1741 = vsel %vm1165, %v442, -inf
          %v1742 = vsel %vm1165, %v443, -inf
          %v1743 = vsel %vm1165, %v444, -inf
          %v1744 = vsel %vm1165, %v445, -inf
          %v1745 = vsel %vm1165, %v446, -inf
          %v1746 = vsel %vm1165, %v447, -inf
          %v1747 = vsel %vm1165, %v448, -inf
          %v1748 = vsel %vm1165, %v449, -inf
          %v1749 = vsel %vm1165, %v450, -inf
          %v1750 = vsel %vm1165, %v451, -inf
          %v1751 = vsel %vm1165, %v452, -inf
          %v1752 = vmax.f32 %v1624, %v1640
          %v1753 = vmax.f32 %v1752, %v1656
          %v1754 = vmax.f32 %v1753, %v1672
          %v1755 = vmax.f32 %v1754, %v1688
          %v1756 = vmax.f32 %v1755, %v1704
          %v1757 = vmax.f32 %v1756, %v1720
          %v1758 = vmax.f32 %v1757, %v1736
          %v1759 = vrot.slane %v1758, 4
          %v1760 = vmax.f32 %v1758, %v1759
          %v1761 = vrot.slane %v1760, 2
          %v1762 = vmax.f32 %v1760, %v1761
          %v1763 = vrot.slane %v1762, 1
          %v1764 = vmax.f32 %v1762, %v1763
          %v1765 = vmax.f32 %v1625, %v1641
          %v1766 = vmax.f32 %v1765, %v1657
          %v1767 = vmax.f32 %v1766, %v1673
          %v1768 = vmax.f32 %v1767, %v1689
          %v1769 = vmax.f32 %v1768, %v1705
          %v1770 = vmax.f32 %v1769, %v1721
          %v1771 = vmax.f32 %v1770, %v1737
          %v1772 = vrot.slane %v1771, 4
          %v1773 = vmax.f32 %v1771, %v1772
          %v1774 = vrot.slane %v1773, 2
          %v1775 = vmax.f32 %v1773, %v1774
          %v1776 = vrot.slane %v1775, 1
          %v1777 = vmax.f32 %v1775, %v1776
          %v1778 = vmax.f32 %v1626, %v1642
          %v1779 = vmax.f32 %v1778, %v1658
          %v1780 = vmax.f32 %v1779, %v1674
          %v1781 = vmax.f32 %v1780, %v1690
          %v1782 = vmax.f32 %v1781, %v1706
          %v1783 = vmax.f32 %v1782, %v1722
          %v1784 = vmax.f32 %v1783, %v1738
          %v1785 = vrot.slane %v1784, 4
          %v1786 = vmax.f32 %v1784, %v1785
          %v1787 = vrot.slane %v1786, 2
          %v1788 = vmax.f32 %v1786, %v1787
          %v1789 = vrot.slane %v1788, 1
          %v1790 = vmax.f32 %v1788, %v1789
          %v1791 = vmax.f32 %v1627, %v1643
          %v1792 = vmax.f32 %v1791, %v1659
          %v1793 = vmax.f32 %v1792, %v1675
          %v1794 = vmax.f32 %v1793, %v1691
          %v1795 = vmax.f32 %v1794, %v1707
          %v1796 = vmax.f32 %v1795, %v1723
          %v1797 = vmax.f32 %v1796, %v1739
          %v1798 = vrot.slane %v1797, 4
          %v1799 = vmax.f32 %v1797, %v1798
          %v1800 = vrot.slane %v1799, 2
          %v1801 = vmax.f32 %v1799, %v1800
          %v1802 = vrot.slane %v1801, 1
          %v1803 = vmax.f32 %v1801, %v1802
          %v1804 = vmax.f32 %v1628, %v1644
          %v1805 = vmax.f32 %v1804, %v1660
          %v1806 = vmax.f32 %v1805, %v1676
          %v1807 = vmax.f32 %v1806, %v1692
          %v1808 = vmax.f32 %v1807, %v1708
          %v1809 = vmax.f32 %v1808, %v1724
          %v1810 = vmax.f32 %v1809, %v1740
          %v1811 = vrot.slane %v1810, 4
          %v1812 = vmax.f32 %v1810, %v1811
          %v1813 = vrot.slane %v1812, 2
          %v1814 = vmax.f32 %v1812, %v1813
          %v1815 = vrot.slane %v1814, 1
          %v1816 = vmax.f32 %v1814, %v1815
          %v1817 = vmax.f32 %v1629, %v1645
          %v1818 = vmax.f32 %v1817, %v1661
          %v1819 = vmax.f32 %v1818, %v1677
          %v1820 = vmax.f32 %v1819, %v1693
          %v1821 = vmax.f32 %v1820, %v1709
          %v1822 = vmax.f32 %v1821, %v1725
          %v1823 = vmax.f32 %v1822, %v1741
          %v1824 = vrot.slane %v1823, 4
          %v1825 = vmax.f32 %v1823, %v1824
          %v1826 = vrot.slane %v1825, 2
          %v1827 = vmax.f32 %v1825, %v1826
          %v1828 = vrot.slane %v1827, 1
          %v1829 = vmax.f32 %v1827, %v1828
          %v1830 = vmax.f32 %v1630, %v1646
          %v1831 = vmax.f32 %v1830, %v1662
          %v1832 = vmax.f32 %v1831, %v1678
          %v1833 = vmax.f32 %v1832, %v1694
          %v1834 = vmax.f32 %v1833, %v1710
          %v1835 = vmax.f32 %v1834, %v1726
          %v1836 = vmax.f32 %v1835, %v1742
          %v1837 = vrot.slane %v1836, 4
          %v1838 = vmax.f32 %v1836, %v1837
          %v1839 = vrot.slane %v1838, 2
          %v1840 = vmax.f32 %v1838, %v1839
          %v1841 = vrot.slane %v1840, 1
          %v1842 = vmax.f32 %v1840, %v1841
          %v1843 = vmax.f32 %v1631, %v1647
          %v1844 = vmax.f32 %v1843, %v1663
          %v1845 = vmax.f32 %v1844, %v1679
          %v1846 = vmax.f32 %v1845, %v1695
          %v1847 = vmax.f32 %v1846, %v1711
          %v1848 = vmax.f32 %v1847, %v1727
          %v1849 = vmax.f32 %v1848, %v1743
          %v1850 = vrot.slane %v1849, 4
          %v1851 = vmax.f32 %v1849, %v1850
          %v1852 = vrot.slane %v1851, 2
          %v1853 = vmax.f32 %v1851, %v1852
          %v1854 = vrot.slane %v1853, 1
          %v1855 = vmax.f32 %v1853, %v1854
          %v1856 = vmax.f32 %v1632, %v1648
          %v1857 = vmax.f32 %v1856, %v1664
          %v1858 = vmax.f32 %v1857, %v1680
          %v1859 = vmax.f32 %v1858, %v1696
          %v1860 = vmax.f32 %v1859, %v1712
          %v1861 = vmax.f32 %v1860, %v1728
          %v1862 = vmax.f32 %v1861, %v1744
          %v1863 = vrot.slane %v1862, 4
          %v1864 = vmax.f32 %v1862, %v1863
          %v1865 = vrot.slane %v1864, 2
          %v1866 = vmax.f32 %v1864, %v1865
          %v1867 = vrot.slane %v1866, 1
          %v1868 = vmax.f32 %v1866, %v1867
          %v1869 = vmax.f32 %v1633, %v1649
          %v1870 = vmax.f32 %v1869, %v1665
          %v1871 = vmax.f32 %v1870, %v1681
          %v1872 = vmax.f32 %v1871, %v1697
          %v1873 = vmax.f32 %v1872, %v1713
          %v1874 = vmax.f32 %v1873, %v1729
          %v1875 = vmax.f32 %v1874, %v1745
          %v1876 = vrot.slane %v1875, 4
          %v1877 = vmax.f32 %v1875, %v1876
          %v1878 = vrot.slane %v1877, 2
          %v1879 = vmax.f32 %v1877, %v1878
          %v1880 = vrot.slane %v1879, 1
          %v1881 = vmax.f32 %v1879, %v1880
          %v1882 = vmax.f32 %v1634, %v1650
          %v1883 = vmax.f32 %v1882, %v1666
          %v1884 = vmax.f32 %v1883, %v1682
          %v1885 = vmax.f32 %v1884, %v1698
          %v1886 = vmax.f32 %v1885, %v1714
          %v1887 = vmax.f32 %v1886, %v1730
          %v1888 = vmax.f32 %v1887, %v1746
          %v1889 = vrot.slane %v1888, 4
          %v1890 = vmax.f32 %v1888, %v1889
          %v1891 = vrot.slane %v1890, 2
          %v1892 = vmax.f32 %v1890, %v1891
          %v1893 = vrot.slane %v1892, 1
          %v1894 = vmax.f32 %v1892, %v1893
          %v1895 = vmax.f32 %v1635, %v1651
          %v1896 = vmax.f32 %v1895, %v1667
          %v1897 = vmax.f32 %v1896, %v1683
          %v1898 = vmax.f32 %v1897, %v1699
          %v1899 = vmax.f32 %v1898, %v1715
          %v1900 = vmax.f32 %v1899, %v1731
          %v1901 = vmax.f32 %v1900, %v1747
          %v1902 = vrot.slane %v1901, 4
          %v1903 = vmax.f32 %v1901, %v1902
          %v1904 = vrot.slane %v1903, 2
          %v1905 = vmax.f32 %v1903, %v1904
          %v1906 = vrot.slane %v1905, 1
          %v1907 = vmax.f32 %v1905, %v1906
          %v1908 = vmax.f32 %v1636, %v1652
          %v1909 = vmax.f32 %v1908, %v1668
          %v1910 = vmax.f32 %v1909, %v1684
          %v1911 = vmax.f32 %v1910, %v1700
          %v1912 = vmax.f32 %v1911, %v1716
          %v1913 = vmax.f32 %v1912, %v1732
          %v1914 = vmax.f32 %v1913, %v1748
          %v1915 = vrot.slane %v1914, 4
          %v1916 = vmax.f32 %v1914, %v1915
          %v1917 = vrot.slane %v1916, 2
          %v1918 = vmax.f32 %v1916, %v1917
          %v1919 = vrot.slane %v1918, 1
          %v1920 = vmax.f32 %v1918, %v1919
          %v1921 = vmax.f32 %v1637, %v1653
          %v1922 = vmax.f32 %v1921, %v1669
          %v1923 = vmax.f32 %v1922, %v1685
          %v1924 = vmax.f32 %v1923, %v1701
          %v1925 = vmax.f32 %v1924, %v1717
          %v1926 = vmax.f32 %v1925, %v1733
          %v1927 = vmax.f32 %v1926, %v1749
          %v1928 = vrot.slane %v1927, 4
          %v1929 = vmax.f32 %v1927, %v1928
          %v1930 = vrot.slane %v1929, 2
          %v1931 = vmax.f32 %v1929, %v1930
          %v1932 = vrot.slane %v1931, 1
          %v1933 = vmax.f32 %v1931, %v1932
          %v1934 = vmax.f32 %v1638, %v1654
          %v1935 = vmax.f32 %v1934, %v1670
          %v1936 = vmax.f32 %v1935, %v1686
          %v1937 = vmax.f32 %v1936, %v1702
          %v1938 = vmax.f32 %v1937, %v1718
          %v1939 = vmax.f32 %v1938, %v1734
          %v1940 = vmax.f32 %v1939, %v1750
          %v1941 = vrot.slane %v1940, 4
          %v1942 = vmax.f32 %v1940, %v1941
          %v1943 = vrot.slane %v1942, 2
          %v1944 = vmax.f32 %v1942, %v1943
          %v1945 = vrot.slane %v1944, 1
          %v1946 = vmax.f32 %v1944, %v1945
          %v1947 = vmax.f32 %v1639, %v1655
          %v1948 = vmax.f32 %v1947, %v1671
          %v1949 = vmax.f32 %v1948, %v1687
          %v1950 = vmax.f32 %v1949, %v1703
          %v1951 = vmax.f32 %v1950, %v1719
          %v1952 = vmax.f32 %v1951, %v1735
          %v1953 = vmax.f32 %v1952, %v1751
          %v1954 = vrot.slane %v1953, 4
          %v1955 = vmax.f32 %v1953, %v1954
          %v1956 = vrot.slane %v1955, 2
          %v1957 = vmax.f32 %v1955, %v1956
          %v1958 = vrot.slane %v1957, 1
          %v1959 = vmax.f32 %v1957, %v1958
          %v1976 = vcombine.low %v1764, %v1777
          %v1977 = vcombine.low %v1790, %v1803
          %v1978 = vcombine.low %v1816, %v1829
          %v1979 = vcombine.low %v1842, %v1855
          %v1981 = vunpack.c.l.s4 1966171168
          %v1982 = vunpack.c.0.s8 %v1981
          %v1983 = vlaneseq
          %v1984 = vshrl.u32 %v1983, 7
          %v1985 = vsub.s32 %v1982, %v1984
          %v1986 = vrot.slane %v1976, %v1985
          %v1988 = vunpack.c.l.s4 1966171168
          %v1989 = vunpack.c.0.s8 %v1988
          %v1990 = vlaneseq
          %v1991 = vshrl.u32 %v1990, 7
          %v1992 = vsub.s32 %v1989, %v1991
          %v1993 = vrot.slane %v1977, %v1992
          %v1995 = vunpack.c.l.s4 1966171168
          %v1996 = vunpack.c.0.s8 %v1995
          %v1997 = vlaneseq
          %v1998 = vshrl.u32 %v1997, 7
          %v1999 = vsub.s32 %v1996, %v1998
          %v2000 = vrot.slane %v1978, %v1999
          %v2002 = vunpack.c.l.s4 1966171168
          %v2003 = vunpack.c.0.s8 %v2002
          %v2004 = vlaneseq
          %v2005 = vshrl.u32 %v2004, 7
          %v2006 = vsub.s32 %v2003, %v2005
          %v2007 = vrot.slane %v1979, %v2006
          %v2008 = vcombine.low %v1986, %v1993
          %v2009 = vcombine.low %v2000, %v2007
          %v2011 = vunpack.c.l.s4 1966171168
          %v2012 = vunpack.c.0.s8 %v2011
          %v2013 = vlaneseq
          %v2014 = vshrl.u32 %v2013, 7
          %v2015 = vsub.s32 %v2012, %v2014
          %v2016 = vrot.slane %v2008, %v2015
          %v2018 = vunpack.c.l.s4 1966171168
          %v2019 = vunpack.c.0.s8 %v2018
          %v2020 = vlaneseq
          %v2021 = vshrl.u32 %v2020, 7
          %v2022 = vsub.s32 %v2019, %v2021
          %v2023 = vrot.slane %v2009, %v2022
          %v2024 = vcombine.low %v2016, %v2023
          %v2025 = vcombine.low %v1868, %v1881
          %v2026 = vcombine.low %v1894, %v1907
          %v2027 = vcombine.low %v1920, %v1933
          %v2028 = vcombine.low %v1946, %v1959
          %v2030 = vunpack.c.l.s4 1966171168
          %v2031 = vunpack.c.0.s8 %v2030
          %v2032 = vlaneseq
          %v2033 = vshrl.u32 %v2032, 7
          %v2034 = vsub.s32 %v2031, %v2033
          %v2035 = vrot.slane %v2025, %v2034
          %v2037 = vunpack.c.l.s4 1966171168
          %v2038 = vunpack.c.0.s8 %v2037
          %v2039 = vlaneseq
          %v2040 = vshrl.u32 %v2039, 7
          %v2041 = vsub.s32 %v2038, %v2040
          %v2042 = vrot.slane %v2026, %v2041
          %v2044 = vunpack.c.l.s4 1966171168
          %v2045 = vunpack.c.0.s8 %v2044
          %v2046 = vlaneseq
          %v2047 = vshrl.u32 %v2046, 7
          %v2048 = vsub.s32 %v2045, %v2047
          %v2049 = vrot.slane %v2027, %v2048
          %v2051 = vunpack.c.l.s4 1966171168
          %v2052 = vunpack.c.0.s8 %v2051
          %v2053 = vlaneseq
          %v2054 = vshrl.u32 %v2053, 7
          %v2055 = vsub.s32 %v2052, %v2054
          %v2056 = vrot.slane %v2028, %v2055
          %v2057 = vcombine.low %v2035, %v2042
          %v2058 = vcombine.low %v2049, %v2056
          %v2060 = vunpack.c.l.s4 1966171168
          %v2061 = vunpack.c.0.s8 %v2060
          %v2062 = vlaneseq
          %v2063 = vshrl.u32 %v2062, 7
          %v2064 = vsub.s32 %v2061, %v2063
          %v2065 = vrot.slane %v2057, %v2064
          %v2067 = vunpack.c.l.s4 1966171168
          %v2068 = vunpack.c.0.s8 %v2067
          %v2069 = vlaneseq
          %v2070 = vshrl.u32 %v2069, 7
          %v2071 = vsub.s32 %v2068, %v2070
          %v2072 = vrot.slane %v2058, %v2071
          %v2073 = vcombine.low %v2065, %v2072
          %v2076 = vmax.f32 %v1622, %v2024
          %v2077 = vmax.f32 %v1623, %v2073
          %2078 = vst [vmem:[#allocation3] sm:$0xff] %v2076
          %2079 = vst [vmem:[#allocation3 + $0x8] sm:$0xff] %v2077
          %v2080 = vld [vmem:[#allocation2] sm:$0xff]
          %v2081 = vld [vmem:[#allocation2 + $0x8] sm:$0xff]
          %v2082 = vmul.f32 %v2080, 0.0051020407
          %v2083 = vmul.f32 %v2081, 0.0051020407
          %v2086 = vlaneseq
          %v2087 = vshrl.u32 %v2086, 7
          %v2088 = vsub.s32 0, %v2087
          %v2089 = vrot.slane %v2082, %v2088
          %v2090 = vlaneseq
          %v2091 = vshrl.u32 %v2090, 7
          %v2092 = vsub.s32 1, %v2091
          %v2093 = vrot.slane %v2082, %v2092
          %v2094 = vlaneseq
          %v2095 = vshrl.u32 %v2094, 7
          %v2096 = vsub.s32 2, %v2095
          %v2097 = vrot.slane %v2082, %v2096
          %v2098 = vlaneseq
          %v2099 = vshrl.u32 %v2098, 7
          %v2100 = vsub.s32 3, %v2099
          %v2101 = vrot.slane %v2082, %v2100
          %v2102 = vlaneseq
          %v2103 = vshrl.u32 %v2102, 7
          %v2104 = vsub.s32 4, %v2103
          %v2105 = vrot.slane %v2082, %v2104
          %v2106 = vlaneseq
          %v2107 = vshrl.u32 %v2106, 7
          %v2108 = vsub.s32 5, %v2107
          %v2109 = vrot.slane %v2082, %v2108
          %v2110 = vlaneseq
          %v2111 = vshrl.u32 %v2110, 7
          %v2112 = vsub.s32 6, %v2111
          %v2113 = vrot.slane %v2082, %v2112
          %v2114 = vlaneseq
          %v2115 = vshrl.u32 %v2114, 7
          %v2116 = vsub.s32 7, %v2115
          %v2117 = vrot.slane %v2082, %v2116
          %v2118 = vlaneseq
          %v2119 = vshrl.u32 %v2118, 7
          %v2120 = vsub.s32 0, %v2119
          %v2121 = vrot.slane %v2083, %v2120
          %v2122 = vlaneseq
          %v2123 = vshrl.u32 %v2122, 7
          %v2124 = vsub.s32 1, %v2123
          %v2125 = vrot.slane %v2083, %v2124
          %v2126 = vlaneseq
          %v2127 = vshrl.u32 %v2126, 7
          %v2128 = vsub.s32 2, %v2127
          %v2129 = vrot.slane %v2083, %v2128
          %v2130 = vlaneseq
          %v2131 = vshrl.u32 %v2130, 7
          %v2132 = vsub.s32 3, %v2131
          %v2133 = vrot.slane %v2083, %v2132
          %v2134 = vlaneseq
          %v2135 = vshrl.u32 %v2134, 7
          %v2136 = vsub.s32 4, %v2135
          %v2137 = vrot.slane %v2083, %v2136
          %v2138 = vlaneseq
          %v2139 = vshrl.u32 %v2138, 7
          %v2140 = vsub.s32 5, %v2139
          %v2141 = vrot.slane %v2083, %v2140
          %v2142 = vlaneseq
          %v2143 = vshrl.u32 %v2142, 7
          %v2144 = vsub.s32 6, %v2143
          %v2145 = vrot.slane %v2083, %v2144
          %v2146 = vlaneseq
          %v2147 = vshrl.u32 %v2146, 7
          %v2148 = vsub.s32 7, %v2147
          %v2149 = vrot.slane %v2083, %v2148
          %v2166 = vpack.c.bf16 %v2089, %v2089
          %v2167 = vpack.c.bf16 %v2093, %v2093
          %v2168 = vpack.c.bf16 %v2097, %v2097
          %v2169 = vpack.c.bf16 %v2101, %v2101
          %v2170 = vpack.c.bf16 %v2105, %v2105
          %v2171 = vpack.c.bf16 %v2109, %v2109
          %v2172 = vpack.c.bf16 %v2113, %v2113
          %v2173 = vpack.c.bf16 %v2117, %v2117
          %v2174 = vpack.c.bf16 %v2121, %v2121
          %v2175 = vpack.c.bf16 %v2125, %v2125
          %v2176 = vpack.c.bf16 %v2129, %v2129
          %v2177 = vpack.c.bf16 %v2133, %v2133
          %v2178 = vpack.c.bf16 %v2137, %v2137
          %v2179 = vpack.c.bf16 %v2141, %v2141
          %v2180 = vpack.c.bf16 %v2145, %v2145
          %v2181 = vpack.c.bf16 %v2149, %v2149
          %v2182 = vld [vmem:[#allocation3] sm:$0xff]
          %v2183 = vld [vmem:[#allocation3 + $0x8] sm:$0xff]
          %v2186 = vlaneseq
          %v2187 = vshrl.u32 %v2186, 7
          %v2188 = vsub.s32 0, %v2187
          %v2189 = vrot.slane %v2182, %v2188
          %v2190 = vlaneseq
          %v2191 = vshrl.u32 %v2190, 7
          %v2192 = vsub.s32 1, %v2191
          %v2193 = vrot.slane %v2182, %v2192
          %v2194 = vlaneseq
          %v2195 = vshrl.u32 %v2194, 7
          %v2196 = vsub.s32 2, %v2195
          %v2197 = vrot.slane %v2182, %v2196
          %v2198 = vlaneseq
          %v2199 = vshrl.u32 %v2198, 7
          %v2200 = vsub.s32 3, %v2199
          %v2201 = vrot.slane %v2182, %v2200
          %v2202 = vlaneseq
          %v2203 = vshrl.u32 %v2202, 7
          %v2204 = vsub.s32 4, %v2203
          %v2205 = vrot.slane %v2182, %v2204
          %v2206 = vlaneseq
          %v2207 = vshrl.u32 %v2206, 7
          %v2208 = vsub.s32 5, %v2207
          %v2209 = vrot.slane %v2182, %v2208
          %v2210 = vlaneseq
          %v2211 = vshrl.u32 %v2210, 7
          %v2212 = vsub.s32 6, %v2211
          %v2213 = vrot.slane %v2182, %v2212
          %v2214 = vlaneseq
          %v2215 = vshrl.u32 %v2214, 7
          %v2216 = vsub.s32 7, %v2215
          %v2217 = vrot.slane %v2182, %v2216
          %v2218 = vlaneseq
          %v2219 = vshrl.u32 %v2218, 7
          %v2220 = vsub.s32 0, %v2219
          %v2221 = vrot.slane %v2183, %v2220
          %v2222 = vlaneseq
          %v2223 = vshrl.u32 %v2222, 7
          %v2224 = vsub.s32 1, %v2223
          %v2225 = vrot.slane %v2183, %v2224
          %v2226 = vlaneseq
          %v2227 = vshrl.u32 %v2226, 7
          %v2228 = vsub.s32 2, %v2227
          %v2229 = vrot.slane %v2183, %v2228
          %v2230 = vlaneseq
          %v2231 = vshrl.u32 %v2230, 7
          %v2232 = vsub.s32 3, %v2231
          %v2233 = vrot.slane %v2183, %v2232
          %v2234 = vlaneseq
          %v2235 = vshrl.u32 %v2234, 7
          %v2236 = vsub.s32 4, %v2235
          %v2237 = vrot.slane %v2183, %v2236
          %v2238 = vlaneseq
          %v2239 = vshrl.u32 %v2238, 7
          %v2240 = vsub.s32 5, %v2239
          %v2241 = vrot.slane %v2183, %v2240
          %v2242 = vlaneseq
          %v2243 = vshrl.u32 %v2242, 7
          %v2244 = vsub.s32 6, %v2243
          %v2245 = vrot.slane %v2183, %v2244
          %v2246 = vlaneseq
          %v2247 = vshrl.u32 %v2246, 7
          %v2248 = vsub.s32 7, %v2247
          %v2249 = vrot.slane %v2183, %v2248
          %v2266 = vpack.c.bf16 %v2189, %v2189
          %v2267 = vpack.c.bf16 %v2193, %v2193
          %v2268 = vpack.c.bf16 %v2197, %v2197
          %v2269 = vpack.c.bf16 %v2201, %v2201
          %v2270 = vpack.c.bf16 %v2205, %v2205
          %v2271 = vpack.c.bf16 %v2209, %v2209
          %v2272 = vpack.c.bf16 %v2213, %v2213
          %v2273 = vpack.c.bf16 %v2217, %v2217
          %v2274 = vpack.c.bf16 %v2221, %v2221
          %v2275 = vpack.c.bf16 %v2225, %v2225
          %v2276 = vpack.c.bf16 %v2229, %v2229
          %v2277 = vpack.c.bf16 %v2233, %v2233
          %v2278 = vpack.c.bf16 %v2237, %v2237
          %v2279 = vpack.c.bf16 %v2241, %v2241
          %v2280 = vpack.c.bf16 %v2245, %v2245
          %v2281 = vpack.c.bf16 %v2249, %v2249
          %v2282 = vld [vmem:[%s1] sm:$0xff]
          %v2283 = vld [vmem:[%s1 + $0x8] sm:$0xff]
          %v2284 = vld [vmem:[%s1 + $0x10] sm:$0xff]
          %v2285 = vld [vmem:[%s1 + $0x18] sm:$0xff]
          %v2286 = vld [vmem:[%s1 + $0x20] sm:$0xff]
          %v2287 = vld [vmem:[%s1 + $0x28] sm:$0xff]
          %v2288 = vld [vmem:[%s1 + $0x30] sm:$0xff]
          %v2289 = vld [vmem:[%s1 + $0x38] sm:$0xff]
          %v2290 = vld [vmem:[%s1 + $0x40] sm:$0xff]
          %v2291 = vld [vmem:[%s1 + $0x48] sm:$0xff]
          %v2292 = vld [vmem:[%s1 + $0x50] sm:$0xff]
          %v2293 = vld [vmem:[%s1 + $0x58] sm:$0xff]
          %v2294 = vld [vmem:[%s1 + $0x60] sm:$0xff]
          %v2295 = vld [vmem:[%s1 + $0x68] sm:$0xff]
          %v2296 = vld [vmem:[%s1 + $0x70] sm:$0xff]
          %v2297 = vld [vmem:[%s1 + $0x78] sm:$0xff]
          %v2298 = vld [vmem:[%s1 + $0x80] sm:$0xff]
          %v2299 = vld [vmem:[%s1 + $0x88] sm:$0xff]
          %v2300 = vld [vmem:[%s1 + $0x90] sm:$0xff]
          %v2301 = vld [vmem:[%s1 + $0x98] sm:$0xff]
          %v2302 = vld [vmem:[%s1 + $0xa0] sm:$0xff]
          %v2303 = vld [vmem:[%s1 + $0xa8] sm:$0xff]
          %v2304 = vld [vmem:[%s1 + $0xb0] sm:$0xff]
          %v2305 = vld [vmem:[%s1 + $0xb8] sm:$0xff]
          %v2306 = vld [vmem:[%s1 + $0xc0] sm:$0xff]
          %v2307 = vld [vmem:[%s1 + $0xc8] sm:$0xff]
          %v2308 = vld [vmem:[%s1 + $0xd0] sm:$0xff]
          %v2309 = vld [vmem:[%s1 + $0xd8] sm:$0xff]
          %v2310 = vld [vmem:[%s1 + $0xe0] sm:$0xff]
          %v2311 = vld [vmem:[%s1 + $0xe8] sm:$0xff]
          %v2312 = vld [vmem:[%s1 + $0xf0] sm:$0xff]
          %v2313 = vld [vmem:[%s1 + $0xf8] sm:$0xff]
          %v2314 = vld [vmem:[%s1 + $0x100] sm:$0xff]
          %v2315 = vld [vmem:[%s1 + $0x108] sm:$0xff]
          %v2316 = vld [vmem:[%s1 + $0x110] sm:$0xff]
          %v2317 = vld [vmem:[%s1 + $0x118] sm:$0xff]
          %v2318 = vld [vmem:[%s1 + $0x120] sm:$0xff]
          %v2319 = vld [vmem:[%s1 + $0x128] sm:$0xff]
          %v2320 = vld [vmem:[%s1 + $0x130] sm:$0xff]
          %v2321 = vld [vmem:[%s1 + $0x138] sm:$0xff]
          %v2322 = vld [vmem:[%s1 + $0x140] sm:$0xff]
          %v2323 = vld [vmem:[%s1 + $0x148] sm:$0xff]
          %v2324 = vld [vmem:[%s1 + $0x150] sm:$0xff]
          %v2325 = vld [vmem:[%s1 + $0x158] sm:$0xff]
          %v2326 = vld [vmem:[%s1 + $0x160] sm:$0xff]
          %v2327 = vld [vmem:[%s1 + $0x168] sm:$0xff]
          %v2328 = vld [vmem:[%s1 + $0x170] sm:$0xff]
          %v2329 = vld [vmem:[%s1 + $0x178] sm:$0xff]
          %v2330 = vld [vmem:[%s1 + $0x180] sm:$0xff]
          %v2331 = vld [vmem:[%s1 + $0x188] sm:$0xff]
          %v2332 = vld [vmem:[%s1 + $0x190] sm:$0xff]
          %v2333 = vld [vmem:[%s1 + $0x198] sm:$0xff]
          %v2334 = vld [vmem:[%s1 + $0x1a0] sm:$0xff]
          %v2335 = vld [vmem:[%s1 + $0x1a8] sm:$0xff]
          %v2336 = vld [vmem:[%s1 + $0x1b0] sm:$0xff]
          %v2337 = vld [vmem:[%s1 + $0x1b8] sm:$0xff]
          %v2338 = vld [vmem:[%s1 + $0x1c0] sm:$0xff]
          %v2339 = vld [vmem:[%s1 + $0x1c8] sm:$0xff]
          %v2340 = vld [vmem:[%s1 + $0x1d0] sm:$0xff]
          %v2341 = vld [vmem:[%s1 + $0x1d8] sm:$0xff]
          %v2342 = vld [vmem:[%s1 + $0x1e0] sm:$0xff]
          %v2343 = vld [vmem:[%s1 + $0x1e8] sm:$0xff]
          %v2344 = vld [vmem:[%s1 + $0x1f0] sm:$0xff]
          %v2345 = vld [vmem:[%s1 + $0x1f8] sm:$0xff]
          %v2346 = vld [vmem:[%s1 + $0x200] sm:$0xff]
          %v2347 = vld [vmem:[%s1 + $0x208] sm:$0xff]
          %v2348 = vld [vmem:[%s1 + $0x210] sm:$0xff]
          %v2349 = vld [vmem:[%s1 + $0x218] sm:$0xff]
          %v2350 = vld [vmem:[%s1 + $0x220] sm:$0xff]
          %v2351 = vld [vmem:[%s1 + $0x228] sm:$0xff]
          %v2352 = vld [vmem:[%s1 + $0x230] sm:$0xff]
          %v2353 = vld [vmem:[%s1 + $0x238] sm:$0xff]
          %v2354 = vld [vmem:[%s1 + $0x240] sm:$0xff]
          %v2355 = vld [vmem:[%s1 + $0x248] sm:$0xff]
          %v2356 = vld [vmem:[%s1 + $0x250] sm:$0xff]
          %v2357 = vld [vmem:[%s1 + $0x258] sm:$0xff]
          %v2358 = vld [vmem:[%s1 + $0x260] sm:$0xff]
          %v2359 = vld [vmem:[%s1 + $0x268] sm:$0xff]
          %v2360 = vld [vmem:[%s1 + $0x270] sm:$0xff]
          %v2361 = vld [vmem:[%s1 + $0x278] sm:$0xff]
          %v2362 = vld [vmem:[%s1 + $0x280] sm:$0xff]
          %v2363 = vld [vmem:[%s1 + $0x288] sm:$0xff]
          %v2364 = vld [vmem:[%s1 + $0x290] sm:$0xff]
          %v2365 = vld [vmem:[%s1 + $0x298] sm:$0xff]
          %v2366 = vld [vmem:[%s1 + $0x2a0] sm:$0xff]
          %v2367 = vld [vmem:[%s1 + $0x2a8] sm:$0xff]
          %v2368 = vld [vmem:[%s1 + $0x2b0] sm:$0xff]
          %v2369 = vld [vmem:[%s1 + $0x2b8] sm:$0xff]
          %v2370 = vld [vmem:[%s1 + $0x2c0] sm:$0xff]
          %v2371 = vld [vmem:[%s1 + $0x2c8] sm:$0xff]
          %v2372 = vld [vmem:[%s1 + $0x2d0] sm:$0xff]
          %v2373 = vld [vmem:[%s1 + $0x2d8] sm:$0xff]
          %v2374 = vld [vmem:[%s1 + $0x2e0] sm:$0xff]
          %v2375 = vld [vmem:[%s1 + $0x2e8] sm:$0xff]
          %v2376 = vld [vmem:[%s1 + $0x2f0] sm:$0xff]
          %v2377 = vld [vmem:[%s1 + $0x2f8] sm:$0xff]
          %v2378 = vld [vmem:[%s1 + $0x300] sm:$0xff]
          %v2379 = vld [vmem:[%s1 + $0x308] sm:$0xff]
          %v2380 = vld [vmem:[%s1 + $0x310] sm:$0xff]
          %v2381 = vld [vmem:[%s1 + $0x318] sm:$0xff]
          %v2382 = vld [vmem:[%s1 + $0x320] sm:$0xff]
          %v2383 = vld [vmem:[%s1 + $0x328] sm:$0xff]
          %v2384 = vld [vmem:[%s1 + $0x330] sm:$0xff]
          %v2385 = vld [vmem:[%s1 + $0x338] sm:$0xff]
          %v2386 = vld [vmem:[%s1 + $0x340] sm:$0xff]
          %v2387 = vld [vmem:[%s1 + $0x348] sm:$0xff]
          %v2388 = vld [vmem:[%s1 + $0x350] sm:$0xff]
          %v2389 = vld [vmem:[%s1 + $0x358] sm:$0xff]
          %v2390 = vld [vmem:[%s1 + $0x360] sm:$0xff]
          %v2391 = vld [vmem:[%s1 + $0x368] sm:$0xff]
          %v2392 = vld [vmem:[%s1 + $0x370] sm:$0xff]
          %v2393 = vld [vmem:[%s1 + $0x378] sm:$0xff]
          %v2394 = vld [vmem:[%s1 + $0x380] sm:$0xff]
          %v2395 = vld [vmem:[%s1 + $0x388] sm:$0xff]
          %v2396 = vld [vmem:[%s1 + $0x390] sm:$0xff]
          %v2397 = vld [vmem:[%s1 + $0x398] sm:$0xff]
          %v2398 = vld [vmem:[%s1 + $0x3a0] sm:$0xff]
          %v2399 = vld [vmem:[%s1 + $0x3a8] sm:$0xff]
          %v2400 = vld [vmem:[%s1 + $0x3b0] sm:$0xff]
          %v2401 = vld [vmem:[%s1 + $0x3b8] sm:$0xff]
          %v2402 = vld [vmem:[%s1 + $0x3c0] sm:$0xff]
          %v2403 = vld [vmem:[%s1 + $0x3c8] sm:$0xff]
          %v2404 = vld [vmem:[%s1 + $0x3d0] sm:$0xff]
          %v2405 = vld [vmem:[%s1 + $0x3d8] sm:$0xff]
          %v2406 = vld [vmem:[%s1 + $0x3e0] sm:$0xff]
          %v2407 = vld [vmem:[%s1 + $0x3e8] sm:$0xff]
          %v2408 = vld [vmem:[%s1 + $0x3f0] sm:$0xff]
          %v2409 = vld [vmem:[%s1 + $0x3f8] sm:$0xff]
          %v2410 = vld [vmem:[%s1 + $0x400] sm:$0xff]
          %v2411 = vld [vmem:[%s1 + $0x408] sm:$0xff]
          %v2412 = vld [vmem:[%s1 + $0x410] sm:$0xff]
          %v2413 = vld [vmem:[%s1 + $0x418] sm:$0xff]
          %v2414 = vld [vmem:[%s1 + $0x420] sm:$0xff]
          %v2415 = vld [vmem:[%s1 + $0x428] sm:$0xff]
          %v2416 = vld [vmem:[%s1 + $0x430] sm:$0xff]
          %v2417 = vld [vmem:[%s1 + $0x438] sm:$0xff]
          %v2418 = vld [vmem:[%s1 + $0x440] sm:$0xff]
          %v2419 = vld [vmem:[%s1 + $0x448] sm:$0xff]
          %v2420 = vld [vmem:[%s1 + $0x450] sm:$0xff]
          %v2421 = vld [vmem:[%s1 + $0x458] sm:$0xff]
          %v2422 = vld [vmem:[%s1 + $0x460] sm:$0xff]
          %v2423 = vld [vmem:[%s1 + $0x468] sm:$0xff]
          %v2424 = vld [vmem:[%s1 + $0x470] sm:$0xff]
          %v2425 = vld [vmem:[%s1 + $0x478] sm:$0xff]
          %v2426 = vld [vmem:[%s1 + $0x480] sm:$0xff]
          %v2427 = vld [vmem:[%s1 + $0x488] sm:$0xff]
          %v2428 = vld [vmem:[%s1 + $0x490] sm:$0xff]
          %v2429 = vld [vmem:[%s1 + $0x498] sm:$0xff]
          %v2430 = vld [vmem:[%s1 + $0x4a0] sm:$0xff]
          %v2431 = vld [vmem:[%s1 + $0x4a8] sm:$0xff]
          %v2432 = vld [vmem:[%s1 + $0x4b0] sm:$0xff]
          %v2433 = vld [vmem:[%s1 + $0x4b8] sm:$0xff]
          %v2434 = vld [vmem:[%s1 + $0x4c0] sm:$0xff]
          %v2435 = vld [vmem:[%s1 + $0x4c8] sm:$0xff]
          %v2436 = vld [vmem:[%s1 + $0x4d0] sm:$0xff]
          %v2437 = vld [vmem:[%s1 + $0x4d8] sm:$0xff]
          %v2438 = vld [vmem:[%s1 + $0x4e0] sm:$0xff]
          %v2439 = vld [vmem:[%s1 + $0x4e8] sm:$0xff]
          %v2440 = vld [vmem:[%s1 + $0x4f0] sm:$0xff]
          %v2441 = vld [vmem:[%s1 + $0x4f8] sm:$0xff]
          %v2442 = vld [vmem:[%s1 + $0x500] sm:$0xff]
          %v2443 = vld [vmem:[%s1 + $0x508] sm:$0xff]
          %v2444 = vld [vmem:[%s1 + $0x510] sm:$0xff]
          %v2445 = vld [vmem:[%s1 + $0x518] sm:$0xff]
          %v2446 = vld [vmem:[%s1 + $0x520] sm:$0xff]
          %v2447 = vld [vmem:[%s1 + $0x528] sm:$0xff]
          %v2448 = vld [vmem:[%s1 + $0x530] sm:$0xff]
          %v2449 = vld [vmem:[%s1 + $0x538] sm:$0xff]
          %v2450 = vld [vmem:[%s1 + $0x540] sm:$0xff]
          %v2451 = vld [vmem:[%s1 + $0x548] sm:$0xff]
          %v2452 = vld [vmem:[%s1 + $0x550] sm:$0xff]
          %v2453 = vld [vmem:[%s1 + $0x558] sm:$0xff]
          %v2454 = vld [vmem:[%s1 + $0x560] sm:$0xff]
          %v2455 = vld [vmem:[%s1 + $0x568] sm:$0xff]
          %v2456 = vld [vmem:[%s1 + $0x570] sm:$0xff]
          %v2457 = vld [vmem:[%s1 + $0x578] sm:$0xff]
          %v2458 = vld [vmem:[%s1 + $0x580] sm:$0xff]
          %v2459 = vld [vmem:[%s1 + $0x588] sm:$0xff]
          %v2460 = vld [vmem:[%s1 + $0x590] sm:$0xff]
          %v2461 = vld [vmem:[%s1 + $0x598] sm:$0xff]
          %v2462 = vld [vmem:[%s1 + $0x5a0] sm:$0xff]
          %v2463 = vld [vmem:[%s1 + $0x5a8] sm:$0xff]
          %v2464 = vld [vmem:[%s1 + $0x5b0] sm:$0xff]
          %v2465 = vld [vmem:[%s1 + $0x5b8] sm:$0xff]
          %v2466 = vld [vmem:[%s1 + $0x5c0] sm:$0xff]
          %v2467 = vld [vmem:[%s1 + $0x5c8] sm:$0xff]
          %v2468 = vld [vmem:[%s1 + $0x5d0] sm:$0xff]
          %v2469 = vld [vmem:[%s1 + $0x5d8] sm:$0xff]
          %v2470 = vld [vmem:[%s1 + $0x5e0] sm:$0xff]
          %v2471 = vld [vmem:[%s1 + $0x5e8] sm:$0xff]
          %v2472 = vld [vmem:[%s1 + $0x5f0] sm:$0xff]
          %v2473 = vld [vmem:[%s1 + $0x5f8] sm:$0xff]
          %v2474 = vld [vmem:[%s1 + $0x600] sm:$0xff]
          %v2475 = vld [vmem:[%s1 + $0x608] sm:$0xff]
          %v2476 = vld [vmem:[%s1 + $0x610] sm:$0xff]
          %v2477 = vld [vmem:[%s1 + $0x618] sm:$0xff]
          %v2478 = vld [vmem:[%s1 + $0x620] sm:$0xff]
          %v2479 = vld [vmem:[%s1 + $0x628] sm:$0xff]
          %v2480 = vld [vmem:[%s1 + $0x630] sm:$0xff]
          %v2481 = vld [vmem:[%s1 + $0x638] sm:$0xff]
          %v2482 = vld [vmem:[%s1 + $0x640] sm:$0xff]
          %v2483 = vld [vmem:[%s1 + $0x648] sm:$0xff]
          %v2484 = vld [vmem:[%s1 + $0x650] sm:$0xff]
          %v2485 = vld [vmem:[%s1 + $0x658] sm:$0xff]
          %v2486 = vld [vmem:[%s1 + $0x660] sm:$0xff]
          %v2487 = vld [vmem:[%s1 + $0x668] sm:$0xff]
          %v2488 = vld [vmem:[%s1 + $0x670] sm:$0xff]
          %v2489 = vld [vmem:[%s1 + $0x678] sm:$0xff]
          %v2490 = vld [vmem:[%s1 + $0x680] sm:$0xff]
          %v2491 = vld [vmem:[%s1 + $0x688] sm:$0xff]
          %v2492 = vld [vmem:[%s1 + $0x690] sm:$0xff]
          %v2493 = vld [vmem:[%s1 + $0x698] sm:$0xff]
          %v2494 = vld [vmem:[%s1 + $0x6a0] sm:$0xff]
          %v2495 = vld [vmem:[%s1 + $0x6a8] sm:$0xff]
          %v2496 = vld [vmem:[%s1 + $0x6b0] sm:$0xff]
          %v2497 = vld [vmem:[%s1 + $0x6b8] sm:$0xff]
          %v2498 = vld [vmem:[%s1 + $0x6c0] sm:$0xff]
          %v2499 = vld [vmem:[%s1 + $0x6c8] sm:$0xff]
          %v2500 = vld [vmem:[%s1 + $0x6d0] sm:$0xff]
          %v2501 = vld [vmem:[%s1 + $0x6d8] sm:$0xff]
          %v2502 = vld [vmem:[%s1 + $0x6e0] sm:$0xff]
          %v2503 = vld [vmem:[%s1 + $0x6e8] sm:$0xff]
          %v2504 = vld [vmem:[%s1 + $0x6f0] sm:$0xff]
          %v2505 = vld [vmem:[%s1 + $0x6f8] sm:$0xff]
          %v2506 = vld [vmem:[%s1 + $0x700] sm:$0xff]
          %v2507 = vld [vmem:[%s1 + $0x708] sm:$0xff]
          %v2508 = vld [vmem:[%s1 + $0x710] sm:$0xff]
          %v2509 = vld [vmem:[%s1 + $0x718] sm:$0xff]
          %v2510 = vld [vmem:[%s1 + $0x720] sm:$0xff]
          %v2511 = vld [vmem:[%s1 + $0x728] sm:$0xff]
          %v2512 = vld [vmem:[%s1 + $0x730] sm:$0xff]
          %v2513 = vld [vmem:[%s1 + $0x738] sm:$0xff]
          %v2514 = vld [vmem:[%s1 + $0x740] sm:$0xff]
          %v2515 = vld [vmem:[%s1 + $0x748] sm:$0xff]
          %v2516 = vld [vmem:[%s1 + $0x750] sm:$0xff]
          %v2517 = vld [vmem:[%s1 + $0x758] sm:$0xff]
          %v2518 = vld [vmem:[%s1 + $0x760] sm:$0xff]
          %v2519 = vld [vmem:[%s1 + $0x768] sm:$0xff]
          %v2520 = vld [vmem:[%s1 + $0x770] sm:$0xff]
          %v2521 = vld [vmem:[%s1 + $0x778] sm:$0xff]
          %v2522 = vld [vmem:[%s1 + $0x780] sm:$0xff]
          %v2523 = vld [vmem:[%s1 + $0x788] sm:$0xff]
          %v2524 = vld [vmem:[%s1 + $0x790] sm:$0xff]
          %v2525 = vld [vmem:[%s1 + $0x798] sm:$0xff]
          %v2526 = vld [vmem:[%s1 + $0x7a0] sm:$0xff]
          %v2527 = vld [vmem:[%s1 + $0x7a8] sm:$0xff]
          %v2528 = vld [vmem:[%s1 + $0x7b0] sm:$0xff]
          %v2529 = vld [vmem:[%s1 + $0x7b8] sm:$0xff]
          %v2530 = vld [vmem:[%s1 + $0x7c0] sm:$0xff]
          %v2531 = vld [vmem:[%s1 + $0x7c8] sm:$0xff]
          %v2532 = vld [vmem:[%s1 + $0x7d0] sm:$0xff]
          %v2533 = vld [vmem:[%s1 + $0x7d8] sm:$0xff]
          %v2534 = vld [vmem:[%s1 + $0x7e0] sm:$0xff]
          %v2535 = vld [vmem:[%s1 + $0x7e8] sm:$0xff]
          %v2536 = vld [vmem:[%s1 + $0x7f0] sm:$0xff]
          %v2537 = vld [vmem:[%s1 + $0x7f8] sm:$0xff]
          %v2538 = vld [vmem:[%s2] sm:$0x3]
          %v2795 = vunpack.c.l.b16 %v2282
          %v2796 = vunpack.c.h.b16 %v2282
          %v2797 = vunpack.c.l.b16 %v2283
          %v2798 = vunpack.c.h.b16 %v2283
          %v2799 = vunpack.c.l.b16 %v2284
          %v2800 = vunpack.c.h.b16 %v2284
          %v2801 = vunpack.c.l.b16 %v2285
          %v2802 = vunpack.c.h.b16 %v2285
          %v2803 = vunpack.c.l.b16 %v2286
          %v2804 = vunpack.c.h.b16 %v2286
          %v2805 = vunpack.c.l.b16 %v2287
          %v2806 = vunpack.c.h.b16 %v2287
          %v2807 = vunpack.c.l.b16 %v2288
          %v2808 = vunpack.c.h.b16 %v2288
          %v2809 = vunpack.c.l.b16 %v2289
          %v2810 = vunpack.c.h.b16 %v2289
          %v2811 = vunpack.c.l.b16 %v2290
          %v2812 = vunpack.c.h.b16 %v2290
          %v2813 = vunpack.c.l.b16 %v2291
          %v2814 = vunpack.c.h.b16 %v2291
          %v2815 = vunpack.c.l.b16 %v2292
          %v2816 = vunpack.c.h.b16 %v2292
          %v2817 = vunpack.c.l.b16 %v2293
          %v2818 = vunpack.c.h.b16 %v2293
          %v2819 = vunpack.c.l.b16 %v2294
          %v2820 = vunpack.c.h.b16 %v2294
          %v2821 = vunpack.c.l.b16 %v2295
          %v2822 = vunpack.c.h.b16 %v2295
          %v2823 = vunpack.c.l.b16 %v2296
          %v2824 = vunpack.c.h.b16 %v2296
          %v2825 = vunpack.c.l.b16 %v2297
          %v2826 = vunpack.c.h.b16 %v2297
          %v2827 = vunpack.c.l.b16 %v2298
          %v2828 = vunpack.c.h.b16 %v2298
          %v2829 = vunpack.c.l.b16 %v2299
          %v2830 = vunpack.c.h.b16 %v2299
          %v2831 = vunpack.c.l.b16 %v2300
          %v2832 = vunpack.c.h.b16 %v2300
          %v2833 = vunpack.c.l.b16 %v2301
          %v2834 = vunpack.c.h.b16 %v2301
          %v2835 = vunpack.c.l.b16 %v2302
          %v2836 = vunpack.c.h.b16 %v2302
          %v2837 = vunpack.c.l.b16 %v2303
          %v2838 = vunpack.c.h.b16 %v2303
          %v2839 = vunpack.c.l.b16 %v2304
          %v2840 = vunpack.c.h.b16 %v2304
          %v2841 = vunpack.c.l.b16 %v2305
          %v2842 = vunpack.c.h.b16 %v2305
          %v2843 = vunpack.c.l.b16 %v2306
          %v2844 = vunpack.c.h.b16 %v2306
          %v2845 = vunpack.c.l.b16 %v2307
          %v2846 = vunpack.c.h.b16 %v2307
          %v2847 = vunpack.c.l.b16 %v2308
          %v2848 = vunpack.c.h.b16 %v2308
          %v2849 = vunpack.c.l.b16 %v2309
          %v2850 = vunpack.c.h.b16 %v2309
          %v2851 = vunpack.c.l.b16 %v2310
          %v2852 = vunpack.c.h.b16 %v2310
          %v2853 = vunpack.c.l.b16 %v2311
          %v2854 = vunpack.c.h.b16 %v2311
          %v2855 = vunpack.c.l.b16 %v2312
          %v2856 = vunpack.c.h.b16 %v2312
          %v2857 = vunpack.c.l.b16 %v2313
          %v2858 = vunpack.c.h.b16 %v2313
          %v2859 = vunpack.c.l.b16 %v2314
          %v2860 = vunpack.c.h.b16 %v2314
          %v2861 = vunpack.c.l.b16 %v2315
          %v2862 = vunpack.c.h.b16 %v2315
          %v2863 = vunpack.c.l.b16 %v2316
          %v2864 = vunpack.c.h.b16 %v2316
          %v2865 = vunpack.c.l.b16 %v2317
          %v2866 = vunpack.c.h.b16 %v2317
          %v2867 = vunpack.c.l.b16 %v2318
          %v2868 = vunpack.c.h.b16 %v2318
          %v2869 = vunpack.c.l.b16 %v2319
          %v2870 = vunpack.c.h.b16 %v2319
          %v2871 = vunpack.c.l.b16 %v2320
          %v2872 = vunpack.c.h.b16 %v2320
          %v2873 = vunpack.c.l.b16 %v2321
          %v2874 = vunpack.c.h.b16 %v2321
          %v2875 = vunpack.c.l.b16 %v2322
          %v2876 = vunpack.c.h.b16 %v2322
          %v2877 = vunpack.c.l.b16 %v2323
          %v2878 = vunpack.c.h.b16 %v2323
          %v2879 = vunpack.c.l.b16 %v2324
          %v2880 = vunpack.c.h.b16 %v2324
          %v2881 = vunpack.c.l.b16 %v2325
          %v2882 = vunpack.c.h.b16 %v2325
          %v2883 = vunpack.c.l.b16 %v2326
          %v2884 = vunpack.c.h.b16 %v2326
          %v2885 = vunpack.c.l.b16 %v2327
          %v2886 = vunpack.c.h.b16 %v2327
          %v2887 = vunpack.c.l.b16 %v2328
          %v2888 = vunpack.c.h.b16 %v2328
          %v2889 = vunpack.c.l.b16 %v2329
          %v2890 = vunpack.c.h.b16 %v2329
          %v2891 = vunpack.c.l.b16 %v2330
          %v2892 = vunpack.c.h.b16 %v2330
          %v2893 = vunpack.c.l.b16 %v2331
          %v2894 = vunpack.c.h.b16 %v2331
          %v2895 = vunpack.c.l.b16 %v2332
          %v2896 = vunpack.c.h.b16 %v2332
          %v2897 = vunpack.c.l.b16 %v2333
          %v2898 = vunpack.c.h.b16 %v2333
          %v2899 = vunpack.c.l.b16 %v2334
          %v2900 = vunpack.c.h.b16 %v2334
          %v2901 = vunpack.c.l.b16 %v2335
          %v2902 = vunpack.c.h.b16 %v2335
          %v2903 = vunpack.c.l.b16 %v2336
          %v2904 = vunpack.c.h.b16 %v2336
          %v2905 = vunpack.c.l.b16 %v2337
          %v2906 = vunpack.c.h.b16 %v2337
          %v2907 = vunpack.c.l.b16 %v2338
          %v2908 = vunpack.c.h.b16 %v2338
          %v2909 = vunpack.c.l.b16 %v2339
          %v2910 = vunpack.c.h.b16 %v2339
          %v2911 = vunpack.c.l.b16 %v2340
          %v2912 = vunpack.c.h.b16 %v2340
          %v2913 = vunpack.c.l.b16 %v2341
          %v2914 = vunpack.c.h.b16 %v2341
          %v2915 = vunpack.c.l.b16 %v2342
          %v2916 = vunpack.c.h.b16 %v2342
          %v2917 = vunpack.c.l.b16 %v2343
          %v2918 = vunpack.c.h.b16 %v2343
          %v2919 = vunpack.c.l.b16 %v2344
          %v2920 = vunpack.c.h.b16 %v2344
          %v2921 = vunpack.c.l.b16 %v2345
          %v2922 = vunpack.c.h.b16 %v2345
          %v2923 = vunpack.c.l.b16 %v2346
          %v2924 = vunpack.c.h.b16 %v2346
          %v2925 = vunpack.c.l.b16 %v2347
          %v2926 = vunpack.c.h.b16 %v2347
          %v2927 = vunpack.c.l.b16 %v2348
          %v2928 = vunpack.c.h.b16 %v2348
          %v2929 = vunpack.c.l.b16 %v2349
          %v2930 = vunpack.c.h.b16 %v2349
          %v2931 = vunpack.c.l.b16 %v2350
          %v2932 = vunpack.c.h.b16 %v2350
          %v2933 = vunpack.c.l.b16 %v2351
          %v2934 = vunpack.c.h.b16 %v2351
          %v2935 = vunpack.c.l.b16 %v2352
          %v2936 = vunpack.c.h.b16 %v2352
          %v2937 = vunpack.c.l.b16 %v2353
          %v2938 = vunpack.c.h.b16 %v2353
          %v2939 = vunpack.c.l.b16 %v2354
          %v2940 = vunpack.c.h.b16 %v2354
          %v2941 = vunpack.c.l.b16 %v2355
          %v2942 = vunpack.c.h.b16 %v2355
          %v2943 = vunpack.c.l.b16 %v2356
          %v2944 = vunpack.c.h.b16 %v2356
          %v2945 = vunpack.c.l.b16 %v2357
          %v2946 = vunpack.c.h.b16 %v2357
          %v2947 = vunpack.c.l.b16 %v2358
          %v2948 = vunpack.c.h.b16 %v2358
          %v2949 = vunpack.c.l.b16 %v2359
          %v2950 = vunpack.c.h.b16 %v2359
          %v2951 = vunpack.c.l.b16 %v2360
          %v2952 = vunpack.c.h.b16 %v2360
          %v2953 = vunpack.c.l.b16 %v2361
          %v2954 = vunpack.c.h.b16 %v2361
          %v2955 = vunpack.c.l.b16 %v2362
          %v2956 = vunpack.c.h.b16 %v2362
          %v2957 = vunpack.c.l.b16 %v2363
          %v2958 = vunpack.c.h.b16 %v2363
          %v2959 = vunpack.c.l.b16 %v2364
          %v2960 = vunpack.c.h.b16 %v2364
          %v2961 = vunpack.c.l.b16 %v2365
          %v2962 = vunpack.c.h.b16 %v2365
          %v2963 = vunpack.c.l.b16 %v2366
          %v2964 = vunpack.c.h.b16 %v2366
          %v2965 = vunpack.c.l.b16 %v2367
          %v2966 = vunpack.c.h.b16 %v2367
          %v2967 = vunpack.c.l.b16 %v2368
          %v2968 = vunpack.c.h.b16 %v2368
          %v2969 = vunpack.c.l.b16 %v2369
          %v2970 = vunpack.c.h.b16 %v2369
          %v2971 = vunpack.c.l.b16 %v2370
          %v2972 = vunpack.c.h.b16 %v2370
          %v2973 = vunpack.c.l.b16 %v2371
          %v2974 = vunpack.c.h.b16 %v2371
          %v2975 = vunpack.c.l.b16 %v2372
          %v2976 = vunpack.c.h.b16 %v2372
          %v2977 = vunpack.c.l.b16 %v2373
          %v2978 = vunpack.c.h.b16 %v2373
          %v2979 = vunpack.c.l.b16 %v2374
          %v2980 = vunpack.c.h.b16 %v2374
          %v2981 = vunpack.c.l.b16 %v2375
          %v2982 = vunpack.c.h.b16 %v2375
          %v2983 = vunpack.c.l.b16 %v2376
          %v2984 = vunpack.c.h.b16 %v2376
          %v2985 = vunpack.c.l.b16 %v2377
          %v2986 = vunpack.c.h.b16 %v2377
          %v2987 = vunpack.c.l.b16 %v2378
          %v2988 = vunpack.c.h.b16 %v2378
          %v2989 = vunpack.c.l.b16 %v2379
          %v2990 = vunpack.c.h.b16 %v2379
          %v2991 = vunpack.c.l.b16 %v2380
          %v2992 = vunpack.c.h.b16 %v2380
          %v2993 = vunpack.c.l.b16 %v2381
          %v2994 = vunpack.c.h.b16 %v2381
          %v2995 = vunpack.c.l.b16 %v2382
          %v2996 = vunpack.c.h.b16 %v2382
          %v2997 = vunpack.c.l.b16 %v2383
          %v2998 = vunpack.c.h.b16 %v2383
          %v2999 = vunpack.c.l.b16 %v2384
          %v3000 = vunpack.c.h.b16 %v2384
          %v3001 = vunpack.c.l.b16 %v2385
          %v3002 = vunpack.c.h.b16 %v2385
          %v3003 = vunpack.c.l.b16 %v2386
          %v3004 = vunpack.c.h.b16 %v2386
          %v3005 = vunpack.c.l.b16 %v2387
          %v3006 = vunpack.c.h.b16 %v2387
          %v3007 = vunpack.c.l.b16 %v2388
          %v3008 = vunpack.c.h.b16 %v2388
          %v3009 = vunpack.c.l.b16 %v2389
          %v3010 = vunpack.c.h.b16 %v2389
          %v3011 = vunpack.c.l.b16 %v2390
          %v3012 = vunpack.c.h.b16 %v2390
          %v3013 = vunpack.c.l.b16 %v2391
          %v3014 = vunpack.c.h.b16 %v2391
          %v3015 = vunpack.c.l.b16 %v2392
          %v3016 = vunpack.c.h.b16 %v2392
          %v3017 = vunpack.c.l.b16 %v2393
          %v3018 = vunpack.c.h.b16 %v2393
          %v3019 = vunpack.c.l.b16 %v2394
          %v3020 = vunpack.c.h.b16 %v2394
          %v3021 = vunpack.c.l.b16 %v2395
          %v3022 = vunpack.c.h.b16 %v2395
          %v3023 = vunpack.c.l.b16 %v2396
          %v3024 = vunpack.c.h.b16 %v2396
          %v3025 = vunpack.c.l.b16 %v2397
          %v3026 = vunpack.c.h.b16 %v2397
          %v3027 = vunpack.c.l.b16 %v2398
          %v3028 = vunpack.c.h.b16 %v2398
          %v3029 = vunpack.c.l.b16 %v2399
          %v3030 = vunpack.c.h.b16 %v2399
          %v3031 = vunpack.c.l.b16 %v2400
          %v3032 = vunpack.c.h.b16 %v2400
          %v3033 = vunpack.c.l.b16 %v2401
          %v3034 = vunpack.c.h.b16 %v2401
          %v3035 = vunpack.c.l.b16 %v2402
          %v3036 = vunpack.c.h.b16 %v2402
          %v3037 = vunpack.c.l.b16 %v2403
          %v3038 = vunpack.c.h.b16 %v2403
          %v3039 = vunpack.c.l.b16 %v2404
          %v3040 = vunpack.c.h.b16 %v2404
          %v3041 = vunpack.c.l.b16 %v2405
          %v3042 = vunpack.c.h.b16 %v2405
          %v3043 = vunpack.c.l.b16 %v2406
          %v3044 = vunpack.c.h.b16 %v2406
          %v3045 = vunpack.c.l.b16 %v2407
          %v3046 = vunpack.c.h.b16 %v2407
          %v3047 = vunpack.c.l.b16 %v2408
          %v3048 = vunpack.c.h.b16 %v2408
          %v3049 = vunpack.c.l.b16 %v2409
          %v3050 = vunpack.c.h.b16 %v2409
          %v3051 = vunpack.c.l.b16 %v2410
          %v3052 = vunpack.c.h.b16 %v2410
          %v3053 = vunpack.c.l.b16 %v2411
          %v3054 = vunpack.c.h.b16 %v2411
          %v3055 = vunpack.c.l.b16 %v2412
          %v3056 = vunpack.c.h.b16 %v2412
          %v3057 = vunpack.c.l.b16 %v2413
          %v3058 = vunpack.c.h.b16 %v2413
          %v3059 = vunpack.c.l.b16 %v2414
          %v3060 = vunpack.c.h.b16 %v2414
          %v3061 = vunpack.c.l.b16 %v2415
          %v3062 = vunpack.c.h.b16 %v2415
          %v3063 = vunpack.c.l.b16 %v2416
          %v3064 = vunpack.c.h.b16 %v2416
          %v3065 = vunpack.c.l.b16 %v2417
          %v3066 = vunpack.c.h.b16 %v2417
          %v3067 = vunpack.c.l.b16 %v2418
          %v3068 = vunpack.c.h.b16 %v2418
          %v3069 = vunpack.c.l.b16 %v2419
          %v3070 = vunpack.c.h.b16 %v2419
          %v3071 = vunpack.c.l.b16 %v2420
          %v3072 = vunpack.c.h.b16 %v2420
          %v3073 = vunpack.c.l.b16 %v2421
          %v3074 = vunpack.c.h.b16 %v2421
          %v3075 = vunpack.c.l.b16 %v2422
          %v3076 = vunpack.c.h.b16 %v2422
          %v3077 = vunpack.c.l.b16 %v2423
          %v3078 = vunpack.c.h.b16 %v2423
          %v3079 = vunpack.c.l.b16 %v2424
          %v3080 = vunpack.c.h.b16 %v2424
          %v3081 = vunpack.c.l.b16 %v2425
          %v3082 = vunpack.c.h.b16 %v2425
          %v3083 = vunpack.c.l.b16 %v2426
          %v3084 = vunpack.c.h.b16 %v2426
          %v3085 = vunpack.c.l.b16 %v2427
          %v3086 = vunpack.c.h.b16 %v2427
          %v3087 = vunpack.c.l.b16 %v2428
          %v3088 = vunpack.c.h.b16 %v2428
          %v3089 = vunpack.c.l.b16 %v2429
          %v3090 = vunpack.c.h.b16 %v2429
          %v3091 = vunpack.c.l.b16 %v2430
          %v3092 = vunpack.c.h.b16 %v2430
          %v3093 = vunpack.c.l.b16 %v2431
          %v3094 = vunpack.c.h.b16 %v2431
          %v3095 = vunpack.c.l.b16 %v2432
          %v3096 = vunpack.c.h.b16 %v2432
          %v3097 = vunpack.c.l.b16 %v2433
          %v3098 = vunpack.c.h.b16 %v2433
          %v3099 = vunpack.c.l.b16 %v2434
          %v3100 = vunpack.c.h.b16 %v2434
          %v3101 = vunpack.c.l.b16 %v2435
          %v3102 = vunpack.c.h.b16 %v2435
          %v3103 = vunpack.c.l.b16 %v2436
          %v3104 = vunpack.c.h.b16 %v2436
          %v3105 = vunpack.c.l.b16 %v2437
          %v3106 = vunpack.c.h.b16 %v2437
          %v3107 = vunpack.c.l.b16 %v2438
          %v3108 = vunpack.c.h.b16 %v2438
          %v3109 = vunpack.c.l.b16 %v2439
          %v3110 = vunpack.c.h.b16 %v2439
          %v3111 = vunpack.c.l.b16 %v2440
          %v3112 = vunpack.c.h.b16 %v2440
          %v3113 = vunpack.c.l.b16 %v2441
          %v3114 = vunpack.c.h.b16 %v2441
          %v3115 = vunpack.c.l.b16 %v2442
          %v3116 = vunpack.c.h.b16 %v2442
          %v3117 = vunpack.c.l.b16 %v2443
          %v3118 = vunpack.c.h.b16 %v2443
          %v3119 = vunpack.c.l.b16 %v2444
          %v3120 = vunpack.c.h.b16 %v2444
          %v3121 = vunpack.c.l.b16 %v2445
          %v3122 = vunpack.c.h.b16 %v2445
          %v3123 = vunpack.c.l.b16 %v2446
          %v3124 = vunpack.c.h.b16 %v2446
          %v3125 = vunpack.c.l.b16 %v2447
          %v3126 = vunpack.c.h.b16 %v2447
          %v3127 = vunpack.c.l.b16 %v2448
          %v3128 = vunpack.c.h.b16 %v2448
          %v3129 = vunpack.c.l.b16 %v2449
          %v3130 = vunpack.c.h.b16 %v2449
          %v3131 = vunpack.c.l.b16 %v2450
          %v3132 = vunpack.c.h.b16 %v2450
          %v3133 = vunpack.c.l.b16 %v2451
          %v3134 = vunpack.c.h.b16 %v2451
          %v3135 = vunpack.c.l.b16 %v2452
          %v3136 = vunpack.c.h.b16 %v2452
          %v3137 = vunpack.c.l.b16 %v2453
          %v3138 = vunpack.c.h.b16 %v2453
          %v3139 = vunpack.c.l.b16 %v2454
          %v3140 = vunpack.c.h.b16 %v2454
          %v3141 = vunpack.c.l.b16 %v2455
          %v3142 = vunpack.c.h.b16 %v2455
          %v3143 = vunpack.c.l.b16 %v2456
          %v3144 = vunpack.c.h.b16 %v2456
          %v3145 = vunpack.c.l.b16 %v2457
          %v3146 = vunpack.c.h.b16 %v2457
          %v3147 = vunpack.c.l.b16 %v2458
          %v3148 = vunpack.c.h.b16 %v2458
          %v3149 = vunpack.c.l.b16 %v2459
          %v3150 = vunpack.c.h.b16 %v2459
          %v3151 = vunpack.c.l.b16 %v2460
          %v3152 = vunpack.c.h.b16 %v2460
          %v3153 = vunpack.c.l.b16 %v2461
          %v3154 = vunpack.c.h.b16 %v2461
          %v3155 = vunpack.c.l.b16 %v2462
          %v3156 = vunpack.c.h.b16 %v2462
          %v3157 = vunpack.c.l.b16 %v2463
          %v3158 = vunpack.c.h.b16 %v2463
          %v3159 = vunpack.c.l.b16 %v2464
          %v3160 = vunpack.c.h.b16 %v2464
          %v3161 = vunpack.c.l.b16 %v2465
          %v3162 = vunpack.c.h.b16 %v2465
          %v3163 = vunpack.c.l.b16 %v2466
          %v3164 = vunpack.c.h.b16 %v2466
          %v3165 = vunpack.c.l.b16 %v2467
          %v3166 = vunpack.c.h.b16 %v2467
          %v3167 = vunpack.c.l.b16 %v2468
          %v3168 = vunpack.c.h.b16 %v2468
          %v3169 = vunpack.c.l.b16 %v2469
          %v3170 = vunpack.c.h.b16 %v2469
          %v3171 = vunpack.c.l.b16 %v2470
          %v3172 = vunpack.c.h.b16 %v2470
          %v3173 = vunpack.c.l.b16 %v2471
          %v3174 = vunpack.c.h.b16 %v2471
          %v3175 = vunpack.c.l.b16 %v2472
          %v3176 = vunpack.c.h.b16 %v2472
          %v3177 = vunpack.c.l.b16 %v2473
          %v3178 = vunpack.c.h.b16 %v2473
          %v3179 = vunpack.c.l.b16 %v2474
          %v3180 = vunpack.c.h.b16 %v2474
          %v3181 = vunpack.c.l.b16 %v2475
          %v3182 = vunpack.c.h.b16 %v2475
          %v3183 = vunpack.c.l.b16 %v2476
          %v3184 = vunpack.c.h.b16 %v2476
          %v3185 = vunpack.c.l.b16 %v2477
          %v3186 = vunpack.c.h.b16 %v2477
          %v3187 = vunpack.c.l.b16 %v2478
          %v3188 = vunpack.c.h.b16 %v2478
          %v3189 = vunpack.c.l.b16 %v2479
          %v3190 = vunpack.c.h.b16 %v2479
          %v3191 = vunpack.c.l.b16 %v2480
          %v3192 = vunpack.c.h.b16 %v2480
          %v3193 = vunpack.c.l.b16 %v2481
          %v3194 = vunpack.c.h.b16 %v2481
          %v3195 = vunpack.c.l.b16 %v2482
          %v3196 = vunpack.c.h.b16 %v2482
          %v3197 = vunpack.c.l.b16 %v2483
          %v3198 = vunpack.c.h.b16 %v2483
          %v3199 = vunpack.c.l.b16 %v2484
          %v3200 = vunpack.c.h.b16 %v2484
          %v3201 = vunpack.c.l.b16 %v2485
          %v3202 = vunpack.c.h.b16 %v2485
          %v3203 = vunpack.c.l.b16 %v2486
          %v3204 = vunpack.c.h.b16 %v2486
          %v3205 = vunpack.c.l.b16 %v2487
          %v3206 = vunpack.c.h.b16 %v2487
          %v3207 = vunpack.c.l.b16 %v2488
          %v3208 = vunpack.c.h.b16 %v2488
          %v3209 = vunpack.c.l.b16 %v2489
          %v3210 = vunpack.c.h.b16 %v2489
          %v3211 = vunpack.c.l.b16 %v2490
          %v3212 = vunpack.c.h.b16 %v2490
          %v3213 = vunpack.c.l.b16 %v2491
          %v3214 = vunpack.c.h.b16 %v2491
          %v3215 = vunpack.c.l.b16 %v2492
          %v3216 = vunpack.c.h.b16 %v2492
          %v3217 = vunpack.c.l.b16 %v2493
          %v3218 = vunpack.c.h.b16 %v2493
          %v3219 = vunpack.c.l.b16 %v2494
          %v3220 = vunpack.c.h.b16 %v2494
          %v3221 = vunpack.c.l.b16 %v2495
          %v3222 = vunpack.c.h.b16 %v2495
          %v3223 = vunpack.c.l.b16 %v2496
          %v3224 = vunpack.c.h.b16 %v2496
          %v3225 = vunpack.c.l.b16 %v2497
          %v3226 = vunpack.c.h.b16 %v2497
          %v3227 = vunpack.c.l.b16 %v2498
          %v3228 = vunpack.c.h.b16 %v2498
          %v3229 = vunpack.c.l.b16 %v2499
          %v3230 = vunpack.c.h.b16 %v2499
          %v3231 = vunpack.c.l.b16 %v2500
          %v3232 = vunpack.c.h.b16 %v2500
          %v3233 = vunpack.c.l.b16 %v2501
          %v3234 = vunpack.c.h.b16 %v2501
          %v3235 = vunpack.c.l.b16 %v2502
          %v3236 = vunpack.c.h.b16 %v2502
          %v3237 = vunpack.c.l.b16 %v2503
          %v3238 = vunpack.c.h.b16 %v2503
          %v3239 = vunpack.c.l.b16 %v2504
          %v3240 = vunpack.c.h.b16 %v2504
          %v3241 = vunpack.c.l.b16 %v2505
          %v3242 = vunpack.c.h.b16 %v2505
          %v3243 = vunpack.c.l.b16 %v2506
          %v3244 = vunpack.c.h.b16 %v2506
          %v3245 = vunpack.c.l.b16 %v2507
          %v3246 = vunpack.c.h.b16 %v2507
          %v3247 = vunpack.c.l.b16 %v2508
          %v3248 = vunpack.c.h.b16 %v2508
          %v3249 = vunpack.c.l.b16 %v2509
          %v3250 = vunpack.c.h.b16 %v2509
          %v3251 = vunpack.c.l.b16 %v2510
          %v3252 = vunpack.c.h.b16 %v2510
          %v3253 = vunpack.c.l.b16 %v2511
          %v3254 = vunpack.c.h.b16 %v2511
          %v3255 = vunpack.c.l.b16 %v2512
          %v3256 = vunpack.c.h.b16 %v2512
          %v3257 = vunpack.c.l.b16 %v2513
          %v3258 = vunpack.c.h.b16 %v2513
          %v3259 = vunpack.c.l.b16 %v2514
          %v3260 = vunpack.c.h.b16 %v2514
          %v3261 = vunpack.c.l.b16 %v2515
          %v3262 = vunpack.c.h.b16 %v2515
          %v3263 = vunpack.c.l.b16 %v2516
          %v3264 = vunpack.c.h.b16 %v2516
          %v3265 = vunpack.c.l.b16 %v2517
          %v3266 = vunpack.c.h.b16 %v2517
          %v3267 = vunpack.c.l.b16 %v2518
          %v3268 = vunpack.c.h.b16 %v2518
          %v3269 = vunpack.c.l.b16 %v2519
          %v3270 = vunpack.c.h.b16 %v2519
          %v3271 = vunpack.c.l.b16 %v2520
          %v3272 = vunpack.c.h.b16 %v2520
          %v3273 = vunpack.c.l.b16 %v2521
          %v3274 = vunpack.c.h.b16 %v2521
          %v3275 = vunpack.c.l.b16 %v2522
          %v3276 = vunpack.c.h.b16 %v2522
          %v3277 = vunpack.c.l.b16 %v2523
          %v3278 = vunpack.c.h.b16 %v2523
          %v3279 = vunpack.c.l.b16 %v2524
          %v3280 = vunpack.c.h.b16 %v2524
          %v3281 = vunpack.c.l.b16 %v2525
          %v3282 = vunpack.c.h.b16 %v2525
          %v3283 = vunpack.c.l.b16 %v2526
          %v3284 = vunpack.c.h.b16 %v2526
          %v3285 = vunpack.c.l.b16 %v2527
          %v3286 = vunpack.c.h.b16 %v2527
          %v3287 = vunpack.c.l.b16 %v2528
          %v3288 = vunpack.c.h.b16 %v2528
          %v3289 = vunpack.c.l.b16 %v2529
          %v3290 = vunpack.c.h.b16 %v2529
          %v3291 = vunpack.c.l.b16 %v2530
          %v3292 = vunpack.c.h.b16 %v2530
          %v3293 = vunpack.c.l.b16 %v2531
          %v3294 = vunpack.c.h.b16 %v2531
          %v3295 = vunpack.c.l.b16 %v2532
          %v3296 = vunpack.c.h.b16 %v2532
          %v3297 = vunpack.c.l.b16 %v2533
          %v3298 = vunpack.c.h.b16 %v2533
          %v3299 = vunpack.c.l.b16 %v2534
          %v3300 = vunpack.c.h.b16 %v2534
          %v3301 = vunpack.c.l.b16 %v2535
          %v3302 = vunpack.c.h.b16 %v2535
          %v3303 = vunpack.c.l.b16 %v2536
          %v3304 = vunpack.c.h.b16 %v2536
          %v3305 = vunpack.c.l.b16 %v2537
          %v3306 = vunpack.c.h.b16 %v2537
          %v3307 = vpack.c.b16 %v2797, %v2795
          %v3308 = vpack.c.b16 %v2798, %v2796
          %v3309 = vpack.c.b16 %v2801, %v2799
          %v3310 = vpack.c.b16 %v2802, %v2800
          %v3311 = vpack.c.b16 %v2805, %v2803
          %v3312 = vpack.c.b16 %v2806, %v2804
          %v3313 = vpack.c.b16 %v2809, %v2807
          %v3314 = vpack.c.b16 %v2810, %v2808
          %v3315 = vpack.c.b16 %v2813, %v2811
          %v3316 = vpack.c.b16 %v2814, %v2812
          %v3317 = vpack.c.b16 %v2817, %v2815
          %v3318 = vpack.c.b16 %v2818, %v2816
          %v3319 = vpack.c.b16 %v2821, %v2819
          %v3320 = vpack.c.b16 %v2822, %v2820
          %v3321 = vpack.c.b16 %v2825, %v2823
          %v3322 = vpack.c.b16 %v2826, %v2824
          %v3323 = vpack.c.b16 %v2829, %v2827
          %v3324 = vpack.c.b16 %v2830, %v2828
          %v3325 = vpack.c.b16 %v2833, %v2831
          %v3326 = vpack.c.b16 %v2834, %v2832
          %v3327 = vpack.c.b16 %v2837, %v2835
          %v3328 = vpack.c.b16 %v2838, %v2836
          %v3329 = vpack.c.b16 %v2841, %v2839
          %v3330 = vpack.c.b16 %v2842, %v2840
          %v3331 = vpack.c.b16 %v2845, %v2843
          %v3332 = vpack.c.b16 %v2846, %v2844
          %v3333 = vpack.c.b16 %v2849, %v2847
          %v3334 = vpack.c.b16 %v2850, %v2848
          %v3335 = vpack.c.b16 %v2853, %v2851
          %v3336 = vpack.c.b16 %v2854, %v2852
          %v3337 = vpack.c.b16 %v2857, %v2855
          %v3338 = vpack.c.b16 %v2858, %v2856
          %v3339 = vpack.c.b16 %v2861, %v2859
          %v3340 = vpack.c.b16 %v2862, %v2860
          %v3341 = vpack.c.b16 %v2865, %v2863
          %v3342 = vpack.c.b16 %v2866, %v2864
          %v3343 = vpack.c.b16 %v2869, %v2867
          %v3344 = vpack.c.b16 %v2870, %v2868
          %v3345 = vpack.c.b16 %v2873, %v2871
          %v3346 = vpack.c.b16 %v2874, %v2872
          %v3347 = vpack.c.b16 %v2877, %v2875
          %v3348 = vpack.c.b16 %v2878, %v2876
          %v3349 = vpack.c.b16 %v2881, %v2879
          %v3350 = vpack.c.b16 %v2882, %v2880
          %v3351 = vpack.c.b16 %v2885, %v2883
          %v3352 = vpack.c.b16 %v2886, %v2884
          %v3353 = vpack.c.b16 %v2889, %v2887
          %v3354 = vpack.c.b16 %v2890, %v2888
          %v3355 = vpack.c.b16 %v2893, %v2891
          %v3356 = vpack.c.b16 %v2894, %v2892
          %v3357 = vpack.c.b16 %v2897, %v2895
          %v3358 = vpack.c.b16 %v2898, %v2896
          %v3359 = vpack.c.b16 %v2901, %v2899
          %v3360 = vpack.c.b16 %v2902, %v2900
          %v3361 = vpack.c.b16 %v2905, %v2903
          %v3362 = vpack.c.b16 %v2906, %v2904
          %v3363 = vpack.c.b16 %v2909, %v2907
          %v3364 = vpack.c.b16 %v2910, %v2908
          %v3365 = vpack.c.b16 %v2913, %v2911
          %v3366 = vpack.c.b16 %v2914, %v2912
          %v3367 = vpack.c.b16 %v2917, %v2915
          %v3368 = vpack.c.b16 %v2918, %v2916
          %v3369 = vpack.c.b16 %v2921, %v2919
          %v3370 = vpack.c.b16 %v2922, %v2920
          %v3371 = vpack.c.b16 %v2925, %v2923
          %v3372 = vpack.c.b16 %v2926, %v2924
          %v3373 = vpack.c.b16 %v2929, %v2927
          %v3374 = vpack.c.b16 %v2930, %v2928
          %v3375 = vpack.c.b16 %v2933, %v2931
          %v3376 = vpack.c.b16 %v2934, %v2932
          %v3377 = vpack.c.b16 %v2937, %v2935
          %v3378 = vpack.c.b16 %v2938, %v2936
          %v3379 = vpack.c.b16 %v2941, %v2939
          %v3380 = vpack.c.b16 %v2942, %v2940
          %v3381 = vpack.c.b16 %v2945, %v2943
          %v3382 = vpack.c.b16 %v2946, %v2944
          %v3383 = vpack.c.b16 %v2949, %v2947
          %v3384 = vpack.c.b16 %v2950, %v2948
          %v3385 = vpack.c.b16 %v2953, %v2951
          %v3386 = vpack.c.b16 %v2954, %v2952
          %v3387 = vpack.c.b16 %v2957, %v2955
          %v3388 = vpack.c.b16 %v2958, %v2956
          %v3389 = vpack.c.b16 %v2961, %v2959
          %v3390 = vpack.c.b16 %v2962, %v2960
          %v3391 = vpack.c.b16 %v2965, %v2963
          %v3392 = vpack.c.b16 %v2966, %v2964
          %v3393 = vpack.c.b16 %v2969, %v2967
          %v3394 = vpack.c.b16 %v2970, %v2968
          %v3395 = vpack.c.b16 %v2973, %v2971
          %v3396 = vpack.c.b16 %v2974, %v2972
          %v3397 = vpack.c.b16 %v2977, %v2975
          %v3398 = vpack.c.b16 %v2978, %v2976
          %v3399 = vpack.c.b16 %v2981, %v2979
          %v3400 = vpack.c.b16 %v2982, %v2980
          %v3401 = vpack.c.b16 %v2985, %v2983
          %v3402 = vpack.c.b16 %v2986, %v2984
          %v3403 = vpack.c.b16 %v2989, %v2987
          %v3404 = vpack.c.b16 %v2990, %v2988
          %v3405 = vpack.c.b16 %v2993, %v2991
          %v3406 = vpack.c.b16 %v2994, %v2992
          %v3407 = vpack.c.b16 %v2997, %v2995
          %v3408 = vpack.c.b16 %v2998, %v2996
          %v3409 = vpack.c.b16 %v3001, %v2999
          %v3410 = vpack.c.b16 %v3002, %v3000
          %v3411 = vpack.c.b16 %v3005, %v3003
          %v3412 = vpack.c.b16 %v3006, %v3004
          %v3413 = vpack.c.b16 %v3009, %v3007
          %v3414 = vpack.c.b16 %v3010, %v3008
          %v3415 = vpack.c.b16 %v3013, %v3011
          %v3416 = vpack.c.b16 %v3014, %v3012
          %v3417 = vpack.c.b16 %v3017, %v3015
          %v3418 = vpack.c.b16 %v3018, %v3016
          %v3419 = vpack.c.b16 %v3021, %v3019
          %v3420 = vpack.c.b16 %v3022, %v3020
          %v3421 = vpack.c.b16 %v3025, %v3023
          %v3422 = vpack.c.b16 %v3026, %v3024
          %v3423 = vpack.c.b16 %v3029, %v3027
          %v3424 = vpack.c.b16 %v3030, %v3028
          %v3425 = vpack.c.b16 %v3033, %v3031
          %v3426 = vpack.c.b16 %v3034, %v3032
          %v3427 = vpack.c.b16 %v3037, %v3035
          %v3428 = vpack.c.b16 %v3038, %v3036
          %v3429 = vpack.c.b16 %v3041, %v3039
          %v3430 = vpack.c.b16 %v3042, %v3040
          %v3431 = vpack.c.b16 %v3045, %v3043
          %v3432 = vpack.c.b16 %v3046, %v3044
          %v3433 = vpack.c.b16 %v3049, %v3047
          %v3434 = vpack.c.b16 %v3050, %v3048
          %v3435 = vpack.c.b16 %v3053, %v3051
          %v3436 = vpack.c.b16 %v3054, %v3052
          %v3437 = vpack.c.b16 %v3057, %v3055
          %v3438 = vpack.c.b16 %v3058, %v3056
          %v3439 = vpack.c.b16 %v3061, %v3059
          %v3440 = vpack.c.b16 %v3062, %v3060
          %v3441 = vpack.c.b16 %v3065, %v3063
          %v3442 = vpack.c.b16 %v3066, %v3064
          %v3443 = vpack.c.b16 %v3069, %v3067
          %v3444 = vpack.c.b16 %v3070, %v3068
          %v3445 = vpack.c.b16 %v3073, %v3071
          %v3446 = vpack.c.b16 %v3074, %v3072
          %v3447 = vpack.c.b16 %v3077, %v3075
          %v3448 = vpack.c.b16 %v3078, %v3076
          %v3449 = vpack.c.b16 %v3081, %v3079
          %v3450 = vpack.c.b16 %v3082, %v3080
          %v3451 = vpack.c.b16 %v3085, %v3083
          %v3452 = vpack.c.b16 %v3086, %v3084
          %v3453 = vpack.c.b16 %v3089, %v3087
          %v3454 = vpack.c.b16 %v3090, %v3088
          %v3455 = vpack.c.b16 %v3093, %v3091
          %v3456 = vpack.c.b16 %v3094, %v3092
          %v3457 = vpack.c.b16 %v3097, %v3095
          %v3458 = vpack.c.b16 %v3098, %v3096
          %v3459 = vpack.c.b16 %v3101, %v3099
          %v3460 = vpack.c.b16 %v3102, %v3100
          %v3461 = vpack.c.b16 %v3105, %v3103
          %v3462 = vpack.c.b16 %v3106, %v3104
          %v3463 = vpack.c.b16 %v3109, %v3107
          %v3464 = vpack.c.b16 %v3110, %v3108
          %v3465 = vpack.c.b16 %v3113, %v3111
          %v3466 = vpack.c.b16 %v3114, %v3112
          %v3467 = vpack.c.b16 %v3117, %v3115
          %v3468 = vpack.c.b16 %v3118, %v3116
          %v3469 = vpack.c.b16 %v3121, %v3119
          %v3470 = vpack.c.b16 %v3122, %v3120
          %v3471 = vpack.c.b16 %v3125, %v3123
          %v3472 = vpack.c.b16 %v3126, %v3124
          %v3473 = vpack.c.b16 %v3129, %v3127
          %v3474 = vpack.c.b16 %v3130, %v3128
          %v3475 = vpack.c.b16 %v3133, %v3131
          %v3476 = vpack.c.b16 %v3134, %v3132
          %v3477 = vpack.c.b16 %v3137, %v3135
          %v3478 = vpack.c.b16 %v3138, %v3136
          %v3479 = vpack.c.b16 %v3141, %v3139
          %v3480 = vpack.c.b16 %v3142, %v3140
          %v3481 = vpack.c.b16 %v3145, %v3143
          %v3482 = vpack.c.b16 %v3146, %v3144
          %v3483 = vpack.c.b16 %v3149, %v3147
          %v3484 = vpack.c.b16 %v3150, %v3148
          %v3485 = vpack.c.b16 %v3153, %v3151
          %v3486 = vpack.c.b16 %v3154, %v3152
          %v3487 = vpack.c.b16 %v3157, %v3155
          %v3488 = vpack.c.b16 %v3158, %v3156
          %v3489 = vpack.c.b16 %v3161, %v3159
          %v3490 = vpack.c.b16 %v3162, %v3160
          %v3491 = vpack.c.b16 %v3165, %v3163
          %v3492 = vpack.c.b16 %v3166, %v3164
          %v3493 = vpack.c.b16 %v3169, %v3167
          %v3494 = vpack.c.b16 %v3170, %v3168
          %v3495 = vpack.c.b16 %v3173, %v3171
          %v3496 = vpack.c.b16 %v3174, %v3172
          %v3497 = vpack.c.b16 %v3177, %v3175
          %v3498 = vpack.c.b16 %v3178, %v3176
          %v3499 = vpack.c.b16 %v3181, %v3179
          %v3500 = vpack.c.b16 %v3182, %v3180
          %v3501 = vpack.c.b16 %v3185, %v3183
          %v3502 = vpack.c.b16 %v3186, %v3184
          %v3503 = vpack.c.b16 %v3189, %v3187
          %v3504 = vpack.c.b16 %v3190, %v3188
          %v3505 = vpack.c.b16 %v3193, %v3191
          %v3506 = vpack.c.b16 %v3194, %v3192
          %v3507 = vpack.c.b16 %v3197, %v3195
          %v3508 = vpack.c.b16 %v3198, %v3196
          %v3509 = vpack.c.b16 %v3201, %v3199
          %v3510 = vpack.c.b16 %v3202, %v3200
          %v3511 = vpack.c.b16 %v3205, %v3203
          %v3512 = vpack.c.b16 %v3206, %v3204
          %v3513 = vpack.c.b16 %v3209, %v3207
          %v3514 = vpack.c.b16 %v3210, %v3208
          %v3515 = vpack.c.b16 %v3213, %v3211
          %v3516 = vpack.c.b16 %v3214, %v3212
          %v3517 = vpack.c.b16 %v3217, %v3215
          %v3518 = vpack.c.b16 %v3218, %v3216
          %v3519 = vpack.c.b16 %v3221, %v3219
          %v3520 = vpack.c.b16 %v3222, %v3220
          %v3521 = vpack.c.b16 %v3225, %v3223
          %v3522 = vpack.c.b16 %v3226, %v3224
          %v3523 = vpack.c.b16 %v3229, %v3227
          %v3524 = vpack.c.b16 %v3230, %v3228
          %v3525 = vpack.c.b16 %v3233, %v3231
          %v3526 = vpack.c.b16 %v3234, %v3232
          %v3527 = vpack.c.b16 %v3237, %v3235
          %v3528 = vpack.c.b16 %v3238, %v3236
          %v3529 = vpack.c.b16 %v3241, %v3239
          %v3530 = vpack.c.b16 %v3242, %v3240
          %v3531 = vpack.c.b16 %v3245, %v3243
          %v3532 = vpack.c.b16 %v3246, %v3244
          %v3533 = vpack.c.b16 %v3249, %v3247
          %v3534 = vpack.c.b16 %v3250, %v3248
          %v3535 = vpack.c.b16 %v3253, %v3251
          %v3536 = vpack.c.b16 %v3254, %v3252
          %v3537 = vpack.c.b16 %v3257, %v3255
          %v3538 = vpack.c.b16 %v3258, %v3256
          %v3539 = vpack.c.b16 %v3261, %v3259
          %v3540 = vpack.c.b16 %v3262, %v3260
          %v3541 = vpack.c.b16 %v3265, %v3263
          %v3542 = vpack.c.b16 %v3266, %v3264
          %v3543 = vpack.c.b16 %v3269, %v3267
          %v3544 = vpack.c.b16 %v3270, %v3268
          %v3545 = vpack.c.b16 %v3273, %v3271
          %v3546 = vpack.c.b16 %v3274, %v3272
          %v3547 = vpack.c.b16 %v3277, %v3275
          %v3548 = vpack.c.b16 %v3278, %v3276
          %v3549 = vpack.c.b16 %v3281, %v3279
          %v3550 = vpack.c.b16 %v3282, %v3280
          %v3551 = vpack.c.b16 %v3285, %v3283
          %v3552 = vpack.c.b16 %v3286, %v3284
          %v3553 = vpack.c.b16 %v3289, %v3287
          %v3554 = vpack.c.b16 %v3290, %v3288
          %v3555 = vpack.c.b16 %v3293, %v3291
          %v3556 = vpack.c.b16 %v3294, %v3292
          %v3557 = vpack.c.b16 %v3297, %v3295
          %v3558 = vpack.c.b16 %v3298, %v3296
          %v3559 = vpack.c.b16 %v3301, %v3299
          %v3560 = vpack.c.b16 %v3302, %v3300
          %v3561 = vpack.c.b16 %v3305, %v3303
          %v3562 = vpack.c.b16 %v3306, %v3304
          %v3820 = vlaneseq
          %v3821 = vshrl.u32 %v3820, 7
          %v3822 = vsub.s32 0, %v3821
          %v3823 = vrot.slane %v2538, %v3822
          %v3824 = vlaneseq
          %v3825 = vshrl.u32 %v3824, 7
          %v3826 = vsub.s32 1, %v3825
          %v3827 = vrot.slane %v2538, %v3826
          %3830 = vmatprep.subr.bf16.mxu0 %v3308
          %3831 = vmatpush1.bf16.msra.mxu0 %v3307
          %3832 = vmatprep.subr.bf16.mxu0 %v3310
          %3833 = vmatpush1.bf16.msra.mxu0 %v3309
          %3834 = vmatprep.subr.bf16.mxu0 %v3312
          %3835 = vmatpush1.bf16.msra.mxu0 %v3311
          %3836 = vmatprep.subr.bf16.mxu0 %v3314
          %3837 = vmatpush1.bf16.msra.mxu0 %v3313
          %3838 = vmatprep.subr.bf16.mxu0 %v3316
          %3839 = vmatpush1.bf16.msra.mxu0 %v3315
          %3840 = vmatprep.subr.bf16.mxu0 %v3318
          %3841 = vmatpush1.bf16.msra.mxu0 %v3317
          %3842 = vmatprep.subr.bf16.mxu0 %v3320
          %3843 = vmatpush1.bf16.msra.mxu0 %v3319
          %3844 = vmatprep.subr.bf16.mxu0 %v3322
          %3845 = vmatpush1.bf16.msra.mxu0 %v3321
          %3846 = vmatprep.subr.bf16.mxu0 %v3324
          %3847 = vmatpush1.bf16.msra.mxu0 %v3323
          %3848 = vmatprep.subr.bf16.mxu0 %v3326
          %3849 = vmatpush1.bf16.msra.mxu0 %v3325
          %3850 = vmatprep.subr.bf16.mxu0 %v3328
          %3851 = vmatpush1.bf16.msra.mxu0 %v3327
          %3852 = vmatprep.subr.bf16.mxu0 %v3330
          %3853 = vmatpush1.bf16.msra.mxu0 %v3329
          %3854 = vmatprep.subr.bf16.mxu0 %v3332
          %3855 = vmatpush1.bf16.msra.mxu0 %v3331
          %3856 = vmatprep.subr.bf16.mxu0 %v3334
          %3857 = vmatpush1.bf16.msra.mxu0 %v3333
          %3858 = vmatprep.subr.bf16.mxu0 %v3336
          %3859 = vmatpush1.bf16.msra.mxu0 %v3335
          %3860 = vmatprep.subr.bf16.mxu0 %v3338
          %3861 = vmatpush1.bf16.msra.mxu0 %v3337
          %3862 = vmatprep.mubr.bf16.mxu0 %v2167
          %3863 = vmatmul.mubr.bf16.gmra.mrb[0].mxu0 %v2166
          %v3864 = vpop.f32.mrb[0].mxu0
          %v3865 = vadd.f32 %v3823, %v3864
          %v3866 = vpop.f32.mrb[0].mxu0
          %v3867 = vadd.f32 %v3827, %v3866
          %v3868 = vpop.f32.mrb[0].mxu0
          %v3869 = vpop.f32.mrb[0].mxu0
          %3870 = vdwg.mxu0
          %3871 = vmatprep.subr.bf16.mxu0 %v3340
          %3872 = vmatpush1.bf16.msra.mxu0 %v3339
          %3873 = vmatprep.subr.bf16.mxu0 %v3342
          %3874 = vmatpush1.bf16.msra.mxu0 %v3341
          %3875 = vmatprep.subr.bf16.mxu0 %v3344
          %3876 = vmatpush1.bf16.msra.mxu0 %v3343
          %3877 = vmatprep.subr.bf16.mxu0 %v3346
          %3878 = vmatpush1.bf16.msra.mxu0 %v3345
          %3879 = vmatprep.subr.bf16.mxu0 %v3348
          %3880 = vmatpush1.bf16.msra.mxu0 %v3347
          %3881 = vmatprep.subr.bf16.mxu0 %v3350
          %3882 = vmatpush1.bf16.msra.mxu0 %v3349
          %3883 = vmatprep.subr.bf16.mxu0 %v3352
          %3884 = vmatpush1.bf16.msra.mxu0 %v3351
          %3885 = vmatprep.subr.bf16.mxu0 %v3354
          %3886 = vmatpush1.bf16.msra.mxu0 %v3353
          %3887 = vmatprep.subr.bf16.mxu0 %v3356
          %3888 = vmatpush1.bf16.msra.mxu0 %v3355
          %3889 = vmatprep.subr.bf16.mxu0 %v3358
          %3890 = vmatpush1.bf16.msra.mxu0 %v3357
          %3891 = vmatprep.subr.bf16.mxu0 %v3360
          %3892 = vmatpush1.bf16.msra.mxu0 %v3359
          %3893 = vmatprep.subr.bf16.mxu0 %v3362
          %3894 = vmatpush1.bf16.msra.mxu0 %v3361
          %3895 = vmatprep.subr.bf16.mxu0 %v3364
          %3896 = vmatpush1.bf16.msra.mxu0 %v3363
          %3897 = vmatprep.subr.bf16.mxu0 %v3366
          %3898 = vmatpush1.bf16.msra.mxu0 %v3365
          %3899 = vmatprep.subr.bf16.mxu0 %v3368
          %3900 = vmatpush1.bf16.msra.mxu0 %v3367
          %3901 = vmatprep.subr.bf16.mxu0 %v3370
          %3902 = vmatpush1.bf16.msra.mxu0 %v3369
          %3903 = vmatprep.mubr.bf16.mxu0 %v2169
          %3904 = vmatmul.mubr.bf16.gmra.mrb[0].mxu0 %v2168
          %v3905 = vpop.f32.mrb[0].mxu0
          %v3906 = vadd.f32 %v3865, %v3905
          %v3907 = vpop.f32.mrb[0].mxu0
          %v3908 = vadd.f32 %v3867, %v3907
          %v3909 = vpop.f32.mrb[0].mxu0
          %v3910 = vpop.f32.mrb[0].mxu0
          %3911 = vdwg.mxu0
          %3912 = vmatprep.subr.bf16.mxu0 %v3372
          %3913 = vmatpush1.bf16.msra.mxu0 %v3371
          %3914 = vmatprep.subr.bf16.mxu0 %v3374
          %3915 = vmatpush1.bf16.msra.mxu0 %v3373
          %3916 = vmatprep.subr.bf16.mxu0 %v3376
          %3917 = vmatpush1.bf16.msra.mxu0 %v3375
          %3918 = vmatprep.subr.bf16.mxu0 %v3378
          %3919 = vmatpush1.bf16.msra.mxu0 %v3377
          %3920 = vmatprep.subr.bf16.mxu0 %v3380
          %3921 = vmatpush1.bf16.msra.mxu0 %v3379
          %3922 = vmatprep.subr.bf16.mxu0 %v3382
          %3923 = vmatpush1.bf16.msra.mxu0 %v3381
          %3924 = vmatprep.subr.bf16.mxu0 %v3384
          %3925 = vmatpush1.bf16.msra.mxu0 %v3383
          %3926 = vmatprep.subr.bf16.mxu0 %v3386
          %3927 = vmatpush1.bf16.msra.mxu0 %v3385
          %3928 = vmatprep.subr.bf16.mxu0 %v3388
          %3929 = vmatpush1.bf16.msra.mxu0 %v3387
          %3930 = vmatprep.subr.bf16.mxu0 %v3390
          %3931 = vmatpush1.bf16.msra.mxu0 %v3389
          %3932 = vmatprep.subr.bf16.mxu0 %v3392
          %3933 = vmatpush1.bf16.msra.mxu0 %v3391
          %3934 = vmatprep.subr.bf16.mxu0 %v3394
          %3935 = vmatpush1.bf16.msra.mxu0 %v3393
          %3936 = vmatprep.subr.bf16.mxu0 %v3396
          %3937 = vmatpush1.bf16.msra.mxu0 %v3395
          %3938 = vmatprep.subr.bf16.mxu0 %v3398
          %3939 = vmatpush1.bf16.msra.mxu0 %v3397
          %3940 = vmatprep.subr.bf16.mxu0 %v3400
          %3941 = vmatpush1.bf16.msra.mxu0 %v3399
          %3942 = vmatprep.subr.bf16.mxu0 %v3402
          %3943 = vmatpush1.bf16.msra.mxu0 %v3401
          %3944 = vmatprep.mubr.bf16.mxu0 %v2171
          %3945 = vmatmul.mubr.bf16.gmra.mrb[0].mxu0 %v2170
          %v3946 = vpop.f32.mrb[0].mxu0
          %v3947 = vadd.f32 %v3906, %v3946
          %v3948 = vpop.f32.mrb[0].mxu0
          %v3949 = vadd.f32 %v3908, %v3948
          %v3950 = vpop.f32.mrb[0].mxu0
          %v3951 = vpop.f32.mrb[0].mxu0
          %3952 = vdwg.mxu0
          %3953 = vmatprep.subr.bf16.mxu0 %v3404
          %3954 = vmatpush1.bf16.msra.mxu0 %v3403
          %3955 = vmatprep.subr.bf16.mxu0 %v3406
          %3956 = vmatpush1.bf16.msra.mxu0 %v3405
          %3957 = vmatprep.subr.bf16.mxu0 %v3408
          %3958 = vmatpush1.bf16.msra.mxu0 %v3407
          %3959 = vmatprep.subr.bf16.mxu0 %v3410
          %3960 = vmatpush1.bf16.msra.mxu0 %v3409
          %3961 = vmatprep.subr.bf16.mxu0 %v3412
          %3962 = vmatpush1.bf16.msra.mxu0 %v3411
          %3963 = vmatprep.subr.bf16.mxu0 %v3414
          %3964 = vmatpush1.bf16.msra.mxu0 %v3413
          %3965 = vmatprep.subr.bf16.mxu0 %v3416
          %3966 = vmatpush1.bf16.msra.mxu0 %v3415
          %3967 = vmatprep.subr.bf16.mxu0 %v3418
          %3968 = vmatpush1.bf16.msra.mxu0 %v3417
          %3969 = vmatprep.subr.bf16.mxu0 %v3420
          %3970 = vmatpush1.bf16.msra.mxu0 %v3419
          %3971 = vmatprep.subr.bf16.mxu0 %v3422
          %3972 = vmatpush1.bf16.msra.mxu0 %v3421
          %3973 = vmatprep.subr.bf16.mxu0 %v3424
          %3974 = vmatpush1.bf16.msra.mxu0 %v3423
          %3975 = vmatprep.subr.bf16.mxu0 %v3426
          %3976 = vmatpush1.bf16.msra.mxu0 %v3425
          %3977 = vmatprep.subr.bf16.mxu0 %v3428
          %3978 = vmatpush1.bf16.msra.mxu0 %v3427
          %3979 = vmatprep.subr.bf16.mxu0 %v3430
          %3980 = vmatpush1.bf16.msra.mxu0 %v3429
          %3981 = vmatprep.subr.bf16.mxu0 %v3432
          %3982 = vmatpush1.bf16.msra.mxu0 %v3431
          %3983 = vmatprep.subr.bf16.mxu0 %v3434
          %3984 = vmatpush1.bf16.msra.mxu0 %v3433
          %3985 = vmatprep.mubr.bf16.mxu0 %v2173
          %3986 = vmatmul.mubr.bf16.gmra.mrb[0].mxu0 %v2172
          %v3987 = vpop.f32.mrb[0].mxu0
          %v3988 = vadd.f32 %v3947, %v3987
          %v3989 = vpop.f32.mrb[0].mxu0
          %v3990 = vadd.f32 %v3949, %v3989
          %v3991 = vpop.f32.mrb[0].mxu0
          %v3992 = vpop.f32.mrb[0].mxu0
          %3993 = vdwg.mxu0
          %3994 = vmatprep.subr.bf16.mxu0 %v3436
          %3995 = vmatpush1.bf16.msra.mxu0 %v3435
          %3996 = vmatprep.subr.bf16.mxu0 %v3438
          %3997 = vmatpush1.bf16.msra.mxu0 %v3437
          %3998 = vmatprep.subr.bf16.mxu0 %v3440
          %3999 = vmatpush1.bf16.msra.mxu0 %v3439
          %4000 = vmatprep.subr.bf16.mxu0 %v3442
          %4001 = vmatpush1.bf16.msra.mxu0 %v3441
          %4002 = vmatprep.subr.bf16.mxu0 %v3444
          %4003 = vmatpush1.bf16.msra.mxu0 %v3443
          %4004 = vmatprep.subr.bf16.mxu0 %v3446
          %4005 = vmatpush1.bf16.msra.mxu0 %v3445
          %4006 = vmatprep.subr.bf16.mxu0 %v3448
          %4007 = vmatpush1.bf16.msra.mxu0 %v3447
          %4008 = vmatprep.subr.bf16.mxu0 %v3450
          %4009 = vmatpush1.bf16.msra.mxu0 %v3449
          %4010 = vmatprep.subr.bf16.mxu0 %v3452
          %4011 = vmatpush1.bf16.msra.mxu0 %v3451
          %4012 = vmatprep.subr.bf16.mxu0 %v3454
          %4013 = vmatpush1.bf16.msra.mxu0 %v3453
          %4014 = vmatprep.subr.bf16.mxu0 %v3456
          %4015 = vmatpush1.bf16.msra.mxu0 %v3455
          %4016 = vmatprep.subr.bf16.mxu0 %v3458
          %4017 = vmatpush1.bf16.msra.mxu0 %v3457
          %4018 = vmatprep.subr.bf16.mxu0 %v3460
          %4019 = vmatpush1.bf16.msra.mxu0 %v3459
          %4020 = vmatprep.subr.bf16.mxu0 %v3462
          %4021 = vmatpush1.bf16.msra.mxu0 %v3461
          %4022 = vmatprep.subr.bf16.mxu0 %v3464
          %4023 = vmatpush1.bf16.msra.mxu0 %v3463
          %4024 = vmatprep.subr.bf16.mxu0 %v3466
          %4025 = vmatpush1.bf16.msra.mxu0 %v3465
          %4026 = vmatprep.mubr.bf16.mxu0 %v2175
          %4027 = vmatmul.mubr.bf16.gmra.mrb[0].mxu0 %v2174
          %v4028 = vpop.f32.mrb[0].mxu0
          %v4029 = vadd.f32 %v3988, %v4028
          %v4030 = vpop.f32.mrb[0].mxu0
          %v4031 = vadd.f32 %v3990, %v4030
          %v4032 = vpop.f32.mrb[0].mxu0
          %v4033 = vpop.f32.mrb[0].mxu0
          %4034 = vdwg.mxu0
          %4035 = vmatprep.subr.bf16.mxu0 %v3468
          %4036 = vmatpush1.bf16.msra.mxu0 %v3467
          %4037 = vmatprep.subr.bf16.mxu0 %v3470
          %4038 = vmatpush1.bf16.msra.mxu0 %v3469
          %4039 = vmatprep.subr.bf16.mxu0 %v3472
          %4040 = vmatpush1.bf16.msra.mxu0 %v3471
          %4041 = vmatprep.subr.bf16.mxu0 %v3474
          %4042 = vmatpush1.bf16.msra.mxu0 %v3473
          %4043 = vmatprep.subr.bf16.mxu0 %v3476
          %4044 = vmatpush1.bf16.msra.mxu0 %v3475
          %4045 = vmatprep.subr.bf16.mxu0 %v3478
          %4046 = vmatpush1.bf16.msra.mxu0 %v3477
          %4047 = vmatprep.subr.bf16.mxu0 %v3480
          %4048 = vmatpush1.bf16.msra.mxu0 %v3479
          %4049 = vmatprep.subr.bf16.mxu0 %v3482
          %4050 = vmatpush1.bf16.msra.mxu0 %v3481
          %4051 = vmatprep.subr.bf16.mxu0 %v3484
          %4052 = vmatpush1.bf16.msra.mxu0 %v3483
          %4053 = vmatprep.subr.bf16.mxu0 %v3486
          %4054 = vmatpush1.bf16.msra.mxu0 %v3485
          %4055 = vmatprep.subr.bf16.mxu0 %v3488
          %4056 = vmatpush1.bf16.msra.mxu0 %v3487
          %4057 = vmatprep.subr.bf16.mxu0 %v3490
          %4058 = vmatpush1.bf16.msra.mxu0 %v3489
          %4059 = vmatprep.subr.bf16.mxu0 %v3492
          %4060 = vmatpush1.bf16.msra.mxu0 %v3491
          %4061 = vmatprep.subr.bf16.mxu0 %v3494
          %4062 = vmatpush1.bf16.msra.mxu0 %v3493
          %4063 = vmatprep.subr.bf16.mxu0 %v3496
          %4064 = vmatpush1.bf16.msra.mxu0 %v3495
          %4065 = vmatprep.subr.bf16.mxu0 %v3498
          %4066 = vmatpush1.bf16.msra.mxu0 %v3497
          %4067 = vmatprep.mubr.bf16.mxu0 %v2177
          %4068 = vmatmul.mubr.bf16.gmra.mrb[0].mxu0 %v2176
          %v4069 = vpop.f32.mrb[0].mxu0
          %v4070 = vadd.f32 %v4029, %v4069
          %v4071 = vpop.f32.mrb[0].mxu0
          %v4072 = vadd.f32 %v4031, %v4071
          %v4073 = vpop.f32.mrb[0].mxu0
          %v4074 = vpop.f32.mrb[0].mxu0
          %4075 = vdwg.mxu0
          %4076 = vmatprep.subr.bf16.mxu0 %v3500
          %4077 = vmatpush1.bf16.msra.mxu0 %v3499
          %4078 = vmatprep.subr.bf16.mxu0 %v3502
          %4079 = vmatpush1.bf16.msra.mxu0 %v3501
          %4080 = vmatprep.subr.bf16.mxu0 %v3504
          %4081 = vmatpush1.bf16.msra.mxu0 %v3503
          %4082 = vmatprep.subr.bf16.mxu0 %v3506
          %4083 = vmatpush1.bf16.msra.mxu0 %v3505
          %4084 = vmatprep.subr.bf16.mxu0 %v3508
          %4085 = vmatpush1.bf16.msra.mxu0 %v3507
          %4086 = vmatprep.subr.bf16.mxu0 %v3510
          %4087 = vmatpush1.bf16.msra.mxu0 %v3509
          %4088 = vmatprep.subr.bf16.mxu0 %v3512
          %4089 = vmatpush1.bf16.msra.mxu0 %v3511
          %4090 = vmatprep.subr.bf16.mxu0 %v3514
          %4091 = vmatpush1.bf16.msra.mxu0 %v3513
          %4092 = vmatprep.subr.bf16.mxu0 %v3516
          %4093 = vmatpush1.bf16.msra.mxu0 %v3515
          %4094 = vmatprep.subr.bf16.mxu0 %v3518
          %4095 = vmatpush1.bf16.msra.mxu0 %v3517
          %4096 = vmatprep.subr.bf16.mxu0 %v3520
          %4097 = vmatpush1.bf16.msra.mxu0 %v3519
          %4098 = vmatprep.subr.bf16.mxu0 %v3522
          %4099 = vmatpush1.bf16.msra.mxu0 %v3521
          %4100 = vmatprep.subr.bf16.mxu0 %v3524
          %4101 = vmatpush1.bf16.msra.mxu0 %v3523
          %4102 = vmatprep.subr.bf16.mxu0 %v3526
          %4103 = vmatpush1.bf16.msra.mxu0 %v3525
          %4104 = vmatprep.subr.bf16.mxu0 %v3528
          %4105 = vmatpush1.bf16.msra.mxu0 %v3527
          %4106 = vmatprep.subr.bf16.mxu0 %v3530
          %4107 = vmatpush1.bf16.msra.mxu0 %v3529
          %4108 = vmatprep.mubr.bf16.mxu0 %v2179
          %4109 = vmatmul.mubr.bf16.gmra.mrb[0].mxu0 %v2178
          %v4110 = vpop.f32.mrb[0].mxu0
          %v4111 = vadd.f32 %v4070, %v4110
          %v4112 = vpop.f32.mrb[0].mxu0
          %v4113 = vadd.f32 %v4072, %v4112
          %v4114 = vpop.f32.mrb[0].mxu0
          %v4115 = vpop.f32.mrb[0].mxu0
          %4116 = vdwg.mxu0
          %4117 = vmatprep.subr.bf16.mxu0 %v3532
          %4118 = vmatpush1.bf16.msra.mxu0 %v3531
          %4119 = vmatprep.subr.bf16.mxu0 %v3534
          %4120 = vmatpush1.bf16.msra.mxu0 %v3533
          %4121 = vmatprep.subr.bf16.mxu0 %v3536
          %4122 = vmatpush1.bf16.msra.mxu0 %v3535
          %4123 = vmatprep.subr.bf16.mxu0 %v3538
          %4124 = vmatpush1.bf16.msra.mxu0 %v3537
          %4125 = vmatprep.subr.bf16.mxu0 %v3540
          %4126 = vmatpush1.bf16.msra.mxu0 %v3539
          %4127 = vmatprep.subr.bf16.mxu0 %v3542
          %4128 = vmatpush1.bf16.msra.mxu0 %v3541
          %4129 = vmatprep.subr.bf16.mxu0 %v3544
          %4130 = vmatpush1.bf16.msra.mxu0 %v3543
          %4131 = vmatprep.subr.bf16.mxu0 %v3546
          %4132 = vmatpush1.bf16.msra.mxu0 %v3545
          %4133 = vmatprep.subr.bf16.mxu0 %v3548
          %4134 = vmatpush1.bf16.msra.mxu0 %v3547
          %4135 = vmatprep.subr.bf16.mxu0 %v3550
          %4136 = vmatpush1.bf16.msra.mxu0 %v3549
          %4137 = vmatprep.subr.bf16.mxu0 %v3552
          %4138 = vmatpush1.bf16.msra.mxu0 %v3551
          %4139 = vmatprep.subr.bf16.mxu0 %v3554
          %4140 = vmatpush1.bf16.msra.mxu0 %v3553
          %4141 = vmatprep.subr.bf16.mxu0 %v3556
          %4142 = vmatpush1.bf16.msra.mxu0 %v3555
          %4143 = vmatprep.subr.bf16.mxu0 %v3558
          %4144 = vmatpush1.bf16.msra.mxu0 %v3557
          %4145 = vmatprep.subr.bf16.mxu0 %v3560
          %4146 = vmatpush1.bf16.msra.mxu0 %v3559
          %4147 = vmatprep.subr.bf16.mxu0 %v3562
          %4148 = vmatpush1.bf16.msra.mxu0 %v3561
          %4149 = vmatprep.mubr.bf16.mxu0 %v2181
          %4150 = vmatmul.mubr.bf16.gmra.mrb[0].mxu0 %v2180
          %v4151 = vpop.f32.mrb[0].mxu0
          %v4152 = vadd.f32 %v4111, %v4151
          %v4153 = vpop.f32.mrb[0].mxu0
          %v4154 = vadd.f32 %v4113, %v4153
          %v4155 = vpop.f32.mrb[0].mxu0
          %v4156 = vpop.f32.mrb[0].mxu0
          %4157 = vdwg.mxu0
          %v4158 = vld [vmem:[%s3] sm:$0xf]
          %v4159 = vld [vmem:[%s3 + $0x4] sm:$0xf]
          %v4160 = vld [vmem:[%s3 + $0x8] sm:$0xf]
          %v4161 = vld [vmem:[%s3 + $0xc] sm:$0xf]
          %v4162 = vld [vmem:[%s3 + $0x10] sm:$0xf]
          %v4163 = vld [vmem:[%s3 + $0x14] sm:$0xf]
          %v4164 = vld [vmem:[%s3 + $0x18] sm:$0xf]
          %v4165 = vld [vmem:[%s3 + $0x1c] sm:$0xf]
          %v4166 = vld [vmem:[%s3 + $0x20] sm:$0xf]
          %v4167 = vld [vmem:[%s3 + $0x24] sm:$0xf]
          %v4168 = vld [vmem:[%s3 + $0x28] sm:$0xf]
          %v4169 = vld [vmem:[%s3 + $0x2c] sm:$0xf]
          %v4170 = vld [vmem:[%s3 + $0x30] sm:$0xf]
          %v4171 = vld [vmem:[%s3 + $0x34] sm:$0xf]
          %v4172 = vld [vmem:[%s3 + $0x38] sm:$0xf]
          %v4173 = vld [vmem:[%s3 + $0x3c] sm:$0xf]
          %v4174 = vld [vmem:[%s3 + $0x40] sm:$0xf]
          %v4175 = vld [vmem:[%s3 + $0x44] sm:$0xf]
          %v4176 = vld [vmem:[%s3 + $0x48] sm:$0xf]
          %v4177 = vld [vmem:[%s3 + $0x4c] sm:$0xf]
          %v4178 = vld [vmem:[%s3 + $0x50] sm:$0xf]
          %v4179 = vld [vmem:[%s3 + $0x54] sm:$0xf]
          %v4180 = vld [vmem:[%s3 + $0x58] sm:$0xf]
          %v4181 = vld [vmem:[%s3 + $0x5c] sm:$0xf]
          %v4182 = vld [vmem:[%s3 + $0x60] sm:$0xf]
          %v4183 = vld [vmem:[%s3 + $0x64] sm:$0xf]
          %v4184 = vld [vmem:[%s3 + $0x68] sm:$0xf]
          %v4185 = vld [vmem:[%s3 + $0x6c] sm:$0xf]
          %v4186 = vld [vmem:[%s3 + $0x70] sm:$0xf]
          %v4187 = vld [vmem:[%s3 + $0x74] sm:$0xf]
          %v4188 = vld [vmem:[%s3 + $0x78] sm:$0xf]
          %v4189 = vld [vmem:[%s3 + $0x7c] sm:$0xf]
          %v4190 = vld [vmem:[%s3 + $0x80] sm:$0xf]
          %v4191 = vld [vmem:[%s3 + $0x84] sm:$0xf]
          %v4192 = vld [vmem:[%s3 + $0x88] sm:$0xf]
          %v4193 = vld [vmem:[%s3 + $0x8c] sm:$0xf]
          %v4194 = vld [vmem:[%s3 + $0x90] sm:$0xf]
          %v4195 = vld [vmem:[%s3 + $0x94] sm:$0xf]
          %v4196 = vld [vmem:[%s3 + $0x98] sm:$0xf]
          %v4197 = vld [vmem:[%s3 + $0x9c] sm:$0xf]
          %v4198 = vld [vmem:[%s3 + $0xa0] sm:$0xf]
          %v4199 = vld [vmem:[%s3 + $0xa4] sm:$0xf]
          %v4200 = vld [vmem:[%s3 + $0xa8] sm:$0xf]
          %v4201 = vld [vmem:[%s3 + $0xac] sm:$0xf]
          %v4202 = vld [vmem:[%s3 + $0xb0] sm:$0xf]
          %v4203 = vld [vmem:[%s3 + $0xb4] sm:$0xf]
          %v4204 = vld [vmem:[%s3 + $0xb8] sm:$0xf]
          %v4205 = vld [vmem:[%s3 + $0xbc] sm:$0xf]
          %v4206 = vld [vmem:[%s3 + $0xc0] sm:$0xf]
          %v4207 = vld [vmem:[%s3 + $0xc4] sm:$0xf]
          %v4208 = vld [vmem:[%s3 + $0xc8] sm:$0xf]
          %v4209 = vld [vmem:[%s3 + $0xcc] sm:$0xf]
          %v4210 = vld [vmem:[%s3 + $0xd0] sm:$0xf]
          %v4211 = vld [vmem:[%s3 + $0xd4] sm:$0xf]
          %v4212 = vld [vmem:[%s3 + $0xd8] sm:$0xf]
          %v4213 = vld [vmem:[%s3 + $0xdc] sm:$0xf]
          %v4214 = vld [vmem:[%s3 + $0xe0] sm:$0xf]
          %v4215 = vld [vmem:[%s3 + $0xe4] sm:$0xf]
          %v4216 = vld [vmem:[%s3 + $0xe8] sm:$0xf]
          %v4217 = vld [vmem:[%s3 + $0xec] sm:$0xf]
          %v4218 = vld [vmem:[%s3 + $0xf0] sm:$0xf]
          %v4219 = vld [vmem:[%s3 + $0xf4] sm:$0xf]
          %v4220 = vld [vmem:[%s3 + $0xf8] sm:$0xf]
          %v4221 = vld [vmem:[%s3 + $0xfc] sm:$0xf]
          %v4222 = vld [vmem:[%s3 + $0x100] sm:$0xf]
          %v4223 = vld [vmem:[%s3 + $0x104] sm:$0xf]
          %v4224 = vld [vmem:[%s3 + $0x108] sm:$0xf]
          %v4225 = vld [vmem:[%s3 + $0x10c] sm:$0xf]
          %v4226 = vld [vmem:[%s3 + $0x110] sm:$0xf]
          %v4227 = vld [vmem:[%s3 + $0x114] sm:$0xf]
          %v4228 = vld [vmem:[%s3 + $0x118] sm:$0xf]
          %v4229 = vld [vmem:[%s3 + $0x11c] sm:$0xf]
          %v4230 = vld [vmem:[%s3 + $0x120] sm:$0xf]
          %v4231 = vld [vmem:[%s3 + $0x124] sm:$0xf]
          %v4232 = vld [vmem:[%s3 + $0x128] sm:$0xf]
          %v4233 = vld [vmem:[%s3 + $0x12c] sm:$0xf]
          %v4234 = vld [vmem:[%s3 + $0x130] sm:$0xf]
          %v4235 = vld [vmem:[%s3 + $0x134] sm:$0xf]
          %v4236 = vld [vmem:[%s3 + $0x138] sm:$0xf]
          %v4237 = vld [vmem:[%s3 + $0x13c] sm:$0xf]
          %v4238 = vld [vmem:[%s3 + $0x140] sm:$0xf]
          %v4239 = vld [vmem:[%s3 + $0x144] sm:$0xf]
          %v4240 = vld [vmem:[%s3 + $0x148] sm:$0xf]
          %v4241 = vld [vmem:[%s3 + $0x14c] sm:$0xf]
          %v4242 = vld [vmem:[%s3 + $0x150] sm:$0xf]
          %v4243 = vld [vmem:[%s3 + $0x154] sm:$0xf]
          %v4244 = vld [vmem:[%s3 + $0x158] sm:$0xf]
          %v4245 = vld [vmem:[%s3 + $0x15c] sm:$0xf]
          %v4246 = vld [vmem:[%s3 + $0x160] sm:$0xf]
          %v4247 = vld [vmem:[%s3 + $0x164] sm:$0xf]
          %v4248 = vld [vmem:[%s3 + $0x168] sm:$0xf]
          %v4249 = vld [vmem:[%s3 + $0x16c] sm:$0xf]
          %v4250 = vld [vmem:[%s3 + $0x170] sm:$0xf]
          %v4251 = vld [vmem:[%s3 + $0x174] sm:$0xf]
          %v4252 = vld [vmem:[%s3 + $0x178] sm:$0xf]
          %v4253 = vld [vmem:[%s3 + $0x17c] sm:$0xf]
          %v4254 = vld [vmem:[%s3 + $0x180] sm:$0xf]
          %v4255 = vld [vmem:[%s3 + $0x184] sm:$0xf]
          %v4256 = vld [vmem:[%s3 + $0x188] sm:$0xf]
          %v4257 = vld [vmem:[%s3 + $0x18c] sm:$0xf]
          %v4258 = vld [vmem:[%s3 + $0x190] sm:$0xf]
          %v4259 = vld [vmem:[%s3 + $0x194] sm:$0xf]
          %v4260 = vld [vmem:[%s3 + $0x198] sm:$0xf]
          %v4261 = vld [vmem:[%s3 + $0x19c] sm:$0xf]
          %v4262 = vld [vmem:[%s3 + $0x1a0] sm:$0xf]
          %v4263 = vld [vmem:[%s3 + $0x1a4] sm:$0xf]
          %v4264 = vld [vmem:[%s3 + $0x1a8] sm:$0xf]
          %v4265 = vld [vmem:[%s3 + $0x1ac] sm:$0xf]
          %v4266 = vld [vmem:[%s3 + $0x1b0] sm:$0xf]
          %v4267 = vld [vmem:[%s3 + $0x1b4] sm:$0xf]
          %v4268 = vld [vmem:[%s3 + $0x1b8] sm:$0xf]
          %v4269 = vld [vmem:[%s3 + $0x1bc] sm:$0xf]
          %v4270 = vld [vmem:[%s3 + $0x1c0] sm:$0xf]
          %v4271 = vld [vmem:[%s3 + $0x1c4] sm:$0xf]
          %v4272 = vld [vmem:[%s3 + $0x1c8] sm:$0xf]
          %v4273 = vld [vmem:[%s3 + $0x1cc] sm:$0xf]
          %v4274 = vld [vmem:[%s3 + $0x1d0] sm:$0xf]
          %v4275 = vld [vmem:[%s3 + $0x1d4] sm:$0xf]
          %v4276 = vld [vmem:[%s3 + $0x1d8] sm:$0xf]
          %v4277 = vld [vmem:[%s3 + $0x1dc] sm:$0xf]
          %v4278 = vld [vmem:[%s3 + $0x1e0] sm:$0xf]
          %v4279 = vld [vmem:[%s3 + $0x1e4] sm:$0xf]
          %v4280 = vld [vmem:[%s3 + $0x1e8] sm:$0xf]
          %v4281 = vld [vmem:[%s3 + $0x1ec] sm:$0xf]
          %v4282 = vld [vmem:[%s3 + $0x1f0] sm:$0xf]
          %v4283 = vld [vmem:[%s3 + $0x1f4] sm:$0xf]
          %v4284 = vld [vmem:[%s3 + $0x1f8] sm:$0xf]
          %v4285 = vld [vmem:[%s3 + $0x1fc] sm:$0xf]
          %v4286 = vld [vmem:[%s3 + $0x200] sm:$0xf]
          %v4287 = vld [vmem:[%s3 + $0x204] sm:$0xf]
          %v4288 = vld [vmem:[%s3 + $0x208] sm:$0xf]
          %v4289 = vld [vmem:[%s3 + $0x20c] sm:$0xf]
          %v4290 = vld [vmem:[%s3 + $0x210] sm:$0xf]
          %v4291 = vld [vmem:[%s3 + $0x214] sm:$0xf]
          %v4292 = vld [vmem:[%s3 + $0x218] sm:$0xf]
          %v4293 = vld [vmem:[%s3 + $0x21c] sm:$0xf]
          %v4294 = vld [vmem:[%s3 + $0x220] sm:$0xf]
          %v4295 = vld [vmem:[%s3 + $0x224] sm:$0xf]
          %v4296 = vld [vmem:[%s3 + $0x228] sm:$0xf]
          %v4297 = vld [vmem:[%s3 + $0x22c] sm:$0xf]
          %v4298 = vld [vmem:[%s3 + $0x230] sm:$0xf]
          %v4299 = vld [vmem:[%s3 + $0x234] sm:$0xf]
          %v4300 = vld [vmem:[%s3 + $0x238] sm:$0xf]
          %v4301 = vld [vmem:[%s3 + $0x23c] sm:$0xf]
          %v4302 = vld [vmem:[%s3 + $0x240] sm:$0xf]
          %v4303 = vld [vmem:[%s3 + $0x244] sm:$0xf]
          %v4304 = vld [vmem:[%s3 + $0x248] sm:$0xf]
          %v4305 = vld [vmem:[%s3 + $0x24c] sm:$0xf]
          %v4306 = vld [vmem:[%s3 + $0x250] sm:$0xf]
          %v4307 = vld [vmem:[%s3 + $0x254] sm:$0xf]
          %v4308 = vld [vmem:[%s3 + $0x258] sm:$0xf]
          %v4309 = vld [vmem:[%s3 + $0x25c] sm:$0xf]
          %v4310 = vld [vmem:[%s3 + $0x260] sm:$0xf]
          %v4311 = vld [vmem:[%s3 + $0x264] sm:$0xf]
          %v4312 = vld [vmem:[%s3 + $0x268] sm:$0xf]
          %v4313 = vld [vmem:[%s3 + $0x26c] sm:$0xf]
          %v4314 = vld [vmem:[%s3 + $0x270] sm:$0xf]
          %v4315 = vld [vmem:[%s3 + $0x274] sm:$0xf]
          %v4316 = vld [vmem:[%s3 + $0x278] sm:$0xf]
          %v4317 = vld [vmem:[%s3 + $0x27c] sm:$0xf]
          %v4318 = vld [vmem:[%s3 + $0x280] sm:$0xf]
          %v4319 = vld [vmem:[%s3 + $0x284] sm:$0xf]
          %v4320 = vld [vmem:[%s3 + $0x288] sm:$0xf]
          %v4321 = vld [vmem:[%s3 + $0x28c] sm:$0xf]
          %v4322 = vld [vmem:[%s3 + $0x290] sm:$0xf]
          %v4323 = vld [vmem:[%s3 + $0x294] sm:$0xf]
          %v4324 = vld [vmem:[%s3 + $0x298] sm:$0xf]
          %v4325 = vld [vmem:[%s3 + $0x29c] sm:$0xf]
          %v4326 = vld [vmem:[%s3 + $0x2a0] sm:$0xf]
          %v4327 = vld [vmem:[%s3 + $0x2a4] sm:$0xf]
          %v4328 = vld [vmem:[%s3 + $0x2a8] sm:$0xf]
          %v4329 = vld [vmem:[%s3 + $0x2ac] sm:$0xf]
          %v4330 = vld [vmem:[%s3 + $0x2b0] sm:$0xf]
          %v4331 = vld [vmem:[%s3 + $0x2b4] sm:$0xf]
          %v4332 = vld [vmem:[%s3 + $0x2b8] sm:$0xf]
          %v4333 = vld [vmem:[%s3 + $0x2bc] sm:$0xf]
          %v4334 = vld [vmem:[%s3 + $0x2c0] sm:$0xf]
          %v4335 = vld [vmem:[%s3 + $0x2c4] sm:$0xf]
          %v4336 = vld [vmem:[%s3 + $0x2c8] sm:$0xf]
          %v4337 = vld [vmem:[%s3 + $0x2cc] sm:$0xf]
          %v4338 = vld [vmem:[%s3 + $0x2d0] sm:$0xf]
          %v4339 = vld [vmem:[%s3 + $0x2d4] sm:$0xf]
          %v4340 = vld [vmem:[%s3 + $0x2d8] sm:$0xf]
          %v4341 = vld [vmem:[%s3 + $0x2dc] sm:$0xf]
          %v4342 = vld [vmem:[%s3 + $0x2e0] sm:$0xf]
          %v4343 = vld [vmem:[%s3 + $0x2e4] sm:$0xf]
          %v4344 = vld [vmem:[%s3 + $0x2e8] sm:$0xf]
          %v4345 = vld [vmem:[%s3 + $0x2ec] sm:$0xf]
          %v4346 = vld [vmem:[%s3 + $0x2f0] sm:$0xf]
          %v4347 = vld [vmem:[%s3 + $0x2f4] sm:$0xf]
          %v4348 = vld [vmem:[%s3 + $0x2f8] sm:$0xf]
          %v4349 = vld [vmem:[%s3 + $0x2fc] sm:$0xf]
          %v4350 = vld [vmem:[%s3 + $0x300] sm:$0xf]
          %v4351 = vld [vmem:[%s3 + $0x304] sm:$0xf]
          %v4352 = vld [vmem:[%s3 + $0x308] sm:$0xf]
          %v4353 = vld [vmem:[%s3 + $0x30c] sm:$0xf]
          %v4354 = vld [vmem:[%s3 + $0x310] sm:$0xf]
          %v4355 = vld [vmem:[%s3 + $0x314] sm:$0xf]
          %v4356 = vld [vmem:[%s3 + $0x318] sm:$0xf]
          %v4357 = vld [vmem:[%s3 + $0x31c] sm:$0xf]
          %v4358 = vld [vmem:[%s3 + $0x320] sm:$0xf]
          %v4359 = vld [vmem:[%s3 + $0x324] sm:$0xf]
          %v4360 = vld [vmem:[%s3 + $0x328] sm:$0xf]
          %v4361 = vld [vmem:[%s3 + $0x32c] sm:$0xf]
          %v4362 = vld [vmem:[%s3 + $0x330] sm:$0xf]
          %v4363 = vld [vmem:[%s3 + $0x334] sm:$0xf]
          %v4364 = vld [vmem:[%s3 + $0x338] sm:$0xf]
          %v4365 = vld [vmem:[%s3 + $0x33c] sm:$0xf]
          %v4366 = vld [vmem:[%s3 + $0x340] sm:$0xf]
          %v4367 = vld [vmem:[%s3 + $0x344] sm:$0xf]
          %v4368 = vld [vmem:[%s3 + $0x348] sm:$0xf]
          %v4369 = vld [vmem:[%s3 + $0x34c] sm:$0xf]
          %v4370 = vld [vmem:[%s3 + $0x350] sm:$0xf]
          %v4371 = vld [vmem:[%s3 + $0x354] sm:$0xf]
          %v4372 = vld [vmem:[%s3 + $0x358] sm:$0xf]
          %v4373 = vld [vmem:[%s3 + $0x35c] sm:$0xf]
          %v4374 = vld [vmem:[%s3 + $0x360] sm:$0xf]
          %v4375 = vld [vmem:[%s3 + $0x364] sm:$0xf]
          %v4376 = vld [vmem:[%s3 + $0x368] sm:$0xf]
          %v4377 = vld [vmem:[%s3 + $0x36c] sm:$0xf]
          %v4378 = vld [vmem:[%s3 + $0x370] sm:$0xf]
          %v4379 = vld [vmem:[%s3 + $0x374] sm:$0xf]
          %v4380 = vld [vmem:[%s3 + $0x378] sm:$0xf]
          %v4381 = vld [vmem:[%s3 + $0x37c] sm:$0xf]
          %v4382 = vld [vmem:[%s3 + $0x380] sm:$0xf]
          %v4383 = vld [vmem:[%s3 + $0x384] sm:$0xf]
          %v4384 = vld [vmem:[%s3 + $0x388] sm:$0xf]
          %v4385 = vld [vmem:[%s3 + $0x38c] sm:$0xf]
          %v4386 = vld [vmem:[%s3 + $0x390] sm:$0xf]
          %v4387 = vld [vmem:[%s3 + $0x394] sm:$0xf]
          %v4388 = vld [vmem:[%s3 + $0x398] sm:$0xf]
          %v4389 = vld [vmem:[%s3 + $0x39c] sm:$0xf]
          %v4390 = vld [vmem:[%s3 + $0x3a0] sm:$0xf]
          %v4391 = vld [vmem:[%s3 + $0x3a4] sm:$0xf]
          %v4392 = vld [vmem:[%s3 + $0x3a8] sm:$0xf]
          %v4393 = vld [vmem:[%s3 + $0x3ac] sm:$0xf]
          %v4394 = vld [vmem:[%s3 + $0x3b0] sm:$0xf]
          %v4395 = vld [vmem:[%s3 + $0x3b4] sm:$0xf]
          %v4396 = vld [vmem:[%s3 + $0x3b8] sm:$0xf]
          %v4397 = vld [vmem:[%s3 + $0x3bc] sm:$0xf]
          %v4398 = vld [vmem:[%s3 + $0x3c0] sm:$0xf]
          %v4399 = vld [vmem:[%s3 + $0x3c4] sm:$0xf]
          %v4400 = vld [vmem:[%s3 + $0x3c8] sm:$0xf]
          %v4401 = vld [vmem:[%s3 + $0x3cc] sm:$0xf]
          %v4402 = vld [vmem:[%s3 + $0x3d0] sm:$0xf]
          %v4403 = vld [vmem:[%s3 + $0x3d4] sm:$0xf]
          %v4404 = vld [vmem:[%s3 + $0x3d8] sm:$0xf]
          %v4405 = vld [vmem:[%s3 + $0x3dc] sm:$0xf]
          %v4406 = vld [vmem:[%s3 + $0x3e0] sm:$0xf]
          %v4407 = vld [vmem:[%s3 + $0x3e4] sm:$0xf]
          %v4408 = vld [vmem:[%s3 + $0x3e8] sm:$0xf]
          %v4409 = vld [vmem:[%s3 + $0x3ec] sm:$0xf]
          %v4410 = vld [vmem:[%s3 + $0x3f0] sm:$0xf]
          %v4411 = vld [vmem:[%s3 + $0x3f4] sm:$0xf]
          %v4412 = vld [vmem:[%s3 + $0x3f8] sm:$0xf]
          %v4413 = vld [vmem:[%s3 + $0x3fc] sm:$0xf]
          %v4414 = vld [vmem:[%s4] sm:$0x1]
          %v4671 = vunpack.c.l.b16 %v4158
          %v4672 = vunpack.c.l.b16 %v4159
          %v4673 = vunpack.c.l.b16 %v4160
          %v4674 = vunpack.c.l.b16 %v4161
          %v4675 = vunpack.c.l.b16 %v4162
          %v4676 = vunpack.c.l.b16 %v4163
          %v4677 = vunpack.c.l.b16 %v4164
          %v4678 = vunpack.c.l.b16 %v4165
          %v4679 = vunpack.c.l.b16 %v4166
          %v4680 = vunpack.c.l.b16 %v4167
          %v4681 = vunpack.c.l.b16 %v4168
          %v4682 = vunpack.c.l.b16 %v4169
          %v4683 = vunpack.c.l.b16 %v4170
          %v4684 = vunpack.c.l.b16 %v4171
          %v4685 = vunpack.c.l.b16 %v4172
          %v4686 = vunpack.c.l.b16 %v4173
          %v4687 = vunpack.c.l.b16 %v4174
          %v4688 = vunpack.c.l.b16 %v4175
          %v4689 = vunpack.c.l.b16 %v4176
          %v4690 = vunpack.c.l.b16 %v4177
          %v4691 = vunpack.c.l.b16 %v4178
          %v4692 = vunpack.c.l.b16 %v4179
          %v4693 = vunpack.c.l.b16 %v4180
          %v4694 = vunpack.c.l.b16 %v4181
          %v4695 = vunpack.c.l.b16 %v4182
          %v4696 = vunpack.c.l.b16 %v4183
          %v4697 = vunpack.c.l.b16 %v4184
          %v4698 = vunpack.c.l.b16 %v4185
          %v4699 = vunpack.c.l.b16 %v4186
          %v4700 = vunpack.c.l.b16 %v4187
          %v4701 = vunpack.c.l.b16 %v4188
          %v4702 = vunpack.c.l.b16 %v4189
          %v4703 = vunpack.c.l.b16 %v4190
          %v4704 = vunpack.c.l.b16 %v4191
          %v4705 = vunpack.c.l.b16 %v4192
          %v4706 = vunpack.c.l.b16 %v4193
          %v4707 = vunpack.c.l.b16 %v4194
          %v4708 = vunpack.c.l.b16 %v4195
          %v4709 = vunpack.c.l.b16 %v4196
          %v4710 = vunpack.c.l.b16 %v4197
          %v4711 = vunpack.c.l.b16 %v4198
          %v4712 = vunpack.c.l.b16 %v4199
          %v4713 = vunpack.c.l.b16 %v4200
          %v4714 = vunpack.c.l.b16 %v4201
          %v4715 = vunpack.c.l.b16 %v4202
          %v4716 = vunpack.c.l.b16 %v4203
          %v4717 = vunpack.c.l.b16 %v4204
          %v4718 = vunpack.c.l.b16 %v4205
          %v4719 = vunpack.c.l.b16 %v4206
          %v4720 = vunpack.c.l.b16 %v4207
          %v4721 = vunpack.c.l.b16 %v4208
          %v4722 = vunpack.c.l.b16 %v4209
          %v4723 = vunpack.c.l.b16 %v4210
          %v4724 = vunpack.c.l.b16 %v4211
          %v4725 = vunpack.c.l.b16 %v4212
          %v4726 = vunpack.c.l.b16 %v4213
          %v4727 = vunpack.c.l.b16 %v4214
          %v4728 = vunpack.c.l.b16 %v4215
          %v4729 = vunpack.c.l.b16 %v4216
          %v4730 = vunpack.c.l.b16 %v4217
          %v4731 = vunpack.c.l.b16 %v4218
          %v4732 = vunpack.c.l.b16 %v4219
          %v4733 = vunpack.c.l.b16 %v4220
          %v4734 = vunpack.c.l.b16 %v4221
          %v4735 = vunpack.c.l.b16 %v4222
          %v4736 = vunpack.c.l.b16 %v4223
          %v4737 = vunpack.c.l.b16 %v4224
          %v4738 = vunpack.c.l.b16 %v4225
          %v4739 = vunpack.c.l.b16 %v4226
          %v4740 = vunpack.c.l.b16 %v4227
          %v4741 = vunpack.c.l.b16 %v4228
          %v4742 = vunpack.c.l.b16 %v4229
          %v4743 = vunpack.c.l.b16 %v4230
          %v4744 = vunpack.c.l.b16 %v4231
          %v4745 = vunpack.c.l.b16 %v4232
          %v4746 = vunpack.c.l.b16 %v4233
          %v4747 = vunpack.c.l.b16 %v4234
          %v4748 = vunpack.c.l.b16 %v4235
          %v4749 = vunpack.c.l.b16 %v4236
          %v4750 = vunpack.c.l.b16 %v4237
          %v4751 = vunpack.c.l.b16 %v4238
          %v4752 = vunpack.c.l.b16 %v4239
          %v4753 = vunpack.c.l.b16 %v4240
          %v4754 = vunpack.c.l.b16 %v4241
          %v4755 = vunpack.c.l.b16 %v4242
          %v4756 = vunpack.c.l.b16 %v4243
          %v4757 = vunpack.c.l.b16 %v4244
          %v4758 = vunpack.c.l.b16 %v4245
          %v4759 = vunpack.c.l.b16 %v4246
          %v4760 = vunpack.c.l.b16 %v4247
          %v4761 = vunpack.c.l.b16 %v4248
          %v4762 = vunpack.c.l.b16 %v4249
          %v4763 = vunpack.c.l.b16 %v4250
          %v4764 = vunpack.c.l.b16 %v4251
          %v4765 = vunpack.c.l.b16 %v4252
          %v4766 = vunpack.c.l.b16 %v4253
          %v4767 = vunpack.c.l.b16 %v4254
          %v4768 = vunpack.c.l.b16 %v4255
          %v4769 = vunpack.c.l.b16 %v4256
          %v4770 = vunpack.c.l.b16 %v4257
          %v4771 = vunpack.c.l.b16 %v4258
          %v4772 = vunpack.c.l.b16 %v4259
          %v4773 = vunpack.c.l.b16 %v4260
          %v4774 = vunpack.c.l.b16 %v4261
          %v4775 = vunpack.c.l.b16 %v4262
          %v4776 = vunpack.c.l.b16 %v4263
          %v4777 = vunpack.c.l.b16 %v4264
          %v4778 = vunpack.c.l.b16 %v4265
          %v4779 = vunpack.c.l.b16 %v4266
          %v4780 = vunpack.c.l.b16 %v4267
          %v4781 = vunpack.c.l.b16 %v4268
          %v4782 = vunpack.c.l.b16 %v4269
          %v4783 = vunpack.c.l.b16 %v4270
          %v4784 = vunpack.c.l.b16 %v4271
          %v4785 = vunpack.c.l.b16 %v4272
          %v4786 = vunpack.c.l.b16 %v4273
          %v4787 = vunpack.c.l.b16 %v4274
          %v4788 = vunpack.c.l.b16 %v4275
          %v4789 = vunpack.c.l.b16 %v4276
          %v4790 = vunpack.c.l.b16 %v4277
          %v4791 = vunpack.c.l.b16 %v4278
          %v4792 = vunpack.c.l.b16 %v4279
          %v4793 = vunpack.c.l.b16 %v4280
          %v4794 = vunpack.c.l.b16 %v4281
          %v4795 = vunpack.c.l.b16 %v4282
          %v4796 = vunpack.c.l.b16 %v4283
          %v4797 = vunpack.c.l.b16 %v4284
          %v4798 = vunpack.c.l.b16 %v4285
          %v4799 = vunpack.c.l.b16 %v4286
          %v4800 = vunpack.c.l.b16 %v4287
          %v4801 = vunpack.c.l.b16 %v4288
          %v4802 = vunpack.c.l.b16 %v4289
          %v4803 = vunpack.c.l.b16 %v4290
          %v4804 = vunpack.c.l.b16 %v4291
          %v4805 = vunpack.c.l.b16 %v4292
          %v4806 = vunpack.c.l.b16 %v4293
          %v4807 = vunpack.c.l.b16 %v4294
          %v4808 = vunpack.c.l.b16 %v4295
          %v4809 = vunpack.c.l.b16 %v4296
          %v4810 = vunpack.c.l.b16 %v4297
          %v4811 = vunpack.c.l.b16 %v4298
          %v4812 = vunpack.c.l.b16 %v4299
          %v4813 = vunpack.c.l.b16 %v4300
          %v4814 = vunpack.c.l.b16 %v4301
          %v4815 = vunpack.c.l.b16 %v4302
          %v4816 = vunpack.c.l.b16 %v4303
          %v4817 = vunpack.c.l.b16 %v4304
          %v4818 = vunpack.c.l.b16 %v4305
          %v4819 = vunpack.c.l.b16 %v4306
          %v4820 = vunpack.c.l.b16 %v4307
          %v4821 = vunpack.c.l.b16 %v4308
          %v4822 = vunpack.c.l.b16 %v4309
          %v4823 = vunpack.c.l.b16 %v4310
          %v4824 = vunpack.c.l.b16 %v4311
          %v4825 = vunpack.c.l.b16 %v4312
          %v4826 = vunpack.c.l.b16 %v4313
          %v4827 = vunpack.c.l.b16 %v4314
          %v4828 = vunpack.c.l.b16 %v4315
          %v4829 = vunpack.c.l.b16 %v4316
          %v4830 = vunpack.c.l.b16 %v4317
          %v4831 = vunpack.c.l.b16 %v4318
          %v4832 = vunpack.c.l.b16 %v4319
          %v4833 = vunpack.c.l.b16 %v4320
          %v4834 = vunpack.c.l.b16 %v4321
          %v4835 = vunpack.c.l.b16 %v4322
          %v4836 = vunpack.c.l.b16 %v4323
          %v4837 = vunpack.c.l.b16 %v4324
          %v4838 = vunpack.c.l.b16 %v4325
          %v4839 = vunpack.c.l.b16 %v4326
          %v4840 = vunpack.c.l.b16 %v4327
          %v4841 = vunpack.c.l.b16 %v4328
          %v4842 = vunpack.c.l.b16 %v4329
          %v4843 = vunpack.c.l.b16 %v4330
          %v4844 = vunpack.c.l.b16 %v4331
          %v4845 = vunpack.c.l.b16 %v4332
          %v4846 = vunpack.c.l.b16 %v4333
          %v4847 = vunpack.c.l.b16 %v4334
          %v4848 = vunpack.c.l.b16 %v4335
          %v4849 = vunpack.c.l.b16 %v4336
          %v4850 = vunpack.c.l.b16 %v4337
          %v4851 = vunpack.c.l.b16 %v4338
          %v4852 = vunpack.c.l.b16 %v4339
          %v4853 = vunpack.c.l.b16 %v4340
          %v4854 = vunpack.c.l.b16 %v4341
          %v4855 = vunpack.c.l.b16 %v4342
          %v4856 = vunpack.c.l.b16 %v4343
          %v4857 = vunpack.c.l.b16 %v4344
          %v4858 = vunpack.c.l.b16 %v4345
          %v4859 = vunpack.c.l.b16 %v4346
          %v4860 = vunpack.c.l.b16 %v4347
          %v4861 = vunpack.c.l.b16 %v4348
          %v4862 = vunpack.c.l.b16 %v4349
          %v4863 = vunpack.c.l.b16 %v4350
          %v4864 = vunpack.c.l.b16 %v4351
          %v4865 = vunpack.c.l.b16 %v4352
          %v4866 = vunpack.c.l.b16 %v4353
          %v4867 = vunpack.c.l.b16 %v4354
          %v4868 = vunpack.c.l.b16 %v4355
          %v4869 = vunpack.c.l.b16 %v4356
          %v4870 = vunpack.c.l.b16 %v4357
          %v4871 = vunpack.c.l.b16 %v4358
          %v4872 = vunpack.c.l.b16 %v4359
          %v4873 = vunpack.c.l.b16 %v4360
          %v4874 = vunpack.c.l.b16 %v4361
          %v4875 = vunpack.c.l.b16 %v4362
          %v4876 = vunpack.c.l.b16 %v4363
          %v4877 = vunpack.c.l.b16 %v4364
          %v4878 = vunpack.c.l.b16 %v4365
          %v4879 = vunpack.c.l.b16 %v4366
          %v4880 = vunpack.c.l.b16 %v4367
          %v4881 = vunpack.c.l.b16 %v4368
          %v4882 = vunpack.c.l.b16 %v4369
          %v4883 = vunpack.c.l.b16 %v4370
          %v4884 = vunpack.c.l.b16 %v4371
          %v4885 = vunpack.c.l.b16 %v4372
          %v4886 = vunpack.c.l.b16 %v4373
          %v4887 = vunpack.c.l.b16 %v4374
          %v4888 = vunpack.c.l.b16 %v4375
          %v4889 = vunpack.c.l.b16 %v4376
          %v4890 = vunpack.c.l.b16 %v4377
          %v4891 = vunpack.c.l.b16 %v4378
          %v4892 = vunpack.c.l.b16 %v4379
          %v4893 = vunpack.c.l.b16 %v4380
          %v4894 = vunpack.c.l.b16 %v4381
          %v4895 = vunpack.c.l.b16 %v4382
          %v4896 = vunpack.c.l.b16 %v4383
          %v4897 = vunpack.c.l.b16 %v4384
          %v4898 = vunpack.c.l.b16 %v4385
          %v4899 = vunpack.c.l.b16 %v4386
          %v4900 = vunpack.c.l.b16 %v4387
          %v4901 = vunpack.c.l.b16 %v4388
          %v4902 = vunpack.c.l.b16 %v4389
          %v4903 = vunpack.c.l.b16 %v4390
          %v4904 = vunpack.c.l.b16 %v4391
          %v4905 = vunpack.c.l.b16 %v4392
          %v4906 = vunpack.c.l.b16 %v4393
          %v4907 = vunpack.c.l.b16 %v4394
          %v4908 = vunpack.c.l.b16 %v4395
          %v4909 = vunpack.c.l.b16 %v4396
          %v4910 = vunpack.c.l.b16 %v4397
          %v4911 = vunpack.c.l.b16 %v4398
          %v4912 = vunpack.c.l.b16 %v4399
          %v4913 = vunpack.c.l.b16 %v4400
          %v4914 = vunpack.c.l.b16 %v4401
          %v4915 = vunpack.c.l.b16 %v4402
          %v4916 = vunpack.c.l.b16 %v4403
          %v4917 = vunpack.c.l.b16 %v4404
          %v4918 = vunpack.c.l.b16 %v4405
          %v4919 = vunpack.c.l.b16 %v4406
          %v4920 = vunpack.c.l.b16 %v4407
          %v4921 = vunpack.c.l.b16 %v4408
          %v4922 = vunpack.c.l.b16 %v4409
          %v4923 = vunpack.c.l.b16 %v4410
          %v4924 = vunpack.c.l.b16 %v4411
          %v4925 = vunpack.c.l.b16 %v4412
          %v4926 = vunpack.c.l.b16 %v4413
          %v4927 = vpack.c.b16 %v4672, %v4671
          %v4928 = vpack.c.b16 %v4674, %v4673
          %v4929 = vpack.c.b16 %v4676, %v4675
          %v4930 = vpack.c.b16 %v4678, %v4677
          %v4931 = vpack.c.b16 %v4680, %v4679
          %v4932 = vpack.c.b16 %v4682, %v4681
          %v4933 = vpack.c.b16 %v4684, %v4683
          %v4934 = vpack.c.b16 %v4686, %v4685
          %v4935 = vpack.c.b16 %v4688, %v4687
          %v4936 = vpack.c.b16 %v4690, %v4689
          %v4937 = vpack.c.b16 %v4692, %v4691
          %v4938 = vpack.c.b16 %v4694, %v4693
          %v4939 = vpack.c.b16 %v4696, %v4695
          %v4940 = vpack.c.b16 %v4698, %v4697
          %v4941 = vpack.c.b16 %v4700, %v4699
          %v4942 = vpack.c.b16 %v4702, %v4701
          %v4943 = vpack.c.b16 %v4704, %v4703
          %v4944 = vpack.c.b16 %v4706, %v4705
          %v4945 = vpack.c.b16 %v4708, %v4707
          %v4946 = vpack.c.b16 %v4710, %v4709
          %v4947 = vpack.c.b16 %v4712, %v4711
          %v4948 = vpack.c.b16 %v4714, %v4713
          %v4949 = vpack.c.b16 %v4716, %v4715
          %v4950 = vpack.c.b16 %v4718, %v4717
          %v4951 = vpack.c.b16 %v4720, %v4719
          %v4952 = vpack.c.b16 %v4722, %v4721
          %v4953 = vpack.c.b16 %v4724, %v4723
          %v4954 = vpack.c.b16 %v4726, %v4725
          %v4955 = vpack.c.b16 %v4728, %v4727
          %v4956 = vpack.c.b16 %v4730, %v4729
          %v4957 = vpack.c.b16 %v4732, %v4731
          %v4958 = vpack.c.b16 %v4734, %v4733
          %v4959 = vpack.c.b16 %v4736, %v4735
          %v4960 = vpack.c.b16 %v4738, %v4737
          %v4961 = vpack.c.b16 %v4740, %v4739
          %v4962 = vpack.c.b16 %v4742, %v4741
          %v4963 = vpack.c.b16 %v4744, %v4743
          %v4964 = vpack.c.b16 %v4746, %v4745
          %v4965 = vpack.c.b16 %v4748, %v4747
          %v4966 = vpack.c.b16 %v4750, %v4749
          %v4967 = vpack.c.b16 %v4752, %v4751
          %v4968 = vpack.c.b16 %v4754, %v4753
          %v4969 = vpack.c.b16 %v4756, %v4755
          %v4970 = vpack.c.b16 %v4758, %v4757
          %v4971 = vpack.c.b16 %v4760, %v4759
          %v4972 = vpack.c.b16 %v4762, %v4761
          %v4973 = vpack.c.b16 %v4764, %v4763
          %v4974 = vpack.c.b16 %v4766, %v4765
          %v4975 = vpack.c.b16 %v4768, %v4767
          %v4976 = vpack.c.b16 %v4770, %v4769
          %v4977 = vpack.c.b16 %v4772, %v4771
          %v4978 = vpack.c.b16 %v4774, %v4773
          %v4979 = vpack.c.b16 %v4776, %v4775
          %v4980 = vpack.c.b16 %v4778, %v4777
          %v4981 = vpack.c.b16 %v4780, %v4779
          %v4982 = vpack.c.b16 %v4782, %v4781
          %v4983 = vpack.c.b16 %v4784, %v4783
          %v4984 = vpack.c.b16 %v4786, %v4785
          %v4985 = vpack.c.b16 %v4788, %v4787
          %v4986 = vpack.c.b16 %v4790, %v4789
          %v4987 = vpack.c.b16 %v4792, %v4791
          %v4988 = vpack.c.b16 %v4794, %v4793
          %v4989 = vpack.c.b16 %v4796, %v4795
          %v4990 = vpack.c.b16 %v4798, %v4797
          %v4991 = vpack.c.b16 %v4800, %v4799
          %v4992 = vpack.c.b16 %v4802, %v4801
          %v4993 = vpack.c.b16 %v4804, %v4803
          %v4994 = vpack.c.b16 %v4806, %v4805
          %v4995 = vpack.c.b16 %v4808, %v4807
          %v4996 = vpack.c.b16 %v4810, %v4809
          %v4997 = vpack.c.b16 %v4812, %v4811
          %v4998 = vpack.c.b16 %v4814, %v4813
          %v4999 = vpack.c.b16 %v4816, %v4815
          %v5000 = vpack.c.b16 %v4818, %v4817
          %v5001 = vpack.c.b16 %v4820, %v4819
          %v5002 = vpack.c.b16 %v4822, %v4821
          %v5003 = vpack.c.b16 %v4824, %v4823
          %v5004 = vpack.c.b16 %v4826, %v4825
          %v5005 = vpack.c.b16 %v4828, %v4827
          %v5006 = vpack.c.b16 %v4830, %v4829
          %v5007 = vpack.c.b16 %v4832, %v4831
          %v5008 = vpack.c.b16 %v4834, %v4833
          %v5009 = vpack.c.b16 %v4836, %v4835
          %v5010 = vpack.c.b16 %v4838, %v4837
          %v5011 = vpack.c.b16 %v4840, %v4839
          %v5012 = vpack.c.b16 %v4842, %v4841
          %v5013 = vpack.c.b16 %v4844, %v4843
          %v5014 = vpack.c.b16 %v4846, %v4845
          %v5015 = vpack.c.b16 %v4848, %v4847
          %v5016 = vpack.c.b16 %v4850, %v4849
          %v5017 = vpack.c.b16 %v4852, %v4851
          %v5018 = vpack.c.b16 %v4854, %v4853
          %v5019 = vpack.c.b16 %v4856, %v4855
          %v5020 = vpack.c.b16 %v4858, %v4857
          %v5021 = vpack.c.b16 %v4860, %v4859
          %v5022 = vpack.c.b16 %v4862, %v4861
          %v5023 = vpack.c.b16 %v4864, %v4863
          %v5024 = vpack.c.b16 %v4866, %v4865
          %v5025 = vpack.c.b16 %v4868, %v4867
          %v5026 = vpack.c.b16 %v4870, %v4869
          %v5027 = vpack.c.b16 %v4872, %v4871
          %v5028 = vpack.c.b16 %v4874, %v4873
          %v5029 = vpack.c.b16 %v4876, %v4875
          %v5030 = vpack.c.b16 %v4878, %v4877
          %v5031 = vpack.c.b16 %v4880, %v4879
          %v5032 = vpack.c.b16 %v4882, %v4881
          %v5033 = vpack.c.b16 %v4884, %v4883
          %v5034 = vpack.c.b16 %v4886, %v4885
          %v5035 = vpack.c.b16 %v4888, %v4887
          %v5036 = vpack.c.b16 %v4890, %v4889
          %v5037 = vpack.c.b16 %v4892, %v4891
          %v5038 = vpack.c.b16 %v4894, %v4893
          %v5039 = vpack.c.b16 %v4896, %v4895
          %v5040 = vpack.c.b16 %v4898, %v4897
          %v5041 = vpack.c.b16 %v4900, %v4899
          %v5042 = vpack.c.b16 %v4902, %v4901
          %v5043 = vpack.c.b16 %v4904, %v4903
          %v5044 = vpack.c.b16 %v4906, %v4905
          %v5045 = vpack.c.b16 %v4908, %v4907
          %v5046 = vpack.c.b16 %v4910, %v4909
          %v5047 = vpack.c.b16 %v4912, %v4911
          %v5048 = vpack.c.b16 %v4914, %v4913
          %v5049 = vpack.c.b16 %v4916, %v4915
          %v5050 = vpack.c.b16 %v4918, %v4917
          %v5051 = vpack.c.b16 %v4920, %v4919
          %v5052 = vpack.c.b16 %v4922, %v4921
          %v5053 = vpack.c.b16 %v4924, %v4923
          %v5054 = vpack.c.b16 %v4926, %v4925
          %5183 = vmatprep.subr.bf16.mxu0 0
          %5184 = vmatpush1.bf16.msra.mxu0 %v4927
          %5185 = vmatprep.subr.bf16.mxu0 0
          %5186 = vmatpush1.bf16.msra.mxu0 %v4928
          %5187 = vmatprep.subr.bf16.mxu0 0
          %5188 = vmatpush1.bf16.msra.mxu0 %v4929
          %5189 = vmatprep.subr.bf16.mxu0 0
          %5190 = vmatpush1.bf16.msra.mxu0 %v4930
          %5191 = vmatprep.subr.bf16.mxu0 0
          %5192 = vmatpush1.bf16.msra.mxu0 %v4931
          %5193 = vmatprep.subr.bf16.mxu0 0
          %5194 = vmatpush1.bf16.msra.mxu0 %v4932
          %5195 = vmatprep.subr.bf16.mxu0 0
          %5196 = vmatpush1.bf16.msra.mxu0 %v4933
          %5197 = vmatprep.subr.bf16.mxu0 0
          %5198 = vmatpush1.bf16.msra.mxu0 %v4934
          %5199 = vmatprep.subr.bf16.mxu0 0
          %5200 = vmatpush1.bf16.msra.mxu0 %v4935
          %5201 = vmatprep.subr.bf16.mxu0 0
          %5202 = vmatpush1.bf16.msra.mxu0 %v4936
          %5203 = vmatprep.subr.bf16.mxu0 0
          %5204 = vmatpush1.bf16.msra.mxu0 %v4937
          %5205 = vmatprep.subr.bf16.mxu0 0
          %5206 = vmatpush1.bf16.msra.mxu0 %v4938
          %5207 = vmatprep.subr.bf16.mxu0 0
          %5208 = vmatpush1.bf16.msra.mxu0 %v4939
          %5209 = vmatprep.subr.bf16.mxu0 0
          %5210 = vmatpush1.bf16.msra.mxu0 %v4940
          %5211 = vmatprep.subr.bf16.mxu0 0
          %5212 = vmatpush1.bf16.msra.mxu0 %v4941
          %5213 = vmatprep.subr.bf16.mxu0 0
          %5214 = vmatpush1.bf16.msra.mxu0 %v4942
          %5215 = vmatprep.mubr.bf16.mxu0 %v2267
          %5216 = vmatmul.mubr.bf16.gmra.mrb[0].mxu0 %v2266
          %v5217 = vpop.f32.mrb[0].mxu0
          %v5218 = vadd.f32 %v4414, %v5217
          %v5219 = vpop.f32.mrb[0].mxu0
          %v5220 = vpop.f32.mrb[0].mxu0
          %v5221 = vpop.f32.mrb[0].mxu0
          %5222 = vdwg.mxu0
          %5223 = vmatprep.subr.bf16.mxu0 0
          %5224 = vmatpush1.bf16.msra.mxu0 %v4943
          %5225 = vmatprep.subr.bf16.mxu0 0
          %5226 = vmatpush1.bf16.msra.mxu0 %v4944
          %5227 = vmatprep.subr.bf16.mxu0 0
          %5228 = vmatpush1.bf16.msra.mxu0 %v4945
          %5229 = vmatprep.subr.bf16.mxu0 0
          %5230 = vmatpush1.bf16.msra.mxu0 %v4946
          %5231 = vmatprep.subr.bf16.mxu0 0
          %5232 = vmatpush1.bf16.msra.mxu0 %v4947
          %5233 = vmatprep.subr.bf16.mxu0 0
          %5234 = vmatpush1.bf16.msra.mxu0 %v4948
          %5235 = vmatprep.subr.bf16.mxu0 0
          %5236 = vmatpush1.bf16.msra.mxu0 %v4949
          %5237 = vmatprep.subr.bf16.mxu0 0
          %5238 = vmatpush1.bf16.msra.mxu0 %v4950
          %5239 = vmatprep.subr.bf16.mxu0 0
          %5240 = vmatpush1.bf16.msra.mxu0 %v4951
          %5241 = vmatprep.subr.bf16.mxu0 0
          %5242 = vmatpush1.bf16.msra.mxu0 %v4952
          %5243 = vmatprep.subr.bf16.mxu0 0
          %5244 = vmatpush1.bf16.msra.mxu0 %v4953
          %5245 = vmatprep.subr.bf16.mxu0 0
          %5246 = vmatpush1.bf16.msra.mxu0 %v4954
          %5247 = vmatprep.subr.bf16.mxu0 0
          %5248 = vmatpush1.bf16.msra.mxu0 %v4955
          %5249 = vmatprep.subr.bf16.mxu0 0
          %5250 = vmatpush1.bf16.msra.mxu0 %v4956
          %5251 = vmatprep.subr.bf16.mxu0 0
          %5252 = vmatpush1.bf16.msra.mxu0 %v4957
          %5253 = vmatprep.subr.bf16.mxu0 0
          %5254 = vmatpush1.bf16.msra.mxu0 %v4958
          %5255 = vmatprep.mubr.bf16.mxu0 %v2269
          %5256 = vmatmul.mubr.bf16.gmra.mrb[0].mxu0 %v2268
          %v5257 = vpop.f32.mrb[0].mxu0
          %v5258 = vadd.f32 %v5218, %v5257
          %v5259 = vpop.f32.mrb[0].mxu0
          %v5260 = vpop.f32.mrb[0].mxu0
          %v5261 = vpop.f32.mrb[0].mxu0
          %5262 = vdwg.mxu0
          %5263 = vmatprep.subr.bf16.mxu0 0
          %5264 = vmatpush1.bf16.msra.mxu0 %v4959
          %5265 = vmatprep.subr.bf16.mxu0 0
          %5266 = vmatpush1.bf16.msra.mxu0 %v4960
          %5267 = vmatprep.subr.bf16.mxu0 0
          %5268 = vmatpush1.bf16.msra.mxu0 %v4961
          %5269 = vmatprep.subr.bf16.mxu0 0
          %5270 = vmatpush1.bf16.msra.mxu0 %v4962
          %5271 = vmatprep.subr.bf16.mxu0 0
          %5272 = vmatpush1.bf16.msra.mxu0 %v4963
          %5273 = vmatprep.subr.bf16.mxu0 0
          %5274 = vmatpush1.bf16.msra.mxu0 %v4964
          %5275 = vmatprep.subr.bf16.mxu0 0
          %5276 = vmatpush1.bf16.msra.mxu0 %v4965
          %5277 = vmatprep.subr.bf16.mxu0 0
          %5278 = vmatpush1.bf16.msra.mxu0 %v4966
          %5279 = vmatprep.subr.bf16.mxu0 0
          %5280 = vmatpush1.bf16.msra.mxu0 %v4967
          %5281 = vmatprep.subr.bf16.mxu0 0
          %5282 = vmatpush1.bf16.msra.mxu0 %v4968
          %5283 = vmatprep.subr.bf16.mxu0 0
          %5284 = vmatpush1.bf16.msra.mxu0 %v4969
          %5285 = vmatprep.subr.bf16.mxu0 0
          %5286 = vmatpush1.bf16.msra.mxu0 %v4970
          %5287 = vmatprep.subr.bf16.mxu0 0
          %5288 = vmatpush1.bf16.msra.mxu0 %v4971
          %5289 = vmatprep.subr.bf16.mxu0 0
          %5290 = vmatpush1.bf16.msra.mxu0 %v4972
          %5291 = vmatprep.subr.bf16.mxu0 0
          %5292 = vmatpush1.bf16.msra.mxu0 %v4973
          %5293 = vmatprep.subr.bf16.mxu0 0
          %5294 = vmatpush1.bf16.msra.mxu0 %v4974
          %5295 = vmatprep.mubr.bf16.mxu0 %v2271
          %5296 = vmatmul.mubr.bf16.gmra.mrb[0].mxu0 %v2270
          %v5297 = vpop.f32.mrb[0].mxu0
          %v5298 = vadd.f32 %v5258, %v5297
          %v5299 = vpop.f32.mrb[0].mxu0
          %v5300 = vpop.f32.mrb[0].mxu0
          %v5301 = vpop.f32.mrb[0].mxu0
          %5302 = vdwg.mxu0
          %5303 = vmatprep.subr.bf16.mxu0 0
          %5304 = vmatpush1.bf16.msra.mxu0 %v4975
          %5305 = vmatprep.subr.bf16.mxu0 0
          %5306 = vmatpush1.bf16.msra.mxu0 %v4976
          %5307 = vmatprep.subr.bf16.mxu0 0
          %5308 = vmatpush1.bf16.msra.mxu0 %v4977
          %5309 = vmatprep.subr.bf16.mxu0 0
          %5310 = vmatpush1.bf16.msra.mxu0 %v4978
          %5311 = vmatprep.subr.bf16.mxu0 0
          %5312 = vmatpush1.bf16.msra.mxu0 %v4979
          %5313 = vmatprep.subr.bf16.mxu0 0
          %5314 = vmatpush1.bf16.msra.mxu0 %v4980
          %5315 = vmatprep.subr.bf16.mxu0 0
          %5316 = vmatpush1.bf16.msra.mxu0 %v4981
          %5317 = vmatprep.subr.bf16.mxu0 0
          %5318 = vmatpush1.bf16.msra.mxu0 %v4982
          %5319 = vmatprep.subr.bf16.mxu0 0
          %5320 = vmatpush1.bf16.msra.mxu0 %v4983
          %5321 = vmatprep.subr.bf16.mxu0 0
          %5322 = vmatpush1.bf16.msra.mxu0 %v4984
          %5323 = vmatprep.subr.bf16.mxu0 0
          %5324 = vmatpush1.bf16.msra.mxu0 %v4985
          %5325 = vmatprep.subr.bf16.mxu0 0
          %5326 = vmatpush1.bf16.msra.mxu0 %v4986
          %5327 = vmatprep.subr.bf16.mxu0 0
          %5328 = vmatpush1.bf16.msra.mxu0 %v4987
          %5329 = vmatprep.subr.bf16.mxu0 0
          %5330 = vmatpush1.bf16.msra.mxu0 %v4988
          %5331 = vmatprep.subr.bf16.mxu0 0
          %5332 = vmatpush1.bf16.msra.mxu0 %v4989
          %5333 = vmatprep.subr.bf16.mxu0 0
          %5334 = vmatpush1.bf16.msra.mxu0 %v4990
          %5335 = vmatprep.mubr.bf16.mxu0 %v2273
          %5336 = vmatmul.mubr.bf16.gmra.mrb[0].mxu0 %v2272
          %v5337 = vpop.f32.mrb[0].mxu0
          %v5338 = vadd.f32 %v5298, %v5337
          %v5339 = vpop.f32.mrb[0].mxu0
          %v5340 = vpop.f32.mrb[0].mxu0
          %v5341 = vpop.f32.mrb[0].mxu0
          %5342 = vdwg.mxu0
          %5343 = vmatprep.subr.bf16.mxu0 0
          %5344 = vmatpush1.bf16.msra.mxu0 %v4991
          %5345 = vmatprep.subr.bf16.mxu0 0
          %5346 = vmatpush1.bf16.msra.mxu0 %v4992
          %5347 = vmatprep.subr.bf16.mxu0 0
          %5348 = vmatpush1.bf16.msra.mxu0 %v4993
          %5349 = vmatprep.subr.bf16.mxu0 0
          %5350 = vmatpush1.bf16.msra.mxu0 %v4994
          %5351 = vmatprep.subr.bf16.mxu0 0
          %5352 = vmatpush1.bf16.msra.mxu0 %v4995
          %5353 = vmatprep.subr.bf16.mxu0 0
          %5354 = vmatpush1.bf16.msra.mxu0 %v4996
          %5355 = vmatprep.subr.bf16.mxu0 0
          %5356 = vmatpush1.bf16.msra.mxu0 %v4997
          %5357 = vmatprep.subr.bf16.mxu0 0
          %5358 = vmatpush1.bf16.msra.mxu0 %v4998
          %5359 = vmatprep.subr.bf16.mxu0 0
          %5360 = vmatpush1.bf16.msra.mxu0 %v4999
          %5361 = vmatprep.subr.bf16.mxu0 0
          %5362 = vmatpush1.bf16.msra.mxu0 %v5000
          %5363 = vmatprep.subr.bf16.mxu0 0
          %5364 = vmatpush1.bf16.msra.mxu0 %v5001
          %5365 = vmatprep.subr.bf16.mxu0 0
          %5366 = vmatpush1.bf16.msra.mxu0 %v5002
          %5367 = vmatprep.subr.bf16.mxu0 0
          %5368 = vmatpush1.bf16.msra.mxu0 %v5003
          %5369 = vmatprep.subr.bf16.mxu0 0
          %5370 = vmatpush1.bf16.msra.mxu0 %v5004
          %5371 = vmatprep.subr.bf16.mxu0 0
          %5372 = vmatpush1.bf16.msra.mxu0 %v5005
          %5373 = vmatprep.subr.bf16.mxu0 0
          %5374 = vmatpush1.bf16.msra.mxu0 %v5006
          %5375 = vmatprep.mubr.bf16.mxu0 %v2275
          %5376 = vmatmul.mubr.bf16.gmra.mrb[0].mxu0 %v2274
          %v5377 = vpop.f32.mrb[0].mxu0
          %v5378 = vadd.f32 %v5338, %v5377
          %v5379 = vpop.f32.mrb[0].mxu0
          %v5380 = vpop.f32.mrb[0].mxu0
          %v5381 = vpop.f32.mrb[0].mxu0
          %5382 = vdwg.mxu0
          %5383 = vmatprep.subr.bf16.mxu0 0
          %5384 = vmatpush1.bf16.msra.mxu0 %v5007
          %5385 = vmatprep.subr.bf16.mxu0 0
          %5386 = vmatpush1.bf16.msra.mxu0 %v5008
          %5387 = vmatprep.subr.bf16.mxu0 0
          %5388 = vmatpush1.bf16.msra.mxu0 %v5009
          %5389 = vmatprep.subr.bf16.mxu0 0
          %5390 = vmatpush1.bf16.msra.mxu0 %v5010
          %5391 = vmatprep.subr.bf16.mxu0 0
          %5392 = vmatpush1.bf16.msra.mxu0 %v5011
          %5393 = vmatprep.subr.bf16.mxu0 0
          %5394 = vmatpush1.bf16.msra.mxu0 %v5012
          %5395 = vmatprep.subr.bf16.mxu0 0
          %5396 = vmatpush1.bf16.msra.mxu0 %v5013
          %5397 = vmatprep.subr.bf16.mxu0 0
          %5398 = vmatpush1.bf16.msra.mxu0 %v5014
          %5399 = vmatprep.subr.bf16.mxu0 0
          %5400 = vmatpush1.bf16.msra.mxu0 %v5015
          %5401 = vmatprep.subr.bf16.mxu0 0
          %5402 = vmatpush1.bf16.msra.mxu0 %v5016
          %5403 = vmatprep.subr.bf16.mxu0 0
          %5404 = vmatpush1.bf16.msra.mxu0 %v5017
          %5405 = vmatprep.subr.bf16.mxu0 0
          %5406 = vmatpush1.bf16.msra.mxu0 %v5018
          %5407 = vmatprep.subr.bf16.mxu0 0
          %5408 = vmatpush1.bf16.msra.mxu0 %v5019
          %5409 = vmatprep.subr.bf16.mxu0 0
          %5410 = vmatpush1.bf16.msra.mxu0 %v5020
          %5411 = vmatprep.subr.bf16.mxu0 0
          %5412 = vmatpush1.bf16.msra.mxu0 %v5021
          %5413 = vmatprep.subr.bf16.mxu0 0
          %5414 = vmatpush1.bf16.msra.mxu0 %v5022
          %5415 = vmatprep.mubr.bf16.mxu0 %v2277
          %5416 = vmatmul.mubr.bf16.gmra.mrb[0].mxu0 %v2276
          %v5417 = vpop.f32.mrb[0].mxu0
          %v5418 = vadd.f32 %v5378, %v5417
          %v5419 = vpop.f32.mrb[0].mxu0
          %v5420 = vpop.f32.mrb[0].mxu0
          %v5421 = vpop.f32.mrb[0].mxu0
          %5422 = vdwg.mxu0
          %5423 = vmatprep.subr.bf16.mxu0 0
          %5424 = vmatpush1.bf16.msra.mxu0 %v5023
          %5425 = vmatprep.subr.bf16.mxu0 0
          %5426 = vmatpush1.bf16.msra.mxu0 %v5024
          %5427 = vmatprep.subr.bf16.mxu0 0
          %5428 = vmatpush1.bf16.msra.mxu0 %v5025
          %5429 = vmatprep.subr.bf16.mxu0 0
          %5430 = vmatpush1.bf16.msra.mxu0 %v5026
          %5431 = vmatprep.subr.bf16.mxu0 0
          %5432 = vmatpush1.bf16.msra.mxu0 %v5027
          %5433 = vmatprep.subr.bf16.mxu0 0
          %5434 = vmatpush1.bf16.msra.mxu0 %v5028
          %5435 = vmatprep.subr.bf16.mxu0 0
          %5436 = vmatpush1.bf16.msra.mxu0 %v5029
          %5437 = vmatprep.subr.bf16.mxu0 0
          %5438 = vmatpush1.bf16.msra.mxu0 %v5030
          %5439 = vmatprep.subr.bf16.mxu0 0
          %5440 = vmatpush1.bf16.msra.mxu0 %v5031
          %5441 = vmatprep.subr.bf16.mxu0 0
          %5442 = vmatpush1.bf16.msra.mxu0 %v5032
          %5443 = vmatprep.subr.bf16.mxu0 0
          %5444 = vmatpush1.bf16.msra.mxu0 %v5033
          %5445 = vmatprep.subr.bf16.mxu0 0
          %5446 = vmatpush1.bf16.msra.mxu0 %v5034
          %5447 = vmatprep.subr.bf16.mxu0 0
          %5448 = vmatpush1.bf16.msra.mxu0 %v5035
          %5449 = vmatprep.subr.bf16.mxu0 0
          %5450 = vmatpush1.bf16.msra.mxu0 %v5036
          %5451 = vmatprep.subr.bf16.mxu0 0
          %5452 = vmatpush1.bf16.msra.mxu0 %v5037
          %5453 = vmatprep.subr.bf16.mxu0 0
          %5454 = vmatpush1.bf16.msra.mxu0 %v5038
          %5455 = vmatprep.mubr.bf16.mxu0 %v2279
          %5456 = vmatmul.mubr.bf16.gmra.mrb[0].mxu0 %v2278
          %v5457 = vpop.f32.mrb[0].mxu0
          %v5458 = vadd.f32 %v5418, %v5457
          %v5459 = vpop.f32.mrb[0].mxu0
          %v5460 = vpop.f32.mrb[0].mxu0
          %v5461 = vpop.f32.mrb[0].mxu0
          %5462 = vdwg.mxu0
          %5463 = vmatprep.subr.bf16.mxu0 0
          %5464 = vmatpush1.bf16.msra.mxu0 %v5039
          %5465 = vmatprep.subr.bf16.mxu0 0
          %5466 = vmatpush1.bf16.msra.mxu0 %v5040
          %5467 = vmatprep.subr.bf16.mxu0 0
          %5468 = vmatpush1.bf16.msra.mxu0 %v5041
          %5469 = vmatprep.subr.bf16.mxu0 0
          %5470 = vmatpush1.bf16.msra.mxu0 %v5042
          %5471 = vmatprep.subr.bf16.mxu0 0
          %5472 = vmatpush1.bf16.msra.mxu0 %v5043
          %5473 = vmatprep.subr.bf16.mxu0 0
          %5474 = vmatpush1.bf16.msra.mxu0 %v5044
          %5475 = vmatprep.subr.bf16.mxu0 0
          %5476 = vmatpush1.bf16.msra.mxu0 %v5045
          %5477 = vmatprep.subr.bf16.mxu0 0
          %5478 = vmatpush1.bf16.msra.mxu0 %v5046
          %5479 = vmatprep.subr.bf16.mxu0 0
          %5480 = vmatpush1.bf16.msra.mxu0 %v5047
          %5481 = vmatprep.subr.bf16.mxu0 0
          %5482 = vmatpush1.bf16.msra.mxu0 %v5048
          %5483 = vmatprep.subr.bf16.mxu0 0
          %5484 = vmatpush1.bf16.msra.mxu0 %v5049
          %5485 = vmatprep.subr.bf16.mxu0 0
          %5486 = vmatpush1.bf16.msra.mxu0 %v5050
          %5487 = vmatprep.subr.bf16.mxu0 0
          %5488 = vmatpush1.bf16.msra.mxu0 %v5051
          %5489 = vmatprep.subr.bf16.mxu0 0
          %5490 = vmatpush1.bf16.msra.mxu0 %v5052
          %5491 = vmatprep.subr.bf16.mxu0 0
          %5492 = vmatpush1.bf16.msra.mxu0 %v5053
          %5493 = vmatprep.subr.bf16.mxu0 0
          %5494 = vmatpush1.bf16.msra.mxu0 %v5054
          %5495 = vmatprep.mubr.bf16.mxu0 %v2281
          %5496 = vmatmul.mubr.bf16.gmra.mrb[0].mxu0 %v2280
          %v5497 = vpop.f32.mrb[0].mxu0
          %v5498 = vadd.f32 %v5458, %v5497
          %v5499 = vpop.f32.mrb[0].mxu0
          %v5500 = vpop.f32.mrb[0].mxu0
          %v5501 = vpop.f32.mrb[0].mxu0
          %5502 = vdwg.mxu0
          %v5503 = vmul.f32 %v4152, %v4152
          %vm5504 = vcmask 1040384
          %v5505 = vsel %vm5504, %v5503, 0.0
          %5506 = vadd.xlane.f32.xlu0 %v5505
          %v5507 = vpop.xlane.xlu0 %5506
          %v5508 = vrsqrt.pop %v5507
          %v5509 = vmul.f32 %v5507, %v5508
          %vm5510 = vcmp.eq.f32.partialorder %v5507, inf
          %v5511 = vsel %vm5510, %v5507, %v5509
          %vm5512 = vcmp.eq.f32.partialorder %v5507, 0.0
          %v5513 = vand.u32 %v5507, 2147483648
          %v5514 = vsel %vm5512, %v5513, %v5511
          %v5515 = vadd.f32 %v5514, 1e-06
          %v5516 = vrcp.pop %v5515
          %v5517 = vmul.f32 %v4152, %v5516
          %v5518 = vmul.f32 %v5498, %v5498
          %v5519 = vsel %vm5504, %v5518, 0.0
          %5520 = vadd.xlane.f32.xlu0 %v5519
          %v5521 = vpop.xlane.xlu0 %5520
          %v5522 = vrsqrt.pop %v5521
          %v5523 = vmul.f32 %v5521, %v5522
          %vm5524 = vcmp.eq.f32.partialorder %v5521, inf
          %v5525 = vsel %vm5524, %v5521, %v5523
          %vm5526 = vcmp.eq.f32.partialorder %v5521, 0.0
          %v5527 = vand.u32 %v5521, 2147483648
          %v5528 = vsel %vm5526, %v5527, %v5525
          %v5529 = vadd.f32 %v5528, 1e-06
          %v5530 = vrcp.pop %v5529
          %v5531 = vmul.f32 %v5498, %v5530
          %v5532 = vmul.f32 %v5517, %v5517
          %v5533 = vsel %vm5504, %v5532, 0.0
          %5534 = vadd.xlane.f32.xlu0 %v5533
          %v5535 = vpop.xlane.xlu0 %5534
          %v5536 = vmul.f32 %v5531, %v5531
          %v5537 = vsel %vm5504, %v5536, 0.0
          %5538 = vadd.xlane.f32.xlu0 %v5537
          %v5539 = vpop.xlane.xlu0 %5538
          %v5540 = vadd.f32 %v5535, %v5539
          %v5541 = vrsqrt.pop %v5540
          %v5542 = vmul.f32 %v5540, %v5541
          %vm5543 = vcmp.eq.f32.partialorder %v5540, inf
          %v5544 = vsel %vm5543, %v5540, %v5542
          %vm5545 = vcmp.eq.f32.partialorder %v5540, 0.0
          %v5546 = vand.u32 %v5540, 2147483648
          %v5547 = vsel %vm5545, %v5546, %v5544
          %v5548 = vadd.f32 %v5547, 1e-06
          %v5549 = vrcp.pop %v5548
          %v5550 = vmul.f32 1.0, %v5549
          %v5551 = vmul.f32 %v5517, %v5550
          %v5552 = vlaneseq
          %vm5553 = vcmp.ge.s32.totalorder %v5552, 0
          %vm5554 = vcmp.lt.s32.totalorder %v5552, 128
          %vm5555 = vmand %vm5553, %vm5554
          %5556 = vst.msk [vmem:[%s288] sm:$0x1] %vm5555, %v5551
          %v5557 = vmul.f32 %v5531, %v5550
          %5558 = vst.msk [vmem:[%s288 + $0x1] sm:$0x1] %vm5555, %v5557
          %5559 = vst [vmem:[%s294] sm:$0x1] %v4154
        $region52: #{tpu_custom_call.1} parent=39 // pred_fallthru
          _
        %s5560 = sand.u32 %s156, 1
        %s5561 = scalar_lea.sflag [#allocation5], %s5560
        %s5562 = sand.u32 %s156, 1
        %s5563 = smul.addr %s5562, 2
        %s5564 = scalar_lea.vmem [#allocation4], %s5563
        %s5565 = sand.u32 %s182, 1
        %s5566 = scalar_lea.sflag [#allocation7], %s5565
        %s5567 = sand.u32 %s182, 1
        %s5568 = scalar_lea.vmem [#allocation6], %s5567
        // Predicated region
        $region53: #{tpu_custom_call.1} parent=39 // pred_check
          %p5569 = pneg %p166
        $region54: #{tpu_custom_call.1} parent=39 // pred_check_branch
          %5571 = sbr.rel (%p5569) target = $region56
        $region55: #{tpu_custom_call.1} parent=39 // pred_region
          %s5573 = ssub.s32 32, 32
          %5574 = vsyncadd %s5561, %s5573
          %s5575 = smul.addr %s28, 2
          %s5576 = smul.addr %s5575, 16
          %s5577 = scalar_lea.hbm %s5, %s5576
          %s5579 = sshll.u32 %s5564, 4
          %s5580 = int_to_ptr.vmem [resolvable:$true] %s5579
          %5582 = dma.vmem_to_hbm [thread:$0]  %s5580, 32, %s5577, %s5561
        $region56: #{tpu_custom_call.1} parent=39 // pred_fallthru
          _
        // Predicated region
        $region57: #{tpu_custom_call.1} parent=39 // pred_check
          %p5583 = pneg %p192
        $region58: #{tpu_custom_call.1} parent=39 // pred_check_branch
          %5585 = sbr.rel (%p5583) target = $region60
        $region59: #{tpu_custom_call.1} parent=39 // pred_region
          %s5587 = ssub.s32 16, 16
          %5588 = vsyncadd %s5566, %s5587
          %s5589 = smul.addr %s28, 16
          %s5590 = scalar_lea.hbm %s6, %s5589
          %s5592 = sshll.u32 %s5568, 4
          %s5593 = int_to_ptr.vmem [resolvable:$true] %s5592
          %5595 = dma.vmem_to_hbm [thread:$0]  %s5593, 16, %s5590, %s5566
        $region60: #{tpu_custom_call.1} parent=39 // pred_fallthru
          _
      $region40: #{tpu_custom_call.1} parent=5 // pred_fallthru
        _
      %p5596 = scmp.le.s32.totalorder 2, %s19
      // Predicated region
      $region61: #{tpu_custom_call.1} parent=5 // pred_check
        %p5597 = pneg %p5596
      $region62: #{tpu_custom_call.1} parent=5 // pred_check_branch
        %5599 = sbr.rel (%p5597) target = $region64
      $region63: #{tpu_custom_call.1} parent=5 // pred_region
        %s5600 = ssub.s32 %s19, 2
        // Predicated region
        $region65: #{tpu_custom_call.1} parent=63 // pred_check
          %p5601 = pneg %p172
        $region66: #{tpu_custom_call.1} parent=63 // pred_check_branch
          %5603 = sbr.rel (%p5601) target = $region68
        $region67: #{tpu_custom_call.1} parent=63 // pred_region
          %s5604 = sand.u32 %s157, 1
          %s5605 = scalar_lea.sflag [#allocation5], %s5604
          %s5606 = sand.u32 %s157, 1
          %s5607 = smul.addr %s5606, 2
          %s5608 = scalar_lea.vmem [#allocation4], %s5607
          %5609 = dma.done %s5605, 32
        $region68: #{tpu_custom_call.1} parent=63 // pred_fallthru
          _
        // Predicated region
        $region69: #{tpu_custom_call.1} parent=63 // pred_check
          %p5610 = pneg %p198
        $region70: #{tpu_custom_call.1} parent=63 // pred_check_branch
          %5612 = sbr.rel (%p5610) target = $region72
        $region71: #{tpu_custom_call.1} parent=63 // pred_region
          %s5613 = sand.u32 %s183, 1
          %s5614 = scalar_lea.sflag [#allocation7], %s5613
          %s5615 = sand.u32 %s183, 1
          %s5616 = scalar_lea.vmem [#allocation6], %s5615
          %5617 = dma.done %s5614, 16
        $region72: #{tpu_custom_call.1} parent=63 // pred_fallthru
          _
      $region64: #{tpu_custom_call.1} parent=5 // pred_fallthru
        _
    $region6: #{tpu_custom_call.1} parent=1 // loop_footer
      %s23 = sadd.s32 1, %s19
    $region7: #{tpu_custom_call.1} parent=1 // loop_footer_branch
      %18 = sbr.rel target = $region3
    $region8: #{tpu_custom_call.1} parent=1 // loop_exit
      _
    %5618 = vsyncpa [#allocation5], 1
    %s5619 = scalar_lea.sflag [#allocation5], 1
    %5620 = vsyncpa %s5619, 1
    %5621 = vsyncpa [#allocation7], 1
    %s5622 = scalar_lea.sflag [#allocation7], 1
    %5623 = vsyncpa %s5622, 1

</llo_original>
